<compile_context>
chip_gen: v7x
topology: tpu7x:2x2x1
jax: 0.10.0
libtpu: 0.0.40
codegen_flags: <defaults>
</compile_context>

<pallas_src>
import jax
import jax.numpy as jnp
from jax import lax
from jax.experimental import pallas as pl
from jax.experimental.pallas import tpu as pltpu

BN_EPS = 1e-5
LANE = 128          # every channel dim is zero-padded to one 128-lane vreg
NEG_INF = -1e30     # pad bias for unused logit lanes (killed by log_softmax)


def _round_up(n, m):
    return ((n + m - 1) // m) * m


# ------------------------------ fused kernel --------------------------------

def _make_m5_kernel(B, S, louts, lpools, a_bases):
    """Builds the fused M5 forward kernel.  All arguments are static ints.

    S[i]      : per-batch row stride of conv layer i's output block
                (S[i+1] = S[i] // 4; S1 is a multiple of 256)
    louts[i]  : valid conv output length of layer i
    lpools[i] : valid pooled length of layer i
    a_bases[i]: row offset of layer i's pooled-activation region inside a_ref
    """
    f32 = jnp.float32

    def kernel(x_ref, w1_ref, w2_ref, w3_ref, w4_ref, g_ref, be_ref,
               wfc_ref, bfc_ref, o_ref, z_ref, a_ref):

        # Zero the pooled-activation scratch once: every pad / seam row the
        # shifted conv reads can touch is then exactly 0 (finite and inert;
        # those rows never reach the BN stats or any valid output).
        a_ref[...] = jnp.zeros_like(a_ref)

        def bn_scale_shift(layer, acc, s_out, lout):
            # Training-mode BatchNorm batch stats over the VALID rows of the
            # batch-merged conv output (pad / seam rows masked out).  The conv
            # bias is dropped: it cancels under BN mean subtraction.
            M = B * s_out
            rows = lax.broadcasted_iota(jnp.int32, (M, 1), 0)
            maskf = jnp.zeros((M, 1), f32)
            for b in range(B):
                inb = (rows >= b * s_out) & (rows < b * s_out + lout)
                maskf = maskf + inb.astype(f32)
            s = jnp.sum(acc * maskf, axis=0, keepdims=True)
            sq = jnp.sum(acc * acc * maskf, axis=0, keepdims=True)
            inv_n = 1.0 / float(B * lout)
            mean = s * inv_n
            var = jnp.maximum(sq * inv_n - mean * mean, 0.0)
            gamma = g_ref[pl.ds(layer, 1), :]
            beta = be_ref[pl.ds(layer, 1), :]
            scale = gamma * lax.rsqrt(var + BN_EPS)
            shift = beta - mean * scale
            return scale, shift

        def pool_bn_relu(s_out, scale, shift, out_base):
            # MaxPool1d(4) on the RAW conv output (commutes with the monotone
            # BN FMA + ReLU; negative-scale lanes take the window min), then a
            # SINGLE FMA + ReLU on the pooled rows only.  s_out % 4 == 0, so
            # one batch-merged stride-4 compaction covers all batches.
            P = (B * s_out) // 4
            mx = z_ref[pl.ds(0, P, stride=4), :]
            mn = mx
            for r in range(1, 4):
                zr = z_ref[pl.ds(r, P, stride=4), :]
                mx = jnp.maximum(mx, zr)
                mn = jnp.minimum(mn, zr)
            pos = (scale >= 0.0).astype(f32)
            pooled = mx * pos + mn * (1.0 - pos)
            a_ref[pl.ds(out_base, P), :] = jnp.maximum(pooled * scale + shift, 0.0)

        # ---- conv1: ONE batch-merged (B*S1, 128) x (128, 128) bf16 MXU dot.
        acc = jnp.dot(x_ref[...], w1_ref[...], preferred_element_type=f32)
        scale, shift = bn_scale_shift(0, acc, S[0], louts[0])
        z_ref[pl.ds(0, B * S[0]), :] = acc
        pool_bn_relu(S[0], scale, shift, a_bases[0])

        # ---- conv2..conv4: lane-concatenate the 3 shifted activation reads
        #      into one (M, 384) LHS -> a single bf16 dot per layer.
        for layer, (w_ref, in_base) in enumerate(
                ((w2_ref, a_bases[0]), (w3_ref, a_bases[1]), (w4_ref, a_bases[2])),
                start=1):
            s_out = S[layer]
            M = B * s_out
            lhs = jnp.concatenate(
                [a_ref[pl.ds(in_base + k, M), :] for k in range(3)],
                axis=1).astype(jnp.bfloat16)
            acc = jnp.dot(lhs, w_ref[...], preferred_element_type=f32)
            scale, shift = bn_scale_shift(layer, acc, s_out, louts[layer])
            z_ref[pl.ds(0, M), :] = acc
            pool_bn_relu(s_out, scale, shift, a_bases[layer])

        # ---- head: global average pool -> Linear -> log_softmax, batched:
        #      one (B,128)x(128,128) dot and one softmax over the (B,128) block.
        a4 = S[3] // 4
        feats = [jnp.mean(a_ref[pl.ds(a_bases[3] + b * a4, lpools[3]), :],
                          axis=0, keepdims=True) for b in range(B)]
        feat = jnp.concatenate(feats, axis=0)                       # (B, LANE)
        y = jnp.dot(feat, wfc_ref[...], preferred_element_type=f32) + bfc_ref[...]
        m = jnp.max(y, axis=-1, keepdims=True)
        zc = y - m
        lse = jnp.log(jnp.sum(jnp.exp(zc), axis=-1, keepdims=True))
        o_ref[...] = zc - lse

    return kernel


# ------------------------------ thin wrapper ---------------------------------

def _full_spec(shape):
    return pl.BlockSpec(shape, lambda i: (0,) * len(shape))


def _pad2(a, rows, cols):
    return jnp.pad(a, ((0, rows - a.shape[0]), (0, cols - a.shape[1])))


def _k3_weight(w):
    """PyTorch Conv1d weight (Cout, Cin, 3) -> stacked (3*LANE, LANE) bf16
    matmul weight; tap-k block occupies rows [k*LANE, (k+1)*LANE)."""
    assert w.shape[2] == 3
    blocks = [_pad2(jnp.transpose(w[:, :, k]), LANE, LANE) for k in range(3)]
    return jnp.concatenate(blocks, axis=0).astype(jnp.bfloat16)


def m5_forward(params, x_ncl, stride=16):
    """Forward pass matching the PyTorch M5 module (training-mode BN).

    x_ncl: (B, n_input, L).  Returns (B, 1, n_output) log-probabilities.
    """
    x_ncl = jnp.asarray(x_ncl, jnp.float32)
    B, n_in, L = x_ncl.shape
    if n_in != 1:
        raise NotImplementedError("fused kernel assumes n_input == 1")
    w1 = params['conv1_w']
    k1 = w1.shape[2]
    if k1 % stride != 0 or L % stride != 0:
        raise NotImplementedError("conv1 frame path needs stride | K1 and L")
    frame = stride
    g1 = k1 // stride
    xrows = L // stride
    assert g1 * frame <= LANE

    # static layer geometry ('valid' convs, MaxPool1d(4) floor division)
    l1 = (L - k1) // stride + 1; p1 = l1 // 4
    l2 = p1 - 2;                 p2 = l2 // 4
    l3 = p2 - 2;                 p3 = l3 // 4
    l4 = p3 - 2;                 p4 = l4 // 4
    assert min(l1, l2, l3, l4, p1, p2, p3, p4) >= 1, "input too short for M5"

    # Per-batch row strides.  S1 is a multiple of 256 so every S_i is a
    # multiple of 4 (single batch-merged stride-4 pooling compaction) and
    # every store block is a multiple of 8 sublanes.
    S1 = _round_up(l1, 256)
    S = (S1, S1 // 4, S1 // 16, S1 // 64)
    a4 = S[3] // 4
    louts = (l1, l2, l3, l4)
    lpools = (p1, p2, p3, p4)

    # Disjoint pooled-activation regions (+8 zeroed pad rows so the k=1,2
    # shifted conv reads stay in-bounds).
    region_rows = [_round_up(B * S[1] + 8, 8), _round_up(B * S[2] + 8, 8),
                   _round_up(B * S[3] + 8, 8), _round_up(B * a4 + 8, 8)]
    a_bases, off = [], 0
    for r in region_rows:
        a_bases.append(off)
        off += r
    a_rows = off
    z_rows = B * S1

    n_out = params['fc1_w'].shape[0]

    # conv1 im2col: frame shifts + lane concat (pure slices, no gather), then
    # K padded 80 -> 128 so the kernel runs one aligned (M,128)x(128,128) dot.
    frames = x_ncl[:, 0, :].reshape(B, xrows, frame)
    frames = jnp.pad(frames, ((0, 0), (0, S1 + g1 - xrows), (0, 0)))
    xcol = jnp.concatenate([frames[:, k:k + S1, :] for k in range(g1)], axis=-1)
    xcol = jnp.pad(xcol, ((0, 0), (0, 0), (0, LANE - g1 * frame)))
    xcol = xcol.reshape(B * S1, LANE).astype(jnp.bfloat16)

    # Weights in matmul layout, channel dims zero-padded to 128 lanes, bf16 for
    # the MXU.  Conv biases are dropped inside the kernel: training-mode BN
    # mean subtraction cancels them exactly (kept in init_params for parity).
    w1_mat = _pad2(jnp.transpose(w1[:, 0, :]), LANE, LANE).astype(jnp.bfloat16)
    w2_mat = _k3_weight(params['conv2_w'])
    w3_mat = _k3_weight(params['conv3_w'])
    w4_mat = _k3_weight(params['conv4_w'])
    bn_g = jnp.stack([jnp.pad(params[f'bn{i}_g'],
                              (0, LANE - params[f'bn{i}_g'].shape[0]))
                      for i in (1, 2, 3, 4)])
    bn_b = jnp.stack([jnp.pad(params[f'bn{i}_b'],
                              (0, LANE - params[f'bn{i}_b'].shape[0]))
                      for i in (1, 2, 3, 4)])
    wfc = params['fc1_w']                                       # (n_out, C4)
    wfc_mat = _pad2(jnp.transpose(wfc), LANE, LANE)             # f32 head
    bfc = jnp.full((1, LANE), NEG_INF, jnp.float32)
    bfc = bfc.at[0, :n_out].set(params['fc1_b'])

    kernel = _make_m5_kernel(B, S, louts, lpools, tuple(a_bases))

    flops = 2 * B * (S[0] * LANE * LANE
                     + (S[1] + S[2] + S[3]) * 3 * LANE * LANE
                     + LANE * LANE)
    bytes_accessed = (B * S1 * LANE * 2 + LANE * LANE * 2
                      + 3 * 3 * LANE * LANE * 2 + 8 * LANE * 4
                      + LANE * LANE * 4 + LANE * 4 + B * LANE * 4)
    cost = pl.CostEstimate(flops=flops, transcendentals=(B + 8) * LANE,
                           bytes_accessed=bytes_accessed)

    out = pl.pallas_call(
        kernel,
        grid=(1,),
        in_specs=[_full_spec(xcol.shape), _full_spec(w1_mat.shape),
                  _full_spec(w2_mat.shape), _full_spec(w3_mat.shape),
                  _full_spec(w4_mat.shape), _full_spec(bn_g.shape),
                  _full_spec(bn_b.shape), _full_spec(wfc_mat.shape),
                  _full_spec(bfc.shape)],
        out_specs=_full_spec((B, LANE)),
        out_shape=jax.ShapeDtypeStruct((B, LANE), jnp.float32),
        scratch_shapes=[pltpu.VMEM((z_rows, LANE), jnp.float32),   # raw conv out
                        pltpu.VMEM((a_rows, LANE), jnp.float32)],  # pooled acts
        compiler_params=pltpu.CompilerParams(
            dimension_semantics=("arbitrary",)),
        cost_estimate=cost,
    )(xcol, w1_mat, w2_mat, w3_mat, w4_mat, bn_g, bn_b, wfc_mat, bfc)

    # drop the lane padding, match the PyTorch output shape (B, 1, n_output)
    return out[:, :n_out].reshape(B, 1, n_out)


# --------------------------- parameter construction --------------------------

def init_params(key, n_input=1, n_output=35, n_channel=32):
    def conv_init(k, cout, cin, ksz):
        bound = 1.0 / float(jnp.sqrt(cin * ksz))
        kw, kb = jax.random.split(k)
        w = jax.random.uniform(kw, (cout, cin, ksz), jnp.float32, -bound, bound)
        b = jax.random.uniform(kb, (cout,), jnp.float32, -bound, bound)
        return w, b

    keys = jax.random.split(key, 5)
    p = {}
    # Conv biases are kept for parameter parity with nn.Conv1d, but they are
    # mathematically cancelled by training-mode BatchNorm mean subtraction,
    # so the fused kernel never reads them.
    p['conv1_w'], p['conv1_b'] = conv_init(keys[0], n_channel, n_input, 80)
    p['conv2_w'], p['conv2_b'] = conv_init(keys[1], n_channel, n_channel, 3)
    p['conv3_w'], p['conv3_b'] = conv_init(keys[2], 2 * n_channel, n_channel, 3)
    p['conv4_w'], p['conv4_b'] = conv_init(keys[3], 2 * n_channel, 2 * n_channel, 3)
    for i, c in zip((1, 2, 3, 4),
                    (n_channel, n_channel, 2 * n_channel, 2 * n_channel)):
        p[f'bn{i}_g'] = jnp.ones((c,), jnp.float32)   # BatchNorm1d defaults
        p[f'bn{i}_b'] = jnp.zeros((c,), jnp.float32)
    bound = 1.0 / float(jnp.sqrt(2 * n_channel))
    kw, kb = jax.random.split(keys[4])
    p['fc1_w'] = jax.random.uniform(kw, (n_output, 2 * n_channel),
                                    jnp.float32, -bound, bound)
    p['fc1_b'] = jax.random.uniform(kb, (n_output,), jnp.float32, -bound, bound)
    return p


if __name__ == "__main__":
    key = jax.random.PRNGKey(0)
    k_param, k_data = jax.random.split(key)
    params = init_params(k_param)
    # Smallest natural M5 input: 1-channel waveform of length 8000
    # (the conv/pool stack needs L >= 6848 to produce a non-empty output).
    x = jax.random.normal(k_data, (2, 1, 8000), dtype=jnp.float32)

    fwd = jax.jit(m5_forward)
    out = jax.block_until_ready(fwd(params, x))

    assert out.shape == (2, 1, 35), out.shape
    assert bool(jnp.all(jnp.isfinite(out)))
    # log_softmax rows must exponentiate-sum to 1.
    probs = jnp.exp(out).sum(axis=-1)
    assert bool(jnp.all(jnp.abs(probs - 1.0) < 1e-3))
    print("KERNEL_OK")
</pallas_src>

<mosaic_0001>
module attributes {stable_mosaic.version = 11 : i64} {
  func.func @kernel(%arg0: i32, %arg1: memref<1024x128xbf16, #tpu.memory_space<vmem>>, %arg2: memref<128x128xbf16, #tpu.memory_space<vmem>>, %arg3: memref<384x128xbf16, #tpu.memory_space<vmem>>, %arg4: memref<384x128xbf16, #tpu.memory_space<vmem>>, %arg5: memref<384x128xbf16, #tpu.memory_space<vmem>>, %arg6: memref<4x128xf32, #tpu.memory_space<vmem>>, %arg7: memref<4x128xf32, #tpu.memory_space<vmem>>, %arg8: memref<128x128xf32, #tpu.memory_space<vmem>>, %arg9: memref<1x128xf32, #tpu.memory_space<vmem>>, %arg10: memref<2x128xf32, #tpu.memory_space<vmem>>, %arg11: memref<1024x128xf32, #tpu.memory_space<vmem>>, %arg12: memref<376x128xf32, #tpu.memory_space<vmem>>) attributes {dimension_semantics = [#tpu.dimension_semantics<arbitrary>], iteration_bounds = array<i64: 1>, scalar_prefetch = 0 : i64, scratch_operands = 2 : i64, tpu.core_type = #tpu.core_type<tc>, window_params = [{pipeline_mode = #tpu.pipeline_mode<synchronous>, transform_indices = @transform_0, window_bounds = array<i64: 1024, 128>}, {pipeline_mode = #tpu.pipeline_mode<synchronous>, transform_indices = @transform_1, window_bounds = array<i64: 128, 128>}, {pipeline_mode = #tpu.pipeline_mode<synchronous>, transform_indices = @transform_2, window_bounds = array<i64: 384, 128>}, {pipeline_mode = #tpu.pipeline_mode<synchronous>, transform_indices = @transform_3, window_bounds = array<i64: 384, 128>}, {pipeline_mode = #tpu.pipeline_mode<synchronous>, transform_indices = @transform_4, window_bounds = array<i64: 384, 128>}, {pipeline_mode = #tpu.pipeline_mode<synchronous>, transform_indices = @transform_5, window_bounds = array<i64: 4, 128>}, {pipeline_mode = #tpu.pipeline_mode<synchronous>, transform_indices = @transform_6, window_bounds = array<i64: 4, 128>}, {pipeline_mode = #tpu.pipeline_mode<synchronous>, transform_indices = @transform_7, window_bounds = array<i64: 128, 128>}, {pipeline_mode = #tpu.pipeline_mode<synchronous>, transform_indices = @transform_8, window_bounds = array<i64: 1, 128>}, {pipeline_mode = #tpu.pipeline_mode<synchronous>, transform_indices = @transform_9, window_bounds = array<i64: 2, 128>}]} {
    %cst = arith.constant 0.000000e+00 : f32
    %0 = vector.broadcast %cst : f32 to vector<376x128xf32>
    %c0 = arith.constant 0 : index
    %c0_0 = arith.constant 0 : index
    %1 = vector.load %arg12[%c0, %c0_0] : memref<376x128xf32, #tpu.memory_space<vmem>>, vector<376x128xf32>
    tpu.vector_store %arg12[%c0, %c0_0], %0 {strides = array<i32>} : memref<376x128xf32, #tpu.memory_space<vmem>>, vector<376x128xf32>,
    %c0_1 = arith.constant 0 : index
    %c0_2 = arith.constant 0 : index
    %2 = vector.load %arg1[%c0_1, %c0_2] : memref<1024x128xbf16, #tpu.memory_space<vmem>>, vector<1024x128xbf16>
    %c0_3 = arith.constant 0 : index
    %c0_4 = arith.constant 0 : index
    %3 = vector.load %arg2[%c0_3, %c0_4] : memref<128x128xbf16, #tpu.memory_space<vmem>>, vector<128x128xbf16>
    %cst_5 = arith.constant dense<0.000000e+00> : vector<1024x128xf32>
    %4 = tpu.matmul %2, %3, %cst_5 {dimension_numbers = #tpu.dot_dimension_numbers<[1], [0], [0], [1], [0, 0, 1, 1], [], []>} : vector<1024x128xbf16>, vector<128x128xbf16>, vector<1024x128xf32> -> vector<1024x128xf32>
    %5 = tpu.iota {dimensions = array<i32: 0>} : vector<1024x1xi32>
    %cst_6 = arith.constant 0.000000e+00 : f32
    %6 = vector.broadcast %cst_6 : f32 to vector<1024x1xf32>
    %c0_i32 = arith.constant 0 : i32
    %7 = vector.broadcast %c0_i32 : i32 to vector<1024x1xi32>
    %8 = arith.cmpi sge, %5, %7 : vector<1024x1xi32>
    %c496_i32 = arith.constant 496 : i32
    %9 = vector.broadcast %c496_i32 : i32 to vector<1024x1xi32>
    %10 = arith.cmpi slt, %5, %9 : vector<1024x1xi32>
    %11 = arith.andi %8, %10 : vector<1024x1xi1>
    %12 = arith.extui %11 : vector<1024x1xi1> to vector<1024x1xi32>
    %13 = arith.sitofp %12 : vector<1024x1xi32> to vector<1024x1xf32>
    %14 = arith.addf %6, %13 : vector<1024x1xf32>
    %c512_i32 = arith.constant 512 : i32
    %15 = vector.broadcast %c512_i32 : i32 to vector<1024x1xi32>
    %16 = arith.cmpi sge, %5, %15 : vector<1024x1xi32>
    %c1008_i32 = arith.constant 1008 : i32
    %17 = vector.broadcast %c1008_i32 : i32 to vector<1024x1xi32>
    %18 = arith.cmpi slt, %5, %17 : vector<1024x1xi32>
    %19 = arith.andi %16, %18 : vector<1024x1xi1>
    %20 = arith.extui %19 : vector<1024x1xi1> to vector<1024x1xi32>
    %21 = arith.sitofp %20 : vector<1024x1xi32> to vector<1024x1xf32>
    %22 = arith.addf %14, %21 : vector<1024x1xf32>
    %23 = vector.broadcast %22 : vector<1024x1xf32> to vector<1024x128xf32>
    %24 = arith.mulf %4, %23 : vector<1024x128xf32>
    %cst_7 = arith.constant dense<0.000000e+00> : vector<128xf32>
    %25 = vector.multi_reduction <add>, %24, %cst_7 [0] : vector<1024x128xf32> to vector<128xf32>
    %26 = vector.shape_cast %25 : vector<128xf32> to vector<1x128xf32>
    %27 = arith.mulf %4, %4 : vector<1024x128xf32>
    %28 = vector.broadcast %22 : vector<1024x1xf32> to vector<1024x128xf32>
    %29 = arith.mulf %27, %28 : vector<1024x128xf32>
    %cst_8 = arith.constant dense<0.000000e+00> : vector<128xf32>
    %30 = vector.multi_reduction <add>, %29, %cst_8 [0] : vector<1024x128xf32> to vector<128xf32>
    %31 = vector.shape_cast %30 : vector<128xf32> to vector<1x128xf32>
    %cst_9 = arith.constant 0.00100806449 : f32
    %32 = vector.broadcast %cst_9 : f32 to vector<1x128xf32>
    %33 = arith.mulf %26, %32 : vector<1x128xf32>
    %cst_10 = arith.constant 0.00100806449 : f32
    %34 = vector.broadcast %cst_10 : f32 to vector<1x128xf32>
    %35 = arith.mulf %31, %34 : vector<1x128xf32>
    %36 = arith.mulf %33, %33 : vector<1x128xf32>
    %37 = arith.subf %35, %36 : vector<1x128xf32>
    %cst_11 = arith.constant 0.000000e+00 : f32
    %38 = vector.broadcast %cst_11 : f32 to vector<1x128xf32>
    %39 = arith.maximumf %37, %38 : vector<1x128xf32>
    %c0_12 = arith.constant 0 : index
    %c0_13 = arith.constant 0 : index
    %40 = vector.load %arg6[%c0_12, %c0_13] : memref<4x128xf32, #tpu.memory_space<vmem>>, vector<1x128xf32>
    %c0_14 = arith.constant 0 : index
    %c0_15 = arith.constant 0 : index
    %41 = vector.load %arg7[%c0_14, %c0_15] : memref<4x128xf32, #tpu.memory_space<vmem>>, vector<1x128xf32>
    %cst_16 = arith.constant 9.99999974E-6 : f32
    %42 = vector.broadcast %cst_16 : f32 to vector<1x128xf32>
    %43 = arith.addf %39, %42 : vector<1x128xf32>
    %44 = math.rsqrt %43 : vector<1x128xf32>
    %45 = arith.mulf %40, %44 : vector<1x128xf32>
    %46 = arith.mulf %33, %45 : vector<1x128xf32>
    %47 = arith.subf %41, %46 : vector<1x128xf32>
    %c0_17 = arith.constant 0 : index
    %c0_18 = arith.constant 0 : index
    %48 = vector.load %arg11[%c0_17, %c0_18] : memref<1024x128xf32, #tpu.memory_space<vmem>>, vector<1024x128xf32>
    tpu.vector_store %arg11[%c0_17, %c0_18], %4 {strides = array<i32>} : memref<1024x128xf32, #tpu.memory_space<vmem>>, vector<1024x128xf32>,
    %c0_19 = arith.constant 0 : index
    %c0_20 = arith.constant 0 : index
    %49 = tpu.strided_load %arg11[%c0_19, %c0_20] {strides = array<i32: 4, 1>} : memref<1024x128xf32, #tpu.memory_space<vmem>>, vector<256x128xf32>
    %c1 = arith.constant 1 : index
    %c0_21 = arith.constant 0 : index
    %50 = tpu.strided_load %arg11[%c1, %c0_21] {strides = array<i32: 4, 1>} : memref<1024x128xf32, #tpu.memory_space<vmem>>, vector<256x128xf32>
    %51 = arith.maximumf %49, %50 : vector<256x128xf32>
    %52 = arith.minimumf %49, %50 : vector<256x128xf32>
    %c2 = arith.constant 2 : index
    %c0_22 = arith.constant 0 : index
    %53 = tpu.strided_load %arg11[%c2, %c0_22] {strides = array<i32: 4, 1>} : memref<1024x128xf32, #tpu.memory_space<vmem>>, vector<256x128xf32>
    %54 = arith.maximumf %51, %53 : vector<256x128xf32>
    %55 = arith.minimumf %52, %53 : vector<256x128xf32>
    %c3 = arith.constant 3 : index
    %c0_23 = arith.constant 0 : index
    %56 = tpu.strided_load %arg11[%c3, %c0_23] {strides = array<i32: 4, 1>} : memref<1024x128xf32, #tpu.memory_space<vmem>>, vector<256x128xf32>
    %57 = arith.maximumf %54, %56 : vector<256x128xf32>
    %58 = arith.minimumf %55, %56 : vector<256x128xf32>
    %cst_24 = arith.constant 0.000000e+00 : f32
    %59 = vector.broadcast %cst_24 : f32 to vector<1x128xf32>
    %60 = arith.cmpf oge, %45, %59 : vector<1x128xf32>
    %61 = arith.extui %60 : vector<1x128xi1> to vector<1x128xi32>
    %62 = arith.sitofp %61 : vector<1x128xi32> to vector<1x128xf32>
    %63 = vector.broadcast %62 : vector<1x128xf32> to vector<256x128xf32>
    %64 = arith.mulf %57, %63 : vector<256x128xf32>
    %cst_25 = arith.constant 1.000000e+00 : f32
    %65 = vector.broadcast %cst_25 : f32 to vector<1x128xf32>
    %66 = arith.subf %65, %62 : vector<1x128xf32>
    %67 = vector.broadcast %66 : vector<1x128xf32> to vector<256x128xf32>
    %68 = arith.mulf %58, %67 : vector<256x128xf32>
    %69 = arith.addf %64, %68 : vector<256x128xf32>
    %70 = vector.broadcast %45 : vector<1x128xf32> to vector<256x128xf32>
    %71 = arith.mulf %69, %70 : vector<256x128xf32>
    %72 = vector.broadcast %47 : vector<1x128xf32> to vector<256x128xf32>
    %73 = arith.addf %71, %72 : vector<256x128xf32>
    %cst_26 = arith.constant 0.000000e+00 : f32
    %74 = vector.broadcast %cst_26 : f32 to vector<256x128xf32>
    %75 = arith.maximumf %73, %74 : vector<256x128xf32>
    %c0_27 = arith.constant 0 : index
    %c0_28 = arith.constant 0 : index
    %76 = vector.load %arg12[%c0_27, %c0_28] : memref<376x128xf32, #tpu.memory_space<vmem>>, vector<256x128xf32>
    tpu.vector_store %arg12[%c0_27, %c0_28], %75 {strides = array<i32>} : memref<376x128xf32, #tpu.memory_space<vmem>>, vector<256x128xf32>,
    %c0_29 = arith.constant 0 : index
    %c0_30 = arith.constant 0 : index
    %77 = vector.load %arg12[%c0_29, %c0_30] : memref<376x128xf32, #tpu.memory_space<vmem>>, vector<256x128xf32>
    %c1_31 = arith.constant 1 : index
    %c0_32 = arith.constant 0 : index
    %78 = vector.load %arg12[%c1_31, %c0_32] : memref<376x128xf32, #tpu.memory_space<vmem>>, vector<256x128xf32>
    %c2_33 = arith.constant 2 : index
    %c0_34 = arith.constant 0 : index
    %79 = vector.load %arg12[%c2_33, %c0_34] : memref<376x128xf32, #tpu.memory_space<vmem>>, vector<256x128xf32>
    %80 = tpu.concatenate %77, %78, %79 in 1 : vector<256x128xf32>, vector<256x128xf32>, vector<256x128xf32> -> vector<256x384xf32>
    %81 = arith.truncf %80 : vector<256x384xf32> to vector<256x384xbf16>
    %c0_35 = arith.constant 0 : index
    %c0_36 = arith.constant 0 : index
    %82 = vector.load %arg3[%c0_35, %c0_36] : memref<384x128xbf16, #tpu.memory_space<vmem>>, vector<384x128xbf16>
    %cst_37 = arith.constant dense<0.000000e+00> : vector<256x128xf32>
    %83 = tpu.matmul %81, %82, %cst_37 {dimension_numbers = #tpu.dot_dimension_numbers<[1], [0], [0], [1], [0, 0, 1, 1], [], []>} : vector<256x384xbf16>, vector<384x128xbf16>, vector<256x128xf32> -> vector<256x128xf32>
    %84 = tpu.iota {dimensions = array<i32: 0>} : vector<256x1xi32>
    %cst_38 = arith.constant 0.000000e+00 : f32
    %85 = vector.broadcast %cst_38 : f32 to vector<256x1xf32>
    %c0_i32_39 = arith.constant 0 : i32
    %86 = vector.broadcast %c0_i32_39 : i32 to vector<256x1xi32>
    %87 = arith.cmpi sge, %84, %86 : vector<256x1xi32>
    %c122_i32 = arith.constant 122 : i32
    %88 = vector.broadcast %c122_i32 : i32 to vector<256x1xi32>
    %89 = arith.cmpi slt, %84, %88 : vector<256x1xi32>
    %90 = arith.andi %87, %89 : vector<256x1xi1>
    %91 = arith.extui %90 : vector<256x1xi1> to vector<256x1xi32>
    %92 = arith.sitofp %91 : vector<256x1xi32> to vector<256x1xf32>
    %93 = arith.addf %85, %92 : vector<256x1xf32>
    %c128_i32 = arith.constant 128 : i32
    %94 = vector.broadcast %c128_i32 : i32 to vector<256x1xi32>
    %95 = arith.cmpi sge, %84, %94 : vector<256x1xi32>
    %c250_i32 = arith.constant 250 : i32
    %96 = vector.broadcast %c250_i32 : i32 to vector<256x1xi32>
    %97 = arith.cmpi slt, %84, %96 : vector<256x1xi32>
    %98 = arith.andi %95, %97 : vector<256x1xi1>
    %99 = arith.extui %98 : vector<256x1xi1> to vector<256x1xi32>
    %100 = arith.sitofp %99 : vector<256x1xi32> to vector<256x1xf32>
    %101 = arith.addf %93, %100 : vector<256x1xf32>
    %102 = vector.broadcast %101 : vector<256x1xf32> to vector<256x128xf32>
    %103 = arith.mulf %83, %102 : vector<256x128xf32>
    %cst_40 = arith.constant dense<0.000000e+00> : vector<128xf32>
    %104 = vector.multi_reduction <add>, %103, %cst_40 [0] : vector<256x128xf32> to vector<128xf32>
    %105 = vector.shape_cast %104 : vector<128xf32> to vector<1x128xf32>
    %106 = arith.mulf %83, %83 : vector<256x128xf32>
    %107 = vector.broadcast %101 : vector<256x1xf32> to vector<256x128xf32>
    %108 = arith.mulf %106, %107 : vector<256x128xf32>
    %cst_41 = arith.constant dense<0.000000e+00> : vector<128xf32>
    %109 = vector.multi_reduction <add>, %108, %cst_41 [0] : vector<256x128xf32> to vector<128xf32>
    %110 = vector.shape_cast %109 : vector<128xf32> to vector<1x128xf32>
    %cst_42 = arith.constant 0.00409836043 : f32
    %111 = vector.broadcast %cst_42 : f32 to vector<1x128xf32>
    %112 = arith.mulf %105, %111 : vector<1x128xf32>
    %cst_43 = arith.constant 0.00409836043 : f32
    %113 = vector.broadcast %cst_43 : f32 to vector<1x128xf32>
    %114 = arith.mulf %110, %113 : vector<1x128xf32>
    %115 = arith.mulf %112, %112 : vector<1x128xf32>
    %116 = arith.subf %114, %115 : vector<1x128xf32>
    %cst_44 = arith.constant 0.000000e+00 : f32
    %117 = vector.broadcast %cst_44 : f32 to vector<1x128xf32>
    %118 = arith.maximumf %116, %117 : vector<1x128xf32>
    %c1_45 = arith.constant 1 : index
    %c0_46 = arith.constant 0 : index
    %119 = vector.load %arg6[%c1_45, %c0_46] : memref<4x128xf32, #tpu.memory_space<vmem>>, vector<1x128xf32>
    %c1_47 = arith.constant 1 : index
    %c0_48 = arith.constant 0 : index
    %120 = vector.load %arg7[%c1_47, %c0_48] : memref<4x128xf32, #tpu.memory_space<vmem>>, vector<1x128xf32>
    %cst_49 = arith.constant 9.99999974E-6 : f32
    %121 = vector.broadcast %cst_49 : f32 to vector<1x128xf32>
    %122 = arith.addf %118, %121 : vector<1x128xf32>
    %123 = math.rsqrt %122 : vector<1x128xf32>
    %124 = arith.mulf %119, %123 : vector<1x128xf32>
    %125 = arith.mulf %112, %124 : vector<1x128xf32>
    %126 = arith.subf %120, %125 : vector<1x128xf32>
    %c0_50 = arith.constant 0 : index
    %c0_51 = arith.constant 0 : index
    %127 = vector.load %arg11[%c0_50, %c0_51] : memref<1024x128xf32, #tpu.memory_space<vmem>>, vector<256x128xf32>
    tpu.vector_store %arg11[%c0_50, %c0_51], %83 {strides = array<i32>} : memref<1024x128xf32, #tpu.memory_space<vmem>>, vector<256x128xf32>,
    %c0_52 = arith.constant 0 : index
    %c0_53 = arith.constant 0 : index
    %128 = tpu.strided_load %arg11[%c0_52, %c0_53] {strides = array<i32: 4, 1>} : memref<1024x128xf32, #tpu.memory_space<vmem>>, vector<64x128xf32>
    %c1_54 = arith.constant 1 : index
    %c0_55 = arith.constant 0 : index
    %129 = tpu.strided_load %arg11[%c1_54, %c0_55] {strides = array<i32: 4, 1>} : memref<1024x128xf32, #tpu.memory_space<vmem>>, vector<64x128xf32>
    %130 = arith.maximumf %128, %129 : vector<64x128xf32>
    %131 = arith.minimumf %128, %129 : vector<64x128xf32>
    %c2_56 = arith.constant 2 : index
    %c0_57 = arith.constant 0 : index
    %132 = tpu.strided_load %arg11[%c2_56, %c0_57] {strides = array<i32: 4, 1>} : memref<1024x128xf32, #tpu.memory_space<vmem>>, vector<64x128xf32>
    %133 = arith.maximumf %130, %132 : vector<64x128xf32>
    %134 = arith.minimumf %131, %132 : vector<64x128xf32>
    %c3_58 = arith.constant 3 : index
    %c0_59 = arith.constant 0 : index
    %135 = tpu.strided_load %arg11[%c3_58, %c0_59] {strides = array<i32: 4, 1>} : memref<1024x128xf32, #tpu.memory_space<vmem>>, vector<64x128xf32>
    %136 = arith.maximumf %133, %135 : vector<64x128xf32>
    %137 = arith.minimumf %134, %135 : vector<64x128xf32>
    %cst_60 = arith.constant 0.000000e+00 : f32
    %138 = vector.broadcast %cst_60 : f32 to vector<1x128xf32>
    %139 = arith.cmpf oge, %124, %138 : vector<1x128xf32>
    %140 = arith.extui %139 : vector<1x128xi1> to vector<1x128xi32>
    %141 = arith.sitofp %140 : vector<1x128xi32> to vector<1x128xf32>
    %142 = vector.broadcast %141 : vector<1x128xf32> to vector<64x128xf32>
    %143 = arith.mulf %136, %142 : vector<64x128xf32>
    %cst_61 = arith.constant 1.000000e+00 : f32
    %144 = vector.broadcast %cst_61 : f32 to vector<1x128xf32>
    %145 = arith.subf %144, %141 : vector<1x128xf32>
    %146 = vector.broadcast %145 : vector<1x128xf32> to vector<64x128xf32>
    %147 = arith.mulf %137, %146 : vector<64x128xf32>
    %148 = arith.addf %143, %147 : vector<64x128xf32>
    %149 = vector.broadcast %124 : vector<1x128xf32> to vector<64x128xf32>
    %150 = arith.mulf %148, %149 : vector<64x128xf32>
    %151 = vector.broadcast %126 : vector<1x128xf32> to vector<64x128xf32>
    %152 = arith.addf %150, %151 : vector<64x128xf32>
    %cst_62 = arith.constant 0.000000e+00 : f32
    %153 = vector.broadcast %cst_62 : f32 to vector<64x128xf32>
    %154 = arith.maximumf %152, %153 : vector<64x128xf32>
    %c264 = arith.constant 264 : index
    %c0_63 = arith.constant 0 : index
    %155 = vector.load %arg12[%c264, %c0_63] : memref<376x128xf32, #tpu.memory_space<vmem>>, vector<64x128xf32>
    tpu.vector_store %arg12[%c264, %c0_63], %154 {strides = array<i32>} : memref<376x128xf32, #tpu.memory_space<vmem>>, vector<64x128xf32>,
    %c264_64 = arith.constant 264 : index
    %c0_65 = arith.constant 0 : index
    %156 = vector.load %arg12[%c264_64, %c0_65] : memref<376x128xf32, #tpu.memory_space<vmem>>, vector<64x128xf32>
    %c265 = arith.constant 265 : index
    %c0_66 = arith.constant 0 : index
    %157 = vector.load %arg12[%c265, %c0_66] : memref<376x128xf32, #tpu.memory_space<vmem>>, vector<64x128xf32>
    %c266 = arith.constant 266 : index
    %c0_67 = arith.constant 0 : index
    %158 = vector.load %arg12[%c266, %c0_67] : memref<376x128xf32, #tpu.memory_space<vmem>>, vector<64x128xf32>
    %159 = tpu.concatenate %156, %157, %158 in 1 : vector<64x128xf32>, vector<64x128xf32>, vector<64x128xf32> -> vector<64x384xf32>
    %160 = arith.truncf %159 : vector<64x384xf32> to vector<64x384xbf16>
    %c0_68 = arith.constant 0 : index
    %c0_69 = arith.constant 0 : index
    %161 = vector.load %arg4[%c0_68, %c0_69] : memref<384x128xbf16, #tpu.memory_space<vmem>>, vector<384x128xbf16>
    %cst_70 = arith.constant dense<0.000000e+00> : vector<64x128xf32>
    %162 = tpu.matmul %160, %161, %cst_70 {dimension_numbers = #tpu.dot_dimension_numbers<[1], [0], [0], [1], [0, 0, 1, 1], [], []>} : vector<64x384xbf16>, vector<384x128xbf16>, vector<64x128xf32> -> vector<64x128xf32>
    %163 = tpu.iota {dimensions = array<i32: 0>} : vector<64x1xi32>
    %cst_71 = arith.constant 0.000000e+00 : f32
    %164 = vector.broadcast %cst_71 : f32 to vector<64x1xf32>
    %c0_i32_72 = arith.constant 0 : i32
    %165 = vector.broadcast %c0_i32_72 : i32 to vector<64x1xi32>
    %166 = arith.cmpi sge, %163, %165 : vector<64x1xi32>
    %c28_i32 = arith.constant 28 : i32
    %167 = vector.broadcast %c28_i32 : i32 to vector<64x1xi32>
    %168 = arith.cmpi slt, %163, %167 : vector<64x1xi32>
    %169 = arith.andi %166, %168 : vector<64x1xi1>
    %170 = arith.extui %169 : vector<64x1xi1> to vector<64x1xi32>
    %171 = arith.sitofp %170 : vector<64x1xi32> to vector<64x1xf32>
    %172 = arith.addf %164, %171 : vector<64x1xf32>
    %c32_i32 = arith.constant 32 : i32
    %173 = vector.broadcast %c32_i32 : i32 to vector<64x1xi32>
    %174 = arith.cmpi sge, %163, %173 : vector<64x1xi32>
    %c60_i32 = arith.constant 60 : i32
    %175 = vector.broadcast %c60_i32 : i32 to vector<64x1xi32>
    %176 = arith.cmpi slt, %163, %175 : vector<64x1xi32>
    %177 = arith.andi %174, %176 : vector<64x1xi1>
    %178 = arith.extui %177 : vector<64x1xi1> to vector<64x1xi32>
    %179 = arith.sitofp %178 : vector<64x1xi32> to vector<64x1xf32>
    %180 = arith.addf %172, %179 : vector<64x1xf32>
    %181 = vector.broadcast %180 : vector<64x1xf32> to vector<64x128xf32>
    %182 = arith.mulf %162, %181 : vector<64x128xf32>
    %cst_73 = arith.constant dense<0.000000e+00> : vector<128xf32>
    %183 = vector.multi_reduction <add>, %182, %cst_73 [0] : vector<64x128xf32> to vector<128xf32>
    %184 = vector.shape_cast %183 : vector<128xf32> to vector<1x128xf32>
    %185 = arith.mulf %162, %162 : vector<64x128xf32>
    %186 = vector.broadcast %180 : vector<64x1xf32> to vector<64x128xf32>
    %187 = arith.mulf %185, %186 : vector<64x128xf32>
    %cst_74 = arith.constant dense<0.000000e+00> : vector<128xf32>
    %188 = vector.multi_reduction <add>, %187, %cst_74 [0] : vector<64x128xf32> to vector<128xf32>
    %189 = vector.shape_cast %188 : vector<128xf32> to vector<1x128xf32>
    %cst_75 = arith.constant 0.0178571437 : f32
    %190 = vector.broadcast %cst_75 : f32 to vector<1x128xf32>
    %191 = arith.mulf %184, %190 : vector<1x128xf32>
    %cst_76 = arith.constant 0.0178571437 : f32
    %192 = vector.broadcast %cst_76 : f32 to vector<1x128xf32>
    %193 = arith.mulf %189, %192 : vector<1x128xf32>
    %194 = arith.mulf %191, %191 : vector<1x128xf32>
    %195 = arith.subf %193, %194 : vector<1x128xf32>
    %cst_77 = arith.constant 0.000000e+00 : f32
    %196 = vector.broadcast %cst_77 : f32 to vector<1x128xf32>
    %197 = arith.maximumf %195, %196 : vector<1x128xf32>
    %c2_78 = arith.constant 2 : index
    %c0_79 = arith.constant 0 : index
    %198 = vector.load %arg6[%c2_78, %c0_79] : memref<4x128xf32, #tpu.memory_space<vmem>>, vector<1x128xf32>
    %c2_80 = arith.constant 2 : index
    %c0_81 = arith.constant 0 : index
    %199 = vector.load %arg7[%c2_80, %c0_81] : memref<4x128xf32, #tpu.memory_space<vmem>>, vector<1x128xf32>
    %cst_82 = arith.constant 9.99999974E-6 : f32
    %200 = vector.broadcast %cst_82 : f32 to vector<1x128xf32>
    %201 = arith.addf %197, %200 : vector<1x128xf32>
    %202 = math.rsqrt %201 : vector<1x128xf32>
    %203 = arith.mulf %198, %202 : vector<1x128xf32>
    %204 = arith.mulf %191, %203 : vector<1x128xf32>
    %205 = arith.subf %199, %204 : vector<1x128xf32>
    %c0_83 = arith.constant 0 : index
    %c0_84 = arith.constant 0 : index
    %206 = vector.load %arg11[%c0_83, %c0_84] : memref<1024x128xf32, #tpu.memory_space<vmem>>, vector<64x128xf32>
    tpu.vector_store %arg11[%c0_83, %c0_84], %162 {strides = array<i32>} : memref<1024x128xf32, #tpu.memory_space<vmem>>, vector<64x128xf32>,
    %c0_85 = arith.constant 0 : index
    %c0_86 = arith.constant 0 : index
    %207 = tpu.strided_load %arg11[%c0_85, %c0_86] {strides = array<i32: 4, 1>} : memref<1024x128xf32, #tpu.memory_space<vmem>>, vector<16x128xf32>
    %c1_87 = arith.constant 1 : index
    %c0_88 = arith.constant 0 : index
    %208 = tpu.strided_load %arg11[%c1_87, %c0_88] {strides = array<i32: 4, 1>} : memref<1024x128xf32, #tpu.memory_space<vmem>>, vector<16x128xf32>
    %209 = arith.maximumf %207, %208 : vector<16x128xf32>
    %210 = arith.minimumf %207, %208 : vector<16x128xf32>
    %c2_89 = arith.constant 2 : index
    %c0_90 = arith.constant 0 : index
    %211 = tpu.strided_load %arg11[%c2_89, %c0_90] {strides = array<i32: 4, 1>} : memref<1024x128xf32, #tpu.memory_space<vmem>>, vector<16x128xf32>
    %212 = arith.maximumf %209, %211 : vector<16x128xf32>
    %213 = arith.minimumf %210, %211 : vector<16x128xf32>
    %c3_91 = arith.constant 3 : index
    %c0_92 = arith.constant 0 : index
    %214 = tpu.strided_load %arg11[%c3_91, %c0_92] {strides = array<i32: 4, 1>} : memref<1024x128xf32, #tpu.memory_space<vmem>>, vector<16x128xf32>
    %215 = arith.maximumf %212, %214 : vector<16x128xf32>
    %216 = arith.minimumf %213, %214 : vector<16x128xf32>
    %cst_93 = arith.constant 0.000000e+00 : f32
    %217 = vector.broadcast %cst_93 : f32 to vector<1x128xf32>
    %218 = arith.cmpf oge, %203, %217 : vector<1x128xf32>
    %219 = arith.extui %218 : vector<1x128xi1> to vector<1x128xi32>
    %220 = arith.sitofp %219 : vector<1x128xi32> to vector<1x128xf32>
    %221 = vector.broadcast %220 : vector<1x128xf32> to vector<16x128xf32>
    %222 = arith.mulf %215, %221 : vector<16x128xf32>
    %cst_94 = arith.constant 1.000000e+00 : f32
    %223 = vector.broadcast %cst_94 : f32 to vector<1x128xf32>
    %224 = arith.subf %223, %220 : vector<1x128xf32>
    %225 = vector.broadcast %224 : vector<1x128xf32> to vector<16x128xf32>
    %226 = arith.mulf %216, %225 : vector<16x128xf32>
    %227 = arith.addf %222, %226 : vector<16x128xf32>
    %228 = vector.broadcast %203 : vector<1x128xf32> to vector<16x128xf32>
    %229 = arith.mulf %227, %228 : vector<16x128xf32>
    %230 = vector.broadcast %205 : vector<1x128xf32> to vector<16x128xf32>
    %231 = arith.addf %229, %230 : vector<16x128xf32>
    %cst_95 = arith.constant 0.000000e+00 : f32
    %232 = vector.broadcast %cst_95 : f32 to vector<16x128xf32>
    %233 = arith.maximumf %231, %232 : vector<16x128xf32>
    %c336 = arith.constant 336 : index
    %c0_96 = arith.constant 0 : index
    %234 = vector.load %arg12[%c336, %c0_96] : memref<376x128xf32, #tpu.memory_space<vmem>>, vector<16x128xf32>
    tpu.vector_store %arg12[%c336, %c0_96], %233 {strides = array<i32>} : memref<376x128xf32, #tpu.memory_space<vmem>>, vector<16x128xf32>,
    %c336_97 = arith.constant 336 : index
    %c0_98 = arith.constant 0 : index
    %235 = vector.load %arg12[%c336_97, %c0_98] : memref<376x128xf32, #tpu.memory_space<vmem>>, vector<16x128xf32>
    %c337 = arith.constant 337 : index
    %c0_99 = arith.constant 0 : index
    %236 = vector.load %arg12[%c337, %c0_99] : memref<376x128xf32, #tpu.memory_space<vmem>>, vector<16x128xf32>
    %c338 = arith.constant 338 : index
    %c0_100 = arith.constant 0 : index
    %237 = vector.load %arg12[%c338, %c0_100] : memref<376x128xf32, #tpu.memory_space<vmem>>, vector<16x128xf32>
    %238 = tpu.concatenate %235, %236, %237 in 1 : vector<16x128xf32>, vector<16x128xf32>, vector<16x128xf32> -> vector<16x384xf32>
    %239 = arith.truncf %238 : vector<16x384xf32> to vector<16x384xbf16>
    %c0_101 = arith.constant 0 : index
    %c0_102 = arith.constant 0 : index
    %240 = vector.load %arg5[%c0_101, %c0_102] : memref<384x128xbf16, #tpu.memory_space<vmem>>, vector<384x128xbf16>
    %cst_103 = arith.constant dense<0.000000e+00> : vector<16x128xf32>
    %241 = tpu.matmul %239, %240, %cst_103 {dimension_numbers = #tpu.dot_dimension_numbers<[1], [0], [0], [1], [0, 0, 1, 1], [], []>} : vector<16x384xbf16>, vector<384x128xbf16>, vector<16x128xf32> -> vector<16x128xf32>
    %242 = tpu.iota {dimensions = array<i32: 0>} : vector<16x1xi32>
    %cst_104 = arith.constant 0.000000e+00 : f32
    %243 = vector.broadcast %cst_104 : f32 to vector<16x1xf32>
    %c0_i32_105 = arith.constant 0 : i32
    %244 = vector.broadcast %c0_i32_105 : i32 to vector<16x1xi32>
    %245 = arith.cmpi sge, %242, %244 : vector<16x1xi32>
    %c5_i32 = arith.constant 5 : i32
    %246 = vector.broadcast %c5_i32 : i32 to vector<16x1xi32>
    %247 = arith.cmpi slt, %242, %246 : vector<16x1xi32>
    %248 = arith.andi %245, %247 : vector<16x1xi1>
    %249 = arith.extui %248 : vector<16x1xi1> to vector<16x1xi32>
    %250 = arith.sitofp %249 : vector<16x1xi32> to vector<16x1xf32>
    %251 = arith.addf %243, %250 : vector<16x1xf32>
    %c8_i32 = arith.constant 8 : i32
    %252 = vector.broadcast %c8_i32 : i32 to vector<16x1xi32>
    %253 = arith.cmpi sge, %242, %252 : vector<16x1xi32>
    %c13_i32 = arith.constant 13 : i32
    %254 = vector.broadcast %c13_i32 : i32 to vector<16x1xi32>
    %255 = arith.cmpi slt, %242, %254 : vector<16x1xi32>
    %256 = arith.andi %253, %255 : vector<16x1xi1>
    %257 = arith.extui %256 : vector<16x1xi1> to vector<16x1xi32>
    %258 = arith.sitofp %257 : vector<16x1xi32> to vector<16x1xf32>
    %259 = arith.addf %251, %258 : vector<16x1xf32>
    %260 = vector.broadcast %259 : vector<16x1xf32> to vector<16x128xf32>
    %261 = arith.mulf %241, %260 : vector<16x128xf32>
    %cst_106 = arith.constant dense<0.000000e+00> : vector<128xf32>
    %262 = vector.multi_reduction <add>, %261, %cst_106 [0] : vector<16x128xf32> to vector<128xf32>
    %263 = vector.shape_cast %262 : vector<128xf32> to vector<1x128xf32>
    %264 = arith.mulf %241, %241 : vector<16x128xf32>
    %265 = vector.broadcast %259 : vector<16x1xf32> to vector<16x128xf32>
    %266 = arith.mulf %264, %265 : vector<16x128xf32>
    %cst_107 = arith.constant dense<0.000000e+00> : vector<128xf32>
    %267 = vector.multi_reduction <add>, %266, %cst_107 [0] : vector<16x128xf32> to vector<128xf32>
    %268 = vector.shape_cast %267 : vector<128xf32> to vector<1x128xf32>
    %cst_108 = arith.constant 1.000000e-01 : f32
    %269 = vector.broadcast %cst_108 : f32 to vector<1x128xf32>
    %270 = arith.mulf %263, %269 : vector<1x128xf32>
    %cst_109 = arith.constant 1.000000e-01 : f32
    %271 = vector.broadcast %cst_109 : f32 to vector<1x128xf32>
    %272 = arith.mulf %268, %271 : vector<1x128xf32>
    %273 = arith.mulf %270, %270 : vector<1x128xf32>
    %274 = arith.subf %272, %273 : vector<1x128xf32>
    %cst_110 = arith.constant 0.000000e+00 : f32
    %275 = vector.broadcast %cst_110 : f32 to vector<1x128xf32>
    %276 = arith.maximumf %274, %275 : vector<1x128xf32>
    %c3_111 = arith.constant 3 : index
    %c0_112 = arith.constant 0 : index
    %277 = vector.load %arg6[%c3_111, %c0_112] : memref<4x128xf32, #tpu.memory_space<vmem>>, vector<1x128xf32>
    %c3_113 = arith.constant 3 : index
    %c0_114 = arith.constant 0 : index
    %278 = vector.load %arg7[%c3_113, %c0_114] : memref<4x128xf32, #tpu.memory_space<vmem>>, vector<1x128xf32>
    %cst_115 = arith.constant 9.99999974E-6 : f32
    %279 = vector.broadcast %cst_115 : f32 to vector<1x128xf32>
    %280 = arith.addf %276, %279 : vector<1x128xf32>
    %281 = math.rsqrt %280 : vector<1x128xf32>
    %282 = arith.mulf %277, %281 : vector<1x128xf32>
    %283 = arith.mulf %270, %282 : vector<1x128xf32>
    %284 = arith.subf %278, %283 : vector<1x128xf32>
    %c0_116 = arith.constant 0 : index
    %c0_117 = arith.constant 0 : index
    %285 = vector.load %arg11[%c0_116, %c0_117] : memref<1024x128xf32, #tpu.memory_space<vmem>>, vector<16x128xf32>
    tpu.vector_store %arg11[%c0_116, %c0_117], %241 {strides = array<i32>} : memref<1024x128xf32, #tpu.memory_space<vmem>>, vector<16x128xf32>,
    %c0_118 = arith.constant 0 : index
    %c0_119 = arith.constant 0 : index
    %286 = tpu.strided_load %arg11[%c0_118, %c0_119] {strides = array<i32: 4, 1>} : memref<1024x128xf32, #tpu.memory_space<vmem>>, vector<4x128xf32>
    %c1_120 = arith.constant 1 : index
    %c0_121 = arith.constant 0 : index
    %287 = tpu.strided_load %arg11[%c1_120, %c0_121] {strides = array<i32: 4, 1>} : memref<1024x128xf32, #tpu.memory_space<vmem>>, vector<4x128xf32>
    %288 = arith.maximumf %286, %287 : vector<4x128xf32>
    %289 = arith.minimumf %286, %287 : vector<4x128xf32>
    %c2_122 = arith.constant 2 : index
    %c0_123 = arith.constant 0 : index
    %290 = tpu.strided_load %arg11[%c2_122, %c0_123] {strides = array<i32: 4, 1>} : memref<1024x128xf32, #tpu.memory_space<vmem>>, vector<4x128xf32>
    %291 = arith.maximumf %288, %290 : vector<4x128xf32>
    %292 = arith.minimumf %289, %290 : vector<4x128xf32>
    %c3_124 = arith.constant 3 : index
    %c0_125 = arith.constant 0 : index
    %293 = tpu.strided_load %arg11[%c3_124, %c0_125] {strides = array<i32: 4, 1>} : memref<1024x128xf32, #tpu.memory_space<vmem>>, vector<4x128xf32>
    %294 = arith.maximumf %291, %293 : vector<4x128xf32>
    %295 = arith.minimumf %292, %293 : vector<4x128xf32>
    %cst_126 = arith.constant 0.000000e+00 : f32
    %296 = vector.broadcast %cst_126 : f32 to vector<1x128xf32>
    %297 = arith.cmpf oge, %282, %296 : vector<1x128xf32>
    %298 = arith.extui %297 : vector<1x128xi1> to vector<1x128xi32>
    %299 = arith.sitofp %298 : vector<1x128xi32> to vector<1x128xf32>
    %300 = vector.broadcast %299 : vector<1x128xf32> to vector<4x128xf32>
    %301 = arith.mulf %294, %300 : vector<4x128xf32>
    %cst_127 = arith.constant 1.000000e+00 : f32
    %302 = vector.broadcast %cst_127 : f32 to vector<1x128xf32>
    %303 = arith.subf %302, %299 : vector<1x128xf32>
    %304 = vector.broadcast %303 : vector<1x128xf32> to vector<4x128xf32>
    %305 = arith.mulf %295, %304 : vector<4x128xf32>
    %306 = arith.addf %301, %305 : vector<4x128xf32>
    %307 = vector.broadcast %282 : vector<1x128xf32> to vector<4x128xf32>
    %308 = arith.mulf %306, %307 : vector<4x128xf32>
    %309 = vector.broadcast %284 : vector<1x128xf32> to vector<4x128xf32>
    %310 = arith.addf %308, %309 : vector<4x128xf32>
    %cst_128 = arith.constant 0.000000e+00 : f32
    %311 = vector.broadcast %cst_128 : f32 to vector<4x128xf32>
    %312 = arith.maximumf %310, %311 : vector<4x128xf32>
    %c360 = arith.constant 360 : index
    %c0_129 = arith.constant 0 : index
    %313 = vector.load %arg12[%c360, %c0_129] : memref<376x128xf32, #tpu.memory_space<vmem>>, vector<4x128xf32>
    tpu.vector_store %arg12[%c360, %c0_129], %312 {strides = array<i32>} : memref<376x128xf32, #tpu.memory_space<vmem>>, vector<4x128xf32>,
    %c360_130 = arith.constant 360 : index
    %c0_131 = arith.constant 0 : index
    %314 = vector.load %arg12[%c360_130, %c0_131] : memref<376x128xf32, #tpu.memory_space<vmem>>, vector<1x128xf32>
    %cst_132 = arith.constant dense<0.000000e+00> : vector<128xf32>
    %315 = vector.multi_reduction <add>, %314, %cst_132 [0] : vector<1x128xf32> to vector<128xf32>
    %316 = vector.shape_cast %315 : vector<128xf32> to vector<1x128xf32>
    %cst_133 = arith.constant 1.000000e+00 : f32
    %317 = vector.broadcast %cst_133 : f32 to vector<1x128xf32>
    %318 = arith.divf %316, %317 : vector<1x128xf32>
    %c362 = arith.constant 362 : index
    %c0_134 = arith.constant 0 : index
    %319 = vector.load %arg12[%c362, %c0_134] : memref<376x128xf32, #tpu.memory_space<vmem>>, vector<1x128xf32>
    %cst_135 = arith.constant dense<0.000000e+00> : vector<128xf32>
    %320 = vector.multi_reduction <add>, %319, %cst_135 [0] : vector<1x128xf32> to vector<128xf32>
    %321 = vector.shape_cast %320 : vector<128xf32> to vector<1x128xf32>
    %cst_136 = arith.constant 1.000000e+00 : f32
    %322 = vector.broadcast %cst_136 : f32 to vector<1x128xf32>
    %323 = arith.divf %321, %322 : vector<1x128xf32>
    %324 = tpu.concatenate %318, %323 in 0 : vector<1x128xf32>, vector<1x128xf32> -> vector<2x128xf32>
    %c0_137 = arith.constant 0 : index
    %c0_138 = arith.constant 0 : index
    %325 = vector.load %arg8[%c0_137, %c0_138] : memref<128x128xf32, #tpu.memory_space<vmem>>, vector<128x128xf32>
    %cst_139 = arith.constant dense<0.000000e+00> : vector<2x128xf32>
    %326 = tpu.matmul %324, %325, %cst_139 {dimension_numbers = #tpu.dot_dimension_numbers<[1], [0], [0], [1], [0, 0, 1, 1], [], []>} : vector<2x128xf32>, vector<128x128xf32>, vector<2x128xf32> -> vector<2x128xf32>
    %c0_140 = arith.constant 0 : index
    %c0_141 = arith.constant 0 : index
    %327 = vector.load %arg9[%c0_140, %c0_141] : memref<1x128xf32, #tpu.memory_space<vmem>>, vector<1x128xf32>
    %328 = vector.broadcast %327 : vector<1x128xf32> to vector<2x128xf32>
    %329 = arith.addf %326, %328 : vector<2x128xf32>
    %cst_142 = arith.constant dense<0xFF800000> : vector<2xf32>
    %330 = vector.multi_reduction <maximumf>, %329, %cst_142 [1] : vector<2x128xf32> to vector<2xf32>
    %331 = vector.shape_cast %330 : vector<2xf32> to vector<2x1xf32>
    %332 = vector.broadcast %331 : vector<2x1xf32> to vector<2x128xf32>
    %333 = arith.subf %329, %332 : vector<2x128xf32>
    %334 = math.exp %333 : vector<2x128xf32>
    %cst_143 = arith.constant dense<0.000000e+00> : vector<2xf32>
    %335 = vector.multi_reduction <add>, %334, %cst_143 [1] : vector<2x128xf32> to vector<2xf32>
    %336 = vector.shape_cast %335 : vector<2xf32> to vector<2x1xf32>
    %337 = math.log %336 : vector<2x1xf32>
    %338 = vector.broadcast %337 : vector<2x1xf32> to vector<2x128xf32>
    %339 = arith.subf %333, %338 : vector<2x128xf32>
    %c0_144 = arith.constant 0 : index
    %c0_145 = arith.constant 0 : index
    %340 = vector.load %arg10[%c0_144, %c0_145] : memref<2x128xf32, #tpu.memory_space<vmem>>, vector<2x128xf32>
    tpu.vector_store %arg10[%c0_144, %c0_145], %339 {strides = array<i32>} : memref<2x128xf32, #tpu.memory_space<vmem>>, vector<2x128xf32>,
    return
  }
  func.func @transform_0(%arg0: i32) -> (i32, i32) {
    %c0_i32 = arith.constant 0 : i32
    %c0_i32_0 = arith.constant 0 : i32
    %c0_i32_1 = arith.constant 0 : i32
    return %c0_i32, %c0_i32_0 : i32, i32
  }
  func.func @transform_1(%arg0: i32) -> (i32, i32) {
    %c0_i32 = arith.constant 0 : i32
    %c0_i32_0 = arith.constant 0 : i32
    %c0_i32_1 = arith.constant 0 : i32
    return %c0_i32, %c0_i32_0 : i32, i32
  }
  func.func @transform_2(%arg0: i32) -> (i32, i32) {
    %c0_i32 = arith.constant 0 : i32
    %c0_i32_0 = arith.constant 0 : i32
    %c0_i32_1 = arith.constant 0 : i32
    return %c0_i32, %c0_i32_0 : i32, i32
  }
  func.func @transform_3(%arg0: i32) -> (i32, i32) {
    %c0_i32 = arith.constant 0 : i32
    %c0_i32_0 = arith.constant 0 : i32
    %c0_i32_1 = arith.constant 0 : i32
    return %c0_i32, %c0_i32_0 : i32, i32
  }
  func.func @transform_4(%arg0: i32) -> (i32, i32) {
    %c0_i32 = arith.constant 0 : i32
    %c0_i32_0 = arith.constant 0 : i32
    %c0_i32_1 = arith.constant 0 : i32
    return %c0_i32, %c0_i32_0 : i32, i32
  }
  func.func @transform_5(%arg0: i32) -> (i32, i32) {
    %c0_i32 = arith.constant 0 : i32
    %c0_i32_0 = arith.constant 0 : i32
    %c0_i32_1 = arith.constant 0 : i32
    return %c0_i32, %c0_i32_0 : i32, i32
  }
  func.func @transform_6(%arg0: i32) -> (i32, i32) {
    %c0_i32 = arith.constant 0 : i32
    %c0_i32_0 = arith.constant 0 : i32
    %c0_i32_1 = arith.constant 0 : i32
    return %c0_i32, %c0_i32_0 : i32, i32
  }
  func.func @transform_7(%arg0: i32) -> (i32, i32) {
    %c0_i32 = arith.constant 0 : i32
    %c0_i32_0 = arith.constant 0 : i32
    %c0_i32_1 = arith.constant 0 : i32
    return %c0_i32, %c0_i32_0 : i32, i32
  }
  func.func @transform_8(%arg0: i32) -> (i32, i32) {
    %c0_i32 = arith.constant 0 : i32
    %c0_i32_0 = arith.constant 0 : i32
    %c0_i32_1 = arith.constant 0 : i32
    return %c0_i32, %c0_i32_0 : i32, i32
  }
  func.func @transform_9(%arg0: i32) -> (i32, i32) {
    %c0_i32 = arith.constant 0 : i32
    %c0_i32_0 = arith.constant 0 : i32
    %c0_i32_1 = arith.constant 0 : i32
    return %c0_i32, %c0_i32_0 : i32, i32
  }
}

</mosaic_0001>

<llo_original>
// kernel: squeeze.11
$region0: #{squeeze.11}
  %s0 = inlined_call_operand.vmem [shape: bf16[2,8000], index: 0, kind: input, shape index: {}]
  %s1 = inlined_call_operand.vmem [shape: bf16[2,500,16], index: 1, kind: output, shape index: {}]
  $region1: #{squeeze.11} parent=0
    #allocation0 [shape = 'u8[516096]{0}', space=vmem, size = 0x7e000, scoped, tag = 'scoped mem for output reshape']
    #allocation1 [shape = 'u8[258048]{0}', space=vmem, size = 0x3f000, scoped, tag = 'scoped mem for input reshape']
    %s3 = smul.u32 1, 2
    %s4 = sshllo.u32 0, %s3
    %s5 = smul.addr 1, 62
    %s6 = scalar_lea.vmem %s0, %s5
    %s7 = sshrl.u32 %s4, 1
    %s8 = sor.u32 %s4, %s7
    %s9 = sand.u32 %s8, 85
    %s10 = sshrl.u32 %s9, 1
    %s11 = sor.u32 %s9, %s10
    %s12 = sand.u32 51, %s11
    %s13 = sshrl.u32 %s12, 2
    %s14 = sor.u32 %s12, %s13
    %s15 = sand.u32 15, %s14
    %v16 = vld [vmem:[%s6] sm:%s15]
    %v17 = vunpack.c.l.bf16 %v16
    %v18 = vunpack.c.h.bf16 %v16
    %s19 = scalar_lea.vmem [#allocation1], 496
    %20 = vst [vmem:[%s19] sm:%s4] %v17
    %s21 = smul.addr 1, 61
    %s22 = scalar_lea.vmem %s0, %s21
    %s23 = sshrl.u32 %s4, 1
    %s24 = sor.u32 %s4, %s23
    %s25 = sand.u32 %s24, 85
    %s26 = sshrl.u32 %s25, 1
    %s27 = sor.u32 %s25, %s26
    %s28 = sand.u32 51, %s27
    %s29 = sshrl.u32 %s28, 2
    %s30 = sor.u32 %s28, %s29
    %s31 = sand.u32 15, %s30
    %v32 = vld [vmem:[%s22] sm:%s31]
    %v33 = vunpack.c.l.bf16 %v32
    %v34 = vunpack.c.h.bf16 %v32
    %s35 = scalar_lea.vmem [#allocation1], 488
    %36 = vst [vmem:[%s35] sm:%s4] %v33
    %s37 = smul.addr 1, 60
    %s38 = scalar_lea.vmem %s0, %s37
    %s39 = sshrl.u32 %s4, 1
    %s40 = sor.u32 %s4, %s39
    %s41 = sand.u32 %s40, 85
    %s42 = sshrl.u32 %s41, 1
    %s43 = sor.u32 %s41, %s42
    %s44 = sand.u32 51, %s43
    %s45 = sshrl.u32 %s44, 2
    %s46 = sor.u32 %s44, %s45
    %s47 = sand.u32 15, %s46
    %v48 = vld [vmem:[%s38] sm:%s47]
    %v49 = vunpack.c.l.bf16 %v48
    %v50 = vunpack.c.h.bf16 %v48
    %s51 = scalar_lea.vmem [#allocation1], 480
    %52 = vst [vmem:[%s51] sm:%s4] %v49
    %s53 = smul.addr 1, 59
    %s54 = scalar_lea.vmem %s0, %s53
    %s55 = sshrl.u32 %s4, 1
    %s56 = sor.u32 %s4, %s55
    %s57 = sand.u32 %s56, 85
    %s58 = sshrl.u32 %s57, 1
    %s59 = sor.u32 %s57, %s58
    %s60 = sand.u32 51, %s59
    %s61 = sshrl.u32 %s60, 2
    %s62 = sor.u32 %s60, %s61
    %s63 = sand.u32 15, %s62
    %v64 = vld [vmem:[%s54] sm:%s63]
    %v65 = vunpack.c.l.bf16 %v64
    %v66 = vunpack.c.h.bf16 %v64
    %s67 = scalar_lea.vmem [#allocation1], 472
    %68 = vst [vmem:[%s67] sm:%s4] %v65
    %s69 = smul.addr 1, 58
    %s70 = scalar_lea.vmem %s0, %s69
    %s71 = sshrl.u32 %s4, 1
    %s72 = sor.u32 %s4, %s71
    %s73 = sand.u32 %s72, 85
    %s74 = sshrl.u32 %s73, 1
    %s75 = sor.u32 %s73, %s74
    %s76 = sand.u32 51, %s75
    %s77 = sshrl.u32 %s76, 2
    %s78 = sor.u32 %s76, %s77
    %s79 = sand.u32 15, %s78
    %v80 = vld [vmem:[%s70] sm:%s79]
    %v81 = vunpack.c.l.bf16 %v80
    %v82 = vunpack.c.h.bf16 %v80
    %s83 = scalar_lea.vmem [#allocation1], 464
    %84 = vst [vmem:[%s83] sm:%s4] %v81
    %s85 = smul.addr 1, 57
    %s86 = scalar_lea.vmem %s0, %s85
    %s87 = sshrl.u32 %s4, 1
    %s88 = sor.u32 %s4, %s87
    %s89 = sand.u32 %s88, 85
    %s90 = sshrl.u32 %s89, 1
    %s91 = sor.u32 %s89, %s90
    %s92 = sand.u32 51, %s91
    %s93 = sshrl.u32 %s92, 2
    %s94 = sor.u32 %s92, %s93
    %s95 = sand.u32 15, %s94
    %v96 = vld [vmem:[%s86] sm:%s95]
    %v97 = vunpack.c.l.bf16 %v96
    %v98 = vunpack.c.h.bf16 %v96
    %s99 = scalar_lea.vmem [#allocation1], 456
    %100 = vst [vmem:[%s99] sm:%s4] %v97
    %s101 = smul.addr 1, 56
    %s102 = scalar_lea.vmem %s0, %s101
    %s103 = sshrl.u32 %s4, 1
    %s104 = sor.u32 %s4, %s103
    %s105 = sand.u32 %s104, 85
    %s106 = sshrl.u32 %s105, 1
    %s107 = sor.u32 %s105, %s106
    %s108 = sand.u32 51, %s107
    %s109 = sshrl.u32 %s108, 2
    %s110 = sor.u32 %s108, %s109
    %s111 = sand.u32 15, %s110
    %v112 = vld [vmem:[%s102] sm:%s111]
    %v113 = vunpack.c.l.bf16 %v112
    %v114 = vunpack.c.h.bf16 %v112
    %s115 = scalar_lea.vmem [#allocation1], 448
    %116 = vst [vmem:[%s115] sm:%s4] %v113
    %s117 = smul.addr 1, 55
    %s118 = scalar_lea.vmem %s0, %s117
    %s119 = sshrl.u32 %s4, 1
    %s120 = sor.u32 %s4, %s119
    %s121 = sand.u32 %s120, 85
    %s122 = sshrl.u32 %s121, 1
    %s123 = sor.u32 %s121, %s122
    %s124 = sand.u32 51, %s123
    %s125 = sshrl.u32 %s124, 2
    %s126 = sor.u32 %s124, %s125
    %s127 = sand.u32 15, %s126
    %v128 = vld [vmem:[%s118] sm:%s127]
    %v129 = vunpack.c.l.bf16 %v128
    %v130 = vunpack.c.h.bf16 %v128
    %s131 = scalar_lea.vmem [#allocation1], 440
    %132 = vst [vmem:[%s131] sm:%s4] %v129
    %s133 = smul.addr 1, 54
    %s134 = scalar_lea.vmem %s0, %s133
    %s135 = sshrl.u32 %s4, 1
    %s136 = sor.u32 %s4, %s135
    %s137 = sand.u32 %s136, 85
    %s138 = sshrl.u32 %s137, 1
    %s139 = sor.u32 %s137, %s138
    %s140 = sand.u32 51, %s139
    %s141 = sshrl.u32 %s140, 2
    %s142 = sor.u32 %s140, %s141
    %s143 = sand.u32 15, %s142
    %v144 = vld [vmem:[%s134] sm:%s143]
    %v145 = vunpack.c.l.bf16 %v144
    %v146 = vunpack.c.h.bf16 %v144
    %s147 = scalar_lea.vmem [#allocation1], 432
    %148 = vst [vmem:[%s147] sm:%s4] %v145
    %s149 = smul.addr 1, 53
    %s150 = scalar_lea.vmem %s0, %s149
    %s151 = sshrl.u32 %s4, 1
    %s152 = sor.u32 %s4, %s151
    %s153 = sand.u32 %s152, 85
    %s154 = sshrl.u32 %s153, 1
    %s155 = sor.u32 %s153, %s154
    %s156 = sand.u32 51, %s155
    %s157 = sshrl.u32 %s156, 2
    %s158 = sor.u32 %s156, %s157
    %s159 = sand.u32 15, %s158
    %v160 = vld [vmem:[%s150] sm:%s159]
    %v161 = vunpack.c.l.bf16 %v160
    %v162 = vunpack.c.h.bf16 %v160
    %s163 = scalar_lea.vmem [#allocation1], 424
    %164 = vst [vmem:[%s163] sm:%s4] %v161
    %s165 = smul.addr 1, 52
    %s166 = scalar_lea.vmem %s0, %s165
    %s167 = sshrl.u32 %s4, 1
    %s168 = sor.u32 %s4, %s167
    %s169 = sand.u32 %s168, 85
    %s170 = sshrl.u32 %s169, 1
    %s171 = sor.u32 %s169, %s170
    %s172 = sand.u32 51, %s171
    %s173 = sshrl.u32 %s172, 2
    %s174 = sor.u32 %s172, %s173
    %s175 = sand.u32 15, %s174
    %v176 = vld [vmem:[%s166] sm:%s175]
    %v177 = vunpack.c.l.bf16 %v176
    %v178 = vunpack.c.h.bf16 %v176
    %s179 = scalar_lea.vmem [#allocation1], 416
    %180 = vst [vmem:[%s179] sm:%s4] %v177
    %s181 = smul.addr 1, 51
    %s182 = scalar_lea.vmem %s0, %s181
    %s183 = sshrl.u32 %s4, 1
    %s184 = sor.u32 %s4, %s183
    %s185 = sand.u32 %s184, 85
    %s186 = sshrl.u32 %s185, 1
    %s187 = sor.u32 %s185, %s186
    %s188 = sand.u32 51, %s187
    %s189 = sshrl.u32 %s188, 2
    %s190 = sor.u32 %s188, %s189
    %s191 = sand.u32 15, %s190
    %v192 = vld [vmem:[%s182] sm:%s191]
    %v193 = vunpack.c.l.bf16 %v192
    %v194 = vunpack.c.h.bf16 %v192
    %s195 = scalar_lea.vmem [#allocation1], 408
    %196 = vst [vmem:[%s195] sm:%s4] %v193
    %s197 = smul.addr 1, 50
    %s198 = scalar_lea.vmem %s0, %s197
    %s199 = sshrl.u32 %s4, 1
    %s200 = sor.u32 %s4, %s199
    %s201 = sand.u32 %s200, 85
    %s202 = sshrl.u32 %s201, 1
    %s203 = sor.u32 %s201, %s202
    %s204 = sand.u32 51, %s203
    %s205 = sshrl.u32 %s204, 2
    %s206 = sor.u32 %s204, %s205
    %s207 = sand.u32 15, %s206
    %v208 = vld [vmem:[%s198] sm:%s207]
    %v209 = vunpack.c.l.bf16 %v208
    %v210 = vunpack.c.h.bf16 %v208
    %s211 = scalar_lea.vmem [#allocation1], 400
    %212 = vst [vmem:[%s211] sm:%s4] %v209
    %s213 = smul.addr 1, 49
    %s214 = scalar_lea.vmem %s0, %s213
    %s215 = sshrl.u32 %s4, 1
    %s216 = sor.u32 %s4, %s215
    %s217 = sand.u32 %s216, 85
    %s218 = sshrl.u32 %s217, 1
    %s219 = sor.u32 %s217, %s218
    %s220 = sand.u32 51, %s219
    %s221 = sshrl.u32 %s220, 2
    %s222 = sor.u32 %s220, %s221
    %s223 = sand.u32 15, %s222
    %v224 = vld [vmem:[%s214] sm:%s223]
    %v225 = vunpack.c.l.bf16 %v224
    %v226 = vunpack.c.h.bf16 %v224
    %s227 = scalar_lea.vmem [#allocation1], 392
    %228 = vst [vmem:[%s227] sm:%s4] %v225
    %s229 = smul.addr 1, 48
    %s230 = scalar_lea.vmem %s0, %s229
    %s231 = sshrl.u32 %s4, 1
    %s232 = sor.u32 %s4, %s231
    %s233 = sand.u32 %s232, 85
    %s234 = sshrl.u32 %s233, 1
    %s235 = sor.u32 %s233, %s234
    %s236 = sand.u32 51, %s235
    %s237 = sshrl.u32 %s236, 2
    %s238 = sor.u32 %s236, %s237
    %s239 = sand.u32 15, %s238
    %v240 = vld [vmem:[%s230] sm:%s239]
    %v241 = vunpack.c.l.bf16 %v240
    %v242 = vunpack.c.h.bf16 %v240
    %s243 = scalar_lea.vmem [#allocation1], 384
    %244 = vst [vmem:[%s243] sm:%s4] %v241
    %s245 = smul.addr 1, 47
    %s246 = scalar_lea.vmem %s0, %s245
    %s247 = sshrl.u32 %s4, 1
    %s248 = sor.u32 %s4, %s247
    %s249 = sand.u32 %s248, 85
    %s250 = sshrl.u32 %s249, 1
    %s251 = sor.u32 %s249, %s250
    %s252 = sand.u32 51, %s251
    %s253 = sshrl.u32 %s252, 2
    %s254 = sor.u32 %s252, %s253
    %s255 = sand.u32 15, %s254
    %v256 = vld [vmem:[%s246] sm:%s255]
    %v257 = vunpack.c.l.bf16 %v256
    %v258 = vunpack.c.h.bf16 %v256
    %s259 = scalar_lea.vmem [#allocation1], 376
    %260 = vst [vmem:[%s259] sm:%s4] %v257
    %s261 = smul.addr 1, 46
    %s262 = scalar_lea.vmem %s0, %s261
    %s263 = sshrl.u32 %s4, 1
    %s264 = sor.u32 %s4, %s263
    %s265 = sand.u32 %s264, 85
    %s266 = sshrl.u32 %s265, 1
    %s267 = sor.u32 %s265, %s266
    %s268 = sand.u32 51, %s267
    %s269 = sshrl.u32 %s268, 2
    %s270 = sor.u32 %s268, %s269
    %s271 = sand.u32 15, %s270
    %v272 = vld [vmem:[%s262] sm:%s271]
    %v273 = vunpack.c.l.bf16 %v272
    %v274 = vunpack.c.h.bf16 %v272
    %s275 = scalar_lea.vmem [#allocation1], 368
    %276 = vst [vmem:[%s275] sm:%s4] %v273
    %s277 = smul.addr 1, 45
    %s278 = scalar_lea.vmem %s0, %s277
    %s279 = sshrl.u32 %s4, 1
    %s280 = sor.u32 %s4, %s279
    %s281 = sand.u32 %s280, 85
    %s282 = sshrl.u32 %s281, 1
    %s283 = sor.u32 %s281, %s282
    %s284 = sand.u32 51, %s283
    %s285 = sshrl.u32 %s284, 2
    %s286 = sor.u32 %s284, %s285
    %s287 = sand.u32 15, %s286
    %v288 = vld [vmem:[%s278] sm:%s287]
    %v289 = vunpack.c.l.bf16 %v288
    %v290 = vunpack.c.h.bf16 %v288
    %s291 = scalar_lea.vmem [#allocation1], 360
    %292 = vst [vmem:[%s291] sm:%s4] %v289
    %s293 = smul.addr 1, 44
    %s294 = scalar_lea.vmem %s0, %s293
    %s295 = sshrl.u32 %s4, 1
    %s296 = sor.u32 %s4, %s295
    %s297 = sand.u32 %s296, 85
    %s298 = sshrl.u32 %s297, 1
    %s299 = sor.u32 %s297, %s298
    %s300 = sand.u32 51, %s299
    %s301 = sshrl.u32 %s300, 2
    %s302 = sor.u32 %s300, %s301
    %s303 = sand.u32 15, %s302
    %v304 = vld [vmem:[%s294] sm:%s303]
    %v305 = vunpack.c.l.bf16 %v304
    %v306 = vunpack.c.h.bf16 %v304
    %s307 = scalar_lea.vmem [#allocation1], 352
    %308 = vst [vmem:[%s307] sm:%s4] %v305
    %s309 = smul.addr 1, 43
    %s310 = scalar_lea.vmem %s0, %s309
    %s311 = sshrl.u32 %s4, 1
    %s312 = sor.u32 %s4, %s311
    %s313 = sand.u32 %s312, 85
    %s314 = sshrl.u32 %s313, 1
    %s315 = sor.u32 %s313, %s314
    %s316 = sand.u32 51, %s315
    %s317 = sshrl.u32 %s316, 2
    %s318 = sor.u32 %s316, %s317
    %s319 = sand.u32 15, %s318
    %v320 = vld [vmem:[%s310] sm:%s319]
    %v321 = vunpack.c.l.bf16 %v320
    %v322 = vunpack.c.h.bf16 %v320
    %s323 = scalar_lea.vmem [#allocation1], 344
    %324 = vst [vmem:[%s323] sm:%s4] %v321
    %s325 = smul.addr 1, 42
    %s326 = scalar_lea.vmem %s0, %s325
    %s327 = sshrl.u32 %s4, 1
    %s328 = sor.u32 %s4, %s327
    %s329 = sand.u32 %s328, 85
    %s330 = sshrl.u32 %s329, 1
    %s331 = sor.u32 %s329, %s330
    %s332 = sand.u32 51, %s331
    %s333 = sshrl.u32 %s332, 2
    %s334 = sor.u32 %s332, %s333
    %s335 = sand.u32 15, %s334
    %v336 = vld [vmem:[%s326] sm:%s335]
    %v337 = vunpack.c.l.bf16 %v336
    %v338 = vunpack.c.h.bf16 %v336
    %s339 = scalar_lea.vmem [#allocation1], 336
    %340 = vst [vmem:[%s339] sm:%s4] %v337
    %s341 = smul.addr 1, 41
    %s342 = scalar_lea.vmem %s0, %s341
    %s343 = sshrl.u32 %s4, 1
    %s344 = sor.u32 %s4, %s343
    %s345 = sand.u32 %s344, 85
    %s346 = sshrl.u32 %s345, 1
    %s347 = sor.u32 %s345, %s346
    %s348 = sand.u32 51, %s347
    %s349 = sshrl.u32 %s348, 2
    %s350 = sor.u32 %s348, %s349
    %s351 = sand.u32 15, %s350
    %v352 = vld [vmem:[%s342] sm:%s351]
    %v353 = vunpack.c.l.bf16 %v352
    %v354 = vunpack.c.h.bf16 %v352
    %s355 = scalar_lea.vmem [#allocation1], 328
    %356 = vst [vmem:[%s355] sm:%s4] %v353
    %s357 = smul.addr 1, 40
    %s358 = scalar_lea.vmem %s0, %s357
    %s359 = sshrl.u32 %s4, 1
    %s360 = sor.u32 %s4, %s359
    %s361 = sand.u32 %s360, 85
    %s362 = sshrl.u32 %s361, 1
    %s363 = sor.u32 %s361, %s362
    %s364 = sand.u32 51, %s363
    %s365 = sshrl.u32 %s364, 2
    %s366 = sor.u32 %s364, %s365
    %s367 = sand.u32 15, %s366
    %v368 = vld [vmem:[%s358] sm:%s367]
    %v369 = vunpack.c.l.bf16 %v368
    %v370 = vunpack.c.h.bf16 %v368
    %s371 = scalar_lea.vmem [#allocation1], 320
    %372 = vst [vmem:[%s371] sm:%s4] %v369
    %s373 = smul.addr 1, 39
    %s374 = scalar_lea.vmem %s0, %s373
    %s375 = sshrl.u32 %s4, 1
    %s376 = sor.u32 %s4, %s375
    %s377 = sand.u32 %s376, 85
    %s378 = sshrl.u32 %s377, 1
    %s379 = sor.u32 %s377, %s378
    %s380 = sand.u32 51, %s379
    %s381 = sshrl.u32 %s380, 2
    %s382 = sor.u32 %s380, %s381
    %s383 = sand.u32 15, %s382
    %v384 = vld [vmem:[%s374] sm:%s383]
    %v385 = vunpack.c.l.bf16 %v384
    %v386 = vunpack.c.h.bf16 %v384
    %s387 = scalar_lea.vmem [#allocation1], 312
    %388 = vst [vmem:[%s387] sm:%s4] %v385
    %s389 = smul.addr 1, 38
    %s390 = scalar_lea.vmem %s0, %s389
    %s391 = sshrl.u32 %s4, 1
    %s392 = sor.u32 %s4, %s391
    %s393 = sand.u32 %s392, 85
    %s394 = sshrl.u32 %s393, 1
    %s395 = sor.u32 %s393, %s394
    %s396 = sand.u32 51, %s395
    %s397 = sshrl.u32 %s396, 2
    %s398 = sor.u32 %s396, %s397
    %s399 = sand.u32 15, %s398
    %v400 = vld [vmem:[%s390] sm:%s399]
    %v401 = vunpack.c.l.bf16 %v400
    %v402 = vunpack.c.h.bf16 %v400
    %s403 = scalar_lea.vmem [#allocation1], 304
    %404 = vst [vmem:[%s403] sm:%s4] %v401
    %s405 = smul.addr 1, 37
    %s406 = scalar_lea.vmem %s0, %s405
    %s407 = sshrl.u32 %s4, 1
    %s408 = sor.u32 %s4, %s407
    %s409 = sand.u32 %s408, 85
    %s410 = sshrl.u32 %s409, 1
    %s411 = sor.u32 %s409, %s410
    %s412 = sand.u32 51, %s411
    %s413 = sshrl.u32 %s412, 2
    %s414 = sor.u32 %s412, %s413
    %s415 = sand.u32 15, %s414
    %v416 = vld [vmem:[%s406] sm:%s415]
    %v417 = vunpack.c.l.bf16 %v416
    %v418 = vunpack.c.h.bf16 %v416
    %s419 = scalar_lea.vmem [#allocation1], 296
    %420 = vst [vmem:[%s419] sm:%s4] %v417
    %s421 = smul.addr 1, 36
    %s422 = scalar_lea.vmem %s0, %s421
    %s423 = sshrl.u32 %s4, 1
    %s424 = sor.u32 %s4, %s423
    %s425 = sand.u32 %s424, 85
    %s426 = sshrl.u32 %s425, 1
    %s427 = sor.u32 %s425, %s426
    %s428 = sand.u32 51, %s427
    %s429 = sshrl.u32 %s428, 2
    %s430 = sor.u32 %s428, %s429
    %s431 = sand.u32 15, %s430
    %v432 = vld [vmem:[%s422] sm:%s431]
    %v433 = vunpack.c.l.bf16 %v432
    %v434 = vunpack.c.h.bf16 %v432
    %s435 = scalar_lea.vmem [#allocation1], 288
    %436 = vst [vmem:[%s435] sm:%s4] %v433
    %s437 = smul.addr 1, 35
    %s438 = scalar_lea.vmem %s0, %s437
    %s439 = sshrl.u32 %s4, 1
    %s440 = sor.u32 %s4, %s439
    %s441 = sand.u32 %s440, 85
    %s442 = sshrl.u32 %s441, 1
    %s443 = sor.u32 %s441, %s442
    %s444 = sand.u32 51, %s443
    %s445 = sshrl.u32 %s444, 2
    %s446 = sor.u32 %s444, %s445
    %s447 = sand.u32 15, %s446
    %v448 = vld [vmem:[%s438] sm:%s447]
    %v449 = vunpack.c.l.bf16 %v448
    %v450 = vunpack.c.h.bf16 %v448
    %s451 = scalar_lea.vmem [#allocation1], 280
    %452 = vst [vmem:[%s451] sm:%s4] %v449
    %s453 = smul.addr 1, 34
    %s454 = scalar_lea.vmem %s0, %s453
    %s455 = sshrl.u32 %s4, 1
    %s456 = sor.u32 %s4, %s455
    %s457 = sand.u32 %s456, 85
    %s458 = sshrl.u32 %s457, 1
    %s459 = sor.u32 %s457, %s458
    %s460 = sand.u32 51, %s459
    %s461 = sshrl.u32 %s460, 2
    %s462 = sor.u32 %s460, %s461
    %s463 = sand.u32 15, %s462
    %v464 = vld [vmem:[%s454] sm:%s463]
    %v465 = vunpack.c.l.bf16 %v464
    %v466 = vunpack.c.h.bf16 %v464
    %s467 = scalar_lea.vmem [#allocation1], 272
    %468 = vst [vmem:[%s467] sm:%s4] %v465
    %s469 = smul.addr 1, 33
    %s470 = scalar_lea.vmem %s0, %s469
    %s471 = sshrl.u32 %s4, 1
    %s472 = sor.u32 %s4, %s471
    %s473 = sand.u32 %s472, 85
    %s474 = sshrl.u32 %s473, 1
    %s475 = sor.u32 %s473, %s474
    %s476 = sand.u32 51, %s475
    %s477 = sshrl.u32 %s476, 2
    %s478 = sor.u32 %s476, %s477
    %s479 = sand.u32 15, %s478
    %v480 = vld [vmem:[%s470] sm:%s479]
    %v481 = vunpack.c.l.bf16 %v480
    %v482 = vunpack.c.h.bf16 %v480
    %s483 = scalar_lea.vmem [#allocation1], 264
    %484 = vst [vmem:[%s483] sm:%s4] %v481
    %s485 = smul.addr 1, 32
    %s486 = scalar_lea.vmem %s0, %s485
    %s487 = sshrl.u32 %s4, 1
    %s488 = sor.u32 %s4, %s487
    %s489 = sand.u32 %s488, 85
    %s490 = sshrl.u32 %s489, 1
    %s491 = sor.u32 %s489, %s490
    %s492 = sand.u32 51, %s491
    %s493 = sshrl.u32 %s492, 2
    %s494 = sor.u32 %s492, %s493
    %s495 = sand.u32 15, %s494
    %v496 = vld [vmem:[%s486] sm:%s495]
    %v497 = vunpack.c.l.bf16 %v496
    %v498 = vunpack.c.h.bf16 %v496
    %s499 = scalar_lea.vmem [#allocation1], 256
    %500 = vst [vmem:[%s499] sm:%s4] %v497
    %s501 = smul.addr 1, 31
    %s502 = scalar_lea.vmem %s0, %s501
    %s503 = sshrl.u32 %s4, 1
    %s504 = sor.u32 %s4, %s503
    %s505 = sand.u32 %s504, 85
    %s506 = sshrl.u32 %s505, 1
    %s507 = sor.u32 %s505, %s506
    %s508 = sand.u32 51, %s507
    %s509 = sshrl.u32 %s508, 2
    %s510 = sor.u32 %s508, %s509
    %s511 = sand.u32 15, %s510
    %v512 = vld [vmem:[%s502] sm:%s511]
    %v513 = vunpack.c.l.bf16 %v512
    %v514 = vunpack.c.h.bf16 %v512
    %s515 = scalar_lea.vmem [#allocation1], 248
    %516 = vst [vmem:[%s515] sm:%s4] %v513
    %s517 = smul.addr 1, 30
    %s518 = scalar_lea.vmem %s0, %s517
    %s519 = sshrl.u32 %s4, 1
    %s520 = sor.u32 %s4, %s519
    %s521 = sand.u32 %s520, 85
    %s522 = sshrl.u32 %s521, 1
    %s523 = sor.u32 %s521, %s522
    %s524 = sand.u32 51, %s523
    %s525 = sshrl.u32 %s524, 2
    %s526 = sor.u32 %s524, %s525
    %s527 = sand.u32 15, %s526
    %v528 = vld [vmem:[%s518] sm:%s527]
    %v529 = vunpack.c.l.bf16 %v528
    %v530 = vunpack.c.h.bf16 %v528
    %s531 = scalar_lea.vmem [#allocation1], 240
    %532 = vst [vmem:[%s531] sm:%s4] %v529
    %s533 = smul.addr 1, 29
    %s534 = scalar_lea.vmem %s0, %s533
    %s535 = sshrl.u32 %s4, 1
    %s536 = sor.u32 %s4, %s535
    %s537 = sand.u32 %s536, 85
    %s538 = sshrl.u32 %s537, 1
    %s539 = sor.u32 %s537, %s538
    %s540 = sand.u32 51, %s539
    %s541 = sshrl.u32 %s540, 2
    %s542 = sor.u32 %s540, %s541
    %s543 = sand.u32 15, %s542
    %v544 = vld [vmem:[%s534] sm:%s543]
    %v545 = vunpack.c.l.bf16 %v544
    %v546 = vunpack.c.h.bf16 %v544
    %s547 = scalar_lea.vmem [#allocation1], 232
    %548 = vst [vmem:[%s547] sm:%s4] %v545
    %s549 = smul.addr 1, 28
    %s550 = scalar_lea.vmem %s0, %s549
    %s551 = sshrl.u32 %s4, 1
    %s552 = sor.u32 %s4, %s551
    %s553 = sand.u32 %s552, 85
    %s554 = sshrl.u32 %s553, 1
    %s555 = sor.u32 %s553, %s554
    %s556 = sand.u32 51, %s555
    %s557 = sshrl.u32 %s556, 2
    %s558 = sor.u32 %s556, %s557
    %s559 = sand.u32 15, %s558
    %v560 = vld [vmem:[%s550] sm:%s559]
    %v561 = vunpack.c.l.bf16 %v560
    %v562 = vunpack.c.h.bf16 %v560
    %s563 = scalar_lea.vmem [#allocation1], 224
    %564 = vst [vmem:[%s563] sm:%s4] %v561
    %s565 = smul.addr 1, 27
    %s566 = scalar_lea.vmem %s0, %s565
    %s567 = sshrl.u32 %s4, 1
    %s568 = sor.u32 %s4, %s567
    %s569 = sand.u32 %s568, 85
    %s570 = sshrl.u32 %s569, 1
    %s571 = sor.u32 %s569, %s570
    %s572 = sand.u32 51, %s571
    %s573 = sshrl.u32 %s572, 2
    %s574 = sor.u32 %s572, %s573
    %s575 = sand.u32 15, %s574
    %v576 = vld [vmem:[%s566] sm:%s575]
    %v577 = vunpack.c.l.bf16 %v576
    %v578 = vunpack.c.h.bf16 %v576
    %s579 = scalar_lea.vmem [#allocation1], 216
    %580 = vst [vmem:[%s579] sm:%s4] %v577
    %s581 = smul.addr 1, 26
    %s582 = scalar_lea.vmem %s0, %s581
    %s583 = sshrl.u32 %s4, 1
    %s584 = sor.u32 %s4, %s583
    %s585 = sand.u32 %s584, 85
    %s586 = sshrl.u32 %s585, 1
    %s587 = sor.u32 %s585, %s586
    %s588 = sand.u32 51, %s587
    %s589 = sshrl.u32 %s588, 2
    %s590 = sor.u32 %s588, %s589
    %s591 = sand.u32 15, %s590
    %v592 = vld [vmem:[%s582] sm:%s591]
    %v593 = vunpack.c.l.bf16 %v592
    %v594 = vunpack.c.h.bf16 %v592
    %s595 = scalar_lea.vmem [#allocation1], 208
    %596 = vst [vmem:[%s595] sm:%s4] %v593
    %s597 = smul.addr 1, 25
    %s598 = scalar_lea.vmem %s0, %s597
    %s599 = sshrl.u32 %s4, 1
    %s600 = sor.u32 %s4, %s599
    %s601 = sand.u32 %s600, 85
    %s602 = sshrl.u32 %s601, 1
    %s603 = sor.u32 %s601, %s602
    %s604 = sand.u32 51, %s603
    %s605 = sshrl.u32 %s604, 2
    %s606 = sor.u32 %s604, %s605
    %s607 = sand.u32 15, %s606
    %v608 = vld [vmem:[%s598] sm:%s607]
    %v609 = vunpack.c.l.bf16 %v608
    %v610 = vunpack.c.h.bf16 %v608
    %s611 = scalar_lea.vmem [#allocation1], 200
    %612 = vst [vmem:[%s611] sm:%s4] %v609
    %s613 = smul.addr 1, 24
    %s614 = scalar_lea.vmem %s0, %s613
    %s615 = sshrl.u32 %s4, 1
    %s616 = sor.u32 %s4, %s615
    %s617 = sand.u32 %s616, 85
    %s618 = sshrl.u32 %s617, 1
    %s619 = sor.u32 %s617, %s618
    %s620 = sand.u32 51, %s619
    %s621 = sshrl.u32 %s620, 2
    %s622 = sor.u32 %s620, %s621
    %s623 = sand.u32 15, %s622
    %v624 = vld [vmem:[%s614] sm:%s623]
    %v625 = vunpack.c.l.bf16 %v624
    %v626 = vunpack.c.h.bf16 %v624
    %s627 = scalar_lea.vmem [#allocation1], 192
    %628 = vst [vmem:[%s627] sm:%s4] %v625
    %s629 = smul.addr 1, 23
    %s630 = scalar_lea.vmem %s0, %s629
    %s631 = sshrl.u32 %s4, 1
    %s632 = sor.u32 %s4, %s631
    %s633 = sand.u32 %s632, 85
    %s634 = sshrl.u32 %s633, 1
    %s635 = sor.u32 %s633, %s634
    %s636 = sand.u32 51, %s635
    %s637 = sshrl.u32 %s636, 2
    %s638 = sor.u32 %s636, %s637
    %s639 = sand.u32 15, %s638
    %v640 = vld [vmem:[%s630] sm:%s639]
    %v641 = vunpack.c.l.bf16 %v640
    %v642 = vunpack.c.h.bf16 %v640
    %s643 = scalar_lea.vmem [#allocation1], 184
    %644 = vst [vmem:[%s643] sm:%s4] %v641
    %s645 = smul.addr 1, 22
    %s646 = scalar_lea.vmem %s0, %s645
    %s647 = sshrl.u32 %s4, 1
    %s648 = sor.u32 %s4, %s647
    %s649 = sand.u32 %s648, 85
    %s650 = sshrl.u32 %s649, 1
    %s651 = sor.u32 %s649, %s650
    %s652 = sand.u32 51, %s651
    %s653 = sshrl.u32 %s652, 2
    %s654 = sor.u32 %s652, %s653
    %s655 = sand.u32 15, %s654
    %v656 = vld [vmem:[%s646] sm:%s655]
    %v657 = vunpack.c.l.bf16 %v656
    %v658 = vunpack.c.h.bf16 %v656
    %s659 = scalar_lea.vmem [#allocation1], 176
    %660 = vst [vmem:[%s659] sm:%s4] %v657
    %s661 = smul.addr 1, 21
    %s662 = scalar_lea.vmem %s0, %s661
    %s663 = sshrl.u32 %s4, 1
    %s664 = sor.u32 %s4, %s663
    %s665 = sand.u32 %s664, 85
    %s666 = sshrl.u32 %s665, 1
    %s667 = sor.u32 %s665, %s666
    %s668 = sand.u32 51, %s667
    %s669 = sshrl.u32 %s668, 2
    %s670 = sor.u32 %s668, %s669
    %s671 = sand.u32 15, %s670
    %v672 = vld [vmem:[%s662] sm:%s671]
    %v673 = vunpack.c.l.bf16 %v672
    %v674 = vunpack.c.h.bf16 %v672
    %s675 = scalar_lea.vmem [#allocation1], 168
    %676 = vst [vmem:[%s675] sm:%s4] %v673
    %s677 = smul.addr 1, 20
    %s678 = scalar_lea.vmem %s0, %s677
    %s679 = sshrl.u32 %s4, 1
    %s680 = sor.u32 %s4, %s679
    %s681 = sand.u32 %s680, 85
    %s682 = sshrl.u32 %s681, 1
    %s683 = sor.u32 %s681, %s682
    %s684 = sand.u32 51, %s683
    %s685 = sshrl.u32 %s684, 2
    %s686 = sor.u32 %s684, %s685
    %s687 = sand.u32 15, %s686
    %v688 = vld [vmem:[%s678] sm:%s687]
    %v689 = vunpack.c.l.bf16 %v688
    %v690 = vunpack.c.h.bf16 %v688
    %s691 = scalar_lea.vmem [#allocation1], 160
    %692 = vst [vmem:[%s691] sm:%s4] %v689
    %s693 = smul.addr 1, 19
    %s694 = scalar_lea.vmem %s0, %s693
    %s695 = sshrl.u32 %s4, 1
    %s696 = sor.u32 %s4, %s695
    %s697 = sand.u32 %s696, 85
    %s698 = sshrl.u32 %s697, 1
    %s699 = sor.u32 %s697, %s698
    %s700 = sand.u32 51, %s699
    %s701 = sshrl.u32 %s700, 2
    %s702 = sor.u32 %s700, %s701
    %s703 = sand.u32 15, %s702
    %v704 = vld [vmem:[%s694] sm:%s703]
    %v705 = vunpack.c.l.bf16 %v704
    %v706 = vunpack.c.h.bf16 %v704
    %s707 = scalar_lea.vmem [#allocation1], 152
    %708 = vst [vmem:[%s707] sm:%s4] %v705
    %s709 = smul.addr 1, 18
    %s710 = scalar_lea.vmem %s0, %s709
    %s711 = sshrl.u32 %s4, 1
    %s712 = sor.u32 %s4, %s711
    %s713 = sand.u32 %s712, 85
    %s714 = sshrl.u32 %s713, 1
    %s715 = sor.u32 %s713, %s714
    %s716 = sand.u32 51, %s715
    %s717 = sshrl.u32 %s716, 2
    %s718 = sor.u32 %s716, %s717
    %s719 = sand.u32 15, %s718
    %v720 = vld [vmem:[%s710] sm:%s719]
    %v721 = vunpack.c.l.bf16 %v720
    %v722 = vunpack.c.h.bf16 %v720
    %s723 = scalar_lea.vmem [#allocation1], 144
    %724 = vst [vmem:[%s723] sm:%s4] %v721
    %s725 = smul.addr 1, 17
    %s726 = scalar_lea.vmem %s0, %s725
    %s727 = sshrl.u32 %s4, 1
    %s728 = sor.u32 %s4, %s727
    %s729 = sand.u32 %s728, 85
    %s730 = sshrl.u32 %s729, 1
    %s731 = sor.u32 %s729, %s730
    %s732 = sand.u32 51, %s731
    %s733 = sshrl.u32 %s732, 2
    %s734 = sor.u32 %s732, %s733
    %s735 = sand.u32 15, %s734
    %v736 = vld [vmem:[%s726] sm:%s735]
    %v737 = vunpack.c.l.bf16 %v736
    %v738 = vunpack.c.h.bf16 %v736
    %s739 = scalar_lea.vmem [#allocation1], 136
    %740 = vst [vmem:[%s739] sm:%s4] %v737
    %s741 = smul.addr 1, 16
    %s742 = scalar_lea.vmem %s0, %s741
    %s743 = sshrl.u32 %s4, 1
    %s744 = sor.u32 %s4, %s743
    %s745 = sand.u32 %s744, 85
    %s746 = sshrl.u32 %s745, 1
    %s747 = sor.u32 %s745, %s746
    %s748 = sand.u32 51, %s747
    %s749 = sshrl.u32 %s748, 2
    %s750 = sor.u32 %s748, %s749
    %s751 = sand.u32 15, %s750
    %v752 = vld [vmem:[%s742] sm:%s751]
    %v753 = vunpack.c.l.bf16 %v752
    %v754 = vunpack.c.h.bf16 %v752
    %s755 = scalar_lea.vmem [#allocation1], 128
    %756 = vst [vmem:[%s755] sm:%s4] %v753
    %s757 = smul.addr 1, 15
    %s758 = scalar_lea.vmem %s0, %s757
    %s759 = sshrl.u32 %s4, 1
    %s760 = sor.u32 %s4, %s759
    %s761 = sand.u32 %s760, 85
    %s762 = sshrl.u32 %s761, 1
    %s763 = sor.u32 %s761, %s762
    %s764 = sand.u32 51, %s763
    %s765 = sshrl.u32 %s764, 2
    %s766 = sor.u32 %s764, %s765
    %s767 = sand.u32 15, %s766
    %v768 = vld [vmem:[%s758] sm:%s767]
    %v769 = vunpack.c.l.bf16 %v768
    %v770 = vunpack.c.h.bf16 %v768
    %s771 = scalar_lea.vmem [#allocation1], 120
    %772 = vst [vmem:[%s771] sm:%s4] %v769
    %s773 = smul.addr 1, 14
    %s774 = scalar_lea.vmem %s0, %s773
    %s775 = sshrl.u32 %s4, 1
    %s776 = sor.u32 %s4, %s775
    %s777 = sand.u32 %s776, 85
    %s778 = sshrl.u32 %s777, 1
    %s779 = sor.u32 %s777, %s778
    %s780 = sand.u32 51, %s779
    %s781 = sshrl.u32 %s780, 2
    %s782 = sor.u32 %s780, %s781
    %s783 = sand.u32 15, %s782
    %v784 = vld [vmem:[%s774] sm:%s783]
    %v785 = vunpack.c.l.bf16 %v784
    %v786 = vunpack.c.h.bf16 %v784
    %s787 = scalar_lea.vmem [#allocation1], 112
    %788 = vst [vmem:[%s787] sm:%s4] %v785
    %s789 = smul.addr 1, 13
    %s790 = scalar_lea.vmem %s0, %s789
    %s791 = sshrl.u32 %s4, 1
    %s792 = sor.u32 %s4, %s791
    %s793 = sand.u32 %s792, 85
    %s794 = sshrl.u32 %s793, 1
    %s795 = sor.u32 %s793, %s794
    %s796 = sand.u32 51, %s795
    %s797 = sshrl.u32 %s796, 2
    %s798 = sor.u32 %s796, %s797
    %s799 = sand.u32 15, %s798
    %v800 = vld [vmem:[%s790] sm:%s799]
    %v801 = vunpack.c.l.bf16 %v800
    %v802 = vunpack.c.h.bf16 %v800
    %s803 = scalar_lea.vmem [#allocation1], 104
    %804 = vst [vmem:[%s803] sm:%s4] %v801
    %s805 = smul.addr 1, 12
    %s806 = scalar_lea.vmem %s0, %s805
    %s807 = sshrl.u32 %s4, 1
    %s808 = sor.u32 %s4, %s807
    %s809 = sand.u32 %s808, 85
    %s810 = sshrl.u32 %s809, 1
    %s811 = sor.u32 %s809, %s810
    %s812 = sand.u32 51, %s811
    %s813 = sshrl.u32 %s812, 2
    %s814 = sor.u32 %s812, %s813
    %s815 = sand.u32 15, %s814
    %v816 = vld [vmem:[%s806] sm:%s815]
    %v817 = vunpack.c.l.bf16 %v816
    %v818 = vunpack.c.h.bf16 %v816
    %s819 = scalar_lea.vmem [#allocation1], 96
    %820 = vst [vmem:[%s819] sm:%s4] %v817
    %s821 = smul.addr 1, 11
    %s822 = scalar_lea.vmem %s0, %s821
    %s823 = sshrl.u32 %s4, 1
    %s824 = sor.u32 %s4, %s823
    %s825 = sand.u32 %s824, 85
    %s826 = sshrl.u32 %s825, 1
    %s827 = sor.u32 %s825, %s826
    %s828 = sand.u32 51, %s827
    %s829 = sshrl.u32 %s828, 2
    %s830 = sor.u32 %s828, %s829
    %s831 = sand.u32 15, %s830
    %v832 = vld [vmem:[%s822] sm:%s831]
    %v833 = vunpack.c.l.bf16 %v832
    %v834 = vunpack.c.h.bf16 %v832
    %s835 = scalar_lea.vmem [#allocation1], 88
    %836 = vst [vmem:[%s835] sm:%s4] %v833
    %s837 = smul.addr 1, 10
    %s838 = scalar_lea.vmem %s0, %s837
    %s839 = sshrl.u32 %s4, 1
    %s840 = sor.u32 %s4, %s839
    %s841 = sand.u32 %s840, 85
    %s842 = sshrl.u32 %s841, 1
    %s843 = sor.u32 %s841, %s842
    %s844 = sand.u32 51, %s843
    %s845 = sshrl.u32 %s844, 2
    %s846 = sor.u32 %s844, %s845
    %s847 = sand.u32 15, %s846
    %v848 = vld [vmem:[%s838] sm:%s847]
    %v849 = vunpack.c.l.bf16 %v848
    %v850 = vunpack.c.h.bf16 %v848
    %s851 = scalar_lea.vmem [#allocation1], 80
    %852 = vst [vmem:[%s851] sm:%s4] %v849
    %s853 = smul.addr 1, 9
    %s854 = scalar_lea.vmem %s0, %s853
    %s855 = sshrl.u32 %s4, 1
    %s856 = sor.u32 %s4, %s855
    %s857 = sand.u32 %s856, 85
    %s858 = sshrl.u32 %s857, 1
    %s859 = sor.u32 %s857, %s858
    %s860 = sand.u32 51, %s859
    %s861 = sshrl.u32 %s860, 2
    %s862 = sor.u32 %s860, %s861
    %s863 = sand.u32 15, %s862
    %v864 = vld [vmem:[%s854] sm:%s863]
    %v865 = vunpack.c.l.bf16 %v864
    %v866 = vunpack.c.h.bf16 %v864
    %s867 = scalar_lea.vmem [#allocation1], 72
    %868 = vst [vmem:[%s867] sm:%s4] %v865
    %s869 = smul.addr 1, 8
    %s870 = scalar_lea.vmem %s0, %s869
    %s871 = sshrl.u32 %s4, 1
    %s872 = sor.u32 %s4, %s871
    %s873 = sand.u32 %s872, 85
    %s874 = sshrl.u32 %s873, 1
    %s875 = sor.u32 %s873, %s874
    %s876 = sand.u32 51, %s875
    %s877 = sshrl.u32 %s876, 2
    %s878 = sor.u32 %s876, %s877
    %s879 = sand.u32 15, %s878
    %v880 = vld [vmem:[%s870] sm:%s879]
    %v881 = vunpack.c.l.bf16 %v880
    %v882 = vunpack.c.h.bf16 %v880
    %s883 = scalar_lea.vmem [#allocation1], 64
    %884 = vst [vmem:[%s883] sm:%s4] %v881
    %s885 = smul.addr 1, 7
    %s886 = scalar_lea.vmem %s0, %s885
    %s887 = sshrl.u32 %s4, 1
    %s888 = sor.u32 %s4, %s887
    %s889 = sand.u32 %s888, 85
    %s890 = sshrl.u32 %s889, 1
    %s891 = sor.u32 %s889, %s890
    %s892 = sand.u32 51, %s891
    %s893 = sshrl.u32 %s892, 2
    %s894 = sor.u32 %s892, %s893
    %s895 = sand.u32 15, %s894
    %v896 = vld [vmem:[%s886] sm:%s895]
    %v897 = vunpack.c.l.bf16 %v896
    %v898 = vunpack.c.h.bf16 %v896
    %s899 = scalar_lea.vmem [#allocation1], 56
    %900 = vst [vmem:[%s899] sm:%s4] %v897
    %s901 = smul.addr 1, 6
    %s902 = scalar_lea.vmem %s0, %s901
    %s903 = sshrl.u32 %s4, 1
    %s904 = sor.u32 %s4, %s903
    %s905 = sand.u32 %s904, 85
    %s906 = sshrl.u32 %s905, 1
    %s907 = sor.u32 %s905, %s906
    %s908 = sand.u32 51, %s907
    %s909 = sshrl.u32 %s908, 2
    %s910 = sor.u32 %s908, %s909
    %s911 = sand.u32 15, %s910
    %v912 = vld [vmem:[%s902] sm:%s911]
    %v913 = vunpack.c.l.bf16 %v912
    %v914 = vunpack.c.h.bf16 %v912
    %s915 = scalar_lea.vmem [#allocation1], 48
    %916 = vst [vmem:[%s915] sm:%s4] %v913
    %s917 = smul.addr 1, 5
    %s918 = scalar_lea.vmem %s0, %s917
    %s919 = sshrl.u32 %s4, 1
    %s920 = sor.u32 %s4, %s919
    %s921 = sand.u32 %s920, 85
    %s922 = sshrl.u32 %s921, 1
    %s923 = sor.u32 %s921, %s922
    %s924 = sand.u32 51, %s923
    %s925 = sshrl.u32 %s924, 2
    %s926 = sor.u32 %s924, %s925
    %s927 = sand.u32 15, %s926
    %v928 = vld [vmem:[%s918] sm:%s927]
    %v929 = vunpack.c.l.bf16 %v928
    %v930 = vunpack.c.h.bf16 %v928
    %s931 = scalar_lea.vmem [#allocation1], 40
    %932 = vst [vmem:[%s931] sm:%s4] %v929
    %s933 = smul.addr 1, 4
    %s934 = scalar_lea.vmem %s0, %s933
    %s935 = sshrl.u32 %s4, 1
    %s936 = sor.u32 %s4, %s935
    %s937 = sand.u32 %s936, 85
    %s938 = sshrl.u32 %s937, 1
    %s939 = sor.u32 %s937, %s938
    %s940 = sand.u32 51, %s939
    %s941 = sshrl.u32 %s940, 2
    %s942 = sor.u32 %s940, %s941
    %s943 = sand.u32 15, %s942
    %v944 = vld [vmem:[%s934] sm:%s943]
    %v945 = vunpack.c.l.bf16 %v944
    %v946 = vunpack.c.h.bf16 %v944
    %s947 = scalar_lea.vmem [#allocation1], 32
    %948 = vst [vmem:[%s947] sm:%s4] %v945
    %s949 = smul.addr 1, 3
    %s950 = scalar_lea.vmem %s0, %s949
    %s951 = sshrl.u32 %s4, 1
    %s952 = sor.u32 %s4, %s951
    %s953 = sand.u32 %s952, 85
    %s954 = sshrl.u32 %s953, 1
    %s955 = sor.u32 %s953, %s954
    %s956 = sand.u32 51, %s955
    %s957 = sshrl.u32 %s956, 2
    %s958 = sor.u32 %s956, %s957
    %s959 = sand.u32 15, %s958
    %v960 = vld [vmem:[%s950] sm:%s959]
    %v961 = vunpack.c.l.bf16 %v960
    %v962 = vunpack.c.h.bf16 %v960
    %s963 = scalar_lea.vmem [#allocation1], 24
    %964 = vst [vmem:[%s963] sm:%s4] %v961
    %s965 = smul.addr 1, 2
    %s966 = scalar_lea.vmem %s0, %s965
    %s967 = sshrl.u32 %s4, 1
    %s968 = sor.u32 %s4, %s967
    %s969 = sand.u32 %s968, 85
    %s970 = sshrl.u32 %s969, 1
    %s971 = sor.u32 %s969, %s970
    %s972 = sand.u32 51, %s971
    %s973 = sshrl.u32 %s972, 2
    %s974 = sor.u32 %s972, %s973
    %s975 = sand.u32 15, %s974
    %v976 = vld [vmem:[%s966] sm:%s975]
    %v977 = vunpack.c.l.bf16 %v976
    %v978 = vunpack.c.h.bf16 %v976
    %s979 = scalar_lea.vmem [#allocation1], 16
    %980 = vst [vmem:[%s979] sm:%s4] %v977
    %s981 = scalar_lea.vmem %s0, 1
    %s982 = sshrl.u32 %s4, 1
    %s983 = sor.u32 %s4, %s982
    %s984 = sand.u32 %s983, 85
    %s985 = sshrl.u32 %s984, 1
    %s986 = sor.u32 %s984, %s985
    %s987 = sand.u32 51, %s986
    %s988 = sshrl.u32 %s987, 2
    %s989 = sor.u32 %s987, %s988
    %s990 = sand.u32 15, %s989
    %v991 = vld [vmem:[%s981] sm:%s990]
    %v992 = vunpack.c.l.bf16 %v991
    %v993 = vunpack.c.h.bf16 %v991
    %s994 = scalar_lea.vmem [#allocation1], 8
    %995 = vst [vmem:[%s994] sm:%s4] %v992
    %s996 = sshrl.u32 %s4, 1
    %s997 = sor.u32 %s4, %s996
    %s998 = sand.u32 %s997, 85
    %s999 = sshrl.u32 %s998, 1
    %s1000 = sor.u32 %s998, %s999
    %s1001 = sand.u32 51, %s1000
    %s1002 = sshrl.u32 %s1001, 2
    %s1003 = sor.u32 %s1001, %s1002
    %s1004 = sand.u32 15, %s1003
    %v1005 = vld [vmem:[%s0] sm:%s1004]
    %v1006 = vunpack.c.l.bf16 %v1005
    %v1007 = vunpack.c.h.bf16 %v1005
    %1008 = vst [vmem:[#allocation1] sm:%s4] %v1006
    %v1009 = vld [vmem:[#allocation1] sm:$0x3]
    %vm1010 = vcmask 130048
    %1011 = vst.msk [vmem:[#allocation0] ss:$504 sm:$0x3] %vm1010, %v1009
    %s1012 = scalar_lea.vmem [#allocation1], 8
    %v1013 = vld [vmem:[%s1012] sm:$0x3]
    %vm1014 = vcmask 130048
    %s1015 = scalar_lea.vmem [#allocation0], 8
    %1016 = vst.msk [vmem:[%s1015] ss:$504 sm:$0x3] %vm1014, %v1013
    %s1017 = scalar_lea.vmem [#allocation1], 16
    %v1018 = vld [vmem:[%s1017] sm:$0x3]
    %vm1019 = vcmask 130048
    %s1020 = scalar_lea.vmem [#allocation0], 16
    %1021 = vst.msk [vmem:[%s1020] ss:$504 sm:$0x3] %vm1019, %v1018
    %s1022 = scalar_lea.vmem [#allocation1], 24
    %v1023 = vld [vmem:[%s1022] sm:$0x3]
    %vm1024 = vcmask 130048
    %s1025 = scalar_lea.vmem [#allocation0], 24
    %1026 = vst.msk [vmem:[%s1025] ss:$504 sm:$0x3] %vm1024, %v1023
    %s1027 = scalar_lea.vmem [#allocation1], 32
    %v1028 = vld [vmem:[%s1027] sm:$0x3]
    %vm1029 = vcmask 130048
    %s1030 = scalar_lea.vmem [#allocation0], 32
    %1031 = vst.msk [vmem:[%s1030] ss:$504 sm:$0x3] %vm1029, %v1028
    %s1032 = scalar_lea.vmem [#allocation1], 40
    %v1033 = vld [vmem:[%s1032] sm:$0x3]
    %vm1034 = vcmask 130048
    %s1035 = scalar_lea.vmem [#allocation0], 40
    %1036 = vst.msk [vmem:[%s1035] ss:$504 sm:$0x3] %vm1034, %v1033
    %s1037 = scalar_lea.vmem [#allocation1], 48
    %v1038 = vld [vmem:[%s1037] sm:$0x3]
    %vm1039 = vcmask 130048
    %s1040 = scalar_lea.vmem [#allocation0], 48
    %1041 = vst.msk [vmem:[%s1040] ss:$504 sm:$0x3] %vm1039, %v1038
    %s1042 = scalar_lea.vmem [#allocation1], 56
    %v1043 = vld [vmem:[%s1042] sm:$0x3]
    %vm1044 = vcmask 130048
    %s1045 = scalar_lea.vmem [#allocation0], 56
    %1046 = vst.msk [vmem:[%s1045] ss:$504 sm:$0x3] %vm1044, %v1043
    %s1047 = scalar_lea.vmem [#allocation1], 64
    %v1048 = vld [vmem:[%s1047] sm:$0x3]
    %vm1049 = vcmask 130048
    %s1050 = scalar_lea.vmem [#allocation0], 64
    %1051 = vst.msk [vmem:[%s1050] ss:$504 sm:$0x3] %vm1049, %v1048
    %s1052 = scalar_lea.vmem [#allocation1], 72
    %v1053 = vld [vmem:[%s1052] sm:$0x3]
    %vm1054 = vcmask 130048
    %s1055 = scalar_lea.vmem [#allocation0], 72
    %1056 = vst.msk [vmem:[%s1055] ss:$504 sm:$0x3] %vm1054, %v1053
    %s1057 = scalar_lea.vmem [#allocation1], 80
    %v1058 = vld [vmem:[%s1057] sm:$0x3]
    %vm1059 = vcmask 130048
    %s1060 = scalar_lea.vmem [#allocation0], 80
    %1061 = vst.msk [vmem:[%s1060] ss:$504 sm:$0x3] %vm1059, %v1058
    %s1062 = scalar_lea.vmem [#allocation1], 88
    %v1063 = vld [vmem:[%s1062] sm:$0x3]
    %vm1064 = vcmask 130048
    %s1065 = scalar_lea.vmem [#allocation0], 88
    %1066 = vst.msk [vmem:[%s1065] ss:$504 sm:$0x3] %vm1064, %v1063
    %s1067 = scalar_lea.vmem [#allocation1], 96
    %v1068 = vld [vmem:[%s1067] sm:$0x3]
    %vm1069 = vcmask 130048
    %s1070 = scalar_lea.vmem [#allocation0], 96
    %1071 = vst.msk [vmem:[%s1070] ss:$504 sm:$0x3] %vm1069, %v1068
    %s1072 = scalar_lea.vmem [#allocation1], 104
    %v1073 = vld [vmem:[%s1072] sm:$0x3]
    %vm1074 = vcmask 130048
    %s1075 = scalar_lea.vmem [#allocation0], 104
    %1076 = vst.msk [vmem:[%s1075] ss:$504 sm:$0x3] %vm1074, %v1073
    %s1077 = scalar_lea.vmem [#allocation1], 112
    %v1078 = vld [vmem:[%s1077] sm:$0x3]
    %vm1079 = vcmask 130048
    %s1080 = scalar_lea.vmem [#allocation0], 112
    %1081 = vst.msk [vmem:[%s1080] ss:$504 sm:$0x3] %vm1079, %v1078
    %s1082 = scalar_lea.vmem [#allocation1], 120
    %v1083 = vld [vmem:[%s1082] sm:$0x3]
    %vm1084 = vcmask 130048
    %s1085 = scalar_lea.vmem [#allocation0], 120
    %1086 = vst.msk [vmem:[%s1085] ss:$504 sm:$0x3] %vm1084, %v1083
    %s1087 = scalar_lea.vmem [#allocation1], 128
    %v1088 = vld [vmem:[%s1087] sm:$0x3]
    %vm1089 = vcmask 130048
    %s1090 = scalar_lea.vmem [#allocation0], 128
    %1091 = vst.msk [vmem:[%s1090] ss:$504 sm:$0x3] %vm1089, %v1088
    %s1092 = scalar_lea.vmem [#allocation1], 136
    %v1093 = vld [vmem:[%s1092] sm:$0x3]
    %vm1094 = vcmask 130048
    %s1095 = scalar_lea.vmem [#allocation0], 136
    %1096 = vst.msk [vmem:[%s1095] ss:$504 sm:$0x3] %vm1094, %v1093
    %s1097 = scalar_lea.vmem [#allocation1], 144
    %v1098 = vld [vmem:[%s1097] sm:$0x3]
    %vm1099 = vcmask 130048
    %s1100 = scalar_lea.vmem [#allocation0], 144
    %1101 = vst.msk [vmem:[%s1100] ss:$504 sm:$0x3] %vm1099, %v1098
    %s1102 = scalar_lea.vmem [#allocation1], 152
    %v1103 = vld [vmem:[%s1102] sm:$0x3]
    %vm1104 = vcmask 130048
    %s1105 = scalar_lea.vmem [#allocation0], 152
    %1106 = vst.msk [vmem:[%s1105] ss:$504 sm:$0x3] %vm1104, %v1103
    %s1107 = scalar_lea.vmem [#allocation1], 160
    %v1108 = vld [vmem:[%s1107] sm:$0x3]
    %vm1109 = vcmask 130048
    %s1110 = scalar_lea.vmem [#allocation0], 160
    %1111 = vst.msk [vmem:[%s1110] ss:$504 sm:$0x3] %vm1109, %v1108
    %s1112 = scalar_lea.vmem [#allocation1], 168
    %v1113 = vld [vmem:[%s1112] sm:$0x3]
    %vm1114 = vcmask 130048
    %s1115 = scalar_lea.vmem [#allocation0], 168
    %1116 = vst.msk [vmem:[%s1115] ss:$504 sm:$0x3] %vm1114, %v1113
    %s1117 = scalar_lea.vmem [#allocation1], 176
    %v1118 = vld [vmem:[%s1117] sm:$0x3]
    %vm1119 = vcmask 130048
    %s1120 = scalar_lea.vmem [#allocation0], 176
    %1121 = vst.msk [vmem:[%s1120] ss:$504 sm:$0x3] %vm1119, %v1118
    %s1122 = scalar_lea.vmem [#allocation1], 184
    %v1123 = vld [vmem:[%s1122] sm:$0x3]
    %vm1124 = vcmask 130048
    %s1125 = scalar_lea.vmem [#allocation0], 184
    %1126 = vst.msk [vmem:[%s1125] ss:$504 sm:$0x3] %vm1124, %v1123
    %s1127 = scalar_lea.vmem [#allocation1], 192
    %v1128 = vld [vmem:[%s1127] sm:$0x3]
    %vm1129 = vcmask 130048
    %s1130 = scalar_lea.vmem [#allocation0], 192
    %1131 = vst.msk [vmem:[%s1130] ss:$504 sm:$0x3] %vm1129, %v1128
    %s1132 = scalar_lea.vmem [#allocation1], 200
    %v1133 = vld [vmem:[%s1132] sm:$0x3]
    %vm1134 = vcmask 130048
    %s1135 = scalar_lea.vmem [#allocation0], 200
    %1136 = vst.msk [vmem:[%s1135] ss:$504 sm:$0x3] %vm1134, %v1133
    %s1137 = scalar_lea.vmem [#allocation1], 208
    %v1138 = vld [vmem:[%s1137] sm:$0x3]
    %vm1139 = vcmask 130048
    %s1140 = scalar_lea.vmem [#allocation0], 208
    %1141 = vst.msk [vmem:[%s1140] ss:$504 sm:$0x3] %vm1139, %v1138
    %s1142 = scalar_lea.vmem [#allocation1], 216
    %v1143 = vld [vmem:[%s1142] sm:$0x3]
    %vm1144 = vcmask 130048
    %s1145 = scalar_lea.vmem [#allocation0], 216
    %1146 = vst.msk [vmem:[%s1145] ss:$504 sm:$0x3] %vm1144, %v1143
    %s1147 = scalar_lea.vmem [#allocation1], 224
    %v1148 = vld [vmem:[%s1147] sm:$0x3]
    %vm1149 = vcmask 130048
    %s1150 = scalar_lea.vmem [#allocation0], 224
    %1151 = vst.msk [vmem:[%s1150] ss:$504 sm:$0x3] %vm1149, %v1148
    %s1152 = scalar_lea.vmem [#allocation1], 232
    %v1153 = vld [vmem:[%s1152] sm:$0x3]
    %vm1154 = vcmask 130048
    %s1155 = scalar_lea.vmem [#allocation0], 232
    %1156 = vst.msk [vmem:[%s1155] ss:$504 sm:$0x3] %vm1154, %v1153
    %s1157 = scalar_lea.vmem [#allocation1], 240
    %v1158 = vld [vmem:[%s1157] sm:$0x3]
    %vm1159 = vcmask 130048
    %s1160 = scalar_lea.vmem [#allocation0], 240
    %1161 = vst.msk [vmem:[%s1160] ss:$504 sm:$0x3] %vm1159, %v1158
    %s1162 = scalar_lea.vmem [#allocation1], 248
    %v1163 = vld [vmem:[%s1162] sm:$0x3]
    %vm1164 = vcmask 130048
    %s1165 = scalar_lea.vmem [#allocation0], 248
    %1166 = vst.msk [vmem:[%s1165] ss:$504 sm:$0x3] %vm1164, %v1163
    %s1167 = scalar_lea.vmem [#allocation1], 256
    %v1168 = vld [vmem:[%s1167] sm:$0x3]
    %vm1169 = vcmask 130048
    %s1170 = scalar_lea.vmem [#allocation0], 256
    %1171 = vst.msk [vmem:[%s1170] ss:$504 sm:$0x3] %vm1169, %v1168
    %s1172 = scalar_lea.vmem [#allocation1], 264
    %v1173 = vld [vmem:[%s1172] sm:$0x3]
    %vm1174 = vcmask 130048
    %s1175 = scalar_lea.vmem [#allocation0], 264
    %1176 = vst.msk [vmem:[%s1175] ss:$504 sm:$0x3] %vm1174, %v1173
    %s1177 = scalar_lea.vmem [#allocation1], 272
    %v1178 = vld [vmem:[%s1177] sm:$0x3]
    %vm1179 = vcmask 130048
    %s1180 = scalar_lea.vmem [#allocation0], 272
    %1181 = vst.msk [vmem:[%s1180] ss:$504 sm:$0x3] %vm1179, %v1178
    %s1182 = scalar_lea.vmem [#allocation1], 280
    %v1183 = vld [vmem:[%s1182] sm:$0x3]
    %vm1184 = vcmask 130048
    %s1185 = scalar_lea.vmem [#allocation0], 280
    %1186 = vst.msk [vmem:[%s1185] ss:$504 sm:$0x3] %vm1184, %v1183
    %s1187 = scalar_lea.vmem [#allocation1], 288
    %v1188 = vld [vmem:[%s1187] sm:$0x3]
    %vm1189 = vcmask 130048
    %s1190 = scalar_lea.vmem [#allocation0], 288
    %1191 = vst.msk [vmem:[%s1190] ss:$504 sm:$0x3] %vm1189, %v1188
    %s1192 = scalar_lea.vmem [#allocation1], 296
    %v1193 = vld [vmem:[%s1192] sm:$0x3]
    %vm1194 = vcmask 130048
    %s1195 = scalar_lea.vmem [#allocation0], 296
    %1196 = vst.msk [vmem:[%s1195] ss:$504 sm:$0x3] %vm1194, %v1193
    %s1197 = scalar_lea.vmem [#allocation1], 304
    %v1198 = vld [vmem:[%s1197] sm:$0x3]
    %vm1199 = vcmask 130048
    %s1200 = scalar_lea.vmem [#allocation0], 304
    %1201 = vst.msk [vmem:[%s1200] ss:$504 sm:$0x3] %vm1199, %v1198
    %s1202 = scalar_lea.vmem [#allocation1], 312
    %v1203 = vld [vmem:[%s1202] sm:$0x3]
    %vm1204 = vcmask 130048
    %s1205 = scalar_lea.vmem [#allocation0], 312
    %1206 = vst.msk [vmem:[%s1205] ss:$504 sm:$0x3] %vm1204, %v1203
    %s1207 = scalar_lea.vmem [#allocation1], 320
    %v1208 = vld [vmem:[%s1207] sm:$0x3]
    %vm1209 = vcmask 130048
    %s1210 = scalar_lea.vmem [#allocation0], 320
    %1211 = vst.msk [vmem:[%s1210] ss:$504 sm:$0x3] %vm1209, %v1208
    %s1212 = scalar_lea.vmem [#allocation1], 328
    %v1213 = vld [vmem:[%s1212] sm:$0x3]
    %vm1214 = vcmask 130048
    %s1215 = scalar_lea.vmem [#allocation0], 328
    %1216 = vst.msk [vmem:[%s1215] ss:$504 sm:$0x3] %vm1214, %v1213
    %s1217 = scalar_lea.vmem [#allocation1], 336
    %v1218 = vld [vmem:[%s1217] sm:$0x3]
    %vm1219 = vcmask 130048
    %s1220 = scalar_lea.vmem [#allocation0], 336
    %1221 = vst.msk [vmem:[%s1220] ss:$504 sm:$0x3] %vm1219, %v1218
    %s1222 = scalar_lea.vmem [#allocation1], 344
    %v1223 = vld [vmem:[%s1222] sm:$0x3]
    %vm1224 = vcmask 130048
    %s1225 = scalar_lea.vmem [#allocation0], 344
    %1226 = vst.msk [vmem:[%s1225] ss:$504 sm:$0x3] %vm1224, %v1223
    %s1227 = scalar_lea.vmem [#allocation1], 352
    %v1228 = vld [vmem:[%s1227] sm:$0x3]
    %vm1229 = vcmask 130048
    %s1230 = scalar_lea.vmem [#allocation0], 352
    %1231 = vst.msk [vmem:[%s1230] ss:$504 sm:$0x3] %vm1229, %v1228
    %s1232 = scalar_lea.vmem [#allocation1], 360
    %v1233 = vld [vmem:[%s1232] sm:$0x3]
    %vm1234 = vcmask 130048
    %s1235 = scalar_lea.vmem [#allocation0], 360
    %1236 = vst.msk [vmem:[%s1235] ss:$504 sm:$0x3] %vm1234, %v1233
    %s1237 = scalar_lea.vmem [#allocation1], 368
    %v1238 = vld [vmem:[%s1237] sm:$0x3]
    %vm1239 = vcmask 130048
    %s1240 = scalar_lea.vmem [#allocation0], 368
    %1241 = vst.msk [vmem:[%s1240] ss:$504 sm:$0x3] %vm1239, %v1238
    %s1242 = scalar_lea.vmem [#allocation1], 376
    %v1243 = vld [vmem:[%s1242] sm:$0x3]
    %vm1244 = vcmask 130048
    %s1245 = scalar_lea.vmem [#allocation0], 376
    %1246 = vst.msk [vmem:[%s1245] ss:$504 sm:$0x3] %vm1244, %v1243
    %s1247 = scalar_lea.vmem [#allocation1], 384
    %v1248 = vld [vmem:[%s1247] sm:$0x3]
    %vm1249 = vcmask 130048
    %s1250 = scalar_lea.vmem [#allocation0], 384
    %1251 = vst.msk [vmem:[%s1250] ss:$504 sm:$0x3] %vm1249, %v1248
    %s1252 = scalar_lea.vmem [#allocation1], 392
    %v1253 = vld [vmem:[%s1252] sm:$0x3]
    %vm1254 = vcmask 130048
    %s1255 = scalar_lea.vmem [#allocation0], 392
    %1256 = vst.msk [vmem:[%s1255] ss:$504 sm:$0x3] %vm1254, %v1253
    %s1257 = scalar_lea.vmem [#allocation1], 400
    %v1258 = vld [vmem:[%s1257] sm:$0x3]
    %vm1259 = vcmask 130048
    %s1260 = scalar_lea.vmem [#allocation0], 400
    %1261 = vst.msk [vmem:[%s1260] ss:$504 sm:$0x3] %vm1259, %v1258
    %s1262 = scalar_lea.vmem [#allocation1], 408
    %v1263 = vld [vmem:[%s1262] sm:$0x3]
    %vm1264 = vcmask 130048
    %s1265 = scalar_lea.vmem [#allocation0], 408
    %1266 = vst.msk [vmem:[%s1265] ss:$504 sm:$0x3] %vm1264, %v1263
    %s1267 = scalar_lea.vmem [#allocation1], 416
    %v1268 = vld [vmem:[%s1267] sm:$0x3]
    %vm1269 = vcmask 130048
    %s1270 = scalar_lea.vmem [#allocation0], 416
    %1271 = vst.msk [vmem:[%s1270] ss:$504 sm:$0x3] %vm1269, %v1268
    %s1272 = scalar_lea.vmem [#allocation1], 424
    %v1273 = vld [vmem:[%s1272] sm:$0x3]
    %vm1274 = vcmask 130048
    %s1275 = scalar_lea.vmem [#allocation0], 424
    %1276 = vst.msk [vmem:[%s1275] ss:$504 sm:$0x3] %vm1274, %v1273
    %s1277 = scalar_lea.vmem [#allocation1], 432
    %v1278 = vld [vmem:[%s1277] sm:$0x3]
    %vm1279 = vcmask 130048
    %s1280 = scalar_lea.vmem [#allocation0], 432
    %1281 = vst.msk [vmem:[%s1280] ss:$504 sm:$0x3] %vm1279, %v1278
    %s1282 = scalar_lea.vmem [#allocation1], 440
    %v1283 = vld [vmem:[%s1282] sm:$0x3]
    %vm1284 = vcmask 130048
    %s1285 = scalar_lea.vmem [#allocation0], 440
    %1286 = vst.msk [vmem:[%s1285] ss:$504 sm:$0x3] %vm1284, %v1283
    %s1287 = scalar_lea.vmem [#allocation1], 448
    %v1288 = vld [vmem:[%s1287] sm:$0x3]
    %vm1289 = vcmask 130048
    %s1290 = scalar_lea.vmem [#allocation0], 448
    %1291 = vst.msk [vmem:[%s1290] ss:$504 sm:$0x3] %vm1289, %v1288
    %s1292 = scalar_lea.vmem [#allocation1], 456
    %v1293 = vld [vmem:[%s1292] sm:$0x3]
    %vm1294 = vcmask 130048
    %s1295 = scalar_lea.vmem [#allocation0], 456
    %1296 = vst.msk [vmem:[%s1295] ss:$504 sm:$0x3] %vm1294, %v1293
    %s1297 = scalar_lea.vmem [#allocation1], 464
    %v1298 = vld [vmem:[%s1297] sm:$0x3]
    %vm1299 = vcmask 130048
    %s1300 = scalar_lea.vmem [#allocation0], 464
    %1301 = vst.msk [vmem:[%s1300] ss:$504 sm:$0x3] %vm1299, %v1298
    %s1302 = scalar_lea.vmem [#allocation1], 472
    %v1303 = vld [vmem:[%s1302] sm:$0x3]
    %vm1304 = vcmask 130048
    %s1305 = scalar_lea.vmem [#allocation0], 472
    %1306 = vst.msk [vmem:[%s1305] ss:$504 sm:$0x3] %vm1304, %v1303
    %s1307 = scalar_lea.vmem [#allocation1], 480
    %v1308 = vld [vmem:[%s1307] sm:$0x3]
    %vm1309 = vcmask 130048
    %s1310 = scalar_lea.vmem [#allocation0], 480
    %1311 = vst.msk [vmem:[%s1310] ss:$504 sm:$0x3] %vm1309, %v1308
    %s1312 = scalar_lea.vmem [#allocation1], 488
    %v1313 = vld [vmem:[%s1312] sm:$0x3]
    %vm1314 = vcmask 130048
    %s1315 = scalar_lea.vmem [#allocation0], 488
    %1316 = vst.msk [vmem:[%s1315] ss:$504 sm:$0x3] %vm1314, %v1313
    %s1317 = scalar_lea.vmem [#allocation1], 496
    %v1318 = vld [vmem:[%s1317] sm:$0x3]
    %vm1319 = vcmask 130048
    %s1320 = scalar_lea.vmem [#allocation0], 496
    %1321 = vst.msk [vmem:[%s1320] ss:$504 sm:$0x3] %vm1319, %v1318
    %v1322 = vld [vmem:[#allocation1] ss:$8 sm:$0x7]
    %s1323 = scalar_lea.vmem [#allocation1], 4294967273
    %v1324 = vld [vmem:[%s1323] ss:$8 sm:$0x78]
    %vm1325 = vcmask 1046531
    %v1326 = vsel %vm1325, %v1324, %v1322
    %s1327 = scalar_lea.vmem [#allocation1], 17
    %v1328 = vld [vmem:[%s1327] sm:$0x80]
    %vm1329 = vcmask 1047559
    %v1330 = vsel %vm1329, %v1328, %v1326
    %1331 = vrot.lane.b32.xlu0 %v1330, 112
    %v1332 = vpop.permute.xlu0 %1331
    %vm1333 = vcmask 130048
    %s1334 = scalar_lea.vmem [#allocation0], 1
    %1335 = vst.msk [vmem:[%s1334] ss:$8 sm:$0x7] %vm1333, %v1332
    %s1336 = scalar_lea.vmem [#allocation0], 481
    %1337 = vst.msk [vmem:[%s1336] ss:$8 sm:$0x78] %vm1333, %v1332
    %s1338 = scalar_lea.vmem [#allocation0], 18
    %1339 = vst.msk [vmem:[%s1338] sm:$0x80] %vm1333, %v1332
    %s1340 = scalar_lea.vmem [#allocation1], 32
    %v1341 = vld [vmem:[%s1340] ss:$8 sm:$0x7]
    %s1342 = scalar_lea.vmem [#allocation1], 9
    %v1343 = vld [vmem:[%s1342] ss:$8 sm:$0x78]
    %vm1344 = vcmask 1046531
    %v1345 = vsel %vm1344, %v1343, %v1341
    %s1346 = scalar_lea.vmem [#allocation1], 49
    %v1347 = vld [vmem:[%s1346] sm:$0x80]
    %vm1348 = vcmask 1047559
    %v1349 = vsel %vm1348, %v1347, %v1345
    %1350 = vrot.lane.b32.xlu0 %v1349, 112
    %v1351 = vpop.permute.xlu0 %1350
    %vm1352 = vcmask 130048
    %s1353 = scalar_lea.vmem [#allocation0], 33
    %1354 = vst.msk [vmem:[%s1353] ss:$8 sm:$0x7] %vm1352, %v1351
    %s1355 = scalar_lea.vmem [#allocation0], 513
    %1356 = vst.msk [vmem:[%s1355] ss:$8 sm:$0x78] %vm1352, %v1351
    %s1357 = scalar_lea.vmem [#allocation0], 50
    %1358 = vst.msk [vmem:[%s1357] sm:$0x80] %vm1352, %v1351
    %s1359 = scalar_lea.vmem [#allocation1], 64
    %v1360 = vld [vmem:[%s1359] ss:$8 sm:$0x7]
    %s1361 = scalar_lea.vmem [#allocation1], 41
    %v1362 = vld [vmem:[%s1361] ss:$8 sm:$0x78]
    %vm1363 = vcmask 1046531
    %v1364 = vsel %vm1363, %v1362, %v1360
    %s1365 = scalar_lea.vmem [#allocation1], 81
    %v1366 = vld [vmem:[%s1365] sm:$0x80]
    %vm1367 = vcmask 1047559
    %v1368 = vsel %vm1367, %v1366, %v1364
    %1369 = vrot.lane.b32.xlu0 %v1368, 112
    %v1370 = vpop.permute.xlu0 %1369
    %vm1371 = vcmask 130048
    %s1372 = scalar_lea.vmem [#allocation0], 65
    %1373 = vst.msk [vmem:[%s1372] ss:$8 sm:$0x7] %vm1371, %v1370
    %s1374 = scalar_lea.vmem [#allocation0], 545
    %1375 = vst.msk [vmem:[%s1374] ss:$8 sm:$0x78] %vm1371, %v1370
    %s1376 = scalar_lea.vmem [#allocation0], 82
    %1377 = vst.msk [vmem:[%s1376] sm:$0x80] %vm1371, %v1370
    %s1378 = scalar_lea.vmem [#allocation1], 96
    %v1379 = vld [vmem:[%s1378] ss:$8 sm:$0x7]
    %s1380 = scalar_lea.vmem [#allocation1], 73
    %v1381 = vld [vmem:[%s1380] ss:$8 sm:$0x78]
    %vm1382 = vcmask 1046531
    %v1383 = vsel %vm1382, %v1381, %v1379
    %s1384 = scalar_lea.vmem [#allocation1], 113
    %v1385 = vld [vmem:[%s1384] sm:$0x80]
    %vm1386 = vcmask 1047559
    %v1387 = vsel %vm1386, %v1385, %v1383
    %1388 = vrot.lane.b32.xlu0 %v1387, 112
    %v1389 = vpop.permute.xlu0 %1388
    %vm1390 = vcmask 130048
    %s1391 = scalar_lea.vmem [#allocation0], 97
    %1392 = vst.msk [vmem:[%s1391] ss:$8 sm:$0x7] %vm1390, %v1389
    %s1393 = scalar_lea.vmem [#allocation0], 577
    %1394 = vst.msk [vmem:[%s1393] ss:$8 sm:$0x78] %vm1390, %v1389
    %s1395 = scalar_lea.vmem [#allocation0], 114
    %1396 = vst.msk [vmem:[%s1395] sm:$0x80] %vm1390, %v1389
    %s1397 = scalar_lea.vmem [#allocation1], 128
    %v1398 = vld [vmem:[%s1397] ss:$8 sm:$0x7]
    %s1399 = scalar_lea.vmem [#allocation1], 105
    %v1400 = vld [vmem:[%s1399] ss:$8 sm:$0x78]
    %vm1401 = vcmask 1046531
    %v1402 = vsel %vm1401, %v1400, %v1398
    %s1403 = scalar_lea.vmem [#allocation1], 145
    %v1404 = vld [vmem:[%s1403] sm:$0x80]
    %vm1405 = vcmask 1047559
    %v1406 = vsel %vm1405, %v1404, %v1402
    %1407 = vrot.lane.b32.xlu0 %v1406, 112
    %v1408 = vpop.permute.xlu0 %1407
    %vm1409 = vcmask 130048
    %s1410 = scalar_lea.vmem [#allocation0], 129
    %1411 = vst.msk [vmem:[%s1410] ss:$8 sm:$0x7] %vm1409, %v1408
    %s1412 = scalar_lea.vmem [#allocation0], 609
    %1413 = vst.msk [vmem:[%s1412] ss:$8 sm:$0x78] %vm1409, %v1408
    %s1414 = scalar_lea.vmem [#allocation0], 146
    %1415 = vst.msk [vmem:[%s1414] sm:$0x80] %vm1409, %v1408
    %s1416 = scalar_lea.vmem [#allocation1], 160
    %v1417 = vld [vmem:[%s1416] ss:$8 sm:$0x7]
    %s1418 = scalar_lea.vmem [#allocation1], 137
    %v1419 = vld [vmem:[%s1418] ss:$8 sm:$0x78]
    %vm1420 = vcmask 1046531
    %v1421 = vsel %vm1420, %v1419, %v1417
    %s1422 = scalar_lea.vmem [#allocation1], 177
    %v1423 = vld [vmem:[%s1422] sm:$0x80]
    %vm1424 = vcmask 1047559
    %v1425 = vsel %vm1424, %v1423, %v1421
    %1426 = vrot.lane.b32.xlu0 %v1425, 112
    %v1427 = vpop.permute.xlu0 %1426
    %vm1428 = vcmask 130048
    %s1429 = scalar_lea.vmem [#allocation0], 161
    %1430 = vst.msk [vmem:[%s1429] ss:$8 sm:$0x7] %vm1428, %v1427
    %s1431 = scalar_lea.vmem [#allocation0], 641
    %1432 = vst.msk [vmem:[%s1431] ss:$8 sm:$0x78] %vm1428, %v1427
    %s1433 = scalar_lea.vmem [#allocation0], 178
    %1434 = vst.msk [vmem:[%s1433] sm:$0x80] %vm1428, %v1427
    %s1435 = scalar_lea.vmem [#allocation1], 192
    %v1436 = vld [vmem:[%s1435] ss:$8 sm:$0x7]
    %s1437 = scalar_lea.vmem [#allocation1], 169
    %v1438 = vld [vmem:[%s1437] ss:$8 sm:$0x78]
    %vm1439 = vcmask 1046531
    %v1440 = vsel %vm1439, %v1438, %v1436
    %s1441 = scalar_lea.vmem [#allocation1], 209
    %v1442 = vld [vmem:[%s1441] sm:$0x80]
    %vm1443 = vcmask 1047559
    %v1444 = vsel %vm1443, %v1442, %v1440
    %1445 = vrot.lane.b32.xlu0 %v1444, 112
    %v1446 = vpop.permute.xlu0 %1445
    %vm1447 = vcmask 130048
    %s1448 = scalar_lea.vmem [#allocation0], 193
    %1449 = vst.msk [vmem:[%s1448] ss:$8 sm:$0x7] %vm1447, %v1446
    %s1450 = scalar_lea.vmem [#allocation0], 673
    %1451 = vst.msk [vmem:[%s1450] ss:$8 sm:$0x78] %vm1447, %v1446
    %s1452 = scalar_lea.vmem [#allocation0], 210
    %1453 = vst.msk [vmem:[%s1452] sm:$0x80] %vm1447, %v1446
    %s1454 = scalar_lea.vmem [#allocation1], 224
    %v1455 = vld [vmem:[%s1454] ss:$8 sm:$0x7]
    %s1456 = scalar_lea.vmem [#allocation1], 201
    %v1457 = vld [vmem:[%s1456] ss:$8 sm:$0x78]
    %vm1458 = vcmask 1046531
    %v1459 = vsel %vm1458, %v1457, %v1455
    %s1460 = scalar_lea.vmem [#allocation1], 241
    %v1461 = vld [vmem:[%s1460] sm:$0x80]
    %vm1462 = vcmask 1047559
    %v1463 = vsel %vm1462, %v1461, %v1459
    %1464 = vrot.lane.b32.xlu0 %v1463, 112
    %v1465 = vpop.permute.xlu0 %1464
    %vm1466 = vcmask 130048
    %s1467 = scalar_lea.vmem [#allocation0], 225
    %1468 = vst.msk [vmem:[%s1467] ss:$8 sm:$0x7] %vm1466, %v1465
    %s1469 = scalar_lea.vmem [#allocation0], 705
    %1470 = vst.msk [vmem:[%s1469] ss:$8 sm:$0x78] %vm1466, %v1465
    %s1471 = scalar_lea.vmem [#allocation0], 242
    %1472 = vst.msk [vmem:[%s1471] sm:$0x80] %vm1466, %v1465
    %s1473 = scalar_lea.vmem [#allocation1], 256
    %v1474 = vld [vmem:[%s1473] ss:$8 sm:$0x7]
    %s1475 = scalar_lea.vmem [#allocation1], 233
    %v1476 = vld [vmem:[%s1475] ss:$8 sm:$0x78]
    %vm1477 = vcmask 1046531
    %v1478 = vsel %vm1477, %v1476, %v1474
    %s1479 = scalar_lea.vmem [#allocation1], 273
    %v1480 = vld [vmem:[%s1479] sm:$0x80]
    %vm1481 = vcmask 1047559
    %v1482 = vsel %vm1481, %v1480, %v1478
    %1483 = vrot.lane.b32.xlu0 %v1482, 112
    %v1484 = vpop.permute.xlu0 %1483
    %vm1485 = vcmask 130048
    %s1486 = scalar_lea.vmem [#allocation0], 257
    %1487 = vst.msk [vmem:[%s1486] ss:$8 sm:$0x7] %vm1485, %v1484
    %s1488 = scalar_lea.vmem [#allocation0], 737
    %1489 = vst.msk [vmem:[%s1488] ss:$8 sm:$0x78] %vm1485, %v1484
    %s1490 = scalar_lea.vmem [#allocation0], 274
    %1491 = vst.msk [vmem:[%s1490] sm:$0x80] %vm1485, %v1484
    %s1492 = scalar_lea.vmem [#allocation1], 288
    %v1493 = vld [vmem:[%s1492] ss:$8 sm:$0x7]
    %s1494 = scalar_lea.vmem [#allocation1], 265
    %v1495 = vld [vmem:[%s1494] ss:$8 sm:$0x78]
    %vm1496 = vcmask 1046531
    %v1497 = vsel %vm1496, %v1495, %v1493
    %s1498 = scalar_lea.vmem [#allocation1], 305
    %v1499 = vld [vmem:[%s1498] sm:$0x80]
    %vm1500 = vcmask 1047559
    %v1501 = vsel %vm1500, %v1499, %v1497
    %1502 = vrot.lane.b32.xlu0 %v1501, 112
    %v1503 = vpop.permute.xlu0 %1502
    %vm1504 = vcmask 130048
    %s1505 = scalar_lea.vmem [#allocation0], 289
    %1506 = vst.msk [vmem:[%s1505] ss:$8 sm:$0x7] %vm1504, %v1503
    %s1507 = scalar_lea.vmem [#allocation0], 769
    %1508 = vst.msk [vmem:[%s1507] ss:$8 sm:$0x78] %vm1504, %v1503
    %s1509 = scalar_lea.vmem [#allocation0], 306
    %1510 = vst.msk [vmem:[%s1509] sm:$0x80] %vm1504, %v1503
    %s1511 = scalar_lea.vmem [#allocation1], 320
    %v1512 = vld [vmem:[%s1511] ss:$8 sm:$0x7]
    %s1513 = scalar_lea.vmem [#allocation1], 297
    %v1514 = vld [vmem:[%s1513] ss:$8 sm:$0x78]
    %vm1515 = vcmask 1046531
    %v1516 = vsel %vm1515, %v1514, %v1512
    %s1517 = scalar_lea.vmem [#allocation1], 337
    %v1518 = vld [vmem:[%s1517] sm:$0x80]
    %vm1519 = vcmask 1047559
    %v1520 = vsel %vm1519, %v1518, %v1516
    %1521 = vrot.lane.b32.xlu0 %v1520, 112
    %v1522 = vpop.permute.xlu0 %1521
    %vm1523 = vcmask 130048
    %s1524 = scalar_lea.vmem [#allocation0], 321
    %1525 = vst.msk [vmem:[%s1524] ss:$8 sm:$0x7] %vm1523, %v1522
    %s1526 = scalar_lea.vmem [#allocation0], 801
    %1527 = vst.msk [vmem:[%s1526] ss:$8 sm:$0x78] %vm1523, %v1522
    %s1528 = scalar_lea.vmem [#allocation0], 338
    %1529 = vst.msk [vmem:[%s1528] sm:$0x80] %vm1523, %v1522
    %s1530 = scalar_lea.vmem [#allocation1], 352
    %v1531 = vld [vmem:[%s1530] ss:$8 sm:$0x7]
    %s1532 = scalar_lea.vmem [#allocation1], 329
    %v1533 = vld [vmem:[%s1532] ss:$8 sm:$0x78]
    %vm1534 = vcmask 1046531
    %v1535 = vsel %vm1534, %v1533, %v1531
    %s1536 = scalar_lea.vmem [#allocation1], 369
    %v1537 = vld [vmem:[%s1536] sm:$0x80]
    %vm1538 = vcmask 1047559
    %v1539 = vsel %vm1538, %v1537, %v1535
    %1540 = vrot.lane.b32.xlu0 %v1539, 112
    %v1541 = vpop.permute.xlu0 %1540
    %vm1542 = vcmask 130048
    %s1543 = scalar_lea.vmem [#allocation0], 353
    %1544 = vst.msk [vmem:[%s1543] ss:$8 sm:$0x7] %vm1542, %v1541
    %s1545 = scalar_lea.vmem [#allocation0], 833
    %1546 = vst.msk [vmem:[%s1545] ss:$8 sm:$0x78] %vm1542, %v1541
    %s1547 = scalar_lea.vmem [#allocation0], 370
    %1548 = vst.msk [vmem:[%s1547] sm:$0x80] %vm1542, %v1541
    %s1549 = scalar_lea.vmem [#allocation1], 384
    %v1550 = vld [vmem:[%s1549] ss:$8 sm:$0x7]
    %s1551 = scalar_lea.vmem [#allocation1], 361
    %v1552 = vld [vmem:[%s1551] ss:$8 sm:$0x78]
    %vm1553 = vcmask 1046531
    %v1554 = vsel %vm1553, %v1552, %v1550
    %s1555 = scalar_lea.vmem [#allocation1], 401
    %v1556 = vld [vmem:[%s1555] sm:$0x80]
    %vm1557 = vcmask 1047559
    %v1558 = vsel %vm1557, %v1556, %v1554
    %1559 = vrot.lane.b32.xlu0 %v1558, 112
    %v1560 = vpop.permute.xlu0 %1559
    %vm1561 = vcmask 130048
    %s1562 = scalar_lea.vmem [#allocation0], 385
    %1563 = vst.msk [vmem:[%s1562] ss:$8 sm:$0x7] %vm1561, %v1560
    %s1564 = scalar_lea.vmem [#allocation0], 865
    %1565 = vst.msk [vmem:[%s1564] ss:$8 sm:$0x78] %vm1561, %v1560
    %s1566 = scalar_lea.vmem [#allocation0], 402
    %1567 = vst.msk [vmem:[%s1566] sm:$0x80] %vm1561, %v1560
    %s1568 = scalar_lea.vmem [#allocation1], 416
    %v1569 = vld [vmem:[%s1568] ss:$8 sm:$0x7]
    %s1570 = scalar_lea.vmem [#allocation1], 393
    %v1571 = vld [vmem:[%s1570] ss:$8 sm:$0x78]
    %vm1572 = vcmask 1046531
    %v1573 = vsel %vm1572, %v1571, %v1569
    %s1574 = scalar_lea.vmem [#allocation1], 433
    %v1575 = vld [vmem:[%s1574] sm:$0x80]
    %vm1576 = vcmask 1047559
    %v1577 = vsel %vm1576, %v1575, %v1573
    %1578 = vrot.lane.b32.xlu0 %v1577, 112
    %v1579 = vpop.permute.xlu0 %1578
    %vm1580 = vcmask 130048
    %s1581 = scalar_lea.vmem [#allocation0], 417
    %1582 = vst.msk [vmem:[%s1581] ss:$8 sm:$0x7] %vm1580, %v1579
    %s1583 = scalar_lea.vmem [#allocation0], 897
    %1584 = vst.msk [vmem:[%s1583] ss:$8 sm:$0x78] %vm1580, %v1579
    %s1585 = scalar_lea.vmem [#allocation0], 434
    %1586 = vst.msk [vmem:[%s1585] sm:$0x80] %vm1580, %v1579
    %s1587 = scalar_lea.vmem [#allocation1], 448
    %v1588 = vld [vmem:[%s1587] ss:$8 sm:$0x7]
    %s1589 = scalar_lea.vmem [#allocation1], 425
    %v1590 = vld [vmem:[%s1589] ss:$8 sm:$0x78]
    %vm1591 = vcmask 1046531
    %v1592 = vsel %vm1591, %v1590, %v1588
    %s1593 = scalar_lea.vmem [#allocation1], 465
    %v1594 = vld [vmem:[%s1593] sm:$0x80]
    %vm1595 = vcmask 1047559
    %v1596 = vsel %vm1595, %v1594, %v1592
    %1597 = vrot.lane.b32.xlu0 %v1596, 112
    %v1598 = vpop.permute.xlu0 %1597
    %vm1599 = vcmask 130048
    %s1600 = scalar_lea.vmem [#allocation0], 449
    %1601 = vst.msk [vmem:[%s1600] ss:$8 sm:$0x7] %vm1599, %v1598
    %s1602 = scalar_lea.vmem [#allocation0], 929
    %1603 = vst.msk [vmem:[%s1602] ss:$8 sm:$0x78] %vm1599, %v1598
    %s1604 = scalar_lea.vmem [#allocation0], 466
    %1605 = vst.msk [vmem:[%s1604] sm:$0x80] %vm1599, %v1598
    %s1606 = scalar_lea.vmem [#allocation1], 480
    %v1607 = vld [vmem:[%s1606] ss:$8 sm:$0x7]
    %s1608 = scalar_lea.vmem [#allocation1], 457
    %v1609 = vld [vmem:[%s1608] ss:$8 sm:$0x38]
    %vm1610 = vcmask 1045507
    %v1611 = vsel %vm1610, %v1609, %v1607
    %1612 = vrot.lane.b32.xlu0 %v1611, 112
    %v1613 = vpop.permute.xlu0 %1612
    %vm1614 = vcmask 130048
    %s1615 = scalar_lea.vmem [#allocation0], 481
    %1616 = vst.msk [vmem:[%s1615] ss:$8 sm:$0x7] %vm1614, %v1613
    %s1617 = scalar_lea.vmem [#allocation0], 961
    %1618 = vst.msk [vmem:[%s1617] ss:$8 sm:$0x38] %vm1614, %v1613
    %v1619 = vld [vmem:[#allocation1] ss:$8 sm:$0x7]
    %s1620 = scalar_lea.vmem [#allocation1], 4294967273
    %v1621 = vld [vmem:[%s1620] ss:$8 sm:$0x78]
    %vm1622 = vcmask 1046531
    %v1623 = vsel %vm1622, %v1621, %v1619
    %s1624 = scalar_lea.vmem [#allocation1], 17
    %v1625 = vld [vmem:[%s1624] sm:$0x80]
    %vm1626 = vcmask 1047559
    %v1627 = vsel %vm1626, %v1625, %v1623
    %1628 = vrot.lane.b32.xlu0 %v1627, 96
    %v1629 = vpop.permute.xlu0 %1628
    %vm1630 = vcmask 130048
    %s1631 = scalar_lea.vmem [#allocation0], 2
    %1632 = vst.msk [vmem:[%s1631] ss:$8 sm:$0x7] %vm1630, %v1629
    %s1633 = scalar_lea.vmem [#allocation0], 482
    %1634 = vst.msk [vmem:[%s1633] ss:$8 sm:$0x78] %vm1630, %v1629
    %s1635 = scalar_lea.vmem [#allocation0], 19
    %1636 = vst.msk [vmem:[%s1635] sm:$0x80] %vm1630, %v1629
    %s1637 = scalar_lea.vmem [#allocation1], 32
    %v1638 = vld [vmem:[%s1637] ss:$8 sm:$0x7]
    %s1639 = scalar_lea.vmem [#allocation1], 9
    %v1640 = vld [vmem:[%s1639] ss:$8 sm:$0x78]
    %vm1641 = vcmask 1046531
    %v1642 = vsel %vm1641, %v1640, %v1638
    %s1643 = scalar_lea.vmem [#allocation1], 49
    %v1644 = vld [vmem:[%s1643] sm:$0x80]
    %vm1645 = vcmask 1047559
    %v1646 = vsel %vm1645, %v1644, %v1642
    %1647 = vrot.lane.b32.xlu0 %v1646, 96
    %v1648 = vpop.permute.xlu0 %1647
    %vm1649 = vcmask 130048
    %s1650 = scalar_lea.vmem [#allocation0], 34
    %1651 = vst.msk [vmem:[%s1650] ss:$8 sm:$0x7] %vm1649, %v1648
    %s1652 = scalar_lea.vmem [#allocation0], 514
    %1653 = vst.msk [vmem:[%s1652] ss:$8 sm:$0x78] %vm1649, %v1648
    %s1654 = scalar_lea.vmem [#allocation0], 51
    %1655 = vst.msk [vmem:[%s1654] sm:$0x80] %vm1649, %v1648
    %s1656 = scalar_lea.vmem [#allocation1], 64
    %v1657 = vld [vmem:[%s1656] ss:$8 sm:$0x7]
    %s1658 = scalar_lea.vmem [#allocation1], 41
    %v1659 = vld [vmem:[%s1658] ss:$8 sm:$0x78]
    %vm1660 = vcmask 1046531
    %v1661 = vsel %vm1660, %v1659, %v1657
    %s1662 = scalar_lea.vmem [#allocation1], 81
    %v1663 = vld [vmem:[%s1662] sm:$0x80]
    %vm1664 = vcmask 1047559
    %v1665 = vsel %vm1664, %v1663, %v1661
    %1666 = vrot.lane.b32.xlu0 %v1665, 96
    %v1667 = vpop.permute.xlu0 %1666
    %vm1668 = vcmask 130048
    %s1669 = scalar_lea.vmem [#allocation0], 66
    %1670 = vst.msk [vmem:[%s1669] ss:$8 sm:$0x7] %vm1668, %v1667
    %s1671 = scalar_lea.vmem [#allocation0], 546
    %1672 = vst.msk [vmem:[%s1671] ss:$8 sm:$0x78] %vm1668, %v1667
    %s1673 = scalar_lea.vmem [#allocation0], 83
    %1674 = vst.msk [vmem:[%s1673] sm:$0x80] %vm1668, %v1667
    %s1675 = scalar_lea.vmem [#allocation1], 96
    %v1676 = vld [vmem:[%s1675] ss:$8 sm:$0x7]
    %s1677 = scalar_lea.vmem [#allocation1], 73
    %v1678 = vld [vmem:[%s1677] ss:$8 sm:$0x78]
    %vm1679 = vcmask 1046531
    %v1680 = vsel %vm1679, %v1678, %v1676
    %s1681 = scalar_lea.vmem [#allocation1], 113
    %v1682 = vld [vmem:[%s1681] sm:$0x80]
    %vm1683 = vcmask 1047559
    %v1684 = vsel %vm1683, %v1682, %v1680
    %1685 = vrot.lane.b32.xlu0 %v1684, 96
    %v1686 = vpop.permute.xlu0 %1685
    %vm1687 = vcmask 130048
    %s1688 = scalar_lea.vmem [#allocation0], 98
    %1689 = vst.msk [vmem:[%s1688] ss:$8 sm:$0x7] %vm1687, %v1686
    %s1690 = scalar_lea.vmem [#allocation0], 578
    %1691 = vst.msk [vmem:[%s1690] ss:$8 sm:$0x78] %vm1687, %v1686
    %s1692 = scalar_lea.vmem [#allocation0], 115
    %1693 = vst.msk [vmem:[%s1692] sm:$0x80] %vm1687, %v1686
    %s1694 = scalar_lea.vmem [#allocation1], 128
    %v1695 = vld [vmem:[%s1694] ss:$8 sm:$0x7]
    %s1696 = scalar_lea.vmem [#allocation1], 105
    %v1697 = vld [vmem:[%s1696] ss:$8 sm:$0x78]
    %vm1698 = vcmask 1046531
    %v1699 = vsel %vm1698, %v1697, %v1695
    %s1700 = scalar_lea.vmem [#allocation1], 145
    %v1701 = vld [vmem:[%s1700] sm:$0x80]
    %vm1702 = vcmask 1047559
    %v1703 = vsel %vm1702, %v1701, %v1699
    %1704 = vrot.lane.b32.xlu0 %v1703, 96
    %v1705 = vpop.permute.xlu0 %1704
    %vm1706 = vcmask 130048
    %s1707 = scalar_lea.vmem [#allocation0], 130
    %1708 = vst.msk [vmem:[%s1707] ss:$8 sm:$0x7] %vm1706, %v1705
    %s1709 = scalar_lea.vmem [#allocation0], 610
    %1710 = vst.msk [vmem:[%s1709] ss:$8 sm:$0x78] %vm1706, %v1705
    %s1711 = scalar_lea.vmem [#allocation0], 147
    %1712 = vst.msk [vmem:[%s1711] sm:$0x80] %vm1706, %v1705
    %s1713 = scalar_lea.vmem [#allocation1], 160
    %v1714 = vld [vmem:[%s1713] ss:$8 sm:$0x7]
    %s1715 = scalar_lea.vmem [#allocation1], 137
    %v1716 = vld [vmem:[%s1715] ss:$8 sm:$0x78]
    %vm1717 = vcmask 1046531
    %v1718 = vsel %vm1717, %v1716, %v1714
    %s1719 = scalar_lea.vmem [#allocation1], 177
    %v1720 = vld [vmem:[%s1719] sm:$0x80]
    %vm1721 = vcmask 1047559
    %v1722 = vsel %vm1721, %v1720, %v1718
    %1723 = vrot.lane.b32.xlu0 %v1722, 96
    %v1724 = vpop.permute.xlu0 %1723
    %vm1725 = vcmask 130048
    %s1726 = scalar_lea.vmem [#allocation0], 162
    %1727 = vst.msk [vmem:[%s1726] ss:$8 sm:$0x7] %vm1725, %v1724
    %s1728 = scalar_lea.vmem [#allocation0], 642
    %1729 = vst.msk [vmem:[%s1728] ss:$8 sm:$0x78] %vm1725, %v1724
    %s1730 = scalar_lea.vmem [#allocation0], 179
    %1731 = vst.msk [vmem:[%s1730] sm:$0x80] %vm1725, %v1724
    %s1732 = scalar_lea.vmem [#allocation1], 192
    %v1733 = vld [vmem:[%s1732] ss:$8 sm:$0x7]
    %s1734 = scalar_lea.vmem [#allocation1], 169
    %v1735 = vld [vmem:[%s1734] ss:$8 sm:$0x78]
    %vm1736 = vcmask 1046531
    %v1737 = vsel %vm1736, %v1735, %v1733
    %s1738 = scalar_lea.vmem [#allocation1], 209
    %v1739 = vld [vmem:[%s1738] sm:$0x80]
    %vm1740 = vcmask 1047559
    %v1741 = vsel %vm1740, %v1739, %v1737
    %1742 = vrot.lane.b32.xlu0 %v1741, 96
    %v1743 = vpop.permute.xlu0 %1742
    %vm1744 = vcmask 130048
    %s1745 = scalar_lea.vmem [#allocation0], 194
    %1746 = vst.msk [vmem:[%s1745] ss:$8 sm:$0x7] %vm1744, %v1743
    %s1747 = scalar_lea.vmem [#allocation0], 674
    %1748 = vst.msk [vmem:[%s1747] ss:$8 sm:$0x78] %vm1744, %v1743
    %s1749 = scalar_lea.vmem [#allocation0], 211
    %1750 = vst.msk [vmem:[%s1749] sm:$0x80] %vm1744, %v1743
    %s1751 = scalar_lea.vmem [#allocation1], 224
    %v1752 = vld [vmem:[%s1751] ss:$8 sm:$0x7]
    %s1753 = scalar_lea.vmem [#allocation1], 201
    %v1754 = vld [vmem:[%s1753] ss:$8 sm:$0x78]
    %vm1755 = vcmask 1046531
    %v1756 = vsel %vm1755, %v1754, %v1752
    %s1757 = scalar_lea.vmem [#allocation1], 241
    %v1758 = vld [vmem:[%s1757] sm:$0x80]
    %vm1759 = vcmask 1047559
    %v1760 = vsel %vm1759, %v1758, %v1756
    %1761 = vrot.lane.b32.xlu0 %v1760, 96
    %v1762 = vpop.permute.xlu0 %1761
    %vm1763 = vcmask 130048
    %s1764 = scalar_lea.vmem [#allocation0], 226
    %1765 = vst.msk [vmem:[%s1764] ss:$8 sm:$0x7] %vm1763, %v1762
    %s1766 = scalar_lea.vmem [#allocation0], 706
    %1767 = vst.msk [vmem:[%s1766] ss:$8 sm:$0x78] %vm1763, %v1762
    %s1768 = scalar_lea.vmem [#allocation0], 243
    %1769 = vst.msk [vmem:[%s1768] sm:$0x80] %vm1763, %v1762
    %s1770 = scalar_lea.vmem [#allocation1], 256
    %v1771 = vld [vmem:[%s1770] ss:$8 sm:$0x7]
    %s1772 = scalar_lea.vmem [#allocation1], 233
    %v1773 = vld [vmem:[%s1772] ss:$8 sm:$0x78]
    %vm1774 = vcmask 1046531
    %v1775 = vsel %vm1774, %v1773, %v1771
    %s1776 = scalar_lea.vmem [#allocation1], 273
    %v1777 = vld [vmem:[%s1776] sm:$0x80]
    %vm1778 = vcmask 1047559
    %v1779 = vsel %vm1778, %v1777, %v1775
    %1780 = vrot.lane.b32.xlu0 %v1779, 96
    %v1781 = vpop.permute.xlu0 %1780
    %vm1782 = vcmask 130048
    %s1783 = scalar_lea.vmem [#allocation0], 258
    %1784 = vst.msk [vmem:[%s1783] ss:$8 sm:$0x7] %vm1782, %v1781
    %s1785 = scalar_lea.vmem [#allocation0], 738
    %1786 = vst.msk [vmem:[%s1785] ss:$8 sm:$0x78] %vm1782, %v1781
    %s1787 = scalar_lea.vmem [#allocation0], 275
    %1788 = vst.msk [vmem:[%s1787] sm:$0x80] %vm1782, %v1781
    %s1789 = scalar_lea.vmem [#allocation1], 288
    %v1790 = vld [vmem:[%s1789] ss:$8 sm:$0x7]
    %s1791 = scalar_lea.vmem [#allocation1], 265
    %v1792 = vld [vmem:[%s1791] ss:$8 sm:$0x78]
    %vm1793 = vcmask 1046531
    %v1794 = vsel %vm1793, %v1792, %v1790
    %s1795 = scalar_lea.vmem [#allocation1], 305
    %v1796 = vld [vmem:[%s1795] sm:$0x80]
    %vm1797 = vcmask 1047559
    %v1798 = vsel %vm1797, %v1796, %v1794
    %1799 = vrot.lane.b32.xlu0 %v1798, 96
    %v1800 = vpop.permute.xlu0 %1799
    %vm1801 = vcmask 130048
    %s1802 = scalar_lea.vmem [#allocation0], 290
    %1803 = vst.msk [vmem:[%s1802] ss:$8 sm:$0x7] %vm1801, %v1800
    %s1804 = scalar_lea.vmem [#allocation0], 770
    %1805 = vst.msk [vmem:[%s1804] ss:$8 sm:$0x78] %vm1801, %v1800
    %s1806 = scalar_lea.vmem [#allocation0], 307
    %1807 = vst.msk [vmem:[%s1806] sm:$0x80] %vm1801, %v1800
    %s1808 = scalar_lea.vmem [#allocation1], 320
    %v1809 = vld [vmem:[%s1808] ss:$8 sm:$0x7]
    %s1810 = scalar_lea.vmem [#allocation1], 297
    %v1811 = vld [vmem:[%s1810] ss:$8 sm:$0x78]
    %vm1812 = vcmask 1046531
    %v1813 = vsel %vm1812, %v1811, %v1809
    %s1814 = scalar_lea.vmem [#allocation1], 337
    %v1815 = vld [vmem:[%s1814] sm:$0x80]
    %vm1816 = vcmask 1047559
    %v1817 = vsel %vm1816, %v1815, %v1813
    %1818 = vrot.lane.b32.xlu0 %v1817, 96
    %v1819 = vpop.permute.xlu0 %1818
    %vm1820 = vcmask 130048
    %s1821 = scalar_lea.vmem [#allocation0], 322
    %1822 = vst.msk [vmem:[%s1821] ss:$8 sm:$0x7] %vm1820, %v1819
    %s1823 = scalar_lea.vmem [#allocation0], 802
    %1824 = vst.msk [vmem:[%s1823] ss:$8 sm:$0x78] %vm1820, %v1819
    %s1825 = scalar_lea.vmem [#allocation0], 339
    %1826 = vst.msk [vmem:[%s1825] sm:$0x80] %vm1820, %v1819
    %s1827 = scalar_lea.vmem [#allocation1], 352
    %v1828 = vld [vmem:[%s1827] ss:$8 sm:$0x7]
    %s1829 = scalar_lea.vmem [#allocation1], 329
    %v1830 = vld [vmem:[%s1829] ss:$8 sm:$0x78]
    %vm1831 = vcmask 1046531
    %v1832 = vsel %vm1831, %v1830, %v1828
    %s1833 = scalar_lea.vmem [#allocation1], 369
    %v1834 = vld [vmem:[%s1833] sm:$0x80]
    %vm1835 = vcmask 1047559
    %v1836 = vsel %vm1835, %v1834, %v1832
    %1837 = vrot.lane.b32.xlu0 %v1836, 96
    %v1838 = vpop.permute.xlu0 %1837
    %vm1839 = vcmask 130048
    %s1840 = scalar_lea.vmem [#allocation0], 354
    %1841 = vst.msk [vmem:[%s1840] ss:$8 sm:$0x7] %vm1839, %v1838
    %s1842 = scalar_lea.vmem [#allocation0], 834
    %1843 = vst.msk [vmem:[%s1842] ss:$8 sm:$0x78] %vm1839, %v1838
    %s1844 = scalar_lea.vmem [#allocation0], 371
    %1845 = vst.msk [vmem:[%s1844] sm:$0x80] %vm1839, %v1838
    %s1846 = scalar_lea.vmem [#allocation1], 384
    %v1847 = vld [vmem:[%s1846] ss:$8 sm:$0x7]
    %s1848 = scalar_lea.vmem [#allocation1], 361
    %v1849 = vld [vmem:[%s1848] ss:$8 sm:$0x78]
    %vm1850 = vcmask 1046531
    %v1851 = vsel %vm1850, %v1849, %v1847
    %s1852 = scalar_lea.vmem [#allocation1], 401
    %v1853 = vld [vmem:[%s1852] sm:$0x80]
    %vm1854 = vcmask 1047559
    %v1855 = vsel %vm1854, %v1853, %v1851
    %1856 = vrot.lane.b32.xlu0 %v1855, 96
    %v1857 = vpop.permute.xlu0 %1856
    %vm1858 = vcmask 130048
    %s1859 = scalar_lea.vmem [#allocation0], 386
    %1860 = vst.msk [vmem:[%s1859] ss:$8 sm:$0x7] %vm1858, %v1857
    %s1861 = scalar_lea.vmem [#allocation0], 866
    %1862 = vst.msk [vmem:[%s1861] ss:$8 sm:$0x78] %vm1858, %v1857
    %s1863 = scalar_lea.vmem [#allocation0], 403
    %1864 = vst.msk [vmem:[%s1863] sm:$0x80] %vm1858, %v1857
    %s1865 = scalar_lea.vmem [#allocation1], 416
    %v1866 = vld [vmem:[%s1865] ss:$8 sm:$0x7]
    %s1867 = scalar_lea.vmem [#allocation1], 393
    %v1868 = vld [vmem:[%s1867] ss:$8 sm:$0x78]
    %vm1869 = vcmask 1046531
    %v1870 = vsel %vm1869, %v1868, %v1866
    %s1871 = scalar_lea.vmem [#allocation1], 433
    %v1872 = vld [vmem:[%s1871] sm:$0x80]
    %vm1873 = vcmask 1047559
    %v1874 = vsel %vm1873, %v1872, %v1870
    %1875 = vrot.lane.b32.xlu0 %v1874, 96
    %v1876 = vpop.permute.xlu0 %1875
    %vm1877 = vcmask 130048
    %s1878 = scalar_lea.vmem [#allocation0], 418
    %1879 = vst.msk [vmem:[%s1878] ss:$8 sm:$0x7] %vm1877, %v1876
    %s1880 = scalar_lea.vmem [#allocation0], 898
    %1881 = vst.msk [vmem:[%s1880] ss:$8 sm:$0x78] %vm1877, %v1876
    %s1882 = scalar_lea.vmem [#allocation0], 435
    %1883 = vst.msk [vmem:[%s1882] sm:$0x80] %vm1877, %v1876
    %s1884 = scalar_lea.vmem [#allocation1], 448
    %v1885 = vld [vmem:[%s1884] ss:$8 sm:$0x7]
    %s1886 = scalar_lea.vmem [#allocation1], 425
    %v1887 = vld [vmem:[%s1886] ss:$8 sm:$0x78]
    %vm1888 = vcmask 1046531
    %v1889 = vsel %vm1888, %v1887, %v1885
    %s1890 = scalar_lea.vmem [#allocation1], 465
    %v1891 = vld [vmem:[%s1890] sm:$0x80]
    %vm1892 = vcmask 1047559
    %v1893 = vsel %vm1892, %v1891, %v1889
    %1894 = vrot.lane.b32.xlu0 %v1893, 96
    %v1895 = vpop.permute.xlu0 %1894
    %vm1896 = vcmask 130048
    %s1897 = scalar_lea.vmem [#allocation0], 450
    %1898 = vst.msk [vmem:[%s1897] ss:$8 sm:$0x7] %vm1896, %v1895
    %s1899 = scalar_lea.vmem [#allocation0], 930
    %1900 = vst.msk [vmem:[%s1899] ss:$8 sm:$0x78] %vm1896, %v1895
    %s1901 = scalar_lea.vmem [#allocation0], 467
    %1902 = vst.msk [vmem:[%s1901] sm:$0x80] %vm1896, %v1895
    %s1903 = scalar_lea.vmem [#allocation1], 480
    %v1904 = vld [vmem:[%s1903] ss:$8 sm:$0x7]
    %s1905 = scalar_lea.vmem [#allocation1], 457
    %v1906 = vld [vmem:[%s1905] ss:$8 sm:$0x38]
    %vm1907 = vcmask 1045507
    %v1908 = vsel %vm1907, %v1906, %v1904
    %1909 = vrot.lane.b32.xlu0 %v1908, 96
    %v1910 = vpop.permute.xlu0 %1909
    %vm1911 = vcmask 130048
    %s1912 = scalar_lea.vmem [#allocation0], 482
    %1913 = vst.msk [vmem:[%s1912] ss:$8 sm:$0x7] %vm1911, %v1910
    %s1914 = scalar_lea.vmem [#allocation0], 962
    %1915 = vst.msk [vmem:[%s1914] ss:$8 sm:$0x38] %vm1911, %v1910
    %v1916 = vld [vmem:[#allocation1] ss:$8 sm:$0x7]
    %s1917 = scalar_lea.vmem [#allocation1], 4294967273
    %v1918 = vld [vmem:[%s1917] ss:$8 sm:$0x78]
    %vm1919 = vcmask 1046531
    %v1920 = vsel %vm1919, %v1918, %v1916
    %s1921 = scalar_lea.vmem [#allocation1], 17
    %v1922 = vld [vmem:[%s1921] sm:$0x80]
    %vm1923 = vcmask 1047559
    %v1924 = vsel %vm1923, %v1922, %v1920
    %1925 = vrot.lane.b32.xlu0 %v1924, 80
    %v1926 = vpop.permute.xlu0 %1925
    %vm1927 = vcmask 130048
    %s1928 = scalar_lea.vmem [#allocation0], 3
    %1929 = vst.msk [vmem:[%s1928] ss:$8 sm:$0x7] %vm1927, %v1926
    %s1930 = scalar_lea.vmem [#allocation0], 483
    %1931 = vst.msk [vmem:[%s1930] ss:$8 sm:$0x78] %vm1927, %v1926
    %s1932 = scalar_lea.vmem [#allocation0], 20
    %1933 = vst.msk [vmem:[%s1932] sm:$0x80] %vm1927, %v1926
    %s1934 = scalar_lea.vmem [#allocation1], 32
    %v1935 = vld [vmem:[%s1934] ss:$8 sm:$0x7]
    %s1936 = scalar_lea.vmem [#allocation1], 9
    %v1937 = vld [vmem:[%s1936] ss:$8 sm:$0x78]
    %vm1938 = vcmask 1046531
    %v1939 = vsel %vm1938, %v1937, %v1935
    %s1940 = scalar_lea.vmem [#allocation1], 49
    %v1941 = vld [vmem:[%s1940] sm:$0x80]
    %vm1942 = vcmask 1047559
    %v1943 = vsel %vm1942, %v1941, %v1939
    %1944 = vrot.lane.b32.xlu0 %v1943, 80
    %v1945 = vpop.permute.xlu0 %1944
    %vm1946 = vcmask 130048
    %s1947 = scalar_lea.vmem [#allocation0], 35
    %1948 = vst.msk [vmem:[%s1947] ss:$8 sm:$0x7] %vm1946, %v1945
    %s1949 = scalar_lea.vmem [#allocation0], 515
    %1950 = vst.msk [vmem:[%s1949] ss:$8 sm:$0x78] %vm1946, %v1945
    %s1951 = scalar_lea.vmem [#allocation0], 52
    %1952 = vst.msk [vmem:[%s1951] sm:$0x80] %vm1946, %v1945
    %s1953 = scalar_lea.vmem [#allocation1], 64
    %v1954 = vld [vmem:[%s1953] ss:$8 sm:$0x7]
    %s1955 = scalar_lea.vmem [#allocation1], 41
    %v1956 = vld [vmem:[%s1955] ss:$8 sm:$0x78]
    %vm1957 = vcmask 1046531
    %v1958 = vsel %vm1957, %v1956, %v1954
    %s1959 = scalar_lea.vmem [#allocation1], 81
    %v1960 = vld [vmem:[%s1959] sm:$0x80]
    %vm1961 = vcmask 1047559
    %v1962 = vsel %vm1961, %v1960, %v1958
    %1963 = vrot.lane.b32.xlu0 %v1962, 80
    %v1964 = vpop.permute.xlu0 %1963
    %vm1965 = vcmask 130048
    %s1966 = scalar_lea.vmem [#allocation0], 67
    %1967 = vst.msk [vmem:[%s1966] ss:$8 sm:$0x7] %vm1965, %v1964
    %s1968 = scalar_lea.vmem [#allocation0], 547
    %1969 = vst.msk [vmem:[%s1968] ss:$8 sm:$0x78] %vm1965, %v1964
    %s1970 = scalar_lea.vmem [#allocation0], 84
    %1971 = vst.msk [vmem:[%s1970] sm:$0x80] %vm1965, %v1964
    %s1972 = scalar_lea.vmem [#allocation1], 96
    %v1973 = vld [vmem:[%s1972] ss:$8 sm:$0x7]
    %s1974 = scalar_lea.vmem [#allocation1], 73
    %v1975 = vld [vmem:[%s1974] ss:$8 sm:$0x78]
    %vm1976 = vcmask 1046531
    %v1977 = vsel %vm1976, %v1975, %v1973
    %s1978 = scalar_lea.vmem [#allocation1], 113
    %v1979 = vld [vmem:[%s1978] sm:$0x80]
    %vm1980 = vcmask 1047559
    %v1981 = vsel %vm1980, %v1979, %v1977
    %1982 = vrot.lane.b32.xlu0 %v1981, 80
    %v1983 = vpop.permute.xlu0 %1982
    %vm1984 = vcmask 130048
    %s1985 = scalar_lea.vmem [#allocation0], 99
    %1986 = vst.msk [vmem:[%s1985] ss:$8 sm:$0x7] %vm1984, %v1983
    %s1987 = scalar_lea.vmem [#allocation0], 579
    %1988 = vst.msk [vmem:[%s1987] ss:$8 sm:$0x78] %vm1984, %v1983
    %s1989 = scalar_lea.vmem [#allocation0], 116
    %1990 = vst.msk [vmem:[%s1989] sm:$0x80] %vm1984, %v1983
    %s1991 = scalar_lea.vmem [#allocation1], 128
    %v1992 = vld [vmem:[%s1991] ss:$8 sm:$0x7]
    %s1993 = scalar_lea.vmem [#allocation1], 105
    %v1994 = vld [vmem:[%s1993] ss:$8 sm:$0x78]
    %vm1995 = vcmask 1046531
    %v1996 = vsel %vm1995, %v1994, %v1992
    %s1997 = scalar_lea.vmem [#allocation1], 145
    %v1998 = vld [vmem:[%s1997] sm:$0x80]
    %vm1999 = vcmask 1047559
    %v2000 = vsel %vm1999, %v1998, %v1996
    %2001 = vrot.lane.b32.xlu0 %v2000, 80
    %v2002 = vpop.permute.xlu0 %2001
    %vm2003 = vcmask 130048
    %s2004 = scalar_lea.vmem [#allocation0], 131
    %2005 = vst.msk [vmem:[%s2004] ss:$8 sm:$0x7] %vm2003, %v2002
    %s2006 = scalar_lea.vmem [#allocation0], 611
    %2007 = vst.msk [vmem:[%s2006] ss:$8 sm:$0x78] %vm2003, %v2002
    %s2008 = scalar_lea.vmem [#allocation0], 148
    %2009 = vst.msk [vmem:[%s2008] sm:$0x80] %vm2003, %v2002
    %s2010 = scalar_lea.vmem [#allocation1], 160
    %v2011 = vld [vmem:[%s2010] ss:$8 sm:$0x7]
    %s2012 = scalar_lea.vmem [#allocation1], 137
    %v2013 = vld [vmem:[%s2012] ss:$8 sm:$0x78]
    %vm2014 = vcmask 1046531
    %v2015 = vsel %vm2014, %v2013, %v2011
    %s2016 = scalar_lea.vmem [#allocation1], 177
    %v2017 = vld [vmem:[%s2016] sm:$0x80]
    %vm2018 = vcmask 1047559
    %v2019 = vsel %vm2018, %v2017, %v2015
    %2020 = vrot.lane.b32.xlu0 %v2019, 80
    %v2021 = vpop.permute.xlu0 %2020
    %vm2022 = vcmask 130048
    %s2023 = scalar_lea.vmem [#allocation0], 163
    %2024 = vst.msk [vmem:[%s2023] ss:$8 sm:$0x7] %vm2022, %v2021
    %s2025 = scalar_lea.vmem [#allocation0], 643
    %2026 = vst.msk [vmem:[%s2025] ss:$8 sm:$0x78] %vm2022, %v2021
    %s2027 = scalar_lea.vmem [#allocation0], 180
    %2028 = vst.msk [vmem:[%s2027] sm:$0x80] %vm2022, %v2021
    %s2029 = scalar_lea.vmem [#allocation1], 192
    %v2030 = vld [vmem:[%s2029] ss:$8 sm:$0x7]
    %s2031 = scalar_lea.vmem [#allocation1], 169
    %v2032 = vld [vmem:[%s2031] ss:$8 sm:$0x78]
    %vm2033 = vcmask 1046531
    %v2034 = vsel %vm2033, %v2032, %v2030
    %s2035 = scalar_lea.vmem [#allocation1], 209
    %v2036 = vld [vmem:[%s2035] sm:$0x80]
    %vm2037 = vcmask 1047559
    %v2038 = vsel %vm2037, %v2036, %v2034
    %2039 = vrot.lane.b32.xlu0 %v2038, 80
    %v2040 = vpop.permute.xlu0 %2039
    %vm2041 = vcmask 130048
    %s2042 = scalar_lea.vmem [#allocation0], 195
    %2043 = vst.msk [vmem:[%s2042] ss:$8 sm:$0x7] %vm2041, %v2040
    %s2044 = scalar_lea.vmem [#allocation0], 675
    %2045 = vst.msk [vmem:[%s2044] ss:$8 sm:$0x78] %vm2041, %v2040
    %s2046 = scalar_lea.vmem [#allocation0], 212
    %2047 = vst.msk [vmem:[%s2046] sm:$0x80] %vm2041, %v2040
    %s2048 = scalar_lea.vmem [#allocation1], 224
    %v2049 = vld [vmem:[%s2048] ss:$8 sm:$0x7]
    %s2050 = scalar_lea.vmem [#allocation1], 201
    %v2051 = vld [vmem:[%s2050] ss:$8 sm:$0x78]
    %vm2052 = vcmask 1046531
    %v2053 = vsel %vm2052, %v2051, %v2049
    %s2054 = scalar_lea.vmem [#allocation1], 241
    %v2055 = vld [vmem:[%s2054] sm:$0x80]
    %vm2056 = vcmask 1047559
    %v2057 = vsel %vm2056, %v2055, %v2053
    %2058 = vrot.lane.b32.xlu0 %v2057, 80
    %v2059 = vpop.permute.xlu0 %2058
    %vm2060 = vcmask 130048
    %s2061 = scalar_lea.vmem [#allocation0], 227
    %2062 = vst.msk [vmem:[%s2061] ss:$8 sm:$0x7] %vm2060, %v2059
    %s2063 = scalar_lea.vmem [#allocation0], 707
    %2064 = vst.msk [vmem:[%s2063] ss:$8 sm:$0x78] %vm2060, %v2059
    %s2065 = scalar_lea.vmem [#allocation0], 244
    %2066 = vst.msk [vmem:[%s2065] sm:$0x80] %vm2060, %v2059
    %s2067 = scalar_lea.vmem [#allocation1], 256
    %v2068 = vld [vmem:[%s2067] ss:$8 sm:$0x7]
    %s2069 = scalar_lea.vmem [#allocation1], 233
    %v2070 = vld [vmem:[%s2069] ss:$8 sm:$0x78]
    %vm2071 = vcmask 1046531
    %v2072 = vsel %vm2071, %v2070, %v2068
    %s2073 = scalar_lea.vmem [#allocation1], 273
    %v2074 = vld [vmem:[%s2073] sm:$0x80]
    %vm2075 = vcmask 1047559
    %v2076 = vsel %vm2075, %v2074, %v2072
    %2077 = vrot.lane.b32.xlu0 %v2076, 80
    %v2078 = vpop.permute.xlu0 %2077
    %vm2079 = vcmask 130048
    %s2080 = scalar_lea.vmem [#allocation0], 259
    %2081 = vst.msk [vmem:[%s2080] ss:$8 sm:$0x7] %vm2079, %v2078
    %s2082 = scalar_lea.vmem [#allocation0], 739
    %2083 = vst.msk [vmem:[%s2082] ss:$8 sm:$0x78] %vm2079, %v2078
    %s2084 = scalar_lea.vmem [#allocation0], 276
    %2085 = vst.msk [vmem:[%s2084] sm:$0x80] %vm2079, %v2078
    %s2086 = scalar_lea.vmem [#allocation1], 288
    %v2087 = vld [vmem:[%s2086] ss:$8 sm:$0x7]
    %s2088 = scalar_lea.vmem [#allocation1], 265
    %v2089 = vld [vmem:[%s2088] ss:$8 sm:$0x78]
    %vm2090 = vcmask 1046531
    %v2091 = vsel %vm2090, %v2089, %v2087
    %s2092 = scalar_lea.vmem [#allocation1], 305
    %v2093 = vld [vmem:[%s2092] sm:$0x80]
    %vm2094 = vcmask 1047559
    %v2095 = vsel %vm2094, %v2093, %v2091
    %2096 = vrot.lane.b32.xlu0 %v2095, 80
    %v2097 = vpop.permute.xlu0 %2096
    %vm2098 = vcmask 130048
    %s2099 = scalar_lea.vmem [#allocation0], 291
    %2100 = vst.msk [vmem:[%s2099] ss:$8 sm:$0x7] %vm2098, %v2097
    %s2101 = scalar_lea.vmem [#allocation0], 771
    %2102 = vst.msk [vmem:[%s2101] ss:$8 sm:$0x78] %vm2098, %v2097
    %s2103 = scalar_lea.vmem [#allocation0], 308
    %2104 = vst.msk [vmem:[%s2103] sm:$0x80] %vm2098, %v2097
    %s2105 = scalar_lea.vmem [#allocation1], 320
    %v2106 = vld [vmem:[%s2105] ss:$8 sm:$0x7]
    %s2107 = scalar_lea.vmem [#allocation1], 297
    %v2108 = vld [vmem:[%s2107] ss:$8 sm:$0x78]
    %vm2109 = vcmask 1046531
    %v2110 = vsel %vm2109, %v2108, %v2106
    %s2111 = scalar_lea.vmem [#allocation1], 337
    %v2112 = vld [vmem:[%s2111] sm:$0x80]
    %vm2113 = vcmask 1047559
    %v2114 = vsel %vm2113, %v2112, %v2110
    %2115 = vrot.lane.b32.xlu0 %v2114, 80
    %v2116 = vpop.permute.xlu0 %2115
    %vm2117 = vcmask 130048
    %s2118 = scalar_lea.vmem [#allocation0], 323
    %2119 = vst.msk [vmem:[%s2118] ss:$8 sm:$0x7] %vm2117, %v2116
    %s2120 = scalar_lea.vmem [#allocation0], 803
    %2121 = vst.msk [vmem:[%s2120] ss:$8 sm:$0x78] %vm2117, %v2116
    %s2122 = scalar_lea.vmem [#allocation0], 340
    %2123 = vst.msk [vmem:[%s2122] sm:$0x80] %vm2117, %v2116
    %s2124 = scalar_lea.vmem [#allocation1], 352
    %v2125 = vld [vmem:[%s2124] ss:$8 sm:$0x7]
    %s2126 = scalar_lea.vmem [#allocation1], 329
    %v2127 = vld [vmem:[%s2126] ss:$8 sm:$0x78]
    %vm2128 = vcmask 1046531
    %v2129 = vsel %vm2128, %v2127, %v2125
    %s2130 = scalar_lea.vmem [#allocation1], 369
    %v2131 = vld [vmem:[%s2130] sm:$0x80]
    %vm2132 = vcmask 1047559
    %v2133 = vsel %vm2132, %v2131, %v2129
    %2134 = vrot.lane.b32.xlu0 %v2133, 80
    %v2135 = vpop.permute.xlu0 %2134
    %vm2136 = vcmask 130048
    %s2137 = scalar_lea.vmem [#allocation0], 355
    %2138 = vst.msk [vmem:[%s2137] ss:$8 sm:$0x7] %vm2136, %v2135
    %s2139 = scalar_lea.vmem [#allocation0], 835
    %2140 = vst.msk [vmem:[%s2139] ss:$8 sm:$0x78] %vm2136, %v2135
    %s2141 = scalar_lea.vmem [#allocation0], 372
    %2142 = vst.msk [vmem:[%s2141] sm:$0x80] %vm2136, %v2135
    %s2143 = scalar_lea.vmem [#allocation1], 384
    %v2144 = vld [vmem:[%s2143] ss:$8 sm:$0x7]
    %s2145 = scalar_lea.vmem [#allocation1], 361
    %v2146 = vld [vmem:[%s2145] ss:$8 sm:$0x78]
    %vm2147 = vcmask 1046531
    %v2148 = vsel %vm2147, %v2146, %v2144
    %s2149 = scalar_lea.vmem [#allocation1], 401
    %v2150 = vld [vmem:[%s2149] sm:$0x80]
    %vm2151 = vcmask 1047559
    %v2152 = vsel %vm2151, %v2150, %v2148
    %2153 = vrot.lane.b32.xlu0 %v2152, 80
    %v2154 = vpop.permute.xlu0 %2153
    %vm2155 = vcmask 130048
    %s2156 = scalar_lea.vmem [#allocation0], 387
    %2157 = vst.msk [vmem:[%s2156] ss:$8 sm:$0x7] %vm2155, %v2154
    %s2158 = scalar_lea.vmem [#allocation0], 867
    %2159 = vst.msk [vmem:[%s2158] ss:$8 sm:$0x78] %vm2155, %v2154
    %s2160 = scalar_lea.vmem [#allocation0], 404
    %2161 = vst.msk [vmem:[%s2160] sm:$0x80] %vm2155, %v2154
    %s2162 = scalar_lea.vmem [#allocation1], 416
    %v2163 = vld [vmem:[%s2162] ss:$8 sm:$0x7]
    %s2164 = scalar_lea.vmem [#allocation1], 393
    %v2165 = vld [vmem:[%s2164] ss:$8 sm:$0x78]
    %vm2166 = vcmask 1046531
    %v2167 = vsel %vm2166, %v2165, %v2163
    %s2168 = scalar_lea.vmem [#allocation1], 433
    %v2169 = vld [vmem:[%s2168] sm:$0x80]
    %vm2170 = vcmask 1047559
    %v2171 = vsel %vm2170, %v2169, %v2167
    %2172 = vrot.lane.b32.xlu0 %v2171, 80
    %v2173 = vpop.permute.xlu0 %2172
    %vm2174 = vcmask 130048
    %s2175 = scalar_lea.vmem [#allocation0], 419
    %2176 = vst.msk [vmem:[%s2175] ss:$8 sm:$0x7] %vm2174, %v2173
    %s2177 = scalar_lea.vmem [#allocation0], 899
    %2178 = vst.msk [vmem:[%s2177] ss:$8 sm:$0x78] %vm2174, %v2173
    %s2179 = scalar_lea.vmem [#allocation0], 436
    %2180 = vst.msk [vmem:[%s2179] sm:$0x80] %vm2174, %v2173
    %s2181 = scalar_lea.vmem [#allocation1], 448
    %v2182 = vld [vmem:[%s2181] ss:$8 sm:$0x7]
    %s2183 = scalar_lea.vmem [#allocation1], 425
    %v2184 = vld [vmem:[%s2183] ss:$8 sm:$0x78]
    %vm2185 = vcmask 1046531
    %v2186 = vsel %vm2185, %v2184, %v2182
    %s2187 = scalar_lea.vmem [#allocation1], 465
    %v2188 = vld [vmem:[%s2187] sm:$0x80]
    %vm2189 = vcmask 1047559
    %v2190 = vsel %vm2189, %v2188, %v2186
    %2191 = vrot.lane.b32.xlu0 %v2190, 80
    %v2192 = vpop.permute.xlu0 %2191
    %vm2193 = vcmask 130048
    %s2194 = scalar_lea.vmem [#allocation0], 451
    %2195 = vst.msk [vmem:[%s2194] ss:$8 sm:$0x7] %vm2193, %v2192
    %s2196 = scalar_lea.vmem [#allocation0], 931
    %2197 = vst.msk [vmem:[%s2196] ss:$8 sm:$0x78] %vm2193, %v2192
    %s2198 = scalar_lea.vmem [#allocation0], 468
    %2199 = vst.msk [vmem:[%s2198] sm:$0x80] %vm2193, %v2192
    %s2200 = scalar_lea.vmem [#allocation1], 480
    %v2201 = vld [vmem:[%s2200] ss:$8 sm:$0x7]
    %s2202 = scalar_lea.vmem [#allocation1], 457
    %v2203 = vld [vmem:[%s2202] ss:$8 sm:$0x38]
    %vm2204 = vcmask 1045507
    %v2205 = vsel %vm2204, %v2203, %v2201
    %2206 = vrot.lane.b32.xlu0 %v2205, 80
    %v2207 = vpop.permute.xlu0 %2206
    %vm2208 = vcmask 130048
    %s2209 = scalar_lea.vmem [#allocation0], 483
    %2210 = vst.msk [vmem:[%s2209] ss:$8 sm:$0x7] %vm2208, %v2207
    %s2211 = scalar_lea.vmem [#allocation0], 963
    %2212 = vst.msk [vmem:[%s2211] ss:$8 sm:$0x38] %vm2208, %v2207
    %v2213 = vld [vmem:[#allocation1] ss:$8 sm:$0x7]
    %s2214 = scalar_lea.vmem [#allocation1], 4294967273
    %v2215 = vld [vmem:[%s2214] ss:$8 sm:$0x78]
    %vm2216 = vcmask 1046531
    %v2217 = vsel %vm2216, %v2215, %v2213
    %s2218 = scalar_lea.vmem [#allocation1], 17
    %v2219 = vld [vmem:[%s2218] sm:$0x80]
    %vm2220 = vcmask 1047559
    %v2221 = vsel %vm2220, %v2219, %v2217
    %2222 = vrot.lane.b32.xlu0 %v2221, 64
    %v2223 = vpop.permute.xlu0 %2222
    %vm2224 = vcmask 130048
    %s2225 = scalar_lea.vmem [#allocation0], 4
    %2226 = vst.msk [vmem:[%s2225] ss:$8 sm:$0x7] %vm2224, %v2223
    %s2227 = scalar_lea.vmem [#allocation0], 484
    %2228 = vst.msk [vmem:[%s2227] ss:$8 sm:$0x78] %vm2224, %v2223
    %s2229 = scalar_lea.vmem [#allocation0], 21
    %2230 = vst.msk [vmem:[%s2229] sm:$0x80] %vm2224, %v2223
    %s2231 = scalar_lea.vmem [#allocation1], 32
    %v2232 = vld [vmem:[%s2231] ss:$8 sm:$0x7]
    %s2233 = scalar_lea.vmem [#allocation1], 9
    %v2234 = vld [vmem:[%s2233] ss:$8 sm:$0x78]
    %vm2235 = vcmask 1046531
    %v2236 = vsel %vm2235, %v2234, %v2232
    %s2237 = scalar_lea.vmem [#allocation1], 49
    %v2238 = vld [vmem:[%s2237] sm:$0x80]
    %vm2239 = vcmask 1047559
    %v2240 = vsel %vm2239, %v2238, %v2236
    %2241 = vrot.lane.b32.xlu0 %v2240, 64
    %v2242 = vpop.permute.xlu0 %2241
    %vm2243 = vcmask 130048
    %s2244 = scalar_lea.vmem [#allocation0], 36
    %2245 = vst.msk [vmem:[%s2244] ss:$8 sm:$0x7] %vm2243, %v2242
    %s2246 = scalar_lea.vmem [#allocation0], 516
    %2247 = vst.msk [vmem:[%s2246] ss:$8 sm:$0x78] %vm2243, %v2242
    %s2248 = scalar_lea.vmem [#allocation0], 53
    %2249 = vst.msk [vmem:[%s2248] sm:$0x80] %vm2243, %v2242
    %s2250 = scalar_lea.vmem [#allocation1], 64
    %v2251 = vld [vmem:[%s2250] ss:$8 sm:$0x7]
    %s2252 = scalar_lea.vmem [#allocation1], 41
    %v2253 = vld [vmem:[%s2252] ss:$8 sm:$0x78]
    %vm2254 = vcmask 1046531
    %v2255 = vsel %vm2254, %v2253, %v2251
    %s2256 = scalar_lea.vmem [#allocation1], 81
    %v2257 = vld [vmem:[%s2256] sm:$0x80]
    %vm2258 = vcmask 1047559
    %v2259 = vsel %vm2258, %v2257, %v2255
    %2260 = vrot.lane.b32.xlu0 %v2259, 64
    %v2261 = vpop.permute.xlu0 %2260
    %vm2262 = vcmask 130048
    %s2263 = scalar_lea.vmem [#allocation0], 68
    %2264 = vst.msk [vmem:[%s2263] ss:$8 sm:$0x7] %vm2262, %v2261
    %s2265 = scalar_lea.vmem [#allocation0], 548
    %2266 = vst.msk [vmem:[%s2265] ss:$8 sm:$0x78] %vm2262, %v2261
    %s2267 = scalar_lea.vmem [#allocation0], 85
    %2268 = vst.msk [vmem:[%s2267] sm:$0x80] %vm2262, %v2261
    %s2269 = scalar_lea.vmem [#allocation1], 96
    %v2270 = vld [vmem:[%s2269] ss:$8 sm:$0x7]
    %s2271 = scalar_lea.vmem [#allocation1], 73
    %v2272 = vld [vmem:[%s2271] ss:$8 sm:$0x78]
    %vm2273 = vcmask 1046531
    %v2274 = vsel %vm2273, %v2272, %v2270
    %s2275 = scalar_lea.vmem [#allocation1], 113
    %v2276 = vld [vmem:[%s2275] sm:$0x80]
    %vm2277 = vcmask 1047559
    %v2278 = vsel %vm2277, %v2276, %v2274
    %2279 = vrot.lane.b32.xlu0 %v2278, 64
    %v2280 = vpop.permute.xlu0 %2279
    %vm2281 = vcmask 130048
    %s2282 = scalar_lea.vmem [#allocation0], 100
    %2283 = vst.msk [vmem:[%s2282] ss:$8 sm:$0x7] %vm2281, %v2280
    %s2284 = scalar_lea.vmem [#allocation0], 580
    %2285 = vst.msk [vmem:[%s2284] ss:$8 sm:$0x78] %vm2281, %v2280
    %s2286 = scalar_lea.vmem [#allocation0], 117
    %2287 = vst.msk [vmem:[%s2286] sm:$0x80] %vm2281, %v2280
    %s2288 = scalar_lea.vmem [#allocation1], 128
    %v2289 = vld [vmem:[%s2288] ss:$8 sm:$0x7]
    %s2290 = scalar_lea.vmem [#allocation1], 105
    %v2291 = vld [vmem:[%s2290] ss:$8 sm:$0x78]
    %vm2292 = vcmask 1046531
    %v2293 = vsel %vm2292, %v2291, %v2289
    %s2294 = scalar_lea.vmem [#allocation1], 145
    %v2295 = vld [vmem:[%s2294] sm:$0x80]
    %vm2296 = vcmask 1047559
    %v2297 = vsel %vm2296, %v2295, %v2293
    %2298 = vrot.lane.b32.xlu0 %v2297, 64
    %v2299 = vpop.permute.xlu0 %2298
    %vm2300 = vcmask 130048
    %s2301 = scalar_lea.vmem [#allocation0], 132
    %2302 = vst.msk [vmem:[%s2301] ss:$8 sm:$0x7] %vm2300, %v2299
    %s2303 = scalar_lea.vmem [#allocation0], 612
    %2304 = vst.msk [vmem:[%s2303] ss:$8 sm:$0x78] %vm2300, %v2299
    %s2305 = scalar_lea.vmem [#allocation0], 149
    %2306 = vst.msk [vmem:[%s2305] sm:$0x80] %vm2300, %v2299
    %s2307 = scalar_lea.vmem [#allocation1], 160
    %v2308 = vld [vmem:[%s2307] ss:$8 sm:$0x7]
    %s2309 = scalar_lea.vmem [#allocation1], 137
    %v2310 = vld [vmem:[%s2309] ss:$8 sm:$0x78]
    %vm2311 = vcmask 1046531
    %v2312 = vsel %vm2311, %v2310, %v2308
    %s2313 = scalar_lea.vmem [#allocation1], 177
    %v2314 = vld [vmem:[%s2313] sm:$0x80]
    %vm2315 = vcmask 1047559
    %v2316 = vsel %vm2315, %v2314, %v2312
    %2317 = vrot.lane.b32.xlu0 %v2316, 64
    %v2318 = vpop.permute.xlu0 %2317
    %vm2319 = vcmask 130048
    %s2320 = scalar_lea.vmem [#allocation0], 164
    %2321 = vst.msk [vmem:[%s2320] ss:$8 sm:$0x7] %vm2319, %v2318
    %s2322 = scalar_lea.vmem [#allocation0], 644
    %2323 = vst.msk [vmem:[%s2322] ss:$8 sm:$0x78] %vm2319, %v2318
    %s2324 = scalar_lea.vmem [#allocation0], 181
    %2325 = vst.msk [vmem:[%s2324] sm:$0x80] %vm2319, %v2318
    %s2326 = scalar_lea.vmem [#allocation1], 192
    %v2327 = vld [vmem:[%s2326] ss:$8 sm:$0x7]
    %s2328 = scalar_lea.vmem [#allocation1], 169
    %v2329 = vld [vmem:[%s2328] ss:$8 sm:$0x78]
    %vm2330 = vcmask 1046531
    %v2331 = vsel %vm2330, %v2329, %v2327
    %s2332 = scalar_lea.vmem [#allocation1], 209
    %v2333 = vld [vmem:[%s2332] sm:$0x80]
    %vm2334 = vcmask 1047559
    %v2335 = vsel %vm2334, %v2333, %v2331
    %2336 = vrot.lane.b32.xlu0 %v2335, 64
    %v2337 = vpop.permute.xlu0 %2336
    %vm2338 = vcmask 130048
    %s2339 = scalar_lea.vmem [#allocation0], 196
    %2340 = vst.msk [vmem:[%s2339] ss:$8 sm:$0x7] %vm2338, %v2337
    %s2341 = scalar_lea.vmem [#allocation0], 676
    %2342 = vst.msk [vmem:[%s2341] ss:$8 sm:$0x78] %vm2338, %v2337
    %s2343 = scalar_lea.vmem [#allocation0], 213
    %2344 = vst.msk [vmem:[%s2343] sm:$0x80] %vm2338, %v2337
    %s2345 = scalar_lea.vmem [#allocation1], 224
    %v2346 = vld [vmem:[%s2345] ss:$8 sm:$0x7]
    %s2347 = scalar_lea.vmem [#allocation1], 201
    %v2348 = vld [vmem:[%s2347] ss:$8 sm:$0x78]
    %vm2349 = vcmask 1046531
    %v2350 = vsel %vm2349, %v2348, %v2346
    %s2351 = scalar_lea.vmem [#allocation1], 241
    %v2352 = vld [vmem:[%s2351] sm:$0x80]
    %vm2353 = vcmask 1047559
    %v2354 = vsel %vm2353, %v2352, %v2350
    %2355 = vrot.lane.b32.xlu0 %v2354, 64
    %v2356 = vpop.permute.xlu0 %2355
    %vm2357 = vcmask 130048
    %s2358 = scalar_lea.vmem [#allocation0], 228
    %2359 = vst.msk [vmem:[%s2358] ss:$8 sm:$0x7] %vm2357, %v2356
    %s2360 = scalar_lea.vmem [#allocation0], 708
    %2361 = vst.msk [vmem:[%s2360] ss:$8 sm:$0x78] %vm2357, %v2356
    %s2362 = scalar_lea.vmem [#allocation0], 245
    %2363 = vst.msk [vmem:[%s2362] sm:$0x80] %vm2357, %v2356
    %s2364 = scalar_lea.vmem [#allocation1], 256
    %v2365 = vld [vmem:[%s2364] ss:$8 sm:$0x7]
    %s2366 = scalar_lea.vmem [#allocation1], 233
    %v2367 = vld [vmem:[%s2366] ss:$8 sm:$0x78]
    %vm2368 = vcmask 1046531
    %v2369 = vsel %vm2368, %v2367, %v2365
    %s2370 = scalar_lea.vmem [#allocation1], 273
    %v2371 = vld [vmem:[%s2370] sm:$0x80]
    %vm2372 = vcmask 1047559
    %v2373 = vsel %vm2372, %v2371, %v2369
    %2374 = vrot.lane.b32.xlu0 %v2373, 64
    %v2375 = vpop.permute.xlu0 %2374
    %vm2376 = vcmask 130048
    %s2377 = scalar_lea.vmem [#allocation0], 260
    %2378 = vst.msk [vmem:[%s2377] ss:$8 sm:$0x7] %vm2376, %v2375
    %s2379 = scalar_lea.vmem [#allocation0], 740
    %2380 = vst.msk [vmem:[%s2379] ss:$8 sm:$0x78] %vm2376, %v2375
    %s2381 = scalar_lea.vmem [#allocation0], 277
    %2382 = vst.msk [vmem:[%s2381] sm:$0x80] %vm2376, %v2375
    %s2383 = scalar_lea.vmem [#allocation1], 288
    %v2384 = vld [vmem:[%s2383] ss:$8 sm:$0x7]
    %s2385 = scalar_lea.vmem [#allocation1], 265
    %v2386 = vld [vmem:[%s2385] ss:$8 sm:$0x78]
    %vm2387 = vcmask 1046531
    %v2388 = vsel %vm2387, %v2386, %v2384
    %s2389 = scalar_lea.vmem [#allocation1], 305
    %v2390 = vld [vmem:[%s2389] sm:$0x80]
    %vm2391 = vcmask 1047559
    %v2392 = vsel %vm2391, %v2390, %v2388
    %2393 = vrot.lane.b32.xlu0 %v2392, 64
    %v2394 = vpop.permute.xlu0 %2393
    %vm2395 = vcmask 130048
    %s2396 = scalar_lea.vmem [#allocation0], 292
    %2397 = vst.msk [vmem:[%s2396] ss:$8 sm:$0x7] %vm2395, %v2394
    %s2398 = scalar_lea.vmem [#allocation0], 772
    %2399 = vst.msk [vmem:[%s2398] ss:$8 sm:$0x78] %vm2395, %v2394
    %s2400 = scalar_lea.vmem [#allocation0], 309
    %2401 = vst.msk [vmem:[%s2400] sm:$0x80] %vm2395, %v2394
    %s2402 = scalar_lea.vmem [#allocation1], 320
    %v2403 = vld [vmem:[%s2402] ss:$8 sm:$0x7]
    %s2404 = scalar_lea.vmem [#allocation1], 297
    %v2405 = vld [vmem:[%s2404] ss:$8 sm:$0x78]
    %vm2406 = vcmask 1046531
    %v2407 = vsel %vm2406, %v2405, %v2403
    %s2408 = scalar_lea.vmem [#allocation1], 337
    %v2409 = vld [vmem:[%s2408] sm:$0x80]
    %vm2410 = vcmask 1047559
    %v2411 = vsel %vm2410, %v2409, %v2407
    %2412 = vrot.lane.b32.xlu0 %v2411, 64
    %v2413 = vpop.permute.xlu0 %2412
    %vm2414 = vcmask 130048
    %s2415 = scalar_lea.vmem [#allocation0], 324
    %2416 = vst.msk [vmem:[%s2415] ss:$8 sm:$0x7] %vm2414, %v2413
    %s2417 = scalar_lea.vmem [#allocation0], 804
    %2418 = vst.msk [vmem:[%s2417] ss:$8 sm:$0x78] %vm2414, %v2413
    %s2419 = scalar_lea.vmem [#allocation0], 341
    %2420 = vst.msk [vmem:[%s2419] sm:$0x80] %vm2414, %v2413
    %s2421 = scalar_lea.vmem [#allocation1], 352
    %v2422 = vld [vmem:[%s2421] ss:$8 sm:$0x7]
    %s2423 = scalar_lea.vmem [#allocation1], 329
    %v2424 = vld [vmem:[%s2423] ss:$8 sm:$0x78]
    %vm2425 = vcmask 1046531
    %v2426 = vsel %vm2425, %v2424, %v2422
    %s2427 = scalar_lea.vmem [#allocation1], 369
    %v2428 = vld [vmem:[%s2427] sm:$0x80]
    %vm2429 = vcmask 1047559
    %v2430 = vsel %vm2429, %v2428, %v2426
    %2431 = vrot.lane.b32.xlu0 %v2430, 64
    %v2432 = vpop.permute.xlu0 %2431
    %vm2433 = vcmask 130048
    %s2434 = scalar_lea.vmem [#allocation0], 356
    %2435 = vst.msk [vmem:[%s2434] ss:$8 sm:$0x7] %vm2433, %v2432
    %s2436 = scalar_lea.vmem [#allocation0], 836
    %2437 = vst.msk [vmem:[%s2436] ss:$8 sm:$0x78] %vm2433, %v2432
    %s2438 = scalar_lea.vmem [#allocation0], 373
    %2439 = vst.msk [vmem:[%s2438] sm:$0x80] %vm2433, %v2432
    %s2440 = scalar_lea.vmem [#allocation1], 384
    %v2441 = vld [vmem:[%s2440] ss:$8 sm:$0x7]
    %s2442 = scalar_lea.vmem [#allocation1], 361
    %v2443 = vld [vmem:[%s2442] ss:$8 sm:$0x78]
    %vm2444 = vcmask 1046531
    %v2445 = vsel %vm2444, %v2443, %v2441
    %s2446 = scalar_lea.vmem [#allocation1], 401
    %v2447 = vld [vmem:[%s2446] sm:$0x80]
    %vm2448 = vcmask 1047559
    %v2449 = vsel %vm2448, %v2447, %v2445
    %2450 = vrot.lane.b32.xlu0 %v2449, 64
    %v2451 = vpop.permute.xlu0 %2450
    %vm2452 = vcmask 130048
    %s2453 = scalar_lea.vmem [#allocation0], 388
    %2454 = vst.msk [vmem:[%s2453] ss:$8 sm:$0x7] %vm2452, %v2451
    %s2455 = scalar_lea.vmem [#allocation0], 868
    %2456 = vst.msk [vmem:[%s2455] ss:$8 sm:$0x78] %vm2452, %v2451
    %s2457 = scalar_lea.vmem [#allocation0], 405
    %2458 = vst.msk [vmem:[%s2457] sm:$0x80] %vm2452, %v2451
    %s2459 = scalar_lea.vmem [#allocation1], 416
    %v2460 = vld [vmem:[%s2459] ss:$8 sm:$0x7]
    %s2461 = scalar_lea.vmem [#allocation1], 393
    %v2462 = vld [vmem:[%s2461] ss:$8 sm:$0x78]
    %vm2463 = vcmask 1046531
    %v2464 = vsel %vm2463, %v2462, %v2460
    %s2465 = scalar_lea.vmem [#allocation1], 433
    %v2466 = vld [vmem:[%s2465] sm:$0x80]
    %vm2467 = vcmask 1047559
    %v2468 = vsel %vm2467, %v2466, %v2464
    %2469 = vrot.lane.b32.xlu0 %v2468, 64
    %v2470 = vpop.permute.xlu0 %2469
    %vm2471 = vcmask 130048
    %s2472 = scalar_lea.vmem [#allocation0], 420
    %2473 = vst.msk [vmem:[%s2472] ss:$8 sm:$0x7] %vm2471, %v2470
    %s2474 = scalar_lea.vmem [#allocation0], 900
    %2475 = vst.msk [vmem:[%s2474] ss:$8 sm:$0x78] %vm2471, %v2470
    %s2476 = scalar_lea.vmem [#allocation0], 437
    %2477 = vst.msk [vmem:[%s2476] sm:$0x80] %vm2471, %v2470
    %s2478 = scalar_lea.vmem [#allocation1], 448
    %v2479 = vld [vmem:[%s2478] ss:$8 sm:$0x7]
    %s2480 = scalar_lea.vmem [#allocation1], 425
    %v2481 = vld [vmem:[%s2480] ss:$8 sm:$0x78]
    %vm2482 = vcmask 1046531
    %v2483 = vsel %vm2482, %v2481, %v2479
    %s2484 = scalar_lea.vmem [#allocation1], 465
    %v2485 = vld [vmem:[%s2484] sm:$0x80]
    %vm2486 = vcmask 1047559
    %v2487 = vsel %vm2486, %v2485, %v2483
    %2488 = vrot.lane.b32.xlu0 %v2487, 64
    %v2489 = vpop.permute.xlu0 %2488
    %vm2490 = vcmask 130048
    %s2491 = scalar_lea.vmem [#allocation0], 452
    %2492 = vst.msk [vmem:[%s2491] ss:$8 sm:$0x7] %vm2490, %v2489
    %s2493 = scalar_lea.vmem [#allocation0], 932
    %2494 = vst.msk [vmem:[%s2493] ss:$8 sm:$0x78] %vm2490, %v2489
    %s2495 = scalar_lea.vmem [#allocation0], 469
    %2496 = vst.msk [vmem:[%s2495] sm:$0x80] %vm2490, %v2489
    %s2497 = scalar_lea.vmem [#allocation1], 480
    %v2498 = vld.sshfl [vmem:[%s2497] sm:$0xff pattern:$0x99999180]
    %2499 = vrot.lane.b32.xlu0 %v2498, 64
    %v2500 = vpop.permute.xlu0 %2499
    %vm2501 = vcmask 130048
    %s2502 = scalar_lea.vmem [#allocation0], 484
    %2503 = vst.msk [vmem:[%s2502] ss:$8 sm:$0x3] %vm2501, %v2500
    %s2504 = scalar_lea.vmem [#allocation0], 972
    %2505 = vst.msk [vmem:[%s2504] ss:$8 sm:$0xc] %vm2501, %v2500
    %v2506 = vld [vmem:[#allocation1] ss:$8 sm:$0x7]
    %s2507 = scalar_lea.vmem [#allocation1], 4294967273
    %v2508 = vld [vmem:[%s2507] ss:$8 sm:$0x78]
    %vm2509 = vcmask 1046531
    %v2510 = vsel %vm2509, %v2508, %v2506
    %s2511 = scalar_lea.vmem [#allocation1], 17
    %v2512 = vld [vmem:[%s2511] sm:$0x80]
    %vm2513 = vcmask 1047559
    %v2514 = vsel %vm2513, %v2512, %v2510
    %2515 = vrot.lane.b32.xlu0 %v2514, 48
    %v2516 = vpop.permute.xlu0 %2515
    %vm2517 = vcmask 130048
    %s2518 = scalar_lea.vmem [#allocation0], 5
    %2519 = vst.msk [vmem:[%s2518] ss:$8 sm:$0x7] %vm2517, %v2516
    %s2520 = scalar_lea.vmem [#allocation0], 485
    %2521 = vst.msk [vmem:[%s2520] ss:$8 sm:$0x78] %vm2517, %v2516
    %s2522 = scalar_lea.vmem [#allocation0], 22
    %2523 = vst.msk [vmem:[%s2522] sm:$0x80] %vm2517, %v2516
    %s2524 = scalar_lea.vmem [#allocation1], 32
    %v2525 = vld [vmem:[%s2524] ss:$8 sm:$0x7]
    %s2526 = scalar_lea.vmem [#allocation1], 9
    %v2527 = vld [vmem:[%s2526] ss:$8 sm:$0x78]
    %vm2528 = vcmask 1046531
    %v2529 = vsel %vm2528, %v2527, %v2525
    %s2530 = scalar_lea.vmem [#allocation1], 49
    %v2531 = vld [vmem:[%s2530] sm:$0x80]
    %vm2532 = vcmask 1047559
    %v2533 = vsel %vm2532, %v2531, %v2529
    %2534 = vrot.lane.b32.xlu0 %v2533, 48
    %v2535 = vpop.permute.xlu0 %2534
    %vm2536 = vcmask 130048
    %s2537 = scalar_lea.vmem [#allocation0], 37
    %2538 = vst.msk [vmem:[%s2537] ss:$8 sm:$0x7] %vm2536, %v2535
    %s2539 = scalar_lea.vmem [#allocation0], 517
    %2540 = vst.msk [vmem:[%s2539] ss:$8 sm:$0x78] %vm2536, %v2535
    %s2541 = scalar_lea.vmem [#allocation0], 54
    %2542 = vst.msk [vmem:[%s2541] sm:$0x80] %vm2536, %v2535
    %s2543 = scalar_lea.vmem [#allocation1], 64
    %v2544 = vld [vmem:[%s2543] ss:$8 sm:$0x7]
    %s2545 = scalar_lea.vmem [#allocation1], 41
    %v2546 = vld [vmem:[%s2545] ss:$8 sm:$0x78]
    %vm2547 = vcmask 1046531
    %v2548 = vsel %vm2547, %v2546, %v2544
    %s2549 = scalar_lea.vmem [#allocation1], 81
    %v2550 = vld [vmem:[%s2549] sm:$0x80]
    %vm2551 = vcmask 1047559
    %v2552 = vsel %vm2551, %v2550, %v2548
    %2553 = vrot.lane.b32.xlu0 %v2552, 48
    %v2554 = vpop.permute.xlu0 %2553
    %vm2555 = vcmask 130048
    %s2556 = scalar_lea.vmem [#allocation0], 69
    %2557 = vst.msk [vmem:[%s2556] ss:$8 sm:$0x7] %vm2555, %v2554
    %s2558 = scalar_lea.vmem [#allocation0], 549
    %2559 = vst.msk [vmem:[%s2558] ss:$8 sm:$0x78] %vm2555, %v2554
    %s2560 = scalar_lea.vmem [#allocation0], 86
    %2561 = vst.msk [vmem:[%s2560] sm:$0x80] %vm2555, %v2554
    %s2562 = scalar_lea.vmem [#allocation1], 96
    %v2563 = vld [vmem:[%s2562] ss:$8 sm:$0x7]
    %s2564 = scalar_lea.vmem [#allocation1], 73
    %v2565 = vld [vmem:[%s2564] ss:$8 sm:$0x78]
    %vm2566 = vcmask 1046531
    %v2567 = vsel %vm2566, %v2565, %v2563
    %s2568 = scalar_lea.vmem [#allocation1], 113
    %v2569 = vld [vmem:[%s2568] sm:$0x80]
    %vm2570 = vcmask 1047559
    %v2571 = vsel %vm2570, %v2569, %v2567
    %2572 = vrot.lane.b32.xlu0 %v2571, 48
    %v2573 = vpop.permute.xlu0 %2572
    %vm2574 = vcmask 130048
    %s2575 = scalar_lea.vmem [#allocation0], 101
    %2576 = vst.msk [vmem:[%s2575] ss:$8 sm:$0x7] %vm2574, %v2573
    %s2577 = scalar_lea.vmem [#allocation0], 581
    %2578 = vst.msk [vmem:[%s2577] ss:$8 sm:$0x78] %vm2574, %v2573
    %s2579 = scalar_lea.vmem [#allocation0], 118
    %2580 = vst.msk [vmem:[%s2579] sm:$0x80] %vm2574, %v2573
    %s2581 = scalar_lea.vmem [#allocation1], 128
    %v2582 = vld [vmem:[%s2581] ss:$8 sm:$0x7]
    %s2583 = scalar_lea.vmem [#allocation1], 105
    %v2584 = vld [vmem:[%s2583] ss:$8 sm:$0x78]
    %vm2585 = vcmask 1046531
    %v2586 = vsel %vm2585, %v2584, %v2582
    %s2587 = scalar_lea.vmem [#allocation1], 145
    %v2588 = vld [vmem:[%s2587] sm:$0x80]
    %vm2589 = vcmask 1047559
    %v2590 = vsel %vm2589, %v2588, %v2586
    %2591 = vrot.lane.b32.xlu0 %v2590, 48
    %v2592 = vpop.permute.xlu0 %2591
    %vm2593 = vcmask 130048
    %s2594 = scalar_lea.vmem [#allocation0], 133
    %2595 = vst.msk [vmem:[%s2594] ss:$8 sm:$0x7] %vm2593, %v2592
    %s2596 = scalar_lea.vmem [#allocation0], 613
    %2597 = vst.msk [vmem:[%s2596] ss:$8 sm:$0x78] %vm2593, %v2592
    %s2598 = scalar_lea.vmem [#allocation0], 150
    %2599 = vst.msk [vmem:[%s2598] sm:$0x80] %vm2593, %v2592
    %s2600 = scalar_lea.vmem [#allocation1], 160
    %v2601 = vld [vmem:[%s2600] ss:$8 sm:$0x7]
    %s2602 = scalar_lea.vmem [#allocation1], 137
    %v2603 = vld [vmem:[%s2602] ss:$8 sm:$0x78]
    %vm2604 = vcmask 1046531
    %v2605 = vsel %vm2604, %v2603, %v2601
    %s2606 = scalar_lea.vmem [#allocation1], 177
    %v2607 = vld [vmem:[%s2606] sm:$0x80]
    %vm2608 = vcmask 1047559
    %v2609 = vsel %vm2608, %v2607, %v2605
    %2610 = vrot.lane.b32.xlu0 %v2609, 48
    %v2611 = vpop.permute.xlu0 %2610
    %vm2612 = vcmask 130048
    %s2613 = scalar_lea.vmem [#allocation0], 165
    %2614 = vst.msk [vmem:[%s2613] ss:$8 sm:$0x7] %vm2612, %v2611
    %s2615 = scalar_lea.vmem [#allocation0], 645
    %2616 = vst.msk [vmem:[%s2615] ss:$8 sm:$0x78] %vm2612, %v2611
    %s2617 = scalar_lea.vmem [#allocation0], 182
    %2618 = vst.msk [vmem:[%s2617] sm:$0x80] %vm2612, %v2611
    %s2619 = scalar_lea.vmem [#allocation1], 192
    %v2620 = vld [vmem:[%s2619] ss:$8 sm:$0x7]
    %s2621 = scalar_lea.vmem [#allocation1], 169
    %v2622 = vld [vmem:[%s2621] ss:$8 sm:$0x78]
    %vm2623 = vcmask 1046531
    %v2624 = vsel %vm2623, %v2622, %v2620
    %s2625 = scalar_lea.vmem [#allocation1], 209
    %v2626 = vld [vmem:[%s2625] sm:$0x80]
    %vm2627 = vcmask 1047559
    %v2628 = vsel %vm2627, %v2626, %v2624
    %2629 = vrot.lane.b32.xlu0 %v2628, 48
    %v2630 = vpop.permute.xlu0 %2629
    %vm2631 = vcmask 130048
    %s2632 = scalar_lea.vmem [#allocation0], 197
    %2633 = vst.msk [vmem:[%s2632] ss:$8 sm:$0x7] %vm2631, %v2630
    %s2634 = scalar_lea.vmem [#allocation0], 677
    %2635 = vst.msk [vmem:[%s2634] ss:$8 sm:$0x78] %vm2631, %v2630
    %s2636 = scalar_lea.vmem [#allocation0], 214
    %2637 = vst.msk [vmem:[%s2636] sm:$0x80] %vm2631, %v2630
    %s2638 = scalar_lea.vmem [#allocation1], 224
    %v2639 = vld [vmem:[%s2638] ss:$8 sm:$0x7]
    %s2640 = scalar_lea.vmem [#allocation1], 201
    %v2641 = vld [vmem:[%s2640] ss:$8 sm:$0x78]
    %vm2642 = vcmask 1046531
    %v2643 = vsel %vm2642, %v2641, %v2639
    %s2644 = scalar_lea.vmem [#allocation1], 241
    %v2645 = vld [vmem:[%s2644] sm:$0x80]
    %vm2646 = vcmask 1047559
    %v2647 = vsel %vm2646, %v2645, %v2643
    %2648 = vrot.lane.b32.xlu0 %v2647, 48
    %v2649 = vpop.permute.xlu0 %2648
    %vm2650 = vcmask 130048
    %s2651 = scalar_lea.vmem [#allocation0], 229
    %2652 = vst.msk [vmem:[%s2651] ss:$8 sm:$0x7] %vm2650, %v2649
    %s2653 = scalar_lea.vmem [#allocation0], 709
    %2654 = vst.msk [vmem:[%s2653] ss:$8 sm:$0x78] %vm2650, %v2649
    %s2655 = scalar_lea.vmem [#allocation0], 246
    %2656 = vst.msk [vmem:[%s2655] sm:$0x80] %vm2650, %v2649
    %s2657 = scalar_lea.vmem [#allocation1], 256
    %v2658 = vld [vmem:[%s2657] ss:$8 sm:$0x7]
    %s2659 = scalar_lea.vmem [#allocation1], 233
    %v2660 = vld [vmem:[%s2659] ss:$8 sm:$0x78]
    %vm2661 = vcmask 1046531
    %v2662 = vsel %vm2661, %v2660, %v2658
    %s2663 = scalar_lea.vmem [#allocation1], 273
    %v2664 = vld [vmem:[%s2663] sm:$0x80]
    %vm2665 = vcmask 1047559
    %v2666 = vsel %vm2665, %v2664, %v2662
    %2667 = vrot.lane.b32.xlu0 %v2666, 48
    %v2668 = vpop.permute.xlu0 %2667
    %vm2669 = vcmask 130048
    %s2670 = scalar_lea.vmem [#allocation0], 261
    %2671 = vst.msk [vmem:[%s2670] ss:$8 sm:$0x7] %vm2669, %v2668
    %s2672 = scalar_lea.vmem [#allocation0], 741
    %2673 = vst.msk [vmem:[%s2672] ss:$8 sm:$0x78] %vm2669, %v2668
    %s2674 = scalar_lea.vmem [#allocation0], 278
    %2675 = vst.msk [vmem:[%s2674] sm:$0x80] %vm2669, %v2668
    %s2676 = scalar_lea.vmem [#allocation1], 288
    %v2677 = vld [vmem:[%s2676] ss:$8 sm:$0x7]
    %s2678 = scalar_lea.vmem [#allocation1], 265
    %v2679 = vld [vmem:[%s2678] ss:$8 sm:$0x78]
    %vm2680 = vcmask 1046531
    %v2681 = vsel %vm2680, %v2679, %v2677
    %s2682 = scalar_lea.vmem [#allocation1], 305
    %v2683 = vld [vmem:[%s2682] sm:$0x80]
    %vm2684 = vcmask 1047559
    %v2685 = vsel %vm2684, %v2683, %v2681
    %2686 = vrot.lane.b32.xlu0 %v2685, 48
    %v2687 = vpop.permute.xlu0 %2686
    %vm2688 = vcmask 130048
    %s2689 = scalar_lea.vmem [#allocation0], 293
    %2690 = vst.msk [vmem:[%s2689] ss:$8 sm:$0x7] %vm2688, %v2687
    %s2691 = scalar_lea.vmem [#allocation0], 773
    %2692 = vst.msk [vmem:[%s2691] ss:$8 sm:$0x78] %vm2688, %v2687
    %s2693 = scalar_lea.vmem [#allocation0], 310
    %2694 = vst.msk [vmem:[%s2693] sm:$0x80] %vm2688, %v2687
    %s2695 = scalar_lea.vmem [#allocation1], 320
    %v2696 = vld [vmem:[%s2695] ss:$8 sm:$0x7]
    %s2697 = scalar_lea.vmem [#allocation1], 297
    %v2698 = vld [vmem:[%s2697] ss:$8 sm:$0x78]
    %vm2699 = vcmask 1046531
    %v2700 = vsel %vm2699, %v2698, %v2696
    %s2701 = scalar_lea.vmem [#allocation1], 337
    %v2702 = vld [vmem:[%s2701] sm:$0x80]
    %vm2703 = vcmask 1047559
    %v2704 = vsel %vm2703, %v2702, %v2700
    %2705 = vrot.lane.b32.xlu0 %v2704, 48
    %v2706 = vpop.permute.xlu0 %2705
    %vm2707 = vcmask 130048
    %s2708 = scalar_lea.vmem [#allocation0], 325
    %2709 = vst.msk [vmem:[%s2708] ss:$8 sm:$0x7] %vm2707, %v2706
    %s2710 = scalar_lea.vmem [#allocation0], 805
    %2711 = vst.msk [vmem:[%s2710] ss:$8 sm:$0x78] %vm2707, %v2706
    %s2712 = scalar_lea.vmem [#allocation0], 342
    %2713 = vst.msk [vmem:[%s2712] sm:$0x80] %vm2707, %v2706
    %s2714 = scalar_lea.vmem [#allocation1], 352
    %v2715 = vld [vmem:[%s2714] ss:$8 sm:$0x7]
    %s2716 = scalar_lea.vmem [#allocation1], 329
    %v2717 = vld [vmem:[%s2716] ss:$8 sm:$0x78]
    %vm2718 = vcmask 1046531
    %v2719 = vsel %vm2718, %v2717, %v2715
    %s2720 = scalar_lea.vmem [#allocation1], 369
    %v2721 = vld [vmem:[%s2720] sm:$0x80]
    %vm2722 = vcmask 1047559
    %v2723 = vsel %vm2722, %v2721, %v2719
    %2724 = vrot.lane.b32.xlu0 %v2723, 48
    %v2725 = vpop.permute.xlu0 %2724
    %vm2726 = vcmask 130048
    %s2727 = scalar_lea.vmem [#allocation0], 357
    %2728 = vst.msk [vmem:[%s2727] ss:$8 sm:$0x7] %vm2726, %v2725
    %s2729 = scalar_lea.vmem [#allocation0], 837
    %2730 = vst.msk [vmem:[%s2729] ss:$8 sm:$0x78] %vm2726, %v2725
    %s2731 = scalar_lea.vmem [#allocation0], 374
    %2732 = vst.msk [vmem:[%s2731] sm:$0x80] %vm2726, %v2725
    %s2733 = scalar_lea.vmem [#allocation1], 384
    %v2734 = vld [vmem:[%s2733] ss:$8 sm:$0x7]
    %s2735 = scalar_lea.vmem [#allocation1], 361
    %v2736 = vld [vmem:[%s2735] ss:$8 sm:$0x78]
    %vm2737 = vcmask 1046531
    %v2738 = vsel %vm2737, %v2736, %v2734
    %s2739 = scalar_lea.vmem [#allocation1], 401
    %v2740 = vld [vmem:[%s2739] sm:$0x80]
    %vm2741 = vcmask 1047559
    %v2742 = vsel %vm2741, %v2740, %v2738
    %2743 = vrot.lane.b32.xlu0 %v2742, 48
    %v2744 = vpop.permute.xlu0 %2743
    %vm2745 = vcmask 130048
    %s2746 = scalar_lea.vmem [#allocation0], 389
    %2747 = vst.msk [vmem:[%s2746] ss:$8 sm:$0x7] %vm2745, %v2744
    %s2748 = scalar_lea.vmem [#allocation0], 869
    %2749 = vst.msk [vmem:[%s2748] ss:$8 sm:$0x78] %vm2745, %v2744
    %s2750 = scalar_lea.vmem [#allocation0], 406
    %2751 = vst.msk [vmem:[%s2750] sm:$0x80] %vm2745, %v2744
    %s2752 = scalar_lea.vmem [#allocation1], 416
    %v2753 = vld [vmem:[%s2752] ss:$8 sm:$0x7]
    %s2754 = scalar_lea.vmem [#allocation1], 393
    %v2755 = vld [vmem:[%s2754] ss:$8 sm:$0x78]
    %vm2756 = vcmask 1046531
    %v2757 = vsel %vm2756, %v2755, %v2753
    %s2758 = scalar_lea.vmem [#allocation1], 433
    %v2759 = vld [vmem:[%s2758] sm:$0x80]
    %vm2760 = vcmask 1047559
    %v2761 = vsel %vm2760, %v2759, %v2757
    %2762 = vrot.lane.b32.xlu0 %v2761, 48
    %v2763 = vpop.permute.xlu0 %2762
    %vm2764 = vcmask 130048
    %s2765 = scalar_lea.vmem [#allocation0], 421
    %2766 = vst.msk [vmem:[%s2765] ss:$8 sm:$0x7] %vm2764, %v2763
    %s2767 = scalar_lea.vmem [#allocation0], 901
    %2768 = vst.msk [vmem:[%s2767] ss:$8 sm:$0x78] %vm2764, %v2763
    %s2769 = scalar_lea.vmem [#allocation0], 438
    %2770 = vst.msk [vmem:[%s2769] sm:$0x80] %vm2764, %v2763
    %s2771 = scalar_lea.vmem [#allocation1], 448
    %v2772 = vld [vmem:[%s2771] ss:$8 sm:$0x7]
    %s2773 = scalar_lea.vmem [#allocation1], 425
    %v2774 = vld [vmem:[%s2773] ss:$8 sm:$0x78]
    %vm2775 = vcmask 1046531
    %v2776 = vsel %vm2775, %v2774, %v2772
    %s2777 = scalar_lea.vmem [#allocation1], 465
    %v2778 = vld [vmem:[%s2777] sm:$0x80]
    %vm2779 = vcmask 1047559
    %v2780 = vsel %vm2779, %v2778, %v2776
    %2781 = vrot.lane.b32.xlu0 %v2780, 48
    %v2782 = vpop.permute.xlu0 %2781
    %vm2783 = vcmask 130048
    %s2784 = scalar_lea.vmem [#allocation0], 453
    %2785 = vst.msk [vmem:[%s2784] ss:$8 sm:$0x7] %vm2783, %v2782
    %s2786 = scalar_lea.vmem [#allocation0], 933
    %2787 = vst.msk [vmem:[%s2786] ss:$8 sm:$0x78] %vm2783, %v2782
    %s2788 = scalar_lea.vmem [#allocation0], 470
    %2789 = vst.msk [vmem:[%s2788] sm:$0x80] %vm2783, %v2782
    %s2790 = scalar_lea.vmem [#allocation1], 480
    %v2791 = vld.sshfl [vmem:[%s2790] sm:$0xff pattern:$0x99999180]
    %2792 = vrot.lane.b32.xlu0 %v2791, 48
    %v2793 = vpop.permute.xlu0 %2792
    %vm2794 = vcmask 130048
    %s2795 = scalar_lea.vmem [#allocation0], 485
    %2796 = vst.msk [vmem:[%s2795] ss:$8 sm:$0x3] %vm2794, %v2793
    %s2797 = scalar_lea.vmem [#allocation0], 973
    %2798 = vst.msk [vmem:[%s2797] ss:$8 sm:$0xc] %vm2794, %v2793
    %v2799 = vld [vmem:[#allocation1] ss:$8 sm:$0x7]
    %s2800 = scalar_lea.vmem [#allocation1], 4294967273
    %v2801 = vld [vmem:[%s2800] ss:$8 sm:$0x78]
    %vm2802 = vcmask 1046531
    %v2803 = vsel %vm2802, %v2801, %v2799
    %s2804 = scalar_lea.vmem [#allocation1], 17
    %v2805 = vld [vmem:[%s2804] sm:$0x80]
    %vm2806 = vcmask 1047559
    %v2807 = vsel %vm2806, %v2805, %v2803
    %2808 = vrot.lane.b32.xlu0 %v2807, 32
    %v2809 = vpop.permute.xlu0 %2808
    %vm2810 = vcmask 130048
    %s2811 = scalar_lea.vmem [#allocation0], 6
    %2812 = vst.msk [vmem:[%s2811] ss:$8 sm:$0x7] %vm2810, %v2809
    %s2813 = scalar_lea.vmem [#allocation0], 486
    %2814 = vst.msk [vmem:[%s2813] ss:$8 sm:$0x78] %vm2810, %v2809
    %s2815 = scalar_lea.vmem [#allocation0], 23
    %2816 = vst.msk [vmem:[%s2815] sm:$0x80] %vm2810, %v2809
    %s2817 = scalar_lea.vmem [#allocation1], 32
    %v2818 = vld [vmem:[%s2817] ss:$8 sm:$0x7]
    %s2819 = scalar_lea.vmem [#allocation1], 9
    %v2820 = vld [vmem:[%s2819] ss:$8 sm:$0x78]
    %vm2821 = vcmask 1046531
    %v2822 = vsel %vm2821, %v2820, %v2818
    %s2823 = scalar_lea.vmem [#allocation1], 49
    %v2824 = vld [vmem:[%s2823] sm:$0x80]
    %vm2825 = vcmask 1047559
    %v2826 = vsel %vm2825, %v2824, %v2822
    %2827 = vrot.lane.b32.xlu0 %v2826, 32
    %v2828 = vpop.permute.xlu0 %2827
    %vm2829 = vcmask 130048
    %s2830 = scalar_lea.vmem [#allocation0], 38
    %2831 = vst.msk [vmem:[%s2830] ss:$8 sm:$0x7] %vm2829, %v2828
    %s2832 = scalar_lea.vmem [#allocation0], 518
    %2833 = vst.msk [vmem:[%s2832] ss:$8 sm:$0x78] %vm2829, %v2828
    %s2834 = scalar_lea.vmem [#allocation0], 55
    %2835 = vst.msk [vmem:[%s2834] sm:$0x80] %vm2829, %v2828
    %s2836 = scalar_lea.vmem [#allocation1], 64
    %v2837 = vld [vmem:[%s2836] ss:$8 sm:$0x7]
    %s2838 = scalar_lea.vmem [#allocation1], 41
    %v2839 = vld [vmem:[%s2838] ss:$8 sm:$0x78]
    %vm2840 = vcmask 1046531
    %v2841 = vsel %vm2840, %v2839, %v2837
    %s2842 = scalar_lea.vmem [#allocation1], 81
    %v2843 = vld [vmem:[%s2842] sm:$0x80]
    %vm2844 = vcmask 1047559
    %v2845 = vsel %vm2844, %v2843, %v2841
    %2846 = vrot.lane.b32.xlu0 %v2845, 32
    %v2847 = vpop.permute.xlu0 %2846
    %vm2848 = vcmask 130048
    %s2849 = scalar_lea.vmem [#allocation0], 70
    %2850 = vst.msk [vmem:[%s2849] ss:$8 sm:$0x7] %vm2848, %v2847
    %s2851 = scalar_lea.vmem [#allocation0], 550
    %2852 = vst.msk [vmem:[%s2851] ss:$8 sm:$0x78] %vm2848, %v2847
    %s2853 = scalar_lea.vmem [#allocation0], 87
    %2854 = vst.msk [vmem:[%s2853] sm:$0x80] %vm2848, %v2847
    %s2855 = scalar_lea.vmem [#allocation1], 96
    %v2856 = vld [vmem:[%s2855] ss:$8 sm:$0x7]
    %s2857 = scalar_lea.vmem [#allocation1], 73
    %v2858 = vld [vmem:[%s2857] ss:$8 sm:$0x78]
    %vm2859 = vcmask 1046531
    %v2860 = vsel %vm2859, %v2858, %v2856
    %s2861 = scalar_lea.vmem [#allocation1], 113
    %v2862 = vld [vmem:[%s2861] sm:$0x80]
    %vm2863 = vcmask 1047559
    %v2864 = vsel %vm2863, %v2862, %v2860
    %2865 = vrot.lane.b32.xlu0 %v2864, 32
    %v2866 = vpop.permute.xlu0 %2865
    %vm2867 = vcmask 130048
    %s2868 = scalar_lea.vmem [#allocation0], 102
    %2869 = vst.msk [vmem:[%s2868] ss:$8 sm:$0x7] %vm2867, %v2866
    %s2870 = scalar_lea.vmem [#allocation0], 582
    %2871 = vst.msk [vmem:[%s2870] ss:$8 sm:$0x78] %vm2867, %v2866
    %s2872 = scalar_lea.vmem [#allocation0], 119
    %2873 = vst.msk [vmem:[%s2872] sm:$0x80] %vm2867, %v2866
    %s2874 = scalar_lea.vmem [#allocation1], 128
    %v2875 = vld [vmem:[%s2874] ss:$8 sm:$0x7]
    %s2876 = scalar_lea.vmem [#allocation1], 105
    %v2877 = vld [vmem:[%s2876] ss:$8 sm:$0x78]
    %vm2878 = vcmask 1046531
    %v2879 = vsel %vm2878, %v2877, %v2875
    %s2880 = scalar_lea.vmem [#allocation1], 145
    %v2881 = vld [vmem:[%s2880] sm:$0x80]
    %vm2882 = vcmask 1047559
    %v2883 = vsel %vm2882, %v2881, %v2879
    %2884 = vrot.lane.b32.xlu0 %v2883, 32
    %v2885 = vpop.permute.xlu0 %2884
    %vm2886 = vcmask 130048
    %s2887 = scalar_lea.vmem [#allocation0], 134
    %2888 = vst.msk [vmem:[%s2887] ss:$8 sm:$0x7] %vm2886, %v2885
    %s2889 = scalar_lea.vmem [#allocation0], 614
    %2890 = vst.msk [vmem:[%s2889] ss:$8 sm:$0x78] %vm2886, %v2885
    %s2891 = scalar_lea.vmem [#allocation0], 151
    %2892 = vst.msk [vmem:[%s2891] sm:$0x80] %vm2886, %v2885
    %s2893 = scalar_lea.vmem [#allocation1], 160
    %v2894 = vld [vmem:[%s2893] ss:$8 sm:$0x7]
    %s2895 = scalar_lea.vmem [#allocation1], 137
    %v2896 = vld [vmem:[%s2895] ss:$8 sm:$0x78]
    %vm2897 = vcmask 1046531
    %v2898 = vsel %vm2897, %v2896, %v2894
    %s2899 = scalar_lea.vmem [#allocation1], 177
    %v2900 = vld [vmem:[%s2899] sm:$0x80]
    %vm2901 = vcmask 1047559
    %v2902 = vsel %vm2901, %v2900, %v2898
    %2903 = vrot.lane.b32.xlu0 %v2902, 32
    %v2904 = vpop.permute.xlu0 %2903
    %vm2905 = vcmask 130048
    %s2906 = scalar_lea.vmem [#allocation0], 166
    %2907 = vst.msk [vmem:[%s2906] ss:$8 sm:$0x7] %vm2905, %v2904
    %s2908 = scalar_lea.vmem [#allocation0], 646
    %2909 = vst.msk [vmem:[%s2908] ss:$8 sm:$0x78] %vm2905, %v2904
    %s2910 = scalar_lea.vmem [#allocation0], 183
    %2911 = vst.msk [vmem:[%s2910] sm:$0x80] %vm2905, %v2904
    %s2912 = scalar_lea.vmem [#allocation1], 192
    %v2913 = vld [vmem:[%s2912] ss:$8 sm:$0x7]
    %s2914 = scalar_lea.vmem [#allocation1], 169
    %v2915 = vld [vmem:[%s2914] ss:$8 sm:$0x78]
    %vm2916 = vcmask 1046531
    %v2917 = vsel %vm2916, %v2915, %v2913
    %s2918 = scalar_lea.vmem [#allocation1], 209
    %v2919 = vld [vmem:[%s2918] sm:$0x80]
    %vm2920 = vcmask 1047559
    %v2921 = vsel %vm2920, %v2919, %v2917
    %2922 = vrot.lane.b32.xlu0 %v2921, 32
    %v2923 = vpop.permute.xlu0 %2922
    %vm2924 = vcmask 130048
    %s2925 = scalar_lea.vmem [#allocation0], 198
    %2926 = vst.msk [vmem:[%s2925] ss:$8 sm:$0x7] %vm2924, %v2923
    %s2927 = scalar_lea.vmem [#allocation0], 678
    %2928 = vst.msk [vmem:[%s2927] ss:$8 sm:$0x78] %vm2924, %v2923
    %s2929 = scalar_lea.vmem [#allocation0], 215
    %2930 = vst.msk [vmem:[%s2929] sm:$0x80] %vm2924, %v2923
    %s2931 = scalar_lea.vmem [#allocation1], 224
    %v2932 = vld [vmem:[%s2931] ss:$8 sm:$0x7]
    %s2933 = scalar_lea.vmem [#allocation1], 201
    %v2934 = vld [vmem:[%s2933] ss:$8 sm:$0x78]
    %vm2935 = vcmask 1046531
    %v2936 = vsel %vm2935, %v2934, %v2932
    %s2937 = scalar_lea.vmem [#allocation1], 241
    %v2938 = vld [vmem:[%s2937] sm:$0x80]
    %vm2939 = vcmask 1047559
    %v2940 = vsel %vm2939, %v2938, %v2936
    %2941 = vrot.lane.b32.xlu0 %v2940, 32
    %v2942 = vpop.permute.xlu0 %2941
    %vm2943 = vcmask 130048
    %s2944 = scalar_lea.vmem [#allocation0], 230
    %2945 = vst.msk [vmem:[%s2944] ss:$8 sm:$0x7] %vm2943, %v2942
    %s2946 = scalar_lea.vmem [#allocation0], 710
    %2947 = vst.msk [vmem:[%s2946] ss:$8 sm:$0x78] %vm2943, %v2942
    %s2948 = scalar_lea.vmem [#allocation0], 247
    %2949 = vst.msk [vmem:[%s2948] sm:$0x80] %vm2943, %v2942
    %s2950 = scalar_lea.vmem [#allocation1], 256
    %v2951 = vld [vmem:[%s2950] ss:$8 sm:$0x7]
    %s2952 = scalar_lea.vmem [#allocation1], 233
    %v2953 = vld [vmem:[%s2952] ss:$8 sm:$0x78]
    %vm2954 = vcmask 1046531
    %v2955 = vsel %vm2954, %v2953, %v2951
    %s2956 = scalar_lea.vmem [#allocation1], 273
    %v2957 = vld [vmem:[%s2956] sm:$0x80]
    %vm2958 = vcmask 1047559
    %v2959 = vsel %vm2958, %v2957, %v2955
    %2960 = vrot.lane.b32.xlu0 %v2959, 32
    %v2961 = vpop.permute.xlu0 %2960
    %vm2962 = vcmask 130048
    %s2963 = scalar_lea.vmem [#allocation0], 262
    %2964 = vst.msk [vmem:[%s2963] ss:$8 sm:$0x7] %vm2962, %v2961
    %s2965 = scalar_lea.vmem [#allocation0], 742
    %2966 = vst.msk [vmem:[%s2965] ss:$8 sm:$0x78] %vm2962, %v2961
    %s2967 = scalar_lea.vmem [#allocation0], 279
    %2968 = vst.msk [vmem:[%s2967] sm:$0x80] %vm2962, %v2961
    %s2969 = scalar_lea.vmem [#allocation1], 288
    %v2970 = vld [vmem:[%s2969] ss:$8 sm:$0x7]
    %s2971 = scalar_lea.vmem [#allocation1], 265
    %v2972 = vld [vmem:[%s2971] ss:$8 sm:$0x78]
    %vm2973 = vcmask 1046531
    %v2974 = vsel %vm2973, %v2972, %v2970
    %s2975 = scalar_lea.vmem [#allocation1], 305
    %v2976 = vld [vmem:[%s2975] sm:$0x80]
    %vm2977 = vcmask 1047559
    %v2978 = vsel %vm2977, %v2976, %v2974
    %2979 = vrot.lane.b32.xlu0 %v2978, 32
    %v2980 = vpop.permute.xlu0 %2979
    %vm2981 = vcmask 130048
    %s2982 = scalar_lea.vmem [#allocation0], 294
    %2983 = vst.msk [vmem:[%s2982] ss:$8 sm:$0x7] %vm2981, %v2980
    %s2984 = scalar_lea.vmem [#allocation0], 774
    %2985 = vst.msk [vmem:[%s2984] ss:$8 sm:$0x78] %vm2981, %v2980
    %s2986 = scalar_lea.vmem [#allocation0], 311
    %2987 = vst.msk [vmem:[%s2986] sm:$0x80] %vm2981, %v2980
    %s2988 = scalar_lea.vmem [#allocation1], 320
    %v2989 = vld [vmem:[%s2988] ss:$8 sm:$0x7]
    %s2990 = scalar_lea.vmem [#allocation1], 297
    %v2991 = vld [vmem:[%s2990] ss:$8 sm:$0x78]
    %vm2992 = vcmask 1046531
    %v2993 = vsel %vm2992, %v2991, %v2989
    %s2994 = scalar_lea.vmem [#allocation1], 337
    %v2995 = vld [vmem:[%s2994] sm:$0x80]
    %vm2996 = vcmask 1047559
    %v2997 = vsel %vm2996, %v2995, %v2993
    %2998 = vrot.lane.b32.xlu0 %v2997, 32
    %v2999 = vpop.permute.xlu0 %2998
    %vm3000 = vcmask 130048
    %s3001 = scalar_lea.vmem [#allocation0], 326
    %3002 = vst.msk [vmem:[%s3001] ss:$8 sm:$0x7] %vm3000, %v2999
    %s3003 = scalar_lea.vmem [#allocation0], 806
    %3004 = vst.msk [vmem:[%s3003] ss:$8 sm:$0x78] %vm3000, %v2999
    %s3005 = scalar_lea.vmem [#allocation0], 343
    %3006 = vst.msk [vmem:[%s3005] sm:$0x80] %vm3000, %v2999
    %s3007 = scalar_lea.vmem [#allocation1], 352
    %v3008 = vld [vmem:[%s3007] ss:$8 sm:$0x7]
    %s3009 = scalar_lea.vmem [#allocation1], 329
    %v3010 = vld [vmem:[%s3009] ss:$8 sm:$0x78]
    %vm3011 = vcmask 1046531
    %v3012 = vsel %vm3011, %v3010, %v3008
    %s3013 = scalar_lea.vmem [#allocation1], 369
    %v3014 = vld [vmem:[%s3013] sm:$0x80]
    %vm3015 = vcmask 1047559
    %v3016 = vsel %vm3015, %v3014, %v3012
    %3017 = vrot.lane.b32.xlu0 %v3016, 32
    %v3018 = vpop.permute.xlu0 %3017
    %vm3019 = vcmask 130048
    %s3020 = scalar_lea.vmem [#allocation0], 358
    %3021 = vst.msk [vmem:[%s3020] ss:$8 sm:$0x7] %vm3019, %v3018
    %s3022 = scalar_lea.vmem [#allocation0], 838
    %3023 = vst.msk [vmem:[%s3022] ss:$8 sm:$0x78] %vm3019, %v3018
    %s3024 = scalar_lea.vmem [#allocation0], 375
    %3025 = vst.msk [vmem:[%s3024] sm:$0x80] %vm3019, %v3018
    %s3026 = scalar_lea.vmem [#allocation1], 384
    %v3027 = vld [vmem:[%s3026] ss:$8 sm:$0x7]
    %s3028 = scalar_lea.vmem [#allocation1], 361
    %v3029 = vld [vmem:[%s3028] ss:$8 sm:$0x78]
    %vm3030 = vcmask 1046531
    %v3031 = vsel %vm3030, %v3029, %v3027
    %s3032 = scalar_lea.vmem [#allocation1], 401
    %v3033 = vld [vmem:[%s3032] sm:$0x80]
    %vm3034 = vcmask 1047559
    %v3035 = vsel %vm3034, %v3033, %v3031
    %3036 = vrot.lane.b32.xlu0 %v3035, 32
    %v3037 = vpop.permute.xlu0 %3036
    %vm3038 = vcmask 130048
    %s3039 = scalar_lea.vmem [#allocation0], 390
    %3040 = vst.msk [vmem:[%s3039] ss:$8 sm:$0x7] %vm3038, %v3037
    %s3041 = scalar_lea.vmem [#allocation0], 870
    %3042 = vst.msk [vmem:[%s3041] ss:$8 sm:$0x78] %vm3038, %v3037
    %s3043 = scalar_lea.vmem [#allocation0], 407
    %3044 = vst.msk [vmem:[%s3043] sm:$0x80] %vm3038, %v3037
    %s3045 = scalar_lea.vmem [#allocation1], 416
    %v3046 = vld [vmem:[%s3045] ss:$8 sm:$0x7]
    %s3047 = scalar_lea.vmem [#allocation1], 393
    %v3048 = vld [vmem:[%s3047] ss:$8 sm:$0x78]
    %vm3049 = vcmask 1046531
    %v3050 = vsel %vm3049, %v3048, %v3046
    %s3051 = scalar_lea.vmem [#allocation1], 433
    %v3052 = vld [vmem:[%s3051] sm:$0x80]
    %vm3053 = vcmask 1047559
    %v3054 = vsel %vm3053, %v3052, %v3050
    %3055 = vrot.lane.b32.xlu0 %v3054, 32
    %v3056 = vpop.permute.xlu0 %3055
    %vm3057 = vcmask 130048
    %s3058 = scalar_lea.vmem [#allocation0], 422
    %3059 = vst.msk [vmem:[%s3058] ss:$8 sm:$0x7] %vm3057, %v3056
    %s3060 = scalar_lea.vmem [#allocation0], 902
    %3061 = vst.msk [vmem:[%s3060] ss:$8 sm:$0x78] %vm3057, %v3056
    %s3062 = scalar_lea.vmem [#allocation0], 439
    %3063 = vst.msk [vmem:[%s3062] sm:$0x80] %vm3057, %v3056
    %s3064 = scalar_lea.vmem [#allocation1], 448
    %v3065 = vld [vmem:[%s3064] ss:$8 sm:$0x7]
    %s3066 = scalar_lea.vmem [#allocation1], 425
    %v3067 = vld [vmem:[%s3066] ss:$8 sm:$0x78]
    %vm3068 = vcmask 1046531
    %v3069 = vsel %vm3068, %v3067, %v3065
    %s3070 = scalar_lea.vmem [#allocation1], 465
    %v3071 = vld [vmem:[%s3070] sm:$0x80]
    %vm3072 = vcmask 1047559
    %v3073 = vsel %vm3072, %v3071, %v3069
    %3074 = vrot.lane.b32.xlu0 %v3073, 32
    %v3075 = vpop.permute.xlu0 %3074
    %vm3076 = vcmask 130048
    %s3077 = scalar_lea.vmem [#allocation0], 454
    %3078 = vst.msk [vmem:[%s3077] ss:$8 sm:$0x7] %vm3076, %v3075
    %s3079 = scalar_lea.vmem [#allocation0], 934
    %3080 = vst.msk [vmem:[%s3079] ss:$8 sm:$0x78] %vm3076, %v3075
    %s3081 = scalar_lea.vmem [#allocation0], 471
    %3082 = vst.msk [vmem:[%s3081] sm:$0x80] %vm3076, %v3075
    %s3083 = scalar_lea.vmem [#allocation1], 480
    %v3084 = vld.sshfl [vmem:[%s3083] sm:$0xff pattern:$0x99999180]
    %3085 = vrot.lane.b32.xlu0 %v3084, 32
    %v3086 = vpop.permute.xlu0 %3085
    %vm3087 = vcmask 130048
    %s3088 = scalar_lea.vmem [#allocation0], 486
    %3089 = vst.msk [vmem:[%s3088] ss:$8 sm:$0x3] %vm3087, %v3086
    %s3090 = scalar_lea.vmem [#allocation0], 974
    %3091 = vst.msk [vmem:[%s3090] ss:$8 sm:$0xc] %vm3087, %v3086
    %v3092 = vld [vmem:[#allocation1] ss:$8 sm:$0x7]
    %s3093 = scalar_lea.vmem [#allocation1], 4294967273
    %v3094 = vld [vmem:[%s3093] ss:$8 sm:$0x78]
    %vm3095 = vcmask 1046531
    %v3096 = vsel %vm3095, %v3094, %v3092
    %s3097 = scalar_lea.vmem [#allocation1], 17
    %v3098 = vld [vmem:[%s3097] sm:$0x80]
    %vm3099 = vcmask 1047559
    %v3100 = vsel %vm3099, %v3098, %v3096
    %3101 = vrot.lane.b32.xlu0 %v3100, 16
    %v3102 = vpop.permute.xlu0 %3101
    %vm3103 = vcmask 130048
    %s3104 = scalar_lea.vmem [#allocation0], 7
    %3105 = vst.msk [vmem:[%s3104] ss:$8 sm:$0x7] %vm3103, %v3102
    %s3106 = scalar_lea.vmem [#allocation0], 487
    %3107 = vst.msk [vmem:[%s3106] ss:$8 sm:$0x78] %vm3103, %v3102
    %s3108 = scalar_lea.vmem [#allocation0], 24
    %3109 = vst.msk [vmem:[%s3108] sm:$0x80] %vm3103, %v3102
    %s3110 = scalar_lea.vmem [#allocation1], 32
    %v3111 = vld [vmem:[%s3110] ss:$8 sm:$0x7]
    %s3112 = scalar_lea.vmem [#allocation1], 9
    %v3113 = vld [vmem:[%s3112] ss:$8 sm:$0x78]
    %vm3114 = vcmask 1046531
    %v3115 = vsel %vm3114, %v3113, %v3111
    %s3116 = scalar_lea.vmem [#allocation1], 49
    %v3117 = vld [vmem:[%s3116] sm:$0x80]
    %vm3118 = vcmask 1047559
    %v3119 = vsel %vm3118, %v3117, %v3115
    %3120 = vrot.lane.b32.xlu0 %v3119, 16
    %v3121 = vpop.permute.xlu0 %3120
    %vm3122 = vcmask 130048
    %s3123 = scalar_lea.vmem [#allocation0], 39
    %3124 = vst.msk [vmem:[%s3123] ss:$8 sm:$0x7] %vm3122, %v3121
    %s3125 = scalar_lea.vmem [#allocation0], 519
    %3126 = vst.msk [vmem:[%s3125] ss:$8 sm:$0x78] %vm3122, %v3121
    %s3127 = scalar_lea.vmem [#allocation0], 56
    %3128 = vst.msk [vmem:[%s3127] sm:$0x80] %vm3122, %v3121
    %s3129 = scalar_lea.vmem [#allocation1], 64
    %v3130 = vld [vmem:[%s3129] ss:$8 sm:$0x7]
    %s3131 = scalar_lea.vmem [#allocation1], 41
    %v3132 = vld [vmem:[%s3131] ss:$8 sm:$0x78]
    %vm3133 = vcmask 1046531
    %v3134 = vsel %vm3133, %v3132, %v3130
    %s3135 = scalar_lea.vmem [#allocation1], 81
    %v3136 = vld [vmem:[%s3135] sm:$0x80]
    %vm3137 = vcmask 1047559
    %v3138 = vsel %vm3137, %v3136, %v3134
    %3139 = vrot.lane.b32.xlu0 %v3138, 16
    %v3140 = vpop.permute.xlu0 %3139
    %vm3141 = vcmask 130048
    %s3142 = scalar_lea.vmem [#allocation0], 71
    %3143 = vst.msk [vmem:[%s3142] ss:$8 sm:$0x7] %vm3141, %v3140
    %s3144 = scalar_lea.vmem [#allocation0], 551
    %3145 = vst.msk [vmem:[%s3144] ss:$8 sm:$0x78] %vm3141, %v3140
    %s3146 = scalar_lea.vmem [#allocation0], 88
    %3147 = vst.msk [vmem:[%s3146] sm:$0x80] %vm3141, %v3140
    %s3148 = scalar_lea.vmem [#allocation1], 96
    %v3149 = vld [vmem:[%s3148] ss:$8 sm:$0x7]
    %s3150 = scalar_lea.vmem [#allocation1], 73
    %v3151 = vld [vmem:[%s3150] ss:$8 sm:$0x78]
    %vm3152 = vcmask 1046531
    %v3153 = vsel %vm3152, %v3151, %v3149
    %s3154 = scalar_lea.vmem [#allocation1], 113
    %v3155 = vld [vmem:[%s3154] sm:$0x80]
    %vm3156 = vcmask 1047559
    %v3157 = vsel %vm3156, %v3155, %v3153
    %3158 = vrot.lane.b32.xlu0 %v3157, 16
    %v3159 = vpop.permute.xlu0 %3158
    %vm3160 = vcmask 130048
    %s3161 = scalar_lea.vmem [#allocation0], 103
    %3162 = vst.msk [vmem:[%s3161] ss:$8 sm:$0x7] %vm3160, %v3159
    %s3163 = scalar_lea.vmem [#allocation0], 583
    %3164 = vst.msk [vmem:[%s3163] ss:$8 sm:$0x78] %vm3160, %v3159
    %s3165 = scalar_lea.vmem [#allocation0], 120
    %3166 = vst.msk [vmem:[%s3165] sm:$0x80] %vm3160, %v3159
    %s3167 = scalar_lea.vmem [#allocation1], 128
    %v3168 = vld [vmem:[%s3167] ss:$8 sm:$0x7]
    %s3169 = scalar_lea.vmem [#allocation1], 105
    %v3170 = vld [vmem:[%s3169] ss:$8 sm:$0x78]
    %vm3171 = vcmask 1046531
    %v3172 = vsel %vm3171, %v3170, %v3168
    %s3173 = scalar_lea.vmem [#allocation1], 145
    %v3174 = vld [vmem:[%s3173] sm:$0x80]
    %vm3175 = vcmask 1047559
    %v3176 = vsel %vm3175, %v3174, %v3172
    %3177 = vrot.lane.b32.xlu0 %v3176, 16
    %v3178 = vpop.permute.xlu0 %3177
    %vm3179 = vcmask 130048
    %s3180 = scalar_lea.vmem [#allocation0], 135
    %3181 = vst.msk [vmem:[%s3180] ss:$8 sm:$0x7] %vm3179, %v3178
    %s3182 = scalar_lea.vmem [#allocation0], 615
    %3183 = vst.msk [vmem:[%s3182] ss:$8 sm:$0x78] %vm3179, %v3178
    %s3184 = scalar_lea.vmem [#allocation0], 152
    %3185 = vst.msk [vmem:[%s3184] sm:$0x80] %vm3179, %v3178
    %s3186 = scalar_lea.vmem [#allocation1], 160
    %v3187 = vld [vmem:[%s3186] ss:$8 sm:$0x7]
    %s3188 = scalar_lea.vmem [#allocation1], 137
    %v3189 = vld [vmem:[%s3188] ss:$8 sm:$0x78]
    %vm3190 = vcmask 1046531
    %v3191 = vsel %vm3190, %v3189, %v3187
    %s3192 = scalar_lea.vmem [#allocation1], 177
    %v3193 = vld [vmem:[%s3192] sm:$0x80]
    %vm3194 = vcmask 1047559
    %v3195 = vsel %vm3194, %v3193, %v3191
    %3196 = vrot.lane.b32.xlu0 %v3195, 16
    %v3197 = vpop.permute.xlu0 %3196
    %vm3198 = vcmask 130048
    %s3199 = scalar_lea.vmem [#allocation0], 167
    %3200 = vst.msk [vmem:[%s3199] ss:$8 sm:$0x7] %vm3198, %v3197
    %s3201 = scalar_lea.vmem [#allocation0], 647
    %3202 = vst.msk [vmem:[%s3201] ss:$8 sm:$0x78] %vm3198, %v3197
    %s3203 = scalar_lea.vmem [#allocation0], 184
    %3204 = vst.msk [vmem:[%s3203] sm:$0x80] %vm3198, %v3197
    %s3205 = scalar_lea.vmem [#allocation1], 192
    %v3206 = vld [vmem:[%s3205] ss:$8 sm:$0x7]
    %s3207 = scalar_lea.vmem [#allocation1], 169
    %v3208 = vld [vmem:[%s3207] ss:$8 sm:$0x78]
    %vm3209 = vcmask 1046531
    %v3210 = vsel %vm3209, %v3208, %v3206
    %s3211 = scalar_lea.vmem [#allocation1], 209
    %v3212 = vld [vmem:[%s3211] sm:$0x80]
    %vm3213 = vcmask 1047559
    %v3214 = vsel %vm3213, %v3212, %v3210
    %3215 = vrot.lane.b32.xlu0 %v3214, 16
    %v3216 = vpop.permute.xlu0 %3215
    %vm3217 = vcmask 130048
    %s3218 = scalar_lea.vmem [#allocation0], 199
    %3219 = vst.msk [vmem:[%s3218] ss:$8 sm:$0x7] %vm3217, %v3216
    %s3220 = scalar_lea.vmem [#allocation0], 679
    %3221 = vst.msk [vmem:[%s3220] ss:$8 sm:$0x78] %vm3217, %v3216
    %s3222 = scalar_lea.vmem [#allocation0], 216
    %3223 = vst.msk [vmem:[%s3222] sm:$0x80] %vm3217, %v3216
    %s3224 = scalar_lea.vmem [#allocation1], 224
    %v3225 = vld [vmem:[%s3224] ss:$8 sm:$0x7]
    %s3226 = scalar_lea.vmem [#allocation1], 201
    %v3227 = vld [vmem:[%s3226] ss:$8 sm:$0x78]
    %vm3228 = vcmask 1046531
    %v3229 = vsel %vm3228, %v3227, %v3225
    %s3230 = scalar_lea.vmem [#allocation1], 241
    %v3231 = vld [vmem:[%s3230] sm:$0x80]
    %vm3232 = vcmask 1047559
    %v3233 = vsel %vm3232, %v3231, %v3229
    %3234 = vrot.lane.b32.xlu0 %v3233, 16
    %v3235 = vpop.permute.xlu0 %3234
    %vm3236 = vcmask 130048
    %s3237 = scalar_lea.vmem [#allocation0], 231
    %3238 = vst.msk [vmem:[%s3237] ss:$8 sm:$0x7] %vm3236, %v3235
    %s3239 = scalar_lea.vmem [#allocation0], 711
    %3240 = vst.msk [vmem:[%s3239] ss:$8 sm:$0x78] %vm3236, %v3235
    %s3241 = scalar_lea.vmem [#allocation0], 248
    %3242 = vst.msk [vmem:[%s3241] sm:$0x80] %vm3236, %v3235
    %s3243 = scalar_lea.vmem [#allocation1], 256
    %v3244 = vld [vmem:[%s3243] ss:$8 sm:$0x7]
    %s3245 = scalar_lea.vmem [#allocation1], 233
    %v3246 = vld [vmem:[%s3245] ss:$8 sm:$0x78]
    %vm3247 = vcmask 1046531
    %v3248 = vsel %vm3247, %v3246, %v3244
    %s3249 = scalar_lea.vmem [#allocation1], 273
    %v3250 = vld [vmem:[%s3249] sm:$0x80]
    %vm3251 = vcmask 1047559
    %v3252 = vsel %vm3251, %v3250, %v3248
    %3253 = vrot.lane.b32.xlu0 %v3252, 16
    %v3254 = vpop.permute.xlu0 %3253
    %vm3255 = vcmask 130048
    %s3256 = scalar_lea.vmem [#allocation0], 263
    %3257 = vst.msk [vmem:[%s3256] ss:$8 sm:$0x7] %vm3255, %v3254
    %s3258 = scalar_lea.vmem [#allocation0], 743
    %3259 = vst.msk [vmem:[%s3258] ss:$8 sm:$0x78] %vm3255, %v3254
    %s3260 = scalar_lea.vmem [#allocation0], 280
    %3261 = vst.msk [vmem:[%s3260] sm:$0x80] %vm3255, %v3254
    %s3262 = scalar_lea.vmem [#allocation1], 288
    %v3263 = vld [vmem:[%s3262] ss:$8 sm:$0x7]
    %s3264 = scalar_lea.vmem [#allocation1], 265
    %v3265 = vld [vmem:[%s3264] ss:$8 sm:$0x78]
    %vm3266 = vcmask 1046531
    %v3267 = vsel %vm3266, %v3265, %v3263
    %s3268 = scalar_lea.vmem [#allocation1], 305
    %v3269 = vld [vmem:[%s3268] sm:$0x80]
    %vm3270 = vcmask 1047559
    %v3271 = vsel %vm3270, %v3269, %v3267
    %3272 = vrot.lane.b32.xlu0 %v3271, 16
    %v3273 = vpop.permute.xlu0 %3272
    %vm3274 = vcmask 130048
    %s3275 = scalar_lea.vmem [#allocation0], 295
    %3276 = vst.msk [vmem:[%s3275] ss:$8 sm:$0x7] %vm3274, %v3273
    %s3277 = scalar_lea.vmem [#allocation0], 775
    %3278 = vst.msk [vmem:[%s3277] ss:$8 sm:$0x78] %vm3274, %v3273
    %s3279 = scalar_lea.vmem [#allocation0], 312
    %3280 = vst.msk [vmem:[%s3279] sm:$0x80] %vm3274, %v3273
    %s3281 = scalar_lea.vmem [#allocation1], 320
    %v3282 = vld [vmem:[%s3281] ss:$8 sm:$0x7]
    %s3283 = scalar_lea.vmem [#allocation1], 297
    %v3284 = vld [vmem:[%s3283] ss:$8 sm:$0x78]
    %vm3285 = vcmask 1046531
    %v3286 = vsel %vm3285, %v3284, %v3282
    %s3287 = scalar_lea.vmem [#allocation1], 337
    %v3288 = vld [vmem:[%s3287] sm:$0x80]
    %vm3289 = vcmask 1047559
    %v3290 = vsel %vm3289, %v3288, %v3286
    %3291 = vrot.lane.b32.xlu0 %v3290, 16
    %v3292 = vpop.permute.xlu0 %3291
    %vm3293 = vcmask 130048
    %s3294 = scalar_lea.vmem [#allocation0], 327
    %3295 = vst.msk [vmem:[%s3294] ss:$8 sm:$0x7] %vm3293, %v3292
    %s3296 = scalar_lea.vmem [#allocation0], 807
    %3297 = vst.msk [vmem:[%s3296] ss:$8 sm:$0x78] %vm3293, %v3292
    %s3298 = scalar_lea.vmem [#allocation0], 344
    %3299 = vst.msk [vmem:[%s3298] sm:$0x80] %vm3293, %v3292
    %s3300 = scalar_lea.vmem [#allocation1], 352
    %v3301 = vld [vmem:[%s3300] ss:$8 sm:$0x7]
    %s3302 = scalar_lea.vmem [#allocation1], 329
    %v3303 = vld [vmem:[%s3302] ss:$8 sm:$0x78]
    %vm3304 = vcmask 1046531
    %v3305 = vsel %vm3304, %v3303, %v3301
    %s3306 = scalar_lea.vmem [#allocation1], 369
    %v3307 = vld [vmem:[%s3306] sm:$0x80]
    %vm3308 = vcmask 1047559
    %v3309 = vsel %vm3308, %v3307, %v3305
    %3310 = vrot.lane.b32.xlu0 %v3309, 16
    %v3311 = vpop.permute.xlu0 %3310
    %vm3312 = vcmask 130048
    %s3313 = scalar_lea.vmem [#allocation0], 359
    %3314 = vst.msk [vmem:[%s3313] ss:$8 sm:$0x7] %vm3312, %v3311
    %s3315 = scalar_lea.vmem [#allocation0], 839
    %3316 = vst.msk [vmem:[%s3315] ss:$8 sm:$0x78] %vm3312, %v3311
    %s3317 = scalar_lea.vmem [#allocation0], 376
    %3318 = vst.msk [vmem:[%s3317] sm:$0x80] %vm3312, %v3311
    %s3319 = scalar_lea.vmem [#allocation1], 384
    %v3320 = vld [vmem:[%s3319] ss:$8 sm:$0x7]
    %s3321 = scalar_lea.vmem [#allocation1], 361
    %v3322 = vld [vmem:[%s3321] ss:$8 sm:$0x78]
    %vm3323 = vcmask 1046531
    %v3324 = vsel %vm3323, %v3322, %v3320
    %s3325 = scalar_lea.vmem [#allocation1], 401
    %v3326 = vld [vmem:[%s3325] sm:$0x80]
    %vm3327 = vcmask 1047559
    %v3328 = vsel %vm3327, %v3326, %v3324
    %3329 = vrot.lane.b32.xlu0 %v3328, 16
    %v3330 = vpop.permute.xlu0 %3329
    %vm3331 = vcmask 130048
    %s3332 = scalar_lea.vmem [#allocation0], 391
    %3333 = vst.msk [vmem:[%s3332] ss:$8 sm:$0x7] %vm3331, %v3330
    %s3334 = scalar_lea.vmem [#allocation0], 871
    %3335 = vst.msk [vmem:[%s3334] ss:$8 sm:$0x78] %vm3331, %v3330
    %s3336 = scalar_lea.vmem [#allocation0], 408
    %3337 = vst.msk [vmem:[%s3336] sm:$0x80] %vm3331, %v3330
    %s3338 = scalar_lea.vmem [#allocation1], 416
    %v3339 = vld [vmem:[%s3338] ss:$8 sm:$0x7]
    %s3340 = scalar_lea.vmem [#allocation1], 393
    %v3341 = vld [vmem:[%s3340] ss:$8 sm:$0x78]
    %vm3342 = vcmask 1046531
    %v3343 = vsel %vm3342, %v3341, %v3339
    %s3344 = scalar_lea.vmem [#allocation1], 433
    %v3345 = vld [vmem:[%s3344] sm:$0x80]
    %vm3346 = vcmask 1047559
    %v3347 = vsel %vm3346, %v3345, %v3343
    %3348 = vrot.lane.b32.xlu0 %v3347, 16
    %v3349 = vpop.permute.xlu0 %3348
    %vm3350 = vcmask 130048
    %s3351 = scalar_lea.vmem [#allocation0], 423
    %3352 = vst.msk [vmem:[%s3351] ss:$8 sm:$0x7] %vm3350, %v3349
    %s3353 = scalar_lea.vmem [#allocation0], 903
    %3354 = vst.msk [vmem:[%s3353] ss:$8 sm:$0x78] %vm3350, %v3349
    %s3355 = scalar_lea.vmem [#allocation0], 440
    %3356 = vst.msk [vmem:[%s3355] sm:$0x80] %vm3350, %v3349
    %s3357 = scalar_lea.vmem [#allocation1], 448
    %v3358 = vld [vmem:[%s3357] ss:$8 sm:$0x7]
    %s3359 = scalar_lea.vmem [#allocation1], 425
    %v3360 = vld [vmem:[%s3359] ss:$8 sm:$0x78]
    %vm3361 = vcmask 1046531
    %v3362 = vsel %vm3361, %v3360, %v3358
    %s3363 = scalar_lea.vmem [#allocation1], 465
    %v3364 = vld [vmem:[%s3363] sm:$0x80]
    %vm3365 = vcmask 1047559
    %v3366 = vsel %vm3365, %v3364, %v3362
    %3367 = vrot.lane.b32.xlu0 %v3366, 16
    %v3368 = vpop.permute.xlu0 %3367
    %vm3369 = vcmask 130048
    %s3370 = scalar_lea.vmem [#allocation0], 455
    %3371 = vst.msk [vmem:[%s3370] ss:$8 sm:$0x7] %vm3369, %v3368
    %s3372 = scalar_lea.vmem [#allocation0], 935
    %3373 = vst.msk [vmem:[%s3372] ss:$8 sm:$0x78] %vm3369, %v3368
    %s3374 = scalar_lea.vmem [#allocation0], 472
    %3375 = vst.msk [vmem:[%s3374] sm:$0x80] %vm3369, %v3368
    %s3376 = scalar_lea.vmem [#allocation1], 480
    %v3377 = vld.sshfl [vmem:[%s3376] sm:$0xff pattern:$0x99999180]
    %3378 = vrot.lane.b32.xlu0 %v3377, 16
    %v3379 = vpop.permute.xlu0 %3378
    %vm3380 = vcmask 130048
    %s3381 = scalar_lea.vmem [#allocation0], 487
    %3382 = vst.msk [vmem:[%s3381] ss:$8 sm:$0x3] %vm3380, %v3379
    %s3383 = scalar_lea.vmem [#allocation0], 975
    %3384 = vst.msk [vmem:[%s3383] ss:$8 sm:$0xc] %vm3380, %v3379
    %s3386 = smul.u32 4, 2
    %s3387 = sshllo.u32 0, %s3386
    %s3388 = sshrl.u32 %s3386, 1
    %v3389 = vld [vmem:[#allocation0] sm:%s3387]
    %v3390 = vpack.c.bf16 0.0, %v3389
    %s3391 = sshllo.u32 0, %s3388
    %3392 = vst [vmem:[%s1] sm:%s3391] %v3390
    %s3393 = scalar_lea.vmem [#allocation0], 8
    %v3394 = vld [vmem:[%s3393] sm:%s3387]
    %v3395 = vpack.c.bf16 0.0, %v3394
    %s3396 = sshllo.u32 0, %s3388
    %s3397 = scalar_lea.vmem %s1, 4
    %3398 = vst [vmem:[%s3397] sm:%s3396] %v3395
    %s3399 = scalar_lea.vmem [#allocation0], 16
    %v3400 = vld [vmem:[%s3399] sm:%s3387]
    %v3401 = vpack.c.bf16 0.0, %v3400
    %s3402 = sshllo.u32 0, %s3388
    %s3403 = smul.addr 4, 2
    %s3404 = scalar_lea.vmem %s1, %s3403
    %3405 = vst [vmem:[%s3404] sm:%s3402] %v3401
    %s3406 = scalar_lea.vmem [#allocation0], 24
    %v3407 = vld [vmem:[%s3406] sm:%s3387]
    %v3408 = vpack.c.bf16 0.0, %v3407
    %s3409 = sshllo.u32 0, %s3388
    %s3410 = smul.addr 4, 3
    %s3411 = scalar_lea.vmem %s1, %s3410
    %3412 = vst [vmem:[%s3411] sm:%s3409] %v3408
    %s3413 = scalar_lea.vmem [#allocation0], 32
    %v3414 = vld [vmem:[%s3413] sm:%s3387]
    %v3415 = vpack.c.bf16 0.0, %v3414
    %s3416 = sshllo.u32 0, %s3388
    %s3417 = smul.addr 4, 4
    %s3418 = scalar_lea.vmem %s1, %s3417
    %3419 = vst [vmem:[%s3418] sm:%s3416] %v3415
    %s3420 = scalar_lea.vmem [#allocation0], 40
    %v3421 = vld [vmem:[%s3420] sm:%s3387]
    %v3422 = vpack.c.bf16 0.0, %v3421
    %s3423 = sshllo.u32 0, %s3388
    %s3424 = smul.addr 4, 5
    %s3425 = scalar_lea.vmem %s1, %s3424
    %3426 = vst [vmem:[%s3425] sm:%s3423] %v3422
    %s3427 = scalar_lea.vmem [#allocation0], 48
    %v3428 = vld [vmem:[%s3427] sm:%s3387]
    %v3429 = vpack.c.bf16 0.0, %v3428
    %s3430 = sshllo.u32 0, %s3388
    %s3431 = smul.addr 4, 6
    %s3432 = scalar_lea.vmem %s1, %s3431
    %3433 = vst [vmem:[%s3432] sm:%s3430] %v3429
    %s3434 = scalar_lea.vmem [#allocation0], 56
    %v3435 = vld [vmem:[%s3434] sm:%s3387]
    %v3436 = vpack.c.bf16 0.0, %v3435
    %s3437 = sshllo.u32 0, %s3388
    %s3438 = smul.addr 4, 7
    %s3439 = scalar_lea.vmem %s1, %s3438
    %3440 = vst [vmem:[%s3439] sm:%s3437] %v3436
    %s3441 = scalar_lea.vmem [#allocation0], 64
    %v3442 = vld [vmem:[%s3441] sm:%s3387]
    %v3443 = vpack.c.bf16 0.0, %v3442
    %s3444 = sshllo.u32 0, %s3388
    %s3445 = smul.addr 4, 8
    %s3446 = scalar_lea.vmem %s1, %s3445
    %3447 = vst [vmem:[%s3446] sm:%s3444] %v3443
    %s3448 = scalar_lea.vmem [#allocation0], 72
    %v3449 = vld [vmem:[%s3448] sm:%s3387]
    %v3450 = vpack.c.bf16 0.0, %v3449
    %s3451 = sshllo.u32 0, %s3388
    %s3452 = smul.addr 4, 9
    %s3453 = scalar_lea.vmem %s1, %s3452
    %3454 = vst [vmem:[%s3453] sm:%s3451] %v3450
    %s3455 = scalar_lea.vmem [#allocation0], 80
    %v3456 = vld [vmem:[%s3455] sm:%s3387]
    %v3457 = vpack.c.bf16 0.0, %v3456
    %s3458 = sshllo.u32 0, %s3388
    %s3459 = smul.addr 4, 10
    %s3460 = scalar_lea.vmem %s1, %s3459
    %3461 = vst [vmem:[%s3460] sm:%s3458] %v3457
    %s3462 = scalar_lea.vmem [#allocation0], 88
    %v3463 = vld [vmem:[%s3462] sm:%s3387]
    %v3464 = vpack.c.bf16 0.0, %v3463
    %s3465 = sshllo.u32 0, %s3388
    %s3466 = smul.addr 4, 11
    %s3467 = scalar_lea.vmem %s1, %s3466
    %3468 = vst [vmem:[%s3467] sm:%s3465] %v3464
    %s3469 = scalar_lea.vmem [#allocation0], 96
    %v3470 = vld [vmem:[%s3469] sm:%s3387]
    %v3471 = vpack.c.bf16 0.0, %v3470
    %s3472 = sshllo.u32 0, %s3388
    %s3473 = smul.addr 4, 12
    %s3474 = scalar_lea.vmem %s1, %s3473
    %3475 = vst [vmem:[%s3474] sm:%s3472] %v3471
    %s3476 = scalar_lea.vmem [#allocation0], 104
    %v3477 = vld [vmem:[%s3476] sm:%s3387]
    %v3478 = vpack.c.bf16 0.0, %v3477
    %s3479 = sshllo.u32 0, %s3388
    %s3480 = smul.addr 4, 13
    %s3481 = scalar_lea.vmem %s1, %s3480
    %3482 = vst [vmem:[%s3481] sm:%s3479] %v3478
    %s3483 = scalar_lea.vmem [#allocation0], 112
    %v3484 = vld [vmem:[%s3483] sm:%s3387]
    %v3485 = vpack.c.bf16 0.0, %v3484
    %s3486 = sshllo.u32 0, %s3388
    %s3487 = smul.addr 4, 14
    %s3488 = scalar_lea.vmem %s1, %s3487
    %3489 = vst [vmem:[%s3488] sm:%s3486] %v3485
    %s3490 = scalar_lea.vmem [#allocation0], 120
    %v3491 = vld [vmem:[%s3490] sm:%s3387]
    %v3492 = vpack.c.bf16 0.0, %v3491
    %s3493 = sshllo.u32 0, %s3388
    %s3494 = smul.addr 4, 15
    %s3495 = scalar_lea.vmem %s1, %s3494
    %3496 = vst [vmem:[%s3495] sm:%s3493] %v3492
    %s3497 = scalar_lea.vmem [#allocation0], 128
    %v3498 = vld [vmem:[%s3497] sm:%s3387]
    %v3499 = vpack.c.bf16 0.0, %v3498
    %s3500 = sshllo.u32 0, %s3388
    %s3501 = smul.addr 4, 16
    %s3502 = scalar_lea.vmem %s1, %s3501
    %3503 = vst [vmem:[%s3502] sm:%s3500] %v3499
    %s3504 = scalar_lea.vmem [#allocation0], 136
    %v3505 = vld [vmem:[%s3504] sm:%s3387]
    %v3506 = vpack.c.bf16 0.0, %v3505
    %s3507 = sshllo.u32 0, %s3388
    %s3508 = smul.addr 4, 17
    %s3509 = scalar_lea.vmem %s1, %s3508
    %3510 = vst [vmem:[%s3509] sm:%s3507] %v3506
    %s3511 = scalar_lea.vmem [#allocation0], 144
    %v3512 = vld [vmem:[%s3511] sm:%s3387]
    %v3513 = vpack.c.bf16 0.0, %v3512
    %s3514 = sshllo.u32 0, %s3388
    %s3515 = smul.addr 4, 18
    %s3516 = scalar_lea.vmem %s1, %s3515
    %3517 = vst [vmem:[%s3516] sm:%s3514] %v3513
    %s3518 = scalar_lea.vmem [#allocation0], 152
    %v3519 = vld [vmem:[%s3518] sm:%s3387]
    %v3520 = vpack.c.bf16 0.0, %v3519
    %s3521 = sshllo.u32 0, %s3388
    %s3522 = smul.addr 4, 19
    %s3523 = scalar_lea.vmem %s1, %s3522
    %3524 = vst [vmem:[%s3523] sm:%s3521] %v3520
    %s3525 = scalar_lea.vmem [#allocation0], 160
    %v3526 = vld [vmem:[%s3525] sm:%s3387]
    %v3527 = vpack.c.bf16 0.0, %v3526
    %s3528 = sshllo.u32 0, %s3388
    %s3529 = smul.addr 4, 20
    %s3530 = scalar_lea.vmem %s1, %s3529
    %3531 = vst [vmem:[%s3530] sm:%s3528] %v3527
    %s3532 = scalar_lea.vmem [#allocation0], 168
    %v3533 = vld [vmem:[%s3532] sm:%s3387]
    %v3534 = vpack.c.bf16 0.0, %v3533
    %s3535 = sshllo.u32 0, %s3388
    %s3536 = smul.addr 4, 21
    %s3537 = scalar_lea.vmem %s1, %s3536
    %3538 = vst [vmem:[%s3537] sm:%s3535] %v3534
    %s3539 = scalar_lea.vmem [#allocation0], 176
    %v3540 = vld [vmem:[%s3539] sm:%s3387]
    %v3541 = vpack.c.bf16 0.0, %v3540
    %s3542 = sshllo.u32 0, %s3388
    %s3543 = smul.addr 4, 22
    %s3544 = scalar_lea.vmem %s1, %s3543
    %3545 = vst [vmem:[%s3544] sm:%s3542] %v3541
    %s3546 = scalar_lea.vmem [#allocation0], 184
    %v3547 = vld [vmem:[%s3546] sm:%s3387]
    %v3548 = vpack.c.bf16 0.0, %v3547
    %s3549 = sshllo.u32 0, %s3388
    %s3550 = smul.addr 4, 23
    %s3551 = scalar_lea.vmem %s1, %s3550
    %3552 = vst [vmem:[%s3551] sm:%s3549] %v3548
    %s3553 = scalar_lea.vmem [#allocation0], 192
    %v3554 = vld [vmem:[%s3553] sm:%s3387]
    %v3555 = vpack.c.bf16 0.0, %v3554
    %s3556 = sshllo.u32 0, %s3388
    %s3557 = smul.addr 4, 24
    %s3558 = scalar_lea.vmem %s1, %s3557
    %3559 = vst [vmem:[%s3558] sm:%s3556] %v3555
    %s3560 = scalar_lea.vmem [#allocation0], 200
    %v3561 = vld [vmem:[%s3560] sm:%s3387]
    %v3562 = vpack.c.bf16 0.0, %v3561
    %s3563 = sshllo.u32 0, %s3388
    %s3564 = smul.addr 4, 25
    %s3565 = scalar_lea.vmem %s1, %s3564
    %3566 = vst [vmem:[%s3565] sm:%s3563] %v3562
    %s3567 = scalar_lea.vmem [#allocation0], 208
    %v3568 = vld [vmem:[%s3567] sm:%s3387]
    %v3569 = vpack.c.bf16 0.0, %v3568
    %s3570 = sshllo.u32 0, %s3388
    %s3571 = smul.addr 4, 26
    %s3572 = scalar_lea.vmem %s1, %s3571
    %3573 = vst [vmem:[%s3572] sm:%s3570] %v3569
    %s3574 = scalar_lea.vmem [#allocation0], 216
    %v3575 = vld [vmem:[%s3574] sm:%s3387]
    %v3576 = vpack.c.bf16 0.0, %v3575
    %s3577 = sshllo.u32 0, %s3388
    %s3578 = smul.addr 4, 27
    %s3579 = scalar_lea.vmem %s1, %s3578
    %3580 = vst [vmem:[%s3579] sm:%s3577] %v3576
    %s3581 = scalar_lea.vmem [#allocation0], 224
    %v3582 = vld [vmem:[%s3581] sm:%s3387]
    %v3583 = vpack.c.bf16 0.0, %v3582
    %s3584 = sshllo.u32 0, %s3388
    %s3585 = smul.addr 4, 28
    %s3586 = scalar_lea.vmem %s1, %s3585
    %3587 = vst [vmem:[%s3586] sm:%s3584] %v3583
    %s3588 = scalar_lea.vmem [#allocation0], 232
    %v3589 = vld [vmem:[%s3588] sm:%s3387]
    %v3590 = vpack.c.bf16 0.0, %v3589
    %s3591 = sshllo.u32 0, %s3388
    %s3592 = smul.addr 4, 29
    %s3593 = scalar_lea.vmem %s1, %s3592
    %3594 = vst [vmem:[%s3593] sm:%s3591] %v3590
    %s3595 = scalar_lea.vmem [#allocation0], 240
    %v3596 = vld [vmem:[%s3595] sm:%s3387]
    %v3597 = vpack.c.bf16 0.0, %v3596
    %s3598 = sshllo.u32 0, %s3388
    %s3599 = smul.addr 4, 30
    %s3600 = scalar_lea.vmem %s1, %s3599
    %3601 = vst [vmem:[%s3600] sm:%s3598] %v3597
    %s3602 = scalar_lea.vmem [#allocation0], 248
    %v3603 = vld [vmem:[%s3602] sm:%s3387]
    %v3604 = vpack.c.bf16 0.0, %v3603
    %s3605 = sshllo.u32 0, %s3388
    %s3606 = smul.addr 4, 31
    %s3607 = scalar_lea.vmem %s1, %s3606
    %3608 = vst [vmem:[%s3607] sm:%s3605] %v3604
    %s3609 = scalar_lea.vmem [#allocation0], 256
    %v3610 = vld [vmem:[%s3609] sm:%s3387]
    %v3611 = vpack.c.bf16 0.0, %v3610
    %s3612 = sshllo.u32 0, %s3388
    %s3613 = smul.addr 4, 32
    %s3614 = scalar_lea.vmem %s1, %s3613
    %3615 = vst [vmem:[%s3614] sm:%s3612] %v3611
    %s3616 = scalar_lea.vmem [#allocation0], 264
    %v3617 = vld [vmem:[%s3616] sm:%s3387]
    %v3618 = vpack.c.bf16 0.0, %v3617
    %s3619 = sshllo.u32 0, %s3388
    %s3620 = smul.addr 4, 33
    %s3621 = scalar_lea.vmem %s1, %s3620
    %3622 = vst [vmem:[%s3621] sm:%s3619] %v3618
    %s3623 = scalar_lea.vmem [#allocation0], 272
    %v3624 = vld [vmem:[%s3623] sm:%s3387]
    %v3625 = vpack.c.bf16 0.0, %v3624
    %s3626 = sshllo.u32 0, %s3388
    %s3627 = smul.addr 4, 34
    %s3628 = scalar_lea.vmem %s1, %s3627
    %3629 = vst [vmem:[%s3628] sm:%s3626] %v3625
    %s3630 = scalar_lea.vmem [#allocation0], 280
    %v3631 = vld [vmem:[%s3630] sm:%s3387]
    %v3632 = vpack.c.bf16 0.0, %v3631
    %s3633 = sshllo.u32 0, %s3388
    %s3634 = smul.addr 4, 35
    %s3635 = scalar_lea.vmem %s1, %s3634
    %3636 = vst [vmem:[%s3635] sm:%s3633] %v3632
    %s3637 = scalar_lea.vmem [#allocation0], 288
    %v3638 = vld [vmem:[%s3637] sm:%s3387]
    %v3639 = vpack.c.bf16 0.0, %v3638
    %s3640 = sshllo.u32 0, %s3388
    %s3641 = smul.addr 4, 36
    %s3642 = scalar_lea.vmem %s1, %s3641
    %3643 = vst [vmem:[%s3642] sm:%s3640] %v3639
    %s3644 = scalar_lea.vmem [#allocation0], 296
    %v3645 = vld [vmem:[%s3644] sm:%s3387]
    %v3646 = vpack.c.bf16 0.0, %v3645
    %s3647 = sshllo.u32 0, %s3388
    %s3648 = smul.addr 4, 37
    %s3649 = scalar_lea.vmem %s1, %s3648
    %3650 = vst [vmem:[%s3649] sm:%s3647] %v3646
    %s3651 = scalar_lea.vmem [#allocation0], 304
    %v3652 = vld [vmem:[%s3651] sm:%s3387]
    %v3653 = vpack.c.bf16 0.0, %v3652
    %s3654 = sshllo.u32 0, %s3388
    %s3655 = smul.addr 4, 38
    %s3656 = scalar_lea.vmem %s1, %s3655
    %3657 = vst [vmem:[%s3656] sm:%s3654] %v3653
    %s3658 = scalar_lea.vmem [#allocation0], 312
    %v3659 = vld [vmem:[%s3658] sm:%s3387]
    %v3660 = vpack.c.bf16 0.0, %v3659
    %s3661 = sshllo.u32 0, %s3388
    %s3662 = smul.addr 4, 39
    %s3663 = scalar_lea.vmem %s1, %s3662
    %3664 = vst [vmem:[%s3663] sm:%s3661] %v3660
    %s3665 = scalar_lea.vmem [#allocation0], 320
    %v3666 = vld [vmem:[%s3665] sm:%s3387]
    %v3667 = vpack.c.bf16 0.0, %v3666
    %s3668 = sshllo.u32 0, %s3388
    %s3669 = smul.addr 4, 40
    %s3670 = scalar_lea.vmem %s1, %s3669
    %3671 = vst [vmem:[%s3670] sm:%s3668] %v3667
    %s3672 = scalar_lea.vmem [#allocation0], 328
    %v3673 = vld [vmem:[%s3672] sm:%s3387]
    %v3674 = vpack.c.bf16 0.0, %v3673
    %s3675 = sshllo.u32 0, %s3388
    %s3676 = smul.addr 4, 41
    %s3677 = scalar_lea.vmem %s1, %s3676
    %3678 = vst [vmem:[%s3677] sm:%s3675] %v3674
    %s3679 = scalar_lea.vmem [#allocation0], 336
    %v3680 = vld [vmem:[%s3679] sm:%s3387]
    %v3681 = vpack.c.bf16 0.0, %v3680
    %s3682 = sshllo.u32 0, %s3388
    %s3683 = smul.addr 4, 42
    %s3684 = scalar_lea.vmem %s1, %s3683
    %3685 = vst [vmem:[%s3684] sm:%s3682] %v3681
    %s3686 = scalar_lea.vmem [#allocation0], 344
    %v3687 = vld [vmem:[%s3686] sm:%s3387]
    %v3688 = vpack.c.bf16 0.0, %v3687
    %s3689 = sshllo.u32 0, %s3388
    %s3690 = smul.addr 4, 43
    %s3691 = scalar_lea.vmem %s1, %s3690
    %3692 = vst [vmem:[%s3691] sm:%s3689] %v3688
    %s3693 = scalar_lea.vmem [#allocation0], 352
    %v3694 = vld [vmem:[%s3693] sm:%s3387]
    %v3695 = vpack.c.bf16 0.0, %v3694
    %s3696 = sshllo.u32 0, %s3388
    %s3697 = smul.addr 4, 44
    %s3698 = scalar_lea.vmem %s1, %s3697
    %3699 = vst [vmem:[%s3698] sm:%s3696] %v3695
    %s3700 = scalar_lea.vmem [#allocation0], 360
    %v3701 = vld [vmem:[%s3700] sm:%s3387]
    %v3702 = vpack.c.bf16 0.0, %v3701
    %s3703 = sshllo.u32 0, %s3388
    %s3704 = smul.addr 4, 45
    %s3705 = scalar_lea.vmem %s1, %s3704
    %3706 = vst [vmem:[%s3705] sm:%s3703] %v3702
    %s3707 = scalar_lea.vmem [#allocation0], 368
    %v3708 = vld [vmem:[%s3707] sm:%s3387]
    %v3709 = vpack.c.bf16 0.0, %v3708
    %s3710 = sshllo.u32 0, %s3388
    %s3711 = smul.addr 4, 46
    %s3712 = scalar_lea.vmem %s1, %s3711
    %3713 = vst [vmem:[%s3712] sm:%s3710] %v3709
    %s3714 = scalar_lea.vmem [#allocation0], 376
    %v3715 = vld [vmem:[%s3714] sm:%s3387]
    %v3716 = vpack.c.bf16 0.0, %v3715
    %s3717 = sshllo.u32 0, %s3388
    %s3718 = smul.addr 4, 47
    %s3719 = scalar_lea.vmem %s1, %s3718
    %3720 = vst [vmem:[%s3719] sm:%s3717] %v3716
    %s3721 = scalar_lea.vmem [#allocation0], 384
    %v3722 = vld [vmem:[%s3721] sm:%s3387]
    %v3723 = vpack.c.bf16 0.0, %v3722
    %s3724 = sshllo.u32 0, %s3388
    %s3725 = smul.addr 4, 48
    %s3726 = scalar_lea.vmem %s1, %s3725
    %3727 = vst [vmem:[%s3726] sm:%s3724] %v3723
    %s3728 = scalar_lea.vmem [#allocation0], 392
    %v3729 = vld [vmem:[%s3728] sm:%s3387]
    %v3730 = vpack.c.bf16 0.0, %v3729
    %s3731 = sshllo.u32 0, %s3388
    %s3732 = smul.addr 4, 49
    %s3733 = scalar_lea.vmem %s1, %s3732
    %3734 = vst [vmem:[%s3733] sm:%s3731] %v3730
    %s3735 = scalar_lea.vmem [#allocation0], 400
    %v3736 = vld [vmem:[%s3735] sm:%s3387]
    %v3737 = vpack.c.bf16 0.0, %v3736
    %s3738 = sshllo.u32 0, %s3388
    %s3739 = smul.addr 4, 50
    %s3740 = scalar_lea.vmem %s1, %s3739
    %3741 = vst [vmem:[%s3740] sm:%s3738] %v3737
    %s3742 = scalar_lea.vmem [#allocation0], 408
    %v3743 = vld [vmem:[%s3742] sm:%s3387]
    %v3744 = vpack.c.bf16 0.0, %v3743
    %s3745 = sshllo.u32 0, %s3388
    %s3746 = smul.addr 4, 51
    %s3747 = scalar_lea.vmem %s1, %s3746
    %3748 = vst [vmem:[%s3747] sm:%s3745] %v3744
    %s3749 = scalar_lea.vmem [#allocation0], 416
    %v3750 = vld [vmem:[%s3749] sm:%s3387]
    %v3751 = vpack.c.bf16 0.0, %v3750
    %s3752 = sshllo.u32 0, %s3388
    %s3753 = smul.addr 4, 52
    %s3754 = scalar_lea.vmem %s1, %s3753
    %3755 = vst [vmem:[%s3754] sm:%s3752] %v3751
    %s3756 = scalar_lea.vmem [#allocation0], 424
    %v3757 = vld [vmem:[%s3756] sm:%s3387]
    %v3758 = vpack.c.bf16 0.0, %v3757
    %s3759 = sshllo.u32 0, %s3388
    %s3760 = smul.addr 4, 53
    %s3761 = scalar_lea.vmem %s1, %s3760
    %3762 = vst [vmem:[%s3761] sm:%s3759] %v3758
    %s3763 = scalar_lea.vmem [#allocation0], 432
    %v3764 = vld [vmem:[%s3763] sm:%s3387]
    %v3765 = vpack.c.bf16 0.0, %v3764
    %s3766 = sshllo.u32 0, %s3388
    %s3767 = smul.addr 4, 54
    %s3768 = scalar_lea.vmem %s1, %s3767
    %3769 = vst [vmem:[%s3768] sm:%s3766] %v3765
    %s3770 = scalar_lea.vmem [#allocation0], 440
    %v3771 = vld [vmem:[%s3770] sm:%s3387]
    %v3772 = vpack.c.bf16 0.0, %v3771
    %s3773 = sshllo.u32 0, %s3388
    %s3774 = smul.addr 4, 55
    %s3775 = scalar_lea.vmem %s1, %s3774
    %3776 = vst [vmem:[%s3775] sm:%s3773] %v3772
    %s3777 = scalar_lea.vmem [#allocation0], 448
    %v3778 = vld [vmem:[%s3777] sm:%s3387]
    %v3779 = vpack.c.bf16 0.0, %v3778
    %s3780 = sshllo.u32 0, %s3388
    %s3781 = smul.addr 4, 56
    %s3782 = scalar_lea.vmem %s1, %s3781
    %3783 = vst [vmem:[%s3782] sm:%s3780] %v3779
    %s3784 = scalar_lea.vmem [#allocation0], 456
    %v3785 = vld [vmem:[%s3784] sm:%s3387]
    %v3786 = vpack.c.bf16 0.0, %v3785
    %s3787 = sshllo.u32 0, %s3388
    %s3788 = smul.addr 4, 57
    %s3789 = scalar_lea.vmem %s1, %s3788
    %3790 = vst [vmem:[%s3789] sm:%s3787] %v3786
    %s3791 = scalar_lea.vmem [#allocation0], 464
    %v3792 = vld [vmem:[%s3791] sm:%s3387]
    %v3793 = vpack.c.bf16 0.0, %v3792
    %s3794 = sshllo.u32 0, %s3388
    %s3795 = smul.addr 4, 58
    %s3796 = scalar_lea.vmem %s1, %s3795
    %3797 = vst [vmem:[%s3796] sm:%s3794] %v3793
    %s3798 = scalar_lea.vmem [#allocation0], 472
    %v3799 = vld [vmem:[%s3798] sm:%s3387]
    %v3800 = vpack.c.bf16 0.0, %v3799
    %s3801 = sshllo.u32 0, %s3388
    %s3802 = smul.addr 4, 59
    %s3803 = scalar_lea.vmem %s1, %s3802
    %3804 = vst [vmem:[%s3803] sm:%s3801] %v3800
    %s3805 = scalar_lea.vmem [#allocation0], 480
    %v3806 = vld [vmem:[%s3805] sm:%s3387]
    %v3807 = vpack.c.bf16 0.0, %v3806
    %s3808 = sshllo.u32 0, %s3388
    %s3809 = smul.addr 4, 60
    %s3810 = scalar_lea.vmem %s1, %s3809
    %3811 = vst [vmem:[%s3810] sm:%s3808] %v3807
    %s3812 = scalar_lea.vmem [#allocation0], 488
    %v3813 = vld [vmem:[%s3812] sm:%s3387]
    %v3814 = vpack.c.bf16 0.0, %v3813
    %s3815 = sshllo.u32 0, %s3388
    %s3816 = smul.addr 4, 61
    %s3817 = scalar_lea.vmem %s1, %s3816
    %3818 = vst [vmem:[%s3817] sm:%s3815] %v3814
    %s3819 = scalar_lea.vmem [#allocation0], 496
    %v3820 = vld [vmem:[%s3819] sm:%s3387]
    %v3821 = vpack.c.bf16 0.0, %v3820
    %s3822 = sshllo.u32 0, %s3388
    %s3823 = smul.addr 4, 62
    %s3824 = scalar_lea.vmem %s1, %s3823
    %3825 = vst [vmem:[%s3824] sm:%s3822] %v3821
    %s3826 = scalar_lea.vmem [#allocation0], 504
    %v3827 = vld [vmem:[%s3826] sm:%s3387]
    %v3828 = vpack.c.bf16 0.0, %v3827
    %s3829 = sshllo.u32 0, %s3388
    %s3830 = smul.addr 4, 63
    %s3831 = scalar_lea.vmem %s1, %s3830
    %3832 = vst [vmem:[%s3831] sm:%s3829] %v3828
    %s3833 = scalar_lea.vmem [#allocation0], 512
    %v3834 = vld [vmem:[%s3833] sm:%s3387]
    %v3835 = vpack.c.bf16 0.0, %v3834
    %s3836 = sshllo.u32 0, %s3388
    %s3837 = smul.addr 4, 64
    %s3838 = scalar_lea.vmem %s1, %s3837
    %3839 = vst [vmem:[%s3838] sm:%s3836] %v3835
    %s3840 = scalar_lea.vmem [#allocation0], 520
    %v3841 = vld [vmem:[%s3840] sm:%s3387]
    %v3842 = vpack.c.bf16 0.0, %v3841
    %s3843 = sshllo.u32 0, %s3388
    %s3844 = smul.addr 4, 65
    %s3845 = scalar_lea.vmem %s1, %s3844
    %3846 = vst [vmem:[%s3845] sm:%s3843] %v3842
    %s3847 = scalar_lea.vmem [#allocation0], 528
    %v3848 = vld [vmem:[%s3847] sm:%s3387]
    %v3849 = vpack.c.bf16 0.0, %v3848
    %s3850 = sshllo.u32 0, %s3388
    %s3851 = smul.addr 4, 66
    %s3852 = scalar_lea.vmem %s1, %s3851
    %3853 = vst [vmem:[%s3852] sm:%s3850] %v3849
    %s3854 = scalar_lea.vmem [#allocation0], 536
    %v3855 = vld [vmem:[%s3854] sm:%s3387]
    %v3856 = vpack.c.bf16 0.0, %v3855
    %s3857 = sshllo.u32 0, %s3388
    %s3858 = smul.addr 4, 67
    %s3859 = scalar_lea.vmem %s1, %s3858
    %3860 = vst [vmem:[%s3859] sm:%s3857] %v3856
    %s3861 = scalar_lea.vmem [#allocation0], 544
    %v3862 = vld [vmem:[%s3861] sm:%s3387]
    %v3863 = vpack.c.bf16 0.0, %v3862
    %s3864 = sshllo.u32 0, %s3388
    %s3865 = smul.addr 4, 68
    %s3866 = scalar_lea.vmem %s1, %s3865
    %3867 = vst [vmem:[%s3866] sm:%s3864] %v3863
    %s3868 = scalar_lea.vmem [#allocation0], 552
    %v3869 = vld [vmem:[%s3868] sm:%s3387]
    %v3870 = vpack.c.bf16 0.0, %v3869
    %s3871 = sshllo.u32 0, %s3388
    %s3872 = smul.addr 4, 69
    %s3873 = scalar_lea.vmem %s1, %s3872
    %3874 = vst [vmem:[%s3873] sm:%s3871] %v3870
    %s3875 = scalar_lea.vmem [#allocation0], 560
    %v3876 = vld [vmem:[%s3875] sm:%s3387]
    %v3877 = vpack.c.bf16 0.0, %v3876
    %s3878 = sshllo.u32 0, %s3388
    %s3879 = smul.addr 4, 70
    %s3880 = scalar_lea.vmem %s1, %s3879
    %3881 = vst [vmem:[%s3880] sm:%s3878] %v3877
    %s3882 = scalar_lea.vmem [#allocation0], 568
    %v3883 = vld [vmem:[%s3882] sm:%s3387]
    %v3884 = vpack.c.bf16 0.0, %v3883
    %s3885 = sshllo.u32 0, %s3388
    %s3886 = smul.addr 4, 71
    %s3887 = scalar_lea.vmem %s1, %s3886
    %3888 = vst [vmem:[%s3887] sm:%s3885] %v3884
    %s3889 = scalar_lea.vmem [#allocation0], 576
    %v3890 = vld [vmem:[%s3889] sm:%s3387]
    %v3891 = vpack.c.bf16 0.0, %v3890
    %s3892 = sshllo.u32 0, %s3388
    %s3893 = smul.addr 4, 72
    %s3894 = scalar_lea.vmem %s1, %s3893
    %3895 = vst [vmem:[%s3894] sm:%s3892] %v3891
    %s3896 = scalar_lea.vmem [#allocation0], 584
    %v3897 = vld [vmem:[%s3896] sm:%s3387]
    %v3898 = vpack.c.bf16 0.0, %v3897
    %s3899 = sshllo.u32 0, %s3388
    %s3900 = smul.addr 4, 73
    %s3901 = scalar_lea.vmem %s1, %s3900
    %3902 = vst [vmem:[%s3901] sm:%s3899] %v3898
    %s3903 = scalar_lea.vmem [#allocation0], 592
    %v3904 = vld [vmem:[%s3903] sm:%s3387]
    %v3905 = vpack.c.bf16 0.0, %v3904
    %s3906 = sshllo.u32 0, %s3388
    %s3907 = smul.addr 4, 74
    %s3908 = scalar_lea.vmem %s1, %s3907
    %3909 = vst [vmem:[%s3908] sm:%s3906] %v3905
    %s3910 = scalar_lea.vmem [#allocation0], 600
    %v3911 = vld [vmem:[%s3910] sm:%s3387]
    %v3912 = vpack.c.bf16 0.0, %v3911
    %s3913 = sshllo.u32 0, %s3388
    %s3914 = smul.addr 4, 75
    %s3915 = scalar_lea.vmem %s1, %s3914
    %3916 = vst [vmem:[%s3915] sm:%s3913] %v3912
    %s3917 = scalar_lea.vmem [#allocation0], 608
    %v3918 = vld [vmem:[%s3917] sm:%s3387]
    %v3919 = vpack.c.bf16 0.0, %v3918
    %s3920 = sshllo.u32 0, %s3388
    %s3921 = smul.addr 4, 76
    %s3922 = scalar_lea.vmem %s1, %s3921
    %3923 = vst [vmem:[%s3922] sm:%s3920] %v3919
    %s3924 = scalar_lea.vmem [#allocation0], 616
    %v3925 = vld [vmem:[%s3924] sm:%s3387]
    %v3926 = vpack.c.bf16 0.0, %v3925
    %s3927 = sshllo.u32 0, %s3388
    %s3928 = smul.addr 4, 77
    %s3929 = scalar_lea.vmem %s1, %s3928
    %3930 = vst [vmem:[%s3929] sm:%s3927] %v3926
    %s3931 = scalar_lea.vmem [#allocation0], 624
    %v3932 = vld [vmem:[%s3931] sm:%s3387]
    %v3933 = vpack.c.bf16 0.0, %v3932
    %s3934 = sshllo.u32 0, %s3388
    %s3935 = smul.addr 4, 78
    %s3936 = scalar_lea.vmem %s1, %s3935
    %3937 = vst [vmem:[%s3936] sm:%s3934] %v3933
    %s3938 = scalar_lea.vmem [#allocation0], 632
    %v3939 = vld [vmem:[%s3938] sm:%s3387]
    %v3940 = vpack.c.bf16 0.0, %v3939
    %s3941 = sshllo.u32 0, %s3388
    %s3942 = smul.addr 4, 79
    %s3943 = scalar_lea.vmem %s1, %s3942
    %3944 = vst [vmem:[%s3943] sm:%s3941] %v3940
    %s3945 = scalar_lea.vmem [#allocation0], 640
    %v3946 = vld [vmem:[%s3945] sm:%s3387]
    %v3947 = vpack.c.bf16 0.0, %v3946
    %s3948 = sshllo.u32 0, %s3388
    %s3949 = smul.addr 4, 80
    %s3950 = scalar_lea.vmem %s1, %s3949
    %3951 = vst [vmem:[%s3950] sm:%s3948] %v3947
    %s3952 = scalar_lea.vmem [#allocation0], 648
    %v3953 = vld [vmem:[%s3952] sm:%s3387]
    %v3954 = vpack.c.bf16 0.0, %v3953
    %s3955 = sshllo.u32 0, %s3388
    %s3956 = smul.addr 4, 81
    %s3957 = scalar_lea.vmem %s1, %s3956
    %3958 = vst [vmem:[%s3957] sm:%s3955] %v3954
    %s3959 = scalar_lea.vmem [#allocation0], 656
    %v3960 = vld [vmem:[%s3959] sm:%s3387]
    %v3961 = vpack.c.bf16 0.0, %v3960
    %s3962 = sshllo.u32 0, %s3388
    %s3963 = smul.addr 4, 82
    %s3964 = scalar_lea.vmem %s1, %s3963
    %3965 = vst [vmem:[%s3964] sm:%s3962] %v3961
    %s3966 = scalar_lea.vmem [#allocation0], 664
    %v3967 = vld [vmem:[%s3966] sm:%s3387]
    %v3968 = vpack.c.bf16 0.0, %v3967
    %s3969 = sshllo.u32 0, %s3388
    %s3970 = smul.addr 4, 83
    %s3971 = scalar_lea.vmem %s1, %s3970
    %3972 = vst [vmem:[%s3971] sm:%s3969] %v3968
    %s3973 = scalar_lea.vmem [#allocation0], 672
    %v3974 = vld [vmem:[%s3973] sm:%s3387]
    %v3975 = vpack.c.bf16 0.0, %v3974
    %s3976 = sshllo.u32 0, %s3388
    %s3977 = smul.addr 4, 84
    %s3978 = scalar_lea.vmem %s1, %s3977
    %3979 = vst [vmem:[%s3978] sm:%s3976] %v3975
    %s3980 = scalar_lea.vmem [#allocation0], 680
    %v3981 = vld [vmem:[%s3980] sm:%s3387]
    %v3982 = vpack.c.bf16 0.0, %v3981
    %s3983 = sshllo.u32 0, %s3388
    %s3984 = smul.addr 4, 85
    %s3985 = scalar_lea.vmem %s1, %s3984
    %3986 = vst [vmem:[%s3985] sm:%s3983] %v3982
    %s3987 = scalar_lea.vmem [#allocation0], 688
    %v3988 = vld [vmem:[%s3987] sm:%s3387]
    %v3989 = vpack.c.bf16 0.0, %v3988
    %s3990 = sshllo.u32 0, %s3388
    %s3991 = smul.addr 4, 86
    %s3992 = scalar_lea.vmem %s1, %s3991
    %3993 = vst [vmem:[%s3992] sm:%s3990] %v3989
    %s3994 = scalar_lea.vmem [#allocation0], 696
    %v3995 = vld [vmem:[%s3994] sm:%s3387]
    %v3996 = vpack.c.bf16 0.0, %v3995
    %s3997 = sshllo.u32 0, %s3388
    %s3998 = smul.addr 4, 87
    %s3999 = scalar_lea.vmem %s1, %s3998
    %4000 = vst [vmem:[%s3999] sm:%s3997] %v3996
    %s4001 = scalar_lea.vmem [#allocation0], 704
    %v4002 = vld [vmem:[%s4001] sm:%s3387]
    %v4003 = vpack.c.bf16 0.0, %v4002
    %s4004 = sshllo.u32 0, %s3388
    %s4005 = smul.addr 4, 88
    %s4006 = scalar_lea.vmem %s1, %s4005
    %4007 = vst [vmem:[%s4006] sm:%s4004] %v4003
    %s4008 = scalar_lea.vmem [#allocation0], 712
    %v4009 = vld [vmem:[%s4008] sm:%s3387]
    %v4010 = vpack.c.bf16 0.0, %v4009
    %s4011 = sshllo.u32 0, %s3388
    %s4012 = smul.addr 4, 89
    %s4013 = scalar_lea.vmem %s1, %s4012
    %4014 = vst [vmem:[%s4013] sm:%s4011] %v4010
    %s4015 = scalar_lea.vmem [#allocation0], 720
    %v4016 = vld [vmem:[%s4015] sm:%s3387]
    %v4017 = vpack.c.bf16 0.0, %v4016
    %s4018 = sshllo.u32 0, %s3388
    %s4019 = smul.addr 4, 90
    %s4020 = scalar_lea.vmem %s1, %s4019
    %4021 = vst [vmem:[%s4020] sm:%s4018] %v4017
    %s4022 = scalar_lea.vmem [#allocation0], 728
    %v4023 = vld [vmem:[%s4022] sm:%s3387]
    %v4024 = vpack.c.bf16 0.0, %v4023
    %s4025 = sshllo.u32 0, %s3388
    %s4026 = smul.addr 4, 91
    %s4027 = scalar_lea.vmem %s1, %s4026
    %4028 = vst [vmem:[%s4027] sm:%s4025] %v4024
    %s4029 = scalar_lea.vmem [#allocation0], 736
    %v4030 = vld [vmem:[%s4029] sm:%s3387]
    %v4031 = vpack.c.bf16 0.0, %v4030
    %s4032 = sshllo.u32 0, %s3388
    %s4033 = smul.addr 4, 92
    %s4034 = scalar_lea.vmem %s1, %s4033
    %4035 = vst [vmem:[%s4034] sm:%s4032] %v4031
    %s4036 = scalar_lea.vmem [#allocation0], 744
    %v4037 = vld [vmem:[%s4036] sm:%s3387]
    %v4038 = vpack.c.bf16 0.0, %v4037
    %s4039 = sshllo.u32 0, %s3388
    %s4040 = smul.addr 4, 93
    %s4041 = scalar_lea.vmem %s1, %s4040
    %4042 = vst [vmem:[%s4041] sm:%s4039] %v4038
    %s4043 = scalar_lea.vmem [#allocation0], 752
    %v4044 = vld [vmem:[%s4043] sm:%s3387]
    %v4045 = vpack.c.bf16 0.0, %v4044
    %s4046 = sshllo.u32 0, %s3388
    %s4047 = smul.addr 4, 94
    %s4048 = scalar_lea.vmem %s1, %s4047
    %4049 = vst [vmem:[%s4048] sm:%s4046] %v4045
    %s4050 = scalar_lea.vmem [#allocation0], 760
    %v4051 = vld [vmem:[%s4050] sm:%s3387]
    %v4052 = vpack.c.bf16 0.0, %v4051
    %s4053 = sshllo.u32 0, %s3388
    %s4054 = smul.addr 4, 95
    %s4055 = scalar_lea.vmem %s1, %s4054
    %4056 = vst [vmem:[%s4055] sm:%s4053] %v4052
    %s4057 = scalar_lea.vmem [#allocation0], 768
    %v4058 = vld [vmem:[%s4057] sm:%s3387]
    %v4059 = vpack.c.bf16 0.0, %v4058
    %s4060 = sshllo.u32 0, %s3388
    %s4061 = smul.addr 4, 96
    %s4062 = scalar_lea.vmem %s1, %s4061
    %4063 = vst [vmem:[%s4062] sm:%s4060] %v4059
    %s4064 = scalar_lea.vmem [#allocation0], 776
    %v4065 = vld [vmem:[%s4064] sm:%s3387]
    %v4066 = vpack.c.bf16 0.0, %v4065
    %s4067 = sshllo.u32 0, %s3388
    %s4068 = smul.addr 4, 97
    %s4069 = scalar_lea.vmem %s1, %s4068
    %4070 = vst [vmem:[%s4069] sm:%s4067] %v4066
    %s4071 = scalar_lea.vmem [#allocation0], 784
    %v4072 = vld [vmem:[%s4071] sm:%s3387]
    %v4073 = vpack.c.bf16 0.0, %v4072
    %s4074 = sshllo.u32 0, %s3388
    %s4075 = smul.addr 4, 98
    %s4076 = scalar_lea.vmem %s1, %s4075
    %4077 = vst [vmem:[%s4076] sm:%s4074] %v4073
    %s4078 = scalar_lea.vmem [#allocation0], 792
    %v4079 = vld [vmem:[%s4078] sm:%s3387]
    %v4080 = vpack.c.bf16 0.0, %v4079
    %s4081 = sshllo.u32 0, %s3388
    %s4082 = smul.addr 4, 99
    %s4083 = scalar_lea.vmem %s1, %s4082
    %4084 = vst [vmem:[%s4083] sm:%s4081] %v4080
    %s4085 = scalar_lea.vmem [#allocation0], 800
    %v4086 = vld [vmem:[%s4085] sm:%s3387]
    %v4087 = vpack.c.bf16 0.0, %v4086
    %s4088 = sshllo.u32 0, %s3388
    %s4089 = smul.addr 4, 100
    %s4090 = scalar_lea.vmem %s1, %s4089
    %4091 = vst [vmem:[%s4090] sm:%s4088] %v4087
    %s4092 = scalar_lea.vmem [#allocation0], 808
    %v4093 = vld [vmem:[%s4092] sm:%s3387]
    %v4094 = vpack.c.bf16 0.0, %v4093
    %s4095 = sshllo.u32 0, %s3388
    %s4096 = smul.addr 4, 101
    %s4097 = scalar_lea.vmem %s1, %s4096
    %4098 = vst [vmem:[%s4097] sm:%s4095] %v4094
    %s4099 = scalar_lea.vmem [#allocation0], 816
    %v4100 = vld [vmem:[%s4099] sm:%s3387]
    %v4101 = vpack.c.bf16 0.0, %v4100
    %s4102 = sshllo.u32 0, %s3388
    %s4103 = smul.addr 4, 102
    %s4104 = scalar_lea.vmem %s1, %s4103
    %4105 = vst [vmem:[%s4104] sm:%s4102] %v4101
    %s4106 = scalar_lea.vmem [#allocation0], 824
    %v4107 = vld [vmem:[%s4106] sm:%s3387]
    %v4108 = vpack.c.bf16 0.0, %v4107
    %s4109 = sshllo.u32 0, %s3388
    %s4110 = smul.addr 4, 103
    %s4111 = scalar_lea.vmem %s1, %s4110
    %4112 = vst [vmem:[%s4111] sm:%s4109] %v4108
    %s4113 = scalar_lea.vmem [#allocation0], 832
    %v4114 = vld [vmem:[%s4113] sm:%s3387]
    %v4115 = vpack.c.bf16 0.0, %v4114
    %s4116 = sshllo.u32 0, %s3388
    %s4117 = smul.addr 4, 104
    %s4118 = scalar_lea.vmem %s1, %s4117
    %4119 = vst [vmem:[%s4118] sm:%s4116] %v4115
    %s4120 = scalar_lea.vmem [#allocation0], 840
    %v4121 = vld [vmem:[%s4120] sm:%s3387]
    %v4122 = vpack.c.bf16 0.0, %v4121
    %s4123 = sshllo.u32 0, %s3388
    %s4124 = smul.addr 4, 105
    %s4125 = scalar_lea.vmem %s1, %s4124
    %4126 = vst [vmem:[%s4125] sm:%s4123] %v4122
    %s4127 = scalar_lea.vmem [#allocation0], 848
    %v4128 = vld [vmem:[%s4127] sm:%s3387]
    %v4129 = vpack.c.bf16 0.0, %v4128
    %s4130 = sshllo.u32 0, %s3388
    %s4131 = smul.addr 4, 106
    %s4132 = scalar_lea.vmem %s1, %s4131
    %4133 = vst [vmem:[%s4132] sm:%s4130] %v4129
    %s4134 = scalar_lea.vmem [#allocation0], 856
    %v4135 = vld [vmem:[%s4134] sm:%s3387]
    %v4136 = vpack.c.bf16 0.0, %v4135
    %s4137 = sshllo.u32 0, %s3388
    %s4138 = smul.addr 4, 107
    %s4139 = scalar_lea.vmem %s1, %s4138
    %4140 = vst [vmem:[%s4139] sm:%s4137] %v4136
    %s4141 = scalar_lea.vmem [#allocation0], 864
    %v4142 = vld [vmem:[%s4141] sm:%s3387]
    %v4143 = vpack.c.bf16 0.0, %v4142
    %s4144 = sshllo.u32 0, %s3388
    %s4145 = smul.addr 4, 108
    %s4146 = scalar_lea.vmem %s1, %s4145
    %4147 = vst [vmem:[%s4146] sm:%s4144] %v4143
    %s4148 = scalar_lea.vmem [#allocation0], 872
    %v4149 = vld [vmem:[%s4148] sm:%s3387]
    %v4150 = vpack.c.bf16 0.0, %v4149
    %s4151 = sshllo.u32 0, %s3388
    %s4152 = smul.addr 4, 109
    %s4153 = scalar_lea.vmem %s1, %s4152
    %4154 = vst [vmem:[%s4153] sm:%s4151] %v4150
    %s4155 = scalar_lea.vmem [#allocation0], 880
    %v4156 = vld [vmem:[%s4155] sm:%s3387]
    %v4157 = vpack.c.bf16 0.0, %v4156
    %s4158 = sshllo.u32 0, %s3388
    %s4159 = smul.addr 4, 110
    %s4160 = scalar_lea.vmem %s1, %s4159
    %4161 = vst [vmem:[%s4160] sm:%s4158] %v4157
    %s4162 = scalar_lea.vmem [#allocation0], 888
    %v4163 = vld [vmem:[%s4162] sm:%s3387]
    %v4164 = vpack.c.bf16 0.0, %v4163
    %s4165 = sshllo.u32 0, %s3388
    %s4166 = smul.addr 4, 111
    %s4167 = scalar_lea.vmem %s1, %s4166
    %4168 = vst [vmem:[%s4167] sm:%s4165] %v4164
    %s4169 = scalar_lea.vmem [#allocation0], 896
    %v4170 = vld [vmem:[%s4169] sm:%s3387]
    %v4171 = vpack.c.bf16 0.0, %v4170
    %s4172 = sshllo.u32 0, %s3388
    %s4173 = smul.addr 4, 112
    %s4174 = scalar_lea.vmem %s1, %s4173
    %4175 = vst [vmem:[%s4174] sm:%s4172] %v4171
    %s4176 = scalar_lea.vmem [#allocation0], 904
    %v4177 = vld [vmem:[%s4176] sm:%s3387]
    %v4178 = vpack.c.bf16 0.0, %v4177
    %s4179 = sshllo.u32 0, %s3388
    %s4180 = smul.addr 4, 113
    %s4181 = scalar_lea.vmem %s1, %s4180
    %4182 = vst [vmem:[%s4181] sm:%s4179] %v4178
    %s4183 = scalar_lea.vmem [#allocation0], 912
    %v4184 = vld [vmem:[%s4183] sm:%s3387]
    %v4185 = vpack.c.bf16 0.0, %v4184
    %s4186 = sshllo.u32 0, %s3388
    %s4187 = smul.addr 4, 114
    %s4188 = scalar_lea.vmem %s1, %s4187
    %4189 = vst [vmem:[%s4188] sm:%s4186] %v4185
    %s4190 = scalar_lea.vmem [#allocation0], 920
    %v4191 = vld [vmem:[%s4190] sm:%s3387]
    %v4192 = vpack.c.bf16 0.0, %v4191
    %s4193 = sshllo.u32 0, %s3388
    %s4194 = smul.addr 4, 115
    %s4195 = scalar_lea.vmem %s1, %s4194
    %4196 = vst [vmem:[%s4195] sm:%s4193] %v4192
    %s4197 = scalar_lea.vmem [#allocation0], 928
    %v4198 = vld [vmem:[%s4197] sm:%s3387]
    %v4199 = vpack.c.bf16 0.0, %v4198
    %s4200 = sshllo.u32 0, %s3388
    %s4201 = smul.addr 4, 116
    %s4202 = scalar_lea.vmem %s1, %s4201
    %4203 = vst [vmem:[%s4202] sm:%s4200] %v4199
    %s4204 = scalar_lea.vmem [#allocation0], 936
    %v4205 = vld [vmem:[%s4204] sm:%s3387]
    %v4206 = vpack.c.bf16 0.0, %v4205
    %s4207 = sshllo.u32 0, %s3388
    %s4208 = smul.addr 4, 117
    %s4209 = scalar_lea.vmem %s1, %s4208
    %4210 = vst [vmem:[%s4209] sm:%s4207] %v4206
    %s4211 = scalar_lea.vmem [#allocation0], 944
    %v4212 = vld [vmem:[%s4211] sm:%s3387]
    %v4213 = vpack.c.bf16 0.0, %v4212
    %s4214 = sshllo.u32 0, %s3388
    %s4215 = smul.addr 4, 118
    %s4216 = scalar_lea.vmem %s1, %s4215
    %4217 = vst [vmem:[%s4216] sm:%s4214] %v4213
    %s4218 = scalar_lea.vmem [#allocation0], 952
    %v4219 = vld [vmem:[%s4218] sm:%s3387]
    %v4220 = vpack.c.bf16 0.0, %v4219
    %s4221 = sshllo.u32 0, %s3388
    %s4222 = smul.addr 4, 119
    %s4223 = scalar_lea.vmem %s1, %s4222
    %4224 = vst [vmem:[%s4223] sm:%s4221] %v4220
    %s4225 = scalar_lea.vmem [#allocation0], 960
    %v4226 = vld [vmem:[%s4225] sm:%s3387]
    %v4227 = vpack.c.bf16 0.0, %v4226
    %s4228 = sshllo.u32 0, %s3388
    %s4229 = smul.addr 4, 120
    %s4230 = scalar_lea.vmem %s1, %s4229
    %4231 = vst [vmem:[%s4230] sm:%s4228] %v4227
    %s4232 = scalar_lea.vmem [#allocation0], 968
    %v4233 = vld [vmem:[%s4232] sm:%s3387]
    %v4234 = vpack.c.bf16 0.0, %v4233
    %s4235 = sshllo.u32 0, %s3388
    %s4236 = smul.addr 4, 121
    %s4237 = scalar_lea.vmem %s1, %s4236
    %4238 = vst [vmem:[%s4237] sm:%s4235] %v4234
    %s4239 = scalar_lea.vmem [#allocation0], 976
    %v4240 = vld [vmem:[%s4239] sm:%s3387]
    %v4241 = vpack.c.bf16 0.0, %v4240
    %s4242 = sshllo.u32 0, %s3388
    %s4243 = smul.addr 4, 122
    %s4244 = scalar_lea.vmem %s1, %s4243
    %4245 = vst [vmem:[%s4244] sm:%s4242] %v4241
    %s4246 = scalar_lea.vmem [#allocation0], 984
    %v4247 = vld [vmem:[%s4246] sm:%s3387]
    %v4248 = vpack.c.bf16 0.0, %v4247
    %s4249 = sshllo.u32 0, %s3388
    %s4250 = smul.addr 4, 123
    %s4251 = scalar_lea.vmem %s1, %s4250
    %4252 = vst [vmem:[%s4251] sm:%s4249] %v4248
    %s4253 = scalar_lea.vmem [#allocation0], 992
    %v4254 = vld [vmem:[%s4253] sm:%s3387]
    %v4255 = vpack.c.bf16 0.0, %v4254
    %s4256 = sshllo.u32 0, %s3388
    %s4257 = smul.addr 4, 124
    %s4258 = scalar_lea.vmem %s1, %s4257
    %4259 = vst [vmem:[%s4258] sm:%s4256] %v4255
    %s4260 = scalar_lea.vmem [#allocation0], 1000
    %v4261 = vld [vmem:[%s4260] sm:%s3387]
    %v4262 = vpack.c.bf16 0.0, %v4261
    %s4263 = sshllo.u32 0, %s3388
    %s4264 = smul.addr 4, 125
    %s4265 = scalar_lea.vmem %s1, %s4264
    %4266 = vst [vmem:[%s4265] sm:%s4263] %v4262

// kernel: m5_forward.1
$region0: #{m5_forward.1}
  #allocation0 [shape = 'u32[]', space=smem, size = 0x4, offset = 0x4, fixed_abs, tag = 'smem constant byte address 0x4 - core index']
  #allocation1 [shape = 'u32[144,128]{1,0:T(1,128)}', space=vmem, size = 0x12000, scoped, tag = 'internal scratch']
  #allocation2 [shape = 'f32[1024,128]{1,0:T(8,128)}', space=vmem, size = 0x80000, scoped, tag = 'scratch operand']
  #allocation3 [shape = 'f32[376,128]{1,0:T(8,128)}', space=vmem, size = 0x2f000, scoped, tag = 'scratch operand']
  %s0 = inlined_call_operand.vmem [shape: bf16[1024,128], index: 0, kind: input, shape index: {}]
  %s1 = inlined_call_operand.vmem [shape: bf16[128,128], index: 1, kind: input, shape index: {}]
  %s2 = inlined_call_operand.vmem [shape: bf16[384,128], index: 2, kind: input, shape index: {}]
  %s3 = inlined_call_operand.vmem [shape: bf16[384,128], index: 3, kind: input, shape index: {}]
  %s4 = inlined_call_operand.vmem [shape: bf16[384,128], index: 4, kind: input, shape index: {}]
  %s5 = inlined_call_operand.vmem [shape: f32[4,128], index: 5, kind: input, shape index: {}]
  %s6 = inlined_call_operand.vmem [shape: f32[4,128], index: 6, kind: input, shape index: {}]
  %s7 = inlined_call_operand.vmem [shape: f32[128,128], index: 7, kind: input, shape index: {}]
  %s8 = inlined_call_operand.vmem [shape: f32[1,128], index: 8, kind: input, shape index: {}]
  %s9 = inlined_call_operand.hbm [shape: f32[2,128], index: 9, kind: output, shape index: {}]
  %s10 = sld [smem:[#allocation0]]
  $region46: #{m5_forward.1} parent=0
    _
  %s12 = ssub.s32 1, %s10
  %s13 = scalar_select 0, %s12, %s10
  $region1: #{m5_forward.1} parent=0
    #allocation4 [shape = 'u8[1024]{0}', space=vmem, size = 0x400, scoped, tag = 'output window, operand 0, single buffered']
    #allocation5 [shape = 's32[1]{0}', space=sflag, size = 0x4, scoped, tag = 'scoped memory for m5_forward.1']
    %14 = vsyncpa [#allocation5], 0
    // Predicated region
    $region2: #{m5_forward.1} parent=1 // pred_check
      _
    $region3: #{m5_forward.1} parent=1 // pred_check_branch
      %16 = sbr.rel (0) target = $region5
    $region4: #{m5_forward.1} parent=1 // pred_region
      _
    $region5: #{m5_forward.1} parent=1 // pred_fallthru
      _
    // Predicated region
    $region6: #{m5_forward.1} parent=1 // pred_check
      _
    $region7: #{m5_forward.1} parent=1 // pred_check_branch
      %18 = sbr.rel (0) target = $region9
    $region8: #{m5_forward.1} parent=1 // pred_region
      _
    $region9: #{m5_forward.1} parent=1 // pred_fallthru
      _
    // Predicated region
    $region10: #{m5_forward.1} parent=1 // pred_check
      _
    $region11: #{m5_forward.1} parent=1 // pred_check_branch
      %20 = sbr.rel (0) target = $region13
    $region12: #{m5_forward.1} parent=1 // pred_region
      _
    $region13: #{m5_forward.1} parent=1 // pred_fallthru
      _
    // Predicated region
    $region14: #{m5_forward.1} parent=1 // pred_check
      _
    $region15: #{m5_forward.1} parent=1 // pred_check_branch
      %22 = sbr.rel (0) target = $region17
    $region16: #{m5_forward.1} parent=1 // pred_region
      _
    $region17: #{m5_forward.1} parent=1 // pred_fallthru
      _
    // Predicated region
    $region18: #{m5_forward.1} parent=1 // pred_check
      _
    $region19: #{m5_forward.1} parent=1 // pred_check_branch
      %24 = sbr.rel (0) target = $region21
    $region20: #{m5_forward.1} parent=1 // pred_region
      _
    $region21: #{m5_forward.1} parent=1 // pred_fallthru
      _
    // Predicated region
    $region22: #{m5_forward.1} parent=1 // pred_check
      _
    $region23: #{m5_forward.1} parent=1 // pred_check_branch
      %26 = sbr.rel (0) target = $region25
    $region24: #{m5_forward.1} parent=1 // pred_region
      _
    $region25: #{m5_forward.1} parent=1 // pred_fallthru
      _
    // Predicated region
    $region26: #{m5_forward.1} parent=1 // pred_check
      _
    $region27: #{m5_forward.1} parent=1 // pred_check_branch
      %28 = sbr.rel (0) target = $region29
    $region28: #{m5_forward.1} parent=1 // pred_region
      _
    $region29: #{m5_forward.1} parent=1 // pred_fallthru
      _
    // Predicated region
    $region30: #{m5_forward.1} parent=1 // pred_check
      _
    $region31: #{m5_forward.1} parent=1 // pred_check_branch
      %30 = sbr.rel (0) target = $region33
    $region32: #{m5_forward.1} parent=1 // pred_region
      _
    $region33: #{m5_forward.1} parent=1 // pred_fallthru
      _
    // Predicated region
    $region34: #{m5_forward.1} parent=1 // pred_check
      _
    $region35: #{m5_forward.1} parent=1 // pred_check_branch
      %32 = sbr.rel (0) target = $region37
    $region36: #{m5_forward.1} parent=1 // pred_region
      _
    $region37: #{m5_forward.1} parent=1 // pred_fallthru
      _
    %34 = vst [vmem:[#allocation3] sm:$0xff] 0.0
    %35 = vst [vmem:[#allocation3 + $0x8] sm:$0xff] 0.0
    %36 = vst [vmem:[#allocation3 + $0x10] sm:$0xff] 0.0
    %37 = vst [vmem:[#allocation3 + $0x18] sm:$0xff] 0.0
    %38 = vst [vmem:[#allocation3 + $0x20] sm:$0xff] 0.0
    %39 = vst [vmem:[#allocation3 + $0x28] sm:$0xff] 0.0
    %40 = vst [vmem:[#allocation3 + $0x30] sm:$0xff] 0.0
    %41 = vst [vmem:[#allocation3 + $0x38] sm:$0xff] 0.0
    %42 = vst [vmem:[#allocation3 + $0x40] sm:$0xff] 0.0
    %43 = vst [vmem:[#allocation3 + $0x48] sm:$0xff] 0.0
    %44 = vst [vmem:[#allocation3 + $0x50] sm:$0xff] 0.0
    %45 = vst [vmem:[#allocation3 + $0x58] sm:$0xff] 0.0
    %46 = vst [vmem:[#allocation3 + $0x60] sm:$0xff] 0.0
    %47 = vst [vmem:[#allocation3 + $0x68] sm:$0xff] 0.0
    %48 = vst [vmem:[#allocation3 + $0x70] sm:$0xff] 0.0
    %49 = vst [vmem:[#allocation3 + $0x78] sm:$0xff] 0.0
    %50 = vst [vmem:[#allocation3 + $0x80] sm:$0xff] 0.0
    %51 = vst [vmem:[#allocation3 + $0x88] sm:$0xff] 0.0
    %52 = vst [vmem:[#allocation3 + $0x90] sm:$0xff] 0.0
    %53 = vst [vmem:[#allocation3 + $0x98] sm:$0xff] 0.0
    %54 = vst [vmem:[#allocation3 + $0xa0] sm:$0xff] 0.0
    %55 = vst [vmem:[#allocation3 + $0xa8] sm:$0xff] 0.0
    %56 = vst [vmem:[#allocation3 + $0xb0] sm:$0xff] 0.0
    %57 = vst [vmem:[#allocation3 + $0xb8] sm:$0xff] 0.0
    %58 = vst [vmem:[#allocation3 + $0xc0] sm:$0xff] 0.0
    %59 = vst [vmem:[#allocation3 + $0xc8] sm:$0xff] 0.0
    %60 = vst [vmem:[#allocation3 + $0xd0] sm:$0xff] 0.0
    %61 = vst [vmem:[#allocation3 + $0xd8] sm:$0xff] 0.0
    %62 = vst [vmem:[#allocation3 + $0xe0] sm:$0xff] 0.0
    %63 = vst [vmem:[#allocation3 + $0xe8] sm:$0xff] 0.0
    %64 = vst [vmem:[#allocation3 + $0xf0] sm:$0xff] 0.0
    %65 = vst [vmem:[#allocation3 + $0xf8] sm:$0xff] 0.0
    %66 = vst [vmem:[#allocation3 + $0x100] sm:$0xff] 0.0
    %67 = vst [vmem:[#allocation3 + $0x108] sm:$0xff] 0.0
    %68 = vst [vmem:[#allocation3 + $0x110] sm:$0xff] 0.0
    %69 = vst [vmem:[#allocation3 + $0x118] sm:$0xff] 0.0
    %70 = vst [vmem:[#allocation3 + $0x120] sm:$0xff] 0.0
    %71 = vst [vmem:[#allocation3 + $0x128] sm:$0xff] 0.0
    %72 = vst [vmem:[#allocation3 + $0x130] sm:$0xff] 0.0
    %73 = vst [vmem:[#allocation3 + $0x138] sm:$0xff] 0.0
    %74 = vst [vmem:[#allocation3 + $0x140] sm:$0xff] 0.0
    %75 = vst [vmem:[#allocation3 + $0x148] sm:$0xff] 0.0
    %76 = vst [vmem:[#allocation3 + $0x150] sm:$0xff] 0.0
    %77 = vst [vmem:[#allocation3 + $0x158] sm:$0xff] 0.0
    %78 = vst [vmem:[#allocation3 + $0x160] sm:$0xff] 0.0
    %79 = vst [vmem:[#allocation3 + $0x168] sm:$0xff] 0.0
    %80 = vst [vmem:[#allocation3 + $0x170] sm:$0xff] 0.0
    %v81 = vld [vmem:[%s0] sm:$0xf]
    %v82 = vld [vmem:[%s0 + $0x4] sm:$0xf]
    %v83 = vld [vmem:[%s0 + $0x8] sm:$0xf]
    %v84 = vld [vmem:[%s0 + $0xc] sm:$0xf]
    %v85 = vld [vmem:[%s0 + $0x10] sm:$0xf]
    %v86 = vld [vmem:[%s0 + $0x14] sm:$0xf]
    %v87 = vld [vmem:[%s0 + $0x18] sm:$0xf]
    %v88 = vld [vmem:[%s0 + $0x1c] sm:$0xf]
    %v89 = vld [vmem:[%s0 + $0x20] sm:$0xf]
    %v90 = vld [vmem:[%s0 + $0x24] sm:$0xf]
    %v91 = vld [vmem:[%s0 + $0x28] sm:$0xf]
    %v92 = vld [vmem:[%s0 + $0x2c] sm:$0xf]
    %v93 = vld [vmem:[%s0 + $0x30] sm:$0xf]
    %v94 = vld [vmem:[%s0 + $0x34] sm:$0xf]
    %v95 = vld [vmem:[%s0 + $0x38] sm:$0xf]
    %v96 = vld [vmem:[%s0 + $0x3c] sm:$0xf]
    %v97 = vld [vmem:[%s0 + $0x40] sm:$0xf]
    %v98 = vld [vmem:[%s0 + $0x44] sm:$0xf]
    %v99 = vld [vmem:[%s0 + $0x48] sm:$0xf]
    %v100 = vld [vmem:[%s0 + $0x4c] sm:$0xf]
    %v101 = vld [vmem:[%s0 + $0x50] sm:$0xf]
    %v102 = vld [vmem:[%s0 + $0x54] sm:$0xf]
    %v103 = vld [vmem:[%s0 + $0x58] sm:$0xf]
    %v104 = vld [vmem:[%s0 + $0x5c] sm:$0xf]
    %v105 = vld [vmem:[%s0 + $0x60] sm:$0xf]
    %v106 = vld [vmem:[%s0 + $0x64] sm:$0xf]
    %v107 = vld [vmem:[%s0 + $0x68] sm:$0xf]
    %v108 = vld [vmem:[%s0 + $0x6c] sm:$0xf]
    %v109 = vld [vmem:[%s0 + $0x70] sm:$0xf]
    %v110 = vld [vmem:[%s0 + $0x74] sm:$0xf]
    %v111 = vld [vmem:[%s0 + $0x78] sm:$0xf]
    %v112 = vld [vmem:[%s0 + $0x7c] sm:$0xf]
    %v113 = vld [vmem:[%s0 + $0x80] sm:$0xf]
    %v114 = vld [vmem:[%s0 + $0x84] sm:$0xf]
    %v115 = vld [vmem:[%s0 + $0x88] sm:$0xf]
    %v116 = vld [vmem:[%s0 + $0x8c] sm:$0xf]
    %v117 = vld [vmem:[%s0 + $0x90] sm:$0xf]
    %v118 = vld [vmem:[%s0 + $0x94] sm:$0xf]
    %v119 = vld [vmem:[%s0 + $0x98] sm:$0xf]
    %v120 = vld [vmem:[%s0 + $0x9c] sm:$0xf]
    %v121 = vld [vmem:[%s0 + $0xa0] sm:$0xf]
    %v122 = vld [vmem:[%s0 + $0xa4] sm:$0xf]
    %v123 = vld [vmem:[%s0 + $0xa8] sm:$0xf]
    %v124 = vld [vmem:[%s0 + $0xac] sm:$0xf]
    %v125 = vld [vmem:[%s0 + $0xb0] sm:$0xf]
    %v126 = vld [vmem:[%s0 + $0xb4] sm:$0xf]
    %v127 = vld [vmem:[%s0 + $0xb8] sm:$0xf]
    %v128 = vld [vmem:[%s0 + $0xbc] sm:$0xf]
    %v129 = vld [vmem:[%s0 + $0xc0] sm:$0xf]
    %v130 = vld [vmem:[%s0 + $0xc4] sm:$0xf]
    %v131 = vld [vmem:[%s0 + $0xc8] sm:$0xf]
    %v132 = vld [vmem:[%s0 + $0xcc] sm:$0xf]
    %v133 = vld [vmem:[%s0 + $0xd0] sm:$0xf]
    %v134 = vld [vmem:[%s0 + $0xd4] sm:$0xf]
    %v135 = vld [vmem:[%s0 + $0xd8] sm:$0xf]
    %v136 = vld [vmem:[%s0 + $0xdc] sm:$0xf]
    %v137 = vld [vmem:[%s0 + $0xe0] sm:$0xf]
    %v138 = vld [vmem:[%s0 + $0xe4] sm:$0xf]
    %v139 = vld [vmem:[%s0 + $0xe8] sm:$0xf]
    %v140 = vld [vmem:[%s0 + $0xec] sm:$0xf]
    %v141 = vld [vmem:[%s0 + $0xf0] sm:$0xf]
    %v142 = vld [vmem:[%s0 + $0xf4] sm:$0xf]
    %v143 = vld [vmem:[%s0 + $0xf8] sm:$0xf]
    %v144 = vld [vmem:[%s0 + $0xfc] sm:$0xf]
    %v145 = vld [vmem:[%s0 + $0x100] sm:$0xf]
    %v146 = vld [vmem:[%s0 + $0x104] sm:$0xf]
    %v147 = vld [vmem:[%s0 + $0x108] sm:$0xf]
    %v148 = vld [vmem:[%s0 + $0x10c] sm:$0xf]
    %v149 = vld [vmem:[%s0 + $0x110] sm:$0xf]
    %v150 = vld [vmem:[%s0 + $0x114] sm:$0xf]
    %v151 = vld [vmem:[%s0 + $0x118] sm:$0xf]
    %v152 = vld [vmem:[%s0 + $0x11c] sm:$0xf]
    %v153 = vld [vmem:[%s0 + $0x120] sm:$0xf]
    %v154 = vld [vmem:[%s0 + $0x124] sm:$0xf]
    %v155 = vld [vmem:[%s0 + $0x128] sm:$0xf]
    %v156 = vld [vmem:[%s0 + $0x12c] sm:$0xf]
    %v157 = vld [vmem:[%s0 + $0x130] sm:$0xf]
    %v158 = vld [vmem:[%s0 + $0x134] sm:$0xf]
    %v159 = vld [vmem:[%s0 + $0x138] sm:$0xf]
    %v160 = vld [vmem:[%s0 + $0x13c] sm:$0xf]
    %v161 = vld [vmem:[%s0 + $0x140] sm:$0xf]
    %v162 = vld [vmem:[%s0 + $0x144] sm:$0xf]
    %v163 = vld [vmem:[%s0 + $0x148] sm:$0xf]
    %v164 = vld [vmem:[%s0 + $0x14c] sm:$0xf]
    %v165 = vld [vmem:[%s0 + $0x150] sm:$0xf]
    %v166 = vld [vmem:[%s0 + $0x154] sm:$0xf]
    %v167 = vld [vmem:[%s0 + $0x158] sm:$0xf]
    %v168 = vld [vmem:[%s0 + $0x15c] sm:$0xf]
    %v169 = vld [vmem:[%s0 + $0x160] sm:$0xf]
    %v170 = vld [vmem:[%s0 + $0x164] sm:$0xf]
    %v171 = vld [vmem:[%s0 + $0x168] sm:$0xf]
    %v172 = vld [vmem:[%s0 + $0x16c] sm:$0xf]
    %v173 = vld [vmem:[%s0 + $0x170] sm:$0xf]
    %v174 = vld [vmem:[%s0 + $0x174] sm:$0xf]
    %v175 = vld [vmem:[%s0 + $0x178] sm:$0xf]
    %v176 = vld [vmem:[%s0 + $0x17c] sm:$0xf]
    %v177 = vld [vmem:[%s0 + $0x180] sm:$0xf]
    %v178 = vld [vmem:[%s0 + $0x184] sm:$0xf]
    %v179 = vld [vmem:[%s0 + $0x188] sm:$0xf]
    %v180 = vld [vmem:[%s0 + $0x18c] sm:$0xf]
    %v181 = vld [vmem:[%s0 + $0x190] sm:$0xf]
    %v182 = vld [vmem:[%s0 + $0x194] sm:$0xf]
    %v183 = vld [vmem:[%s0 + $0x198] sm:$0xf]
    %v184 = vld [vmem:[%s0 + $0x19c] sm:$0xf]
    %v185 = vld [vmem:[%s0 + $0x1a0] sm:$0xf]
    %v186 = vld [vmem:[%s0 + $0x1a4] sm:$0xf]
    %v187 = vld [vmem:[%s0 + $0x1a8] sm:$0xf]
    %v188 = vld [vmem:[%s0 + $0x1ac] sm:$0xf]
    %v189 = vld [vmem:[%s0 + $0x1b0] sm:$0xf]
    %v190 = vld [vmem:[%s0 + $0x1b4] sm:$0xf]
    %v191 = vld [vmem:[%s0 + $0x1b8] sm:$0xf]
    %v192 = vld [vmem:[%s0 + $0x1bc] sm:$0xf]
    %v193 = vld [vmem:[%s0 + $0x1c0] sm:$0xf]
    %v194 = vld [vmem:[%s0 + $0x1c4] sm:$0xf]
    %v195 = vld [vmem:[%s0 + $0x1c8] sm:$0xf]
    %v196 = vld [vmem:[%s0 + $0x1cc] sm:$0xf]
    %v197 = vld [vmem:[%s0 + $0x1d0] sm:$0xf]
    %v198 = vld [vmem:[%s0 + $0x1d4] sm:$0xf]
    %v199 = vld [vmem:[%s0 + $0x1d8] sm:$0xf]
    %v200 = vld [vmem:[%s0 + $0x1dc] sm:$0xf]
    %v201 = vld [vmem:[%s0 + $0x1e0] sm:$0xf]
    %v202 = vld [vmem:[%s0 + $0x1e4] sm:$0xf]
    %v203 = vld [vmem:[%s0 + $0x1e8] sm:$0xf]
    %v204 = vld [vmem:[%s0 + $0x1ec] sm:$0xf]
    %v205 = vld [vmem:[%s0 + $0x1f0] sm:$0xf]
    %v206 = vld [vmem:[%s0 + $0x1f4] sm:$0xf]
    %v207 = vld [vmem:[%s0 + $0x1f8] sm:$0xf]
    %v208 = vld [vmem:[%s0 + $0x1fc] sm:$0xf]
    %v209 = vld [vmem:[%s1] sm:$0xf]
    %v210 = vld [vmem:[%s1 + $0x4] sm:$0xf]
    %v211 = vld [vmem:[%s1 + $0x8] sm:$0xf]
    %v212 = vld [vmem:[%s1 + $0xc] sm:$0xf]
    %v213 = vld [vmem:[%s1 + $0x10] sm:$0xf]
    %v214 = vld [vmem:[%s1 + $0x14] sm:$0xf]
    %v215 = vld [vmem:[%s1 + $0x18] sm:$0xf]
    %v216 = vld [vmem:[%s1 + $0x1c] sm:$0xf]
    %v217 = vld [vmem:[%s1 + $0x20] sm:$0xf]
    %v218 = vld [vmem:[%s1 + $0x24] sm:$0xf]
    %v219 = vld [vmem:[%s1 + $0x28] sm:$0xf]
    %v220 = vld [vmem:[%s1 + $0x2c] sm:$0xf]
    %v221 = vld [vmem:[%s1 + $0x30] sm:$0xf]
    %v222 = vld [vmem:[%s1 + $0x34] sm:$0xf]
    %v223 = vld [vmem:[%s1 + $0x38] sm:$0xf]
    %v224 = vld [vmem:[%s1 + $0x3c] sm:$0xf]
    %v353 = vunpack.c.l.b16 %v81
    %v354 = vunpack.c.l.b16 %v82
    %v355 = vunpack.c.l.b16 %v83
    %v356 = vunpack.c.l.b16 %v84
    %v357 = vunpack.c.l.b16 %v85
    %v358 = vunpack.c.l.b16 %v86
    %v359 = vunpack.c.l.b16 %v87
    %v360 = vunpack.c.l.b16 %v88
    %v361 = vunpack.c.l.b16 %v89
    %v362 = vunpack.c.l.b16 %v90
    %v363 = vunpack.c.l.b16 %v91
    %v364 = vunpack.c.l.b16 %v92
    %v365 = vunpack.c.l.b16 %v93
    %v366 = vunpack.c.l.b16 %v94
    %v367 = vunpack.c.l.b16 %v95
    %v368 = vunpack.c.l.b16 %v96
    %v369 = vunpack.c.l.b16 %v97
    %v370 = vunpack.c.l.b16 %v98
    %v371 = vunpack.c.l.b16 %v99
    %v372 = vunpack.c.l.b16 %v100
    %v373 = vunpack.c.l.b16 %v101
    %v374 = vunpack.c.l.b16 %v102
    %v375 = vunpack.c.l.b16 %v103
    %v376 = vunpack.c.l.b16 %v104
    %v377 = vunpack.c.l.b16 %v105
    %v378 = vunpack.c.l.b16 %v106
    %v379 = vunpack.c.l.b16 %v107
    %v380 = vunpack.c.l.b16 %v108
    %v381 = vunpack.c.l.b16 %v109
    %v382 = vunpack.c.l.b16 %v110
    %v383 = vunpack.c.l.b16 %v111
    %v384 = vunpack.c.l.b16 %v112
    %v385 = vunpack.c.l.b16 %v113
    %v386 = vunpack.c.l.b16 %v114
    %v387 = vunpack.c.l.b16 %v115
    %v388 = vunpack.c.l.b16 %v116
    %v389 = vunpack.c.l.b16 %v117
    %v390 = vunpack.c.l.b16 %v118
    %v391 = vunpack.c.l.b16 %v119
    %v392 = vunpack.c.l.b16 %v120
    %v393 = vunpack.c.l.b16 %v121
    %v394 = vunpack.c.l.b16 %v122
    %v395 = vunpack.c.l.b16 %v123
    %v396 = vunpack.c.l.b16 %v124
    %v397 = vunpack.c.l.b16 %v125
    %v398 = vunpack.c.l.b16 %v126
    %v399 = vunpack.c.l.b16 %v127
    %v400 = vunpack.c.l.b16 %v128
    %v401 = vunpack.c.l.b16 %v129
    %v402 = vunpack.c.l.b16 %v130
    %v403 = vunpack.c.l.b16 %v131
    %v404 = vunpack.c.l.b16 %v132
    %v405 = vunpack.c.l.b16 %v133
    %v406 = vunpack.c.l.b16 %v134
    %v407 = vunpack.c.l.b16 %v135
    %v408 = vunpack.c.l.b16 %v136
    %v409 = vunpack.c.l.b16 %v137
    %v410 = vunpack.c.l.b16 %v138
    %v411 = vunpack.c.l.b16 %v139
    %v412 = vunpack.c.l.b16 %v140
    %v413 = vunpack.c.l.b16 %v141
    %v414 = vunpack.c.l.b16 %v142
    %v415 = vunpack.c.l.b16 %v143
    %v416 = vunpack.c.l.b16 %v144
    %v417 = vunpack.c.l.b16 %v145
    %v418 = vunpack.c.l.b16 %v146
    %v419 = vunpack.c.l.b16 %v147
    %v420 = vunpack.c.l.b16 %v148
    %v421 = vunpack.c.l.b16 %v149
    %v422 = vunpack.c.l.b16 %v150
    %v423 = vunpack.c.l.b16 %v151
    %v424 = vunpack.c.l.b16 %v152
    %v425 = vunpack.c.l.b16 %v153
    %v426 = vunpack.c.l.b16 %v154
    %v427 = vunpack.c.l.b16 %v155
    %v428 = vunpack.c.l.b16 %v156
    %v429 = vunpack.c.l.b16 %v157
    %v430 = vunpack.c.l.b16 %v158
    %v431 = vunpack.c.l.b16 %v159
    %v432 = vunpack.c.l.b16 %v160
    %v433 = vunpack.c.l.b16 %v161
    %v434 = vunpack.c.l.b16 %v162
    %v435 = vunpack.c.l.b16 %v163
    %v436 = vunpack.c.l.b16 %v164
    %v437 = vunpack.c.l.b16 %v165
    %v438 = vunpack.c.l.b16 %v166
    %v439 = vunpack.c.l.b16 %v167
    %v440 = vunpack.c.l.b16 %v168
    %v441 = vunpack.c.l.b16 %v169
    %v442 = vunpack.c.l.b16 %v170
    %v443 = vunpack.c.l.b16 %v171
    %v444 = vunpack.c.l.b16 %v172
    %v445 = vunpack.c.l.b16 %v173
    %v446 = vunpack.c.l.b16 %v174
    %v447 = vunpack.c.l.b16 %v175
    %v448 = vunpack.c.l.b16 %v176
    %v449 = vunpack.c.l.b16 %v177
    %v450 = vunpack.c.l.b16 %v178
    %v451 = vunpack.c.l.b16 %v179
    %v452 = vunpack.c.l.b16 %v180
    %v453 = vunpack.c.l.b16 %v181
    %v454 = vunpack.c.l.b16 %v182
    %v455 = vunpack.c.l.b16 %v183
    %v456 = vunpack.c.l.b16 %v184
    %v457 = vunpack.c.l.b16 %v185
    %v458 = vunpack.c.l.b16 %v186
    %v459 = vunpack.c.l.b16 %v187
    %v460 = vunpack.c.l.b16 %v188
    %v461 = vunpack.c.l.b16 %v189
    %v462 = vunpack.c.l.b16 %v190
    %v463 = vunpack.c.l.b16 %v191
    %v464 = vunpack.c.l.b16 %v192
    %v465 = vunpack.c.l.b16 %v193
    %v466 = vunpack.c.l.b16 %v194
    %v467 = vunpack.c.l.b16 %v195
    %v468 = vunpack.c.l.b16 %v196
    %v469 = vunpack.c.l.b16 %v197
    %v470 = vunpack.c.l.b16 %v198
    %v471 = vunpack.c.l.b16 %v199
    %v472 = vunpack.c.l.b16 %v200
    %v473 = vunpack.c.l.b16 %v201
    %v474 = vunpack.c.l.b16 %v202
    %v475 = vunpack.c.l.b16 %v203
    %v476 = vunpack.c.l.b16 %v204
    %v477 = vunpack.c.l.b16 %v205
    %v478 = vunpack.c.l.b16 %v206
    %v479 = vunpack.c.l.b16 %v207
    %v480 = vunpack.c.l.b16 %v208
    %v481 = vpack.c.b16 %v354, %v353
    %v482 = vpack.c.b16 %v356, %v355
    %v483 = vpack.c.b16 %v358, %v357
    %v484 = vpack.c.b16 %v360, %v359
    %v485 = vpack.c.b16 %v362, %v361
    %v486 = vpack.c.b16 %v364, %v363
    %v487 = vpack.c.b16 %v366, %v365
    %v488 = vpack.c.b16 %v368, %v367
    %v489 = vpack.c.b16 %v370, %v369
    %v490 = vpack.c.b16 %v372, %v371
    %v491 = vpack.c.b16 %v374, %v373
    %v492 = vpack.c.b16 %v376, %v375
    %v493 = vpack.c.b16 %v378, %v377
    %v494 = vpack.c.b16 %v380, %v379
    %v495 = vpack.c.b16 %v382, %v381
    %v496 = vpack.c.b16 %v384, %v383
    %v497 = vpack.c.b16 %v386, %v385
    %v498 = vpack.c.b16 %v388, %v387
    %v499 = vpack.c.b16 %v390, %v389
    %v500 = vpack.c.b16 %v392, %v391
    %v501 = vpack.c.b16 %v394, %v393
    %v502 = vpack.c.b16 %v396, %v395
    %v503 = vpack.c.b16 %v398, %v397
    %v504 = vpack.c.b16 %v400, %v399
    %v505 = vpack.c.b16 %v402, %v401
    %v506 = vpack.c.b16 %v404, %v403
    %v507 = vpack.c.b16 %v406, %v405
    %v508 = vpack.c.b16 %v408, %v407
    %v509 = vpack.c.b16 %v410, %v409
    %v510 = vpack.c.b16 %v412, %v411
    %v511 = vpack.c.b16 %v414, %v413
    %v512 = vpack.c.b16 %v416, %v415
    %v513 = vpack.c.b16 %v418, %v417
    %v514 = vpack.c.b16 %v420, %v419
    %v515 = vpack.c.b16 %v422, %v421
    %v516 = vpack.c.b16 %v424, %v423
    %v517 = vpack.c.b16 %v426, %v425
    %v518 = vpack.c.b16 %v428, %v427
    %v519 = vpack.c.b16 %v430, %v429
    %v520 = vpack.c.b16 %v432, %v431
    %v521 = vpack.c.b16 %v434, %v433
    %v522 = vpack.c.b16 %v436, %v435
    %v523 = vpack.c.b16 %v438, %v437
    %v524 = vpack.c.b16 %v440, %v439
    %v525 = vpack.c.b16 %v442, %v441
    %v526 = vpack.c.b16 %v444, %v443
    %v527 = vpack.c.b16 %v446, %v445
    %v528 = vpack.c.b16 %v448, %v447
    %v529 = vpack.c.b16 %v450, %v449
    %v530 = vpack.c.b16 %v452, %v451
    %v531 = vpack.c.b16 %v454, %v453
    %v532 = vpack.c.b16 %v456, %v455
    %v533 = vpack.c.b16 %v458, %v457
    %v534 = vpack.c.b16 %v460, %v459
    %v535 = vpack.c.b16 %v462, %v461
    %v536 = vpack.c.b16 %v464, %v463
    %v537 = vpack.c.b16 %v466, %v465
    %v538 = vpack.c.b16 %v468, %v467
    %v539 = vpack.c.b16 %v470, %v469
    %v540 = vpack.c.b16 %v472, %v471
    %v541 = vpack.c.b16 %v474, %v473
    %v542 = vpack.c.b16 %v476, %v475
    %v543 = vpack.c.b16 %v478, %v477
    %v544 = vpack.c.b16 %v480, %v479
    %v625 = vunpack.c.l.b16 %v209
    %v626 = vunpack.c.l.b16 %v210
    %v627 = vunpack.c.l.b16 %v211
    %v628 = vunpack.c.l.b16 %v212
    %v629 = vunpack.c.l.b16 %v213
    %v630 = vunpack.c.l.b16 %v214
    %v631 = vunpack.c.l.b16 %v215
    %v632 = vunpack.c.l.b16 %v216
    %v633 = vunpack.c.l.b16 %v217
    %v634 = vunpack.c.l.b16 %v218
    %v635 = vunpack.c.l.b16 %v219
    %v636 = vunpack.c.l.b16 %v220
    %v637 = vunpack.c.l.b16 %v221
    %v638 = vunpack.c.l.b16 %v222
    %v639 = vunpack.c.l.b16 %v223
    %v640 = vunpack.c.l.b16 %v224
    %v641 = vpack.c.b16 %v626, %v625
    %v642 = vpack.c.b16 %v628, %v627
    %v643 = vpack.c.b16 %v630, %v629
    %v644 = vpack.c.b16 %v632, %v631
    %v645 = vpack.c.b16 %v634, %v633
    %v646 = vpack.c.b16 %v636, %v635
    %v647 = vpack.c.b16 %v638, %v637
    %v648 = vpack.c.b16 %v640, %v639
    %657 = vmatprep.subr.bf16.mxu0 0
    %658 = vmatpush1.bf16.msra.mxu0 %v641
    %659 = vmatprep.subr.bf16.mxu0 0
    %660 = vmatpush1.bf16.msra.mxu0 %v642
    %661 = vmatprep.subr.bf16.mxu0 0
    %662 = vmatpush1.bf16.msra.mxu0 %v643
    %663 = vmatprep.subr.bf16.mxu0 0
    %664 = vmatpush1.bf16.msra.mxu0 %v644
    %665 = vmatprep.subr.bf16.mxu0 0
    %666 = vmatpush1.bf16.msra.mxu0 %v645
    %667 = vmatprep.subr.bf16.mxu0 0
    %668 = vmatpush1.bf16.msra.mxu0 %v646
    %669 = vmatprep.subr.bf16.mxu0 0
    %670 = vmatpush1.bf16.msra.mxu0 %v647
    %671 = vmatprep.subr.bf16.mxu0 0
    %672 = vmatpush1.bf16.msra.mxu0 %v648
    %673 = vmatprep.subr.bf16.mxu0 0
    %674 = vmatpush1.bf16.msra.mxu0 0
    %675 = vmatprep.subr.bf16.mxu0 0
    %676 = vmatpush1.bf16.msra.mxu0 0
    %677 = vmatprep.subr.bf16.mxu0 0
    %678 = vmatpush1.bf16.msra.mxu0 0
    %679 = vmatprep.subr.bf16.mxu0 0
    %680 = vmatpush1.bf16.msra.mxu0 0
    %681 = vmatprep.subr.bf16.mxu0 0
    %682 = vmatpush1.bf16.msra.mxu0 0
    %683 = vmatprep.subr.bf16.mxu0 0
    %684 = vmatpush1.bf16.msra.mxu0 0
    %685 = vmatprep.subr.bf16.mxu0 0
    %686 = vmatpush1.bf16.msra.mxu0 0
    %687 = vmatprep.subr.bf16.mxu0 0
    %688 = vmatpush1.bf16.msra.mxu0 0
    %689 = vmatprep.mubr.bf16.mxu0 0
    %690 = vmatmul.mubr.bf16.gmra.mrb[0].mxu0 %v481
    %v691 = vpop.f32.mrb[0].mxu0
    %v692 = vadd.f32 0.0, %v691
    %v693 = vpop.f32.mrb[0].mxu0
    %v694 = vpop.f32.mrb[0].mxu0
    %v695 = vadd.f32 0.0, %v694
    %v696 = vpop.f32.mrb[0].mxu0
    %697 = vmatprep.mubr.bf16.mxu0 0
    %698 = vmatmul.mubr.bf16.gmra.mrb[0].mxu0 %v482
    %v699 = vpop.f32.mrb[0].mxu0
    %v700 = vadd.f32 0.0, %v699
    %v701 = vpop.f32.mrb[0].mxu0
    %v702 = vpop.f32.mrb[0].mxu0
    %v703 = vadd.f32 0.0, %v702
    %v704 = vpop.f32.mrb[0].mxu0
    %705 = vmatprep.mubr.bf16.mxu0 0
    %706 = vmatmul.mubr.bf16.gmra.mrb[0].mxu0 %v483
    %v707 = vpop.f32.mrb[0].mxu0
    %v708 = vadd.f32 0.0, %v707
    %v709 = vpop.f32.mrb[0].mxu0
    %v710 = vpop.f32.mrb[0].mxu0
    %v711 = vadd.f32 0.0, %v710
    %v712 = vpop.f32.mrb[0].mxu0
    %713 = vmatprep.mubr.bf16.mxu0 0
    %714 = vmatmul.mubr.bf16.gmra.mrb[0].mxu0 %v484
    %v715 = vpop.f32.mrb[0].mxu0
    %v716 = vadd.f32 0.0, %v715
    %v717 = vpop.f32.mrb[0].mxu0
    %v718 = vpop.f32.mrb[0].mxu0
    %v719 = vadd.f32 0.0, %v718
    %v720 = vpop.f32.mrb[0].mxu0
    %721 = vmatprep.mubr.bf16.mxu0 0
    %722 = vmatmul.mubr.bf16.gmra.mrb[0].mxu0 %v485
    %v723 = vpop.f32.mrb[0].mxu0
    %v724 = vadd.f32 0.0, %v723
    %v725 = vpop.f32.mrb[0].mxu0
    %v726 = vpop.f32.mrb[0].mxu0
    %v727 = vadd.f32 0.0, %v726
    %v728 = vpop.f32.mrb[0].mxu0
    %729 = vmatprep.mubr.bf16.mxu0 0
    %730 = vmatmul.mubr.bf16.gmra.mrb[0].mxu0 %v486
    %v731 = vpop.f32.mrb[0].mxu0
    %v732 = vadd.f32 0.0, %v731
    %v733 = vpop.f32.mrb[0].mxu0
    %v734 = vpop.f32.mrb[0].mxu0
    %v735 = vadd.f32 0.0, %v734
    %v736 = vpop.f32.mrb[0].mxu0
    %737 = vmatprep.mubr.bf16.mxu0 0
    %738 = vmatmul.mubr.bf16.gmra.mrb[0].mxu0 %v487
    %v739 = vpop.f32.mrb[0].mxu0
    %v740 = vadd.f32 0.0, %v739
    %v741 = vpop.f32.mrb[0].mxu0
    %v742 = vpop.f32.mrb[0].mxu0
    %v743 = vadd.f32 0.0, %v742
    %v744 = vpop.f32.mrb[0].mxu0
    %745 = vmatprep.mubr.bf16.mxu0 0
    %746 = vmatmul.mubr.bf16.gmra.mrb[0].mxu0 %v488
    %v747 = vpop.f32.mrb[0].mxu0
    %v748 = vadd.f32 0.0, %v747
    %v749 = vpop.f32.mrb[0].mxu0
    %v750 = vpop.f32.mrb[0].mxu0
    %v751 = vadd.f32 0.0, %v750
    %v752 = vpop.f32.mrb[0].mxu0
    %753 = vmatprep.mubr.bf16.mxu0 0
    %754 = vmatmul.mubr.bf16.gmra.mrb[0].mxu0 %v489
    %v755 = vpop.f32.mrb[0].mxu0
    %v756 = vadd.f32 0.0, %v755
    %v757 = vpop.f32.mrb[0].mxu0
    %v758 = vpop.f32.mrb[0].mxu0
    %v759 = vadd.f32 0.0, %v758
    %v760 = vpop.f32.mrb[0].mxu0
    %761 = vmatprep.mubr.bf16.mxu0 0
    %762 = vmatmul.mubr.bf16.gmra.mrb[0].mxu0 %v490
    %v763 = vpop.f32.mrb[0].mxu0
    %v764 = vadd.f32 0.0, %v763
    %v765 = vpop.f32.mrb[0].mxu0
    %v766 = vpop.f32.mrb[0].mxu0
    %v767 = vadd.f32 0.0, %v766
    %v768 = vpop.f32.mrb[0].mxu0
    %769 = vmatprep.mubr.bf16.mxu0 0
    %770 = vmatmul.mubr.bf16.gmra.mrb[0].mxu0 %v491
    %v771 = vpop.f32.mrb[0].mxu0
    %v772 = vadd.f32 0.0, %v771
    %v773 = vpop.f32.mrb[0].mxu0
    %v774 = vpop.f32.mrb[0].mxu0
    %v775 = vadd.f32 0.0, %v774
    %v776 = vpop.f32.mrb[0].mxu0
    %777 = vmatprep.mubr.bf16.mxu0 0
    %778 = vmatmul.mubr.bf16.gmra.mrb[0].mxu0 %v492
    %v779 = vpop.f32.mrb[0].mxu0
    %v780 = vadd.f32 0.0, %v779
    %v781 = vpop.f32.mrb[0].mxu0
    %v782 = vpop.f32.mrb[0].mxu0
    %v783 = vadd.f32 0.0, %v782
    %v784 = vpop.f32.mrb[0].mxu0
    %785 = vmatprep.mubr.bf16.mxu0 0
    %786 = vmatmul.mubr.bf16.gmra.mrb[0].mxu0 %v493
    %v787 = vpop.f32.mrb[0].mxu0
    %v788 = vadd.f32 0.0, %v787
    %v789 = vpop.f32.mrb[0].mxu0
    %v790 = vpop.f32.mrb[0].mxu0
    %v791 = vadd.f32 0.0, %v790
    %v792 = vpop.f32.mrb[0].mxu0
    %793 = vmatprep.mubr.bf16.mxu0 0
    %794 = vmatmul.mubr.bf16.gmra.mrb[0].mxu0 %v494
    %v795 = vpop.f32.mrb[0].mxu0
    %v796 = vadd.f32 0.0, %v795
    %v797 = vpop.f32.mrb[0].mxu0
    %v798 = vpop.f32.mrb[0].mxu0
    %v799 = vadd.f32 0.0, %v798
    %v800 = vpop.f32.mrb[0].mxu0
    %801 = vmatprep.mubr.bf16.mxu0 0
    %802 = vmatmul.mubr.bf16.gmra.mrb[0].mxu0 %v495
    %v803 = vpop.f32.mrb[0].mxu0
    %v804 = vadd.f32 0.0, %v803
    %v805 = vpop.f32.mrb[0].mxu0
    %v806 = vpop.f32.mrb[0].mxu0
    %v807 = vadd.f32 0.0, %v806
    %v808 = vpop.f32.mrb[0].mxu0
    %809 = vmatprep.mubr.bf16.mxu0 0
    %810 = vmatmul.mubr.bf16.gmra.mrb[0].mxu0 %v496
    %v811 = vpop.f32.mrb[0].mxu0
    %v812 = vadd.f32 0.0, %v811
    %v813 = vpop.f32.mrb[0].mxu0
    %v814 = vpop.f32.mrb[0].mxu0
    %v815 = vadd.f32 0.0, %v814
    %v816 = vpop.f32.mrb[0].mxu0
    %817 = vmatprep.mubr.bf16.mxu0 0
    %818 = vmatmul.mubr.bf16.gmra.mrb[0].mxu0 %v497
    %v819 = vpop.f32.mrb[0].mxu0
    %v820 = vadd.f32 0.0, %v819
    %v821 = vpop.f32.mrb[0].mxu0
    %v822 = vpop.f32.mrb[0].mxu0
    %v823 = vadd.f32 0.0, %v822
    %v824 = vpop.f32.mrb[0].mxu0
    %825 = vmatprep.mubr.bf16.mxu0 0
    %826 = vmatmul.mubr.bf16.gmra.mrb[0].mxu0 %v498
    %v827 = vpop.f32.mrb[0].mxu0
    %v828 = vadd.f32 0.0, %v827
    %v829 = vpop.f32.mrb[0].mxu0
    %v830 = vpop.f32.mrb[0].mxu0
    %v831 = vadd.f32 0.0, %v830
    %v832 = vpop.f32.mrb[0].mxu0
    %833 = vmatprep.mubr.bf16.mxu0 0
    %834 = vmatmul.mubr.bf16.gmra.mrb[0].mxu0 %v499
    %v835 = vpop.f32.mrb[0].mxu0
    %v836 = vadd.f32 0.0, %v835
    %v837 = vpop.f32.mrb[0].mxu0
    %v838 = vpop.f32.mrb[0].mxu0
    %v839 = vadd.f32 0.0, %v838
    %v840 = vpop.f32.mrb[0].mxu0
    %841 = vmatprep.mubr.bf16.mxu0 0
    %842 = vmatmul.mubr.bf16.gmra.mrb[0].mxu0 %v500
    %v843 = vpop.f32.mrb[0].mxu0
    %v844 = vadd.f32 0.0, %v843
    %v845 = vpop.f32.mrb[0].mxu0
    %v846 = vpop.f32.mrb[0].mxu0
    %v847 = vadd.f32 0.0, %v846
    %v848 = vpop.f32.mrb[0].mxu0
    %849 = vmatprep.mubr.bf16.mxu0 0
    %850 = vmatmul.mubr.bf16.gmra.mrb[0].mxu0 %v501
    %v851 = vpop.f32.mrb[0].mxu0
    %v852 = vadd.f32 0.0, %v851
    %v853 = vpop.f32.mrb[0].mxu0
    %v854 = vpop.f32.mrb[0].mxu0
    %v855 = vadd.f32 0.0, %v854
    %v856 = vpop.f32.mrb[0].mxu0
    %857 = vmatprep.mubr.bf16.mxu0 0
    %858 = vmatmul.mubr.bf16.gmra.mrb[0].mxu0 %v502
    %v859 = vpop.f32.mrb[0].mxu0
    %v860 = vadd.f32 0.0, %v859
    %v861 = vpop.f32.mrb[0].mxu0
    %v862 = vpop.f32.mrb[0].mxu0
    %v863 = vadd.f32 0.0, %v862
    %v864 = vpop.f32.mrb[0].mxu0
    %865 = vmatprep.mubr.bf16.mxu0 0
    %866 = vmatmul.mubr.bf16.gmra.mrb[0].mxu0 %v503
    %v867 = vpop.f32.mrb[0].mxu0
    %v868 = vadd.f32 0.0, %v867
    %v869 = vpop.f32.mrb[0].mxu0
    %v870 = vpop.f32.mrb[0].mxu0
    %v871 = vadd.f32 0.0, %v870
    %v872 = vpop.f32.mrb[0].mxu0
    %873 = vmatprep.mubr.bf16.mxu0 0
    %874 = vmatmul.mubr.bf16.gmra.mrb[0].mxu0 %v504
    %v875 = vpop.f32.mrb[0].mxu0
    %v876 = vadd.f32 0.0, %v875
    %v877 = vpop.f32.mrb[0].mxu0
    %v878 = vpop.f32.mrb[0].mxu0
    %v879 = vadd.f32 0.0, %v878
    %v880 = vpop.f32.mrb[0].mxu0
    %881 = vmatprep.mubr.bf16.mxu0 0
    %882 = vmatmul.mubr.bf16.gmra.mrb[0].mxu0 %v505
    %v883 = vpop.f32.mrb[0].mxu0
    %v884 = vadd.f32 0.0, %v883
    %v885 = vpop.f32.mrb[0].mxu0
    %v886 = vpop.f32.mrb[0].mxu0
    %v887 = vadd.f32 0.0, %v886
    %v888 = vpop.f32.mrb[0].mxu0
    %889 = vmatprep.mubr.bf16.mxu0 0
    %890 = vmatmul.mubr.bf16.gmra.mrb[0].mxu0 %v506
    %v891 = vpop.f32.mrb[0].mxu0
    %v892 = vadd.f32 0.0, %v891
    %v893 = vpop.f32.mrb[0].mxu0
    %v894 = vpop.f32.mrb[0].mxu0
    %v895 = vadd.f32 0.0, %v894
    %v896 = vpop.f32.mrb[0].mxu0
    %897 = vmatprep.mubr.bf16.mxu0 0
    %898 = vmatmul.mubr.bf16.gmra.mrb[0].mxu0 %v507
    %v899 = vpop.f32.mrb[0].mxu0
    %v900 = vadd.f32 0.0, %v899
    %v901 = vpop.f32.mrb[0].mxu0
    %v902 = vpop.f32.mrb[0].mxu0
    %v903 = vadd.f32 0.0, %v902
    %v904 = vpop.f32.mrb[0].mxu0
    %905 = vmatprep.mubr.bf16.mxu0 0
    %906 = vmatmul.mubr.bf16.gmra.mrb[0].mxu0 %v508
    %v907 = vpop.f32.mrb[0].mxu0
    %v908 = vadd.f32 0.0, %v907
    %v909 = vpop.f32.mrb[0].mxu0
    %v910 = vpop.f32.mrb[0].mxu0
    %v911 = vadd.f32 0.0, %v910
    %v912 = vpop.f32.mrb[0].mxu0
    %913 = vmatprep.mubr.bf16.mxu0 0
    %914 = vmatmul.mubr.bf16.gmra.mrb[0].mxu0 %v509
    %v915 = vpop.f32.mrb[0].mxu0
    %v916 = vadd.f32 0.0, %v915
    %v917 = vpop.f32.mrb[0].mxu0
    %v918 = vpop.f32.mrb[0].mxu0
    %v919 = vadd.f32 0.0, %v918
    %v920 = vpop.f32.mrb[0].mxu0
    %921 = vmatprep.mubr.bf16.mxu0 0
    %922 = vmatmul.mubr.bf16.gmra.mrb[0].mxu0 %v510
    %v923 = vpop.f32.mrb[0].mxu0
    %v924 = vadd.f32 0.0, %v923
    %v925 = vpop.f32.mrb[0].mxu0
    %v926 = vpop.f32.mrb[0].mxu0
    %v927 = vadd.f32 0.0, %v926
    %v928 = vpop.f32.mrb[0].mxu0
    %929 = vmatprep.mubr.bf16.mxu0 0
    %930 = vmatmul.mubr.bf16.gmra.mrb[0].mxu0 %v511
    %v931 = vpop.f32.mrb[0].mxu0
    %v932 = vadd.f32 0.0, %v931
    %v933 = vpop.f32.mrb[0].mxu0
    %v934 = vpop.f32.mrb[0].mxu0
    %v935 = vadd.f32 0.0, %v934
    %v936 = vpop.f32.mrb[0].mxu0
    %937 = vmatprep.mubr.bf16.mxu0 0
    %938 = vmatmul.mubr.bf16.gmra.mrb[0].mxu0 %v512
    %v939 = vpop.f32.mrb[0].mxu0
    %v940 = vadd.f32 0.0, %v939
    %v941 = vpop.f32.mrb[0].mxu0
    %v942 = vpop.f32.mrb[0].mxu0
    %v943 = vadd.f32 0.0, %v942
    %v944 = vpop.f32.mrb[0].mxu0
    %945 = vmatprep.mubr.bf16.mxu0 0
    %946 = vmatmul.mubr.bf16.gmra.mrb[0].mxu0 %v513
    %v947 = vpop.f32.mrb[0].mxu0
    %v948 = vadd.f32 0.0, %v947
    %v949 = vpop.f32.mrb[0].mxu0
    %v950 = vpop.f32.mrb[0].mxu0
    %v951 = vadd.f32 0.0, %v950
    %v952 = vpop.f32.mrb[0].mxu0
    %953 = vmatprep.mubr.bf16.mxu0 0
    %954 = vmatmul.mubr.bf16.gmra.mrb[0].mxu0 %v514
    %v955 = vpop.f32.mrb[0].mxu0
    %v956 = vadd.f32 0.0, %v955
    %v957 = vpop.f32.mrb[0].mxu0
    %v958 = vpop.f32.mrb[0].mxu0
    %v959 = vadd.f32 0.0, %v958
    %v960 = vpop.f32.mrb[0].mxu0
    %961 = vmatprep.mubr.bf16.mxu0 0
    %962 = vmatmul.mubr.bf16.gmra.mrb[0].mxu0 %v515
    %v963 = vpop.f32.mrb[0].mxu0
    %v964 = vadd.f32 0.0, %v963
    %v965 = vpop.f32.mrb[0].mxu0
    %v966 = vpop.f32.mrb[0].mxu0
    %v967 = vadd.f32 0.0, %v966
    %v968 = vpop.f32.mrb[0].mxu0
    %969 = vmatprep.mubr.bf16.mxu0 0
    %970 = vmatmul.mubr.bf16.gmra.mrb[0].mxu0 %v516
    %v971 = vpop.f32.mrb[0].mxu0
    %v972 = vadd.f32 0.0, %v971
    %v973 = vpop.f32.mrb[0].mxu0
    %v974 = vpop.f32.mrb[0].mxu0
    %v975 = vadd.f32 0.0, %v974
    %v976 = vpop.f32.mrb[0].mxu0
    %977 = vmatprep.mubr.bf16.mxu0 0
    %978 = vmatmul.mubr.bf16.gmra.mrb[0].mxu0 %v517
    %v979 = vpop.f32.mrb[0].mxu0
    %v980 = vadd.f32 0.0, %v979
    %v981 = vpop.f32.mrb[0].mxu0
    %v982 = vpop.f32.mrb[0].mxu0
    %v983 = vadd.f32 0.0, %v982
    %v984 = vpop.f32.mrb[0].mxu0
    %985 = vmatprep.mubr.bf16.mxu0 0
    %986 = vmatmul.mubr.bf16.gmra.mrb[0].mxu0 %v518
    %v987 = vpop.f32.mrb[0].mxu0
    %v988 = vadd.f32 0.0, %v987
    %v989 = vpop.f32.mrb[0].mxu0
    %v990 = vpop.f32.mrb[0].mxu0
    %v991 = vadd.f32 0.0, %v990
    %v992 = vpop.f32.mrb[0].mxu0
    %993 = vmatprep.mubr.bf16.mxu0 0
    %994 = vmatmul.mubr.bf16.gmra.mrb[0].mxu0 %v519
    %v995 = vpop.f32.mrb[0].mxu0
    %v996 = vadd.f32 0.0, %v995
    %v997 = vpop.f32.mrb[0].mxu0
    %v998 = vpop.f32.mrb[0].mxu0
    %v999 = vadd.f32 0.0, %v998
    %v1000 = vpop.f32.mrb[0].mxu0
    %1001 = vmatprep.mubr.bf16.mxu0 0
    %1002 = vmatmul.mubr.bf16.gmra.mrb[0].mxu0 %v520
    %v1003 = vpop.f32.mrb[0].mxu0
    %v1004 = vadd.f32 0.0, %v1003
    %v1005 = vpop.f32.mrb[0].mxu0
    %v1006 = vpop.f32.mrb[0].mxu0
    %v1007 = vadd.f32 0.0, %v1006
    %v1008 = vpop.f32.mrb[0].mxu0
    %1009 = vmatprep.mubr.bf16.mxu0 0
    %1010 = vmatmul.mubr.bf16.gmra.mrb[0].mxu0 %v521
    %v1011 = vpop.f32.mrb[0].mxu0
    %v1012 = vadd.f32 0.0, %v1011
    %v1013 = vpop.f32.mrb[0].mxu0
    %v1014 = vpop.f32.mrb[0].mxu0
    %v1015 = vadd.f32 0.0, %v1014
    %v1016 = vpop.f32.mrb[0].mxu0
    %1017 = vmatprep.mubr.bf16.mxu0 0
    %1018 = vmatmul.mubr.bf16.gmra.mrb[0].mxu0 %v522
    %v1019 = vpop.f32.mrb[0].mxu0
    %v1020 = vadd.f32 0.0, %v1019
    %v1021 = vpop.f32.mrb[0].mxu0
    %v1022 = vpop.f32.mrb[0].mxu0
    %v1023 = vadd.f32 0.0, %v1022
    %v1024 = vpop.f32.mrb[0].mxu0
    %1025 = vmatprep.mubr.bf16.mxu0 0
    %1026 = vmatmul.mubr.bf16.gmra.mrb[0].mxu0 %v523
    %v1027 = vpop.f32.mrb[0].mxu0
    %v1028 = vadd.f32 0.0, %v1027
    %v1029 = vpop.f32.mrb[0].mxu0
    %v1030 = vpop.f32.mrb[0].mxu0
    %v1031 = vadd.f32 0.0, %v1030
    %v1032 = vpop.f32.mrb[0].mxu0
    %1033 = vmatprep.mubr.bf16.mxu0 0
    %1034 = vmatmul.mubr.bf16.gmra.mrb[0].mxu0 %v524
    %v1035 = vpop.f32.mrb[0].mxu0
    %v1036 = vadd.f32 0.0, %v1035
    %v1037 = vpop.f32.mrb[0].mxu0
    %v1038 = vpop.f32.mrb[0].mxu0
    %v1039 = vadd.f32 0.0, %v1038
    %v1040 = vpop.f32.mrb[0].mxu0
    %1041 = vmatprep.mubr.bf16.mxu0 0
    %1042 = vmatmul.mubr.bf16.gmra.mrb[0].mxu0 %v525
    %v1043 = vpop.f32.mrb[0].mxu0
    %v1044 = vadd.f32 0.0, %v1043
    %v1045 = vpop.f32.mrb[0].mxu0
    %v1046 = vpop.f32.mrb[0].mxu0
    %v1047 = vadd.f32 0.0, %v1046
    %v1048 = vpop.f32.mrb[0].mxu0
    %1049 = vmatprep.mubr.bf16.mxu0 0
    %1050 = vmatmul.mubr.bf16.gmra.mrb[0].mxu0 %v526
    %v1051 = vpop.f32.mrb[0].mxu0
    %v1052 = vadd.f32 0.0, %v1051
    %v1053 = vpop.f32.mrb[0].mxu0
    %v1054 = vpop.f32.mrb[0].mxu0
    %v1055 = vadd.f32 0.0, %v1054
    %v1056 = vpop.f32.mrb[0].mxu0
    %1057 = vmatprep.mubr.bf16.mxu0 0
    %1058 = vmatmul.mubr.bf16.gmra.mrb[0].mxu0 %v527
    %v1059 = vpop.f32.mrb[0].mxu0
    %v1060 = vadd.f32 0.0, %v1059
    %v1061 = vpop.f32.mrb[0].mxu0
    %v1062 = vpop.f32.mrb[0].mxu0
    %v1063 = vadd.f32 0.0, %v1062
    %v1064 = vpop.f32.mrb[0].mxu0
    %1065 = vmatprep.mubr.bf16.mxu0 0
    %1066 = vmatmul.mubr.bf16.gmra.mrb[0].mxu0 %v528
    %v1067 = vpop.f32.mrb[0].mxu0
    %v1068 = vadd.f32 0.0, %v1067
    %v1069 = vpop.f32.mrb[0].mxu0
    %v1070 = vpop.f32.mrb[0].mxu0
    %v1071 = vadd.f32 0.0, %v1070
    %v1072 = vpop.f32.mrb[0].mxu0
    %1073 = vmatprep.mubr.bf16.mxu0 0
    %1074 = vmatmul.mubr.bf16.gmra.mrb[0].mxu0 %v529
    %v1075 = vpop.f32.mrb[0].mxu0
    %v1076 = vadd.f32 0.0, %v1075
    %v1077 = vpop.f32.mrb[0].mxu0
    %v1078 = vpop.f32.mrb[0].mxu0
    %v1079 = vadd.f32 0.0, %v1078
    %v1080 = vpop.f32.mrb[0].mxu0
    %1081 = vmatprep.mubr.bf16.mxu0 0
    %1082 = vmatmul.mubr.bf16.gmra.mrb[0].mxu0 %v530
    %v1083 = vpop.f32.mrb[0].mxu0
    %v1084 = vadd.f32 0.0, %v1083
    %v1085 = vpop.f32.mrb[0].mxu0
    %v1086 = vpop.f32.mrb[0].mxu0
    %v1087 = vadd.f32 0.0, %v1086
    %v1088 = vpop.f32.mrb[0].mxu0
    %1089 = vmatprep.mubr.bf16.mxu0 0
    %1090 = vmatmul.mubr.bf16.gmra.mrb[0].mxu0 %v531
    %v1091 = vpop.f32.mrb[0].mxu0
    %v1092 = vadd.f32 0.0, %v1091
    %v1093 = vpop.f32.mrb[0].mxu0
    %v1094 = vpop.f32.mrb[0].mxu0
    %v1095 = vadd.f32 0.0, %v1094
    %v1096 = vpop.f32.mrb[0].mxu0
    %1097 = vmatprep.mubr.bf16.mxu0 0
    %1098 = vmatmul.mubr.bf16.gmra.mrb[0].mxu0 %v532
    %v1099 = vpop.f32.mrb[0].mxu0
    %v1100 = vadd.f32 0.0, %v1099
    %v1101 = vpop.f32.mrb[0].mxu0
    %v1102 = vpop.f32.mrb[0].mxu0
    %v1103 = vadd.f32 0.0, %v1102
    %v1104 = vpop.f32.mrb[0].mxu0
    %1105 = vmatprep.mubr.bf16.mxu0 0
    %1106 = vmatmul.mubr.bf16.gmra.mrb[0].mxu0 %v533
    %v1107 = vpop.f32.mrb[0].mxu0
    %v1108 = vadd.f32 0.0, %v1107
    %v1109 = vpop.f32.mrb[0].mxu0
    %v1110 = vpop.f32.mrb[0].mxu0
    %v1111 = vadd.f32 0.0, %v1110
    %v1112 = vpop.f32.mrb[0].mxu0
    %1113 = vmatprep.mubr.bf16.mxu0 0
    %1114 = vmatmul.mubr.bf16.gmra.mrb[0].mxu0 %v534
    %v1115 = vpop.f32.mrb[0].mxu0
    %v1116 = vadd.f32 0.0, %v1115
    %v1117 = vpop.f32.mrb[0].mxu0
    %v1118 = vpop.f32.mrb[0].mxu0
    %v1119 = vadd.f32 0.0, %v1118
    %v1120 = vpop.f32.mrb[0].mxu0
    %1121 = vmatprep.mubr.bf16.mxu0 0
    %1122 = vmatmul.mubr.bf16.gmra.mrb[0].mxu0 %v535
    %v1123 = vpop.f32.mrb[0].mxu0
    %v1124 = vadd.f32 0.0, %v1123
    %v1125 = vpop.f32.mrb[0].mxu0
    %v1126 = vpop.f32.mrb[0].mxu0
    %v1127 = vadd.f32 0.0, %v1126
    %v1128 = vpop.f32.mrb[0].mxu0
    %1129 = vmatprep.mubr.bf16.mxu0 0
    %1130 = vmatmul.mubr.bf16.gmra.mrb[0].mxu0 %v536
    %v1131 = vpop.f32.mrb[0].mxu0
    %v1132 = vadd.f32 0.0, %v1131
    %v1133 = vpop.f32.mrb[0].mxu0
    %v1134 = vpop.f32.mrb[0].mxu0
    %v1135 = vadd.f32 0.0, %v1134
    %v1136 = vpop.f32.mrb[0].mxu0
    %1137 = vmatprep.mubr.bf16.mxu0 0
    %1138 = vmatmul.mubr.bf16.gmra.mrb[0].mxu0 %v537
    %v1139 = vpop.f32.mrb[0].mxu0
    %v1140 = vadd.f32 0.0, %v1139
    %v1141 = vpop.f32.mrb[0].mxu0
    %v1142 = vpop.f32.mrb[0].mxu0
    %v1143 = vadd.f32 0.0, %v1142
    %v1144 = vpop.f32.mrb[0].mxu0
    %1145 = vmatprep.mubr.bf16.mxu0 0
    %1146 = vmatmul.mubr.bf16.gmra.mrb[0].mxu0 %v538
    %v1147 = vpop.f32.mrb[0].mxu0
    %v1148 = vadd.f32 0.0, %v1147
    %v1149 = vpop.f32.mrb[0].mxu0
    %v1150 = vpop.f32.mrb[0].mxu0
    %v1151 = vadd.f32 0.0, %v1150
    %v1152 = vpop.f32.mrb[0].mxu0
    %1153 = vmatprep.mubr.bf16.mxu0 0
    %1154 = vmatmul.mubr.bf16.gmra.mrb[0].mxu0 %v539
    %v1155 = vpop.f32.mrb[0].mxu0
    %v1156 = vadd.f32 0.0, %v1155
    %v1157 = vpop.f32.mrb[0].mxu0
    %v1158 = vpop.f32.mrb[0].mxu0
    %v1159 = vadd.f32 0.0, %v1158
    %v1160 = vpop.f32.mrb[0].mxu0
    %1161 = vmatprep.mubr.bf16.mxu0 0
    %1162 = vmatmul.mubr.bf16.gmra.mrb[0].mxu0 %v540
    %v1163 = vpop.f32.mrb[0].mxu0
    %v1164 = vadd.f32 0.0, %v1163
    %v1165 = vpop.f32.mrb[0].mxu0
    %v1166 = vpop.f32.mrb[0].mxu0
    %v1167 = vadd.f32 0.0, %v1166
    %v1168 = vpop.f32.mrb[0].mxu0
    %1169 = vmatprep.mubr.bf16.mxu0 0
    %1170 = vmatmul.mubr.bf16.gmra.mrb[0].mxu0 %v541
    %v1171 = vpop.f32.mrb[0].mxu0
    %v1172 = vadd.f32 0.0, %v1171
    %v1173 = vpop.f32.mrb[0].mxu0
    %v1174 = vpop.f32.mrb[0].mxu0
    %v1175 = vadd.f32 0.0, %v1174
    %v1176 = vpop.f32.mrb[0].mxu0
    %1177 = vmatprep.mubr.bf16.mxu0 0
    %1178 = vmatmul.mubr.bf16.gmra.mrb[0].mxu0 %v542
    %v1179 = vpop.f32.mrb[0].mxu0
    %v1180 = vadd.f32 0.0, %v1179
    %v1181 = vpop.f32.mrb[0].mxu0
    %v1182 = vpop.f32.mrb[0].mxu0
    %v1183 = vadd.f32 0.0, %v1182
    %v1184 = vpop.f32.mrb[0].mxu0
    %1185 = vmatprep.mubr.bf16.mxu0 0
    %1186 = vmatmul.mubr.bf16.gmra.mrb[0].mxu0 %v543
    %v1187 = vpop.f32.mrb[0].mxu0
    %v1188 = vadd.f32 0.0, %v1187
    %v1189 = vpop.f32.mrb[0].mxu0
    %v1190 = vpop.f32.mrb[0].mxu0
    %v1191 = vadd.f32 0.0, %v1190
    %v1192 = vpop.f32.mrb[0].mxu0
    %1193 = vmatprep.mubr.bf16.mxu0 0
    %1194 = vmatmul.mubr.bf16.gmra.mrb[0].mxu0 %v544
    %v1195 = vpop.f32.mrb[0].mxu0
    %v1196 = vadd.f32 0.0, %v1195
    %v1197 = vpop.f32.mrb[0].mxu0
    %v1198 = vpop.f32.mrb[0].mxu0
    %v1199 = vadd.f32 0.0, %v1198
    %v1200 = vpop.f32.mrb[0].mxu0
    %1201 = vdwg.mxu0
    %v1202 = vlaneseq
    %v1203 = vshrl.u32 %v1202, 7
    %v1204 = vadd.s32 %v1203, 8
    %v1205 = vadd.s32 %v1203, 16
    %v1206 = vadd.s32 %v1203, 24
    %v1207 = vadd.s32 %v1203, 32
    %v1208 = vadd.s32 %v1203, 40
    %v1209 = vadd.s32 %v1203, 48
    %v1210 = vadd.s32 %v1203, 56
    %v1211 = vadd.s32 %v1203, 64
    %v1212 = vadd.s32 %v1203, 72
    %v1213 = vadd.s32 %v1203, 80
    %v1214 = vadd.s32 %v1203, 88
    %v1215 = vadd.s32 %v1203, 96
    %v1216 = vadd.s32 %v1203, 104
    %v1217 = vadd.s32 %v1203, 112
    %v1218 = vadd.s32 %v1203, 120
    %v1219 = vadd.s32 %v1203, 128
    %v1220 = vadd.s32 %v1203, 136
    %v1221 = vadd.s32 %v1203, 144
    %v1222 = vadd.s32 %v1203, 152
    %v1223 = vadd.s32 %v1203, 160
    %v1224 = vadd.s32 %v1203, 168
    %v1225 = vadd.s32 %v1203, 176
    %v1226 = vadd.s32 %v1203, 184
    %v1227 = vadd.s32 %v1203, 192
    %v1228 = vadd.s32 %v1203, 200
    %v1229 = vadd.s32 %v1203, 208
    %v1230 = vadd.s32 %v1203, 216
    %v1231 = vadd.s32 %v1203, 224
    %v1232 = vadd.s32 %v1203, 232
    %v1233 = vadd.s32 %v1203, 240
    %v1234 = vadd.s32 %v1203, 248
    %v1235 = vadd.s32 %v1203, 256
    %v1236 = vadd.s32 %v1203, 264
    %v1237 = vadd.s32 %v1203, 272
    %v1238 = vadd.s32 %v1203, 280
    %v1239 = vadd.s32 %v1203, 288
    %v1240 = vadd.s32 %v1203, 296
    %v1241 = vadd.s32 %v1203, 304
    %v1242 = vadd.s32 %v1203, 312
    %v1243 = vadd.s32 %v1203, 320
    %v1244 = vadd.s32 %v1203, 328
    %v1245 = vadd.s32 %v1203, 336
    %v1246 = vadd.s32 %v1203, 344
    %v1247 = vadd.s32 %v1203, 352
    %v1248 = vadd.s32 %v1203, 360
    %v1249 = vadd.s32 %v1203, 368
    %v1250 = vadd.s32 %v1203, 376
    %v1251 = vadd.s32 %v1203, 384
    %v1252 = vadd.s32 %v1203, 392
    %v1253 = vadd.s32 %v1203, 400
    %v1254 = vadd.s32 %v1203, 408
    %v1255 = vadd.s32 %v1203, 416
    %v1256 = vadd.s32 %v1203, 424
    %v1257 = vadd.s32 %v1203, 432
    %v1258 = vadd.s32 %v1203, 440
    %v1259 = vadd.s32 %v1203, 448
    %v1260 = vadd.s32 %v1203, 456
    %v1261 = vadd.s32 %v1203, 464
    %v1262 = vadd.s32 %v1203, 472
    %v1263 = vadd.s32 %v1203, 480
    %v1264 = vadd.s32 %v1203, 488
    %v1265 = vadd.s32 %v1203, 496
    %v1266 = vadd.s32 %v1203, 504
    %v1267 = vadd.s32 %v1203, 512
    %v1268 = vadd.s32 %v1203, 520
    %v1269 = vadd.s32 %v1203, 528
    %v1270 = vadd.s32 %v1203, 536
    %v1271 = vadd.s32 %v1203, 544
    %v1272 = vadd.s32 %v1203, 552
    %v1273 = vadd.s32 %v1203, 560
    %v1274 = vadd.s32 %v1203, 568
    %v1275 = vadd.s32 %v1203, 576
    %v1276 = vadd.s32 %v1203, 584
    %v1277 = vadd.s32 %v1203, 592
    %v1278 = vadd.s32 %v1203, 600
    %v1279 = vadd.s32 %v1203, 608
    %v1280 = vadd.s32 %v1203, 616
    %v1281 = vadd.s32 %v1203, 624
    %v1282 = vadd.s32 %v1203, 632
    %v1283 = vadd.s32 %v1203, 640
    %v1284 = vadd.s32 %v1203, 648
    %v1285 = vadd.s32 %v1203, 656
    %v1286 = vadd.s32 %v1203, 664
    %v1287 = vadd.s32 %v1203, 672
    %v1288 = vadd.s32 %v1203, 680
    %v1289 = vadd.s32 %v1203, 688
    %v1290 = vadd.s32 %v1203, 696
    %v1291 = vadd.s32 %v1203, 704
    %v1292 = vadd.s32 %v1203, 712
    %v1293 = vadd.s32 %v1203, 720
    %v1294 = vadd.s32 %v1203, 728
    %v1295 = vadd.s32 %v1203, 736
    %v1296 = vadd.s32 %v1203, 744
    %v1297 = vadd.s32 %v1203, 752
    %v1298 = vadd.s32 %v1203, 760
    %v1299 = vadd.s32 %v1203, 768
    %v1300 = vadd.s32 %v1203, 776
    %v1301 = vadd.s32 %v1203, 784
    %v1302 = vadd.s32 %v1203, 792
    %v1303 = vadd.s32 %v1203, 800
    %v1304 = vadd.s32 %v1203, 808
    %v1305 = vadd.s32 %v1203, 816
    %v1306 = vadd.s32 %v1203, 824
    %v1307 = vadd.s32 %v1203, 832
    %v1308 = vadd.s32 %v1203, 840
    %v1309 = vadd.s32 %v1203, 848
    %v1310 = vadd.s32 %v1203, 856
    %v1311 = vadd.s32 %v1203, 864
    %v1312 = vadd.s32 %v1203, 872
    %v1313 = vadd.s32 %v1203, 880
    %v1314 = vadd.s32 %v1203, 888
    %v1315 = vadd.s32 %v1203, 896
    %v1316 = vadd.s32 %v1203, 904
    %v1317 = vadd.s32 %v1203, 912
    %v1318 = vadd.s32 %v1203, 920
    %v1319 = vadd.s32 %v1203, 928
    %v1320 = vadd.s32 %v1203, 936
    %v1321 = vadd.s32 %v1203, 944
    %v1322 = vadd.s32 %v1203, 952
    %v1323 = vadd.s32 %v1203, 960
    %v1324 = vadd.s32 %v1203, 968
    %v1325 = vadd.s32 %v1203, 976
    %v1326 = vadd.s32 %v1203, 984
    %v1327 = vadd.s32 %v1203, 992
    %v1328 = vadd.s32 %v1203, 1000
    %v1329 = vadd.s32 %v1203, 1008
    %v1330 = vadd.s32 %v1203, 1016
    %vm1331 = vcmp.ge.s32.totalorder %v1203, 0
    %vm1332 = vcmp.ge.s32.totalorder %v1204, 0
    %vm1333 = vcmp.ge.s32.totalorder %v1205, 0
    %vm1334 = vcmp.ge.s32.totalorder %v1206, 0
    %vm1335 = vcmp.ge.s32.totalorder %v1207, 0
    %vm1336 = vcmp.ge.s32.totalorder %v1208, 0
    %vm1337 = vcmp.ge.s32.totalorder %v1209, 0
    %vm1338 = vcmp.ge.s32.totalorder %v1210, 0
    %vm1339 = vcmp.ge.s32.totalorder %v1211, 0
    %vm1340 = vcmp.ge.s32.totalorder %v1212, 0
    %vm1341 = vcmp.ge.s32.totalorder %v1213, 0
    %vm1342 = vcmp.ge.s32.totalorder %v1214, 0
    %vm1343 = vcmp.ge.s32.totalorder %v1215, 0
    %vm1344 = vcmp.ge.s32.totalorder %v1216, 0
    %vm1345 = vcmp.ge.s32.totalorder %v1217, 0
    %vm1346 = vcmp.ge.s32.totalorder %v1218, 0
    %vm1347 = vcmp.ge.s32.totalorder %v1219, 0
    %vm1348 = vcmp.ge.s32.totalorder %v1220, 0
    %vm1349 = vcmp.ge.s32.totalorder %v1221, 0
    %vm1350 = vcmp.ge.s32.totalorder %v1222, 0
    %vm1351 = vcmp.ge.s32.totalorder %v1223, 0
    %vm1352 = vcmp.ge.s32.totalorder %v1224, 0
    %vm1353 = vcmp.ge.s32.totalorder %v1225, 0
    %vm1354 = vcmp.ge.s32.totalorder %v1226, 0
    %vm1355 = vcmp.ge.s32.totalorder %v1227, 0
    %vm1356 = vcmp.ge.s32.totalorder %v1228, 0
    %vm1357 = vcmp.ge.s32.totalorder %v1229, 0
    %vm1358 = vcmp.ge.s32.totalorder %v1230, 0
    %vm1359 = vcmp.ge.s32.totalorder %v1231, 0
    %vm1360 = vcmp.ge.s32.totalorder %v1232, 0
    %vm1361 = vcmp.ge.s32.totalorder %v1233, 0
    %vm1362 = vcmp.ge.s32.totalorder %v1234, 0
    %vm1363 = vcmp.ge.s32.totalorder %v1235, 0
    %vm1364 = vcmp.ge.s32.totalorder %v1236, 0
    %vm1365 = vcmp.ge.s32.totalorder %v1237, 0
    %vm1366 = vcmp.ge.s32.totalorder %v1238, 0
    %vm1367 = vcmp.ge.s32.totalorder %v1239, 0
    %vm1368 = vcmp.ge.s32.totalorder %v1240, 0
    %vm1369 = vcmp.ge.s32.totalorder %v1241, 0
    %vm1370 = vcmp.ge.s32.totalorder %v1242, 0
    %vm1371 = vcmp.ge.s32.totalorder %v1243, 0
    %vm1372 = vcmp.ge.s32.totalorder %v1244, 0
    %vm1373 = vcmp.ge.s32.totalorder %v1245, 0
    %vm1374 = vcmp.ge.s32.totalorder %v1246, 0
    %vm1375 = vcmp.ge.s32.totalorder %v1247, 0
    %vm1376 = vcmp.ge.s32.totalorder %v1248, 0
    %vm1377 = vcmp.ge.s32.totalorder %v1249, 0
    %vm1378 = vcmp.ge.s32.totalorder %v1250, 0
    %vm1379 = vcmp.ge.s32.totalorder %v1251, 0
    %vm1380 = vcmp.ge.s32.totalorder %v1252, 0
    %vm1381 = vcmp.ge.s32.totalorder %v1253, 0
    %vm1382 = vcmp.ge.s32.totalorder %v1254, 0
    %vm1383 = vcmp.ge.s32.totalorder %v1255, 0
    %vm1384 = vcmp.ge.s32.totalorder %v1256, 0
    %vm1385 = vcmp.ge.s32.totalorder %v1257, 0
    %vm1386 = vcmp.ge.s32.totalorder %v1258, 0
    %vm1387 = vcmp.ge.s32.totalorder %v1259, 0
    %vm1388 = vcmp.ge.s32.totalorder %v1260, 0
    %vm1389 = vcmp.ge.s32.totalorder %v1261, 0
    %vm1390 = vcmp.ge.s32.totalorder %v1262, 0
    %vm1391 = vcmp.ge.s32.totalorder %v1263, 0
    %vm1392 = vcmp.ge.s32.totalorder %v1264, 0
    %vm1393 = vcmp.ge.s32.totalorder %v1265, 0
    %vm1394 = vcmp.ge.s32.totalorder %v1266, 0
    %vm1395 = vcmp.ge.s32.totalorder %v1267, 0
    %vm1396 = vcmp.ge.s32.totalorder %v1268, 0
    %vm1397 = vcmp.ge.s32.totalorder %v1269, 0
    %vm1398 = vcmp.ge.s32.totalorder %v1270, 0
    %vm1399 = vcmp.ge.s32.totalorder %v1271, 0
    %vm1400 = vcmp.ge.s32.totalorder %v1272, 0
    %vm1401 = vcmp.ge.s32.totalorder %v1273, 0
    %vm1402 = vcmp.ge.s32.totalorder %v1274, 0
    %vm1403 = vcmp.ge.s32.totalorder %v1275, 0
    %vm1404 = vcmp.ge.s32.totalorder %v1276, 0
    %vm1405 = vcmp.ge.s32.totalorder %v1277, 0
    %vm1406 = vcmp.ge.s32.totalorder %v1278, 0
    %vm1407 = vcmp.ge.s32.totalorder %v1279, 0
    %vm1408 = vcmp.ge.s32.totalorder %v1280, 0
    %vm1409 = vcmp.ge.s32.totalorder %v1281, 0
    %vm1410 = vcmp.ge.s32.totalorder %v1282, 0
    %vm1411 = vcmp.ge.s32.totalorder %v1283, 0
    %vm1412 = vcmp.ge.s32.totalorder %v1284, 0
    %vm1413 = vcmp.ge.s32.totalorder %v1285, 0
    %vm1414 = vcmp.ge.s32.totalorder %v1286, 0
    %vm1415 = vcmp.ge.s32.totalorder %v1287, 0
    %vm1416 = vcmp.ge.s32.totalorder %v1288, 0
    %vm1417 = vcmp.ge.s32.totalorder %v1289, 0
    %vm1418 = vcmp.ge.s32.totalorder %v1290, 0
    %vm1419 = vcmp.ge.s32.totalorder %v1291, 0
    %vm1420 = vcmp.ge.s32.totalorder %v1292, 0
    %vm1421 = vcmp.ge.s32.totalorder %v1293, 0
    %vm1422 = vcmp.ge.s32.totalorder %v1294, 0
    %vm1423 = vcmp.ge.s32.totalorder %v1295, 0
    %vm1424 = vcmp.ge.s32.totalorder %v1296, 0
    %vm1425 = vcmp.ge.s32.totalorder %v1297, 0
    %vm1426 = vcmp.ge.s32.totalorder %v1298, 0
    %vm1427 = vcmp.ge.s32.totalorder %v1299, 0
    %vm1428 = vcmp.ge.s32.totalorder %v1300, 0
    %vm1429 = vcmp.ge.s32.totalorder %v1301, 0
    %vm1430 = vcmp.ge.s32.totalorder %v1302, 0
    %vm1431 = vcmp.ge.s32.totalorder %v1303, 0
    %vm1432 = vcmp.ge.s32.totalorder %v1304, 0
    %vm1433 = vcmp.ge.s32.totalorder %v1305, 0
    %vm1434 = vcmp.ge.s32.totalorder %v1306, 0
    %vm1435 = vcmp.ge.s32.totalorder %v1307, 0
    %vm1436 = vcmp.ge.s32.totalorder %v1308, 0
    %vm1437 = vcmp.ge.s32.totalorder %v1309, 0
    %vm1438 = vcmp.ge.s32.totalorder %v1310, 0
    %vm1439 = vcmp.ge.s32.totalorder %v1311, 0
    %vm1440 = vcmp.ge.s32.totalorder %v1312, 0
    %vm1441 = vcmp.ge.s32.totalorder %v1313, 0
    %vm1442 = vcmp.ge.s32.totalorder %v1314, 0
    %vm1443 = vcmp.ge.s32.totalorder %v1315, 0
    %vm1444 = vcmp.ge.s32.totalorder %v1316, 0
    %vm1445 = vcmp.ge.s32.totalorder %v1317, 0
    %vm1446 = vcmp.ge.s32.totalorder %v1318, 0
    %vm1447 = vcmp.ge.s32.totalorder %v1319, 0
    %vm1448 = vcmp.ge.s32.totalorder %v1320, 0
    %vm1449 = vcmp.ge.s32.totalorder %v1321, 0
    %vm1450 = vcmp.ge.s32.totalorder %v1322, 0
    %vm1451 = vcmp.ge.s32.totalorder %v1323, 0
    %vm1452 = vcmp.ge.s32.totalorder %v1324, 0
    %vm1453 = vcmp.ge.s32.totalorder %v1325, 0
    %vm1454 = vcmp.ge.s32.totalorder %v1326, 0
    %vm1455 = vcmp.ge.s32.totalorder %v1327, 0
    %vm1456 = vcmp.ge.s32.totalorder %v1328, 0
    %vm1457 = vcmp.ge.s32.totalorder %v1329, 0
    %vm1458 = vcmp.ge.s32.totalorder %v1330, 0
    %vm1459 = vcmp.lt.s32.totalorder %v1203, 496
    %vm1460 = vcmp.lt.s32.totalorder %v1204, 496
    %vm1461 = vcmp.lt.s32.totalorder %v1205, 496
    %vm1462 = vcmp.lt.s32.totalorder %v1206, 496
    %vm1463 = vcmp.lt.s32.totalorder %v1207, 496
    %vm1464 = vcmp.lt.s32.totalorder %v1208, 496
    %vm1465 = vcmp.lt.s32.totalorder %v1209, 496
    %vm1466 = vcmp.lt.s32.totalorder %v1210, 496
    %vm1467 = vcmp.lt.s32.totalorder %v1211, 496
    %vm1468 = vcmp.lt.s32.totalorder %v1212, 496
    %vm1469 = vcmp.lt.s32.totalorder %v1213, 496
    %vm1470 = vcmp.lt.s32.totalorder %v1214, 496
    %vm1471 = vcmp.lt.s32.totalorder %v1215, 496
    %vm1472 = vcmp.lt.s32.totalorder %v1216, 496
    %vm1473 = vcmp.lt.s32.totalorder %v1217, 496
    %vm1474 = vcmp.lt.s32.totalorder %v1218, 496
    %vm1475 = vcmp.lt.s32.totalorder %v1219, 496
    %vm1476 = vcmp.lt.s32.totalorder %v1220, 496
    %vm1477 = vcmp.lt.s32.totalorder %v1221, 496
    %vm1478 = vcmp.lt.s32.totalorder %v1222, 496
    %vm1479 = vcmp.lt.s32.totalorder %v1223, 496
    %vm1480 = vcmp.lt.s32.totalorder %v1224, 496
    %vm1481 = vcmp.lt.s32.totalorder %v1225, 496
    %vm1482 = vcmp.lt.s32.totalorder %v1226, 496
    %vm1483 = vcmp.lt.s32.totalorder %v1227, 496
    %vm1484 = vcmp.lt.s32.totalorder %v1228, 496
    %vm1485 = vcmp.lt.s32.totalorder %v1229, 496
    %vm1486 = vcmp.lt.s32.totalorder %v1230, 496
    %vm1487 = vcmp.lt.s32.totalorder %v1231, 496
    %vm1488 = vcmp.lt.s32.totalorder %v1232, 496
    %vm1489 = vcmp.lt.s32.totalorder %v1233, 496
    %vm1490 = vcmp.lt.s32.totalorder %v1234, 496
    %vm1491 = vcmp.lt.s32.totalorder %v1235, 496
    %vm1492 = vcmp.lt.s32.totalorder %v1236, 496
    %vm1493 = vcmp.lt.s32.totalorder %v1237, 496
    %vm1494 = vcmp.lt.s32.totalorder %v1238, 496
    %vm1495 = vcmp.lt.s32.totalorder %v1239, 496
    %vm1496 = vcmp.lt.s32.totalorder %v1240, 496
    %vm1497 = vcmp.lt.s32.totalorder %v1241, 496
    %vm1498 = vcmp.lt.s32.totalorder %v1242, 496
    %vm1499 = vcmp.lt.s32.totalorder %v1243, 496
    %vm1500 = vcmp.lt.s32.totalorder %v1244, 496
    %vm1501 = vcmp.lt.s32.totalorder %v1245, 496
    %vm1502 = vcmp.lt.s32.totalorder %v1246, 496
    %vm1503 = vcmp.lt.s32.totalorder %v1247, 496
    %vm1504 = vcmp.lt.s32.totalorder %v1248, 496
    %vm1505 = vcmp.lt.s32.totalorder %v1249, 496
    %vm1506 = vcmp.lt.s32.totalorder %v1250, 496
    %vm1507 = vcmp.lt.s32.totalorder %v1251, 496
    %vm1508 = vcmp.lt.s32.totalorder %v1252, 496
    %vm1509 = vcmp.lt.s32.totalorder %v1253, 496
    %vm1510 = vcmp.lt.s32.totalorder %v1254, 496
    %vm1511 = vcmp.lt.s32.totalorder %v1255, 496
    %vm1512 = vcmp.lt.s32.totalorder %v1256, 496
    %vm1513 = vcmp.lt.s32.totalorder %v1257, 496
    %vm1514 = vcmp.lt.s32.totalorder %v1258, 496
    %vm1515 = vcmp.lt.s32.totalorder %v1259, 496
    %vm1516 = vcmp.lt.s32.totalorder %v1260, 496
    %vm1517 = vcmp.lt.s32.totalorder %v1261, 496
    %vm1518 = vcmp.lt.s32.totalorder %v1262, 496
    %vm1519 = vcmp.lt.s32.totalorder %v1263, 496
    %vm1520 = vcmp.lt.s32.totalorder %v1264, 496
    %vm1521 = vcmp.lt.s32.totalorder %v1265, 496
    %vm1522 = vcmp.lt.s32.totalorder %v1266, 496
    %vm1523 = vcmp.lt.s32.totalorder %v1267, 496
    %vm1524 = vcmp.lt.s32.totalorder %v1268, 496
    %vm1525 = vcmp.lt.s32.totalorder %v1269, 496
    %vm1526 = vcmp.lt.s32.totalorder %v1270, 496
    %vm1527 = vcmp.lt.s32.totalorder %v1271, 496
    %vm1528 = vcmp.lt.s32.totalorder %v1272, 496
    %vm1529 = vcmp.lt.s32.totalorder %v1273, 496
    %vm1530 = vcmp.lt.s32.totalorder %v1274, 496
    %vm1531 = vcmp.lt.s32.totalorder %v1275, 496
    %vm1532 = vcmp.lt.s32.totalorder %v1276, 496
    %vm1533 = vcmp.lt.s32.totalorder %v1277, 496
    %vm1534 = vcmp.lt.s32.totalorder %v1278, 496
    %vm1535 = vcmp.lt.s32.totalorder %v1279, 496
    %vm1536 = vcmp.lt.s32.totalorder %v1280, 496
    %vm1537 = vcmp.lt.s32.totalorder %v1281, 496
    %vm1538 = vcmp.lt.s32.totalorder %v1282, 496
    %vm1539 = vcmp.lt.s32.totalorder %v1283, 496
    %vm1540 = vcmp.lt.s32.totalorder %v1284, 496
    %vm1541 = vcmp.lt.s32.totalorder %v1285, 496
    %vm1542 = vcmp.lt.s32.totalorder %v1286, 496
    %vm1543 = vcmp.lt.s32.totalorder %v1287, 496
    %vm1544 = vcmp.lt.s32.totalorder %v1288, 496
    %vm1545 = vcmp.lt.s32.totalorder %v1289, 496
    %vm1546 = vcmp.lt.s32.totalorder %v1290, 496
    %vm1547 = vcmp.lt.s32.totalorder %v1291, 496
    %vm1548 = vcmp.lt.s32.totalorder %v1292, 496
    %vm1549 = vcmp.lt.s32.totalorder %v1293, 496
    %vm1550 = vcmp.lt.s32.totalorder %v1294, 496
    %vm1551 = vcmp.lt.s32.totalorder %v1295, 496
    %vm1552 = vcmp.lt.s32.totalorder %v1296, 496
    %vm1553 = vcmp.lt.s32.totalorder %v1297, 496
    %vm1554 = vcmp.lt.s32.totalorder %v1298, 496
    %vm1555 = vcmp.lt.s32.totalorder %v1299, 496
    %vm1556 = vcmp.lt.s32.totalorder %v1300, 496
    %vm1557 = vcmp.lt.s32.totalorder %v1301, 496
    %vm1558 = vcmp.lt.s32.totalorder %v1302, 496
    %vm1559 = vcmp.lt.s32.totalorder %v1303, 496
    %vm1560 = vcmp.lt.s32.totalorder %v1304, 496
    %vm1561 = vcmp.lt.s32.totalorder %v1305, 496
    %vm1562 = vcmp.lt.s32.totalorder %v1306, 496
    %vm1563 = vcmp.lt.s32.totalorder %v1307, 496
    %vm1564 = vcmp.lt.s32.totalorder %v1308, 496
    %vm1565 = vcmp.lt.s32.totalorder %v1309, 496
    %vm1566 = vcmp.lt.s32.totalorder %v1310, 496
    %vm1567 = vcmp.lt.s32.totalorder %v1311, 496
    %vm1568 = vcmp.lt.s32.totalorder %v1312, 496
    %vm1569 = vcmp.lt.s32.totalorder %v1313, 496
    %vm1570 = vcmp.lt.s32.totalorder %v1314, 496
    %vm1571 = vcmp.lt.s32.totalorder %v1315, 496
    %vm1572 = vcmp.lt.s32.totalorder %v1316, 496
    %vm1573 = vcmp.lt.s32.totalorder %v1317, 496
    %vm1574 = vcmp.lt.s32.totalorder %v1318, 496
    %vm1575 = vcmp.lt.s32.totalorder %v1319, 496
    %vm1576 = vcmp.lt.s32.totalorder %v1320, 496
    %vm1577 = vcmp.lt.s32.totalorder %v1321, 496
    %vm1578 = vcmp.lt.s32.totalorder %v1322, 496
    %vm1579 = vcmp.lt.s32.totalorder %v1323, 496
    %vm1580 = vcmp.lt.s32.totalorder %v1324, 496
    %vm1581 = vcmp.lt.s32.totalorder %v1325, 496
    %vm1582 = vcmp.lt.s32.totalorder %v1326, 496
    %vm1583 = vcmp.lt.s32.totalorder %v1327, 496
    %vm1584 = vcmp.lt.s32.totalorder %v1328, 496
    %vm1585 = vcmp.lt.s32.totalorder %v1329, 496
    %vm1586 = vcmp.lt.s32.totalorder %v1330, 496
    %vm1587 = vmand %vm1331, %vm1459
    %vm1588 = vmand %vm1332, %vm1460
    %vm1589 = vmand %vm1333, %vm1461
    %vm1590 = vmand %vm1334, %vm1462
    %vm1591 = vmand %vm1335, %vm1463
    %vm1592 = vmand %vm1336, %vm1464
    %vm1593 = vmand %vm1337, %vm1465
    %vm1594 = vmand %vm1338, %vm1466
    %vm1595 = vmand %vm1339, %vm1467
    %vm1596 = vmand %vm1340, %vm1468
    %vm1597 = vmand %vm1341, %vm1469
    %vm1598 = vmand %vm1342, %vm1470
    %vm1599 = vmand %vm1343, %vm1471
    %vm1600 = vmand %vm1344, %vm1472
    %vm1601 = vmand %vm1345, %vm1473
    %vm1602 = vmand %vm1346, %vm1474
    %vm1603 = vmand %vm1347, %vm1475
    %vm1604 = vmand %vm1348, %vm1476
    %vm1605 = vmand %vm1349, %vm1477
    %vm1606 = vmand %vm1350, %vm1478
    %vm1607 = vmand %vm1351, %vm1479
    %vm1608 = vmand %vm1352, %vm1480
    %vm1609 = vmand %vm1353, %vm1481
    %vm1610 = vmand %vm1354, %vm1482
    %vm1611 = vmand %vm1355, %vm1483
    %vm1612 = vmand %vm1356, %vm1484
    %vm1613 = vmand %vm1357, %vm1485
    %vm1614 = vmand %vm1358, %vm1486
    %vm1615 = vmand %vm1359, %vm1487
    %vm1616 = vmand %vm1360, %vm1488
    %vm1617 = vmand %vm1361, %vm1489
    %vm1618 = vmand %vm1362, %vm1490
    %vm1619 = vmand %vm1363, %vm1491
    %vm1620 = vmand %vm1364, %vm1492
    %vm1621 = vmand %vm1365, %vm1493
    %vm1622 = vmand %vm1366, %vm1494
    %vm1623 = vmand %vm1367, %vm1495
    %vm1624 = vmand %vm1368, %vm1496
    %vm1625 = vmand %vm1369, %vm1497
    %vm1626 = vmand %vm1370, %vm1498
    %vm1627 = vmand %vm1371, %vm1499
    %vm1628 = vmand %vm1372, %vm1500
    %vm1629 = vmand %vm1373, %vm1501
    %vm1630 = vmand %vm1374, %vm1502
    %vm1631 = vmand %vm1375, %vm1503
    %vm1632 = vmand %vm1376, %vm1504
    %vm1633 = vmand %vm1377, %vm1505
    %vm1634 = vmand %vm1378, %vm1506
    %vm1635 = vmand %vm1379, %vm1507
    %vm1636 = vmand %vm1380, %vm1508
    %vm1637 = vmand %vm1381, %vm1509
    %vm1638 = vmand %vm1382, %vm1510
    %vm1639 = vmand %vm1383, %vm1511
    %vm1640 = vmand %vm1384, %vm1512
    %vm1641 = vmand %vm1385, %vm1513
    %vm1642 = vmand %vm1386, %vm1514
    %vm1643 = vmand %vm1387, %vm1515
    %vm1644 = vmand %vm1388, %vm1516
    %vm1645 = vmand %vm1389, %vm1517
    %vm1646 = vmand %vm1390, %vm1518
    %vm1647 = vmand %vm1391, %vm1519
    %vm1648 = vmand %vm1392, %vm1520
    %vm1649 = vmand %vm1393, %vm1521
    %vm1650 = vmand %vm1394, %vm1522
    %vm1651 = vmand %vm1395, %vm1523
    %vm1652 = vmand %vm1396, %vm1524
    %vm1653 = vmand %vm1397, %vm1525
    %vm1654 = vmand %vm1398, %vm1526
    %vm1655 = vmand %vm1399, %vm1527
    %vm1656 = vmand %vm1400, %vm1528
    %vm1657 = vmand %vm1401, %vm1529
    %vm1658 = vmand %vm1402, %vm1530
    %vm1659 = vmand %vm1403, %vm1531
    %vm1660 = vmand %vm1404, %vm1532
    %vm1661 = vmand %vm1405, %vm1533
    %vm1662 = vmand %vm1406, %vm1534
    %vm1663 = vmand %vm1407, %vm1535
    %vm1664 = vmand %vm1408, %vm1536
    %vm1665 = vmand %vm1409, %vm1537
    %vm1666 = vmand %vm1410, %vm1538
    %vm1667 = vmand %vm1411, %vm1539
    %vm1668 = vmand %vm1412, %vm1540
    %vm1669 = vmand %vm1413, %vm1541
    %vm1670 = vmand %vm1414, %vm1542
    %vm1671 = vmand %vm1415, %vm1543
    %vm1672 = vmand %vm1416, %vm1544
    %vm1673 = vmand %vm1417, %vm1545
    %vm1674 = vmand %vm1418, %vm1546
    %vm1675 = vmand %vm1419, %vm1547
    %vm1676 = vmand %vm1420, %vm1548
    %vm1677 = vmand %vm1421, %vm1549
    %vm1678 = vmand %vm1422, %vm1550
    %vm1679 = vmand %vm1423, %vm1551
    %vm1680 = vmand %vm1424, %vm1552
    %vm1681 = vmand %vm1425, %vm1553
    %vm1682 = vmand %vm1426, %vm1554
    %vm1683 = vmand %vm1427, %vm1555
    %vm1684 = vmand %vm1428, %vm1556
    %vm1685 = vmand %vm1429, %vm1557
    %vm1686 = vmand %vm1430, %vm1558
    %vm1687 = vmand %vm1431, %vm1559
    %vm1688 = vmand %vm1432, %vm1560
    %vm1689 = vmand %vm1433, %vm1561
    %vm1690 = vmand %vm1434, %vm1562
    %vm1691 = vmand %vm1435, %vm1563
    %vm1692 = vmand %vm1436, %vm1564
    %vm1693 = vmand %vm1437, %vm1565
    %vm1694 = vmand %vm1438, %vm1566
    %vm1695 = vmand %vm1439, %vm1567
    %vm1696 = vmand %vm1440, %vm1568
    %vm1697 = vmand %vm1441, %vm1569
    %vm1698 = vmand %vm1442, %vm1570
    %vm1699 = vmand %vm1443, %vm1571
    %vm1700 = vmand %vm1444, %vm1572
    %vm1701 = vmand %vm1445, %vm1573
    %vm1702 = vmand %vm1446, %vm1574
    %vm1703 = vmand %vm1447, %vm1575
    %vm1704 = vmand %vm1448, %vm1576
    %vm1705 = vmand %vm1449, %vm1577
    %vm1706 = vmand %vm1450, %vm1578
    %vm1707 = vmand %vm1451, %vm1579
    %vm1708 = vmand %vm1452, %vm1580
    %vm1709 = vmand %vm1453, %vm1581
    %vm1710 = vmand %vm1454, %vm1582
    %vm1711 = vmand %vm1455, %vm1583
    %vm1712 = vmand %vm1456, %vm1584
    %vm1713 = vmand %vm1457, %vm1585
    %vm1714 = vmand %vm1458, %vm1586
    %v1715 = vsel %vm1587, 1, 0
    %v1716 = vsel %vm1588, 1, 0
    %v1717 = vsel %vm1589, 1, 0
    %v1718 = vsel %vm1590, 1, 0
    %v1719 = vsel %vm1591, 1, 0
    %v1720 = vsel %vm1592, 1, 0
    %v1721 = vsel %vm1593, 1, 0
    %v1722 = vsel %vm1594, 1, 0
    %v1723 = vsel %vm1595, 1, 0
    %v1724 = vsel %vm1596, 1, 0
    %v1725 = vsel %vm1597, 1, 0
    %v1726 = vsel %vm1598, 1, 0
    %v1727 = vsel %vm1599, 1, 0
    %v1728 = vsel %vm1600, 1, 0
    %v1729 = vsel %vm1601, 1, 0
    %v1730 = vsel %vm1602, 1, 0
    %v1731 = vsel %vm1603, 1, 0
    %v1732 = vsel %vm1604, 1, 0
    %v1733 = vsel %vm1605, 1, 0
    %v1734 = vsel %vm1606, 1, 0
    %v1735 = vsel %vm1607, 1, 0
    %v1736 = vsel %vm1608, 1, 0
    %v1737 = vsel %vm1609, 1, 0
    %v1738 = vsel %vm1610, 1, 0
    %v1739 = vsel %vm1611, 1, 0
    %v1740 = vsel %vm1612, 1, 0
    %v1741 = vsel %vm1613, 1, 0
    %v1742 = vsel %vm1614, 1, 0
    %v1743 = vsel %vm1615, 1, 0
    %v1744 = vsel %vm1616, 1, 0
    %v1745 = vsel %vm1617, 1, 0
    %v1746 = vsel %vm1618, 1, 0
    %v1747 = vsel %vm1619, 1, 0
    %v1748 = vsel %vm1620, 1, 0
    %v1749 = vsel %vm1621, 1, 0
    %v1750 = vsel %vm1622, 1, 0
    %v1751 = vsel %vm1623, 1, 0
    %v1752 = vsel %vm1624, 1, 0
    %v1753 = vsel %vm1625, 1, 0
    %v1754 = vsel %vm1626, 1, 0
    %v1755 = vsel %vm1627, 1, 0
    %v1756 = vsel %vm1628, 1, 0
    %v1757 = vsel %vm1629, 1, 0
    %v1758 = vsel %vm1630, 1, 0
    %v1759 = vsel %vm1631, 1, 0
    %v1760 = vsel %vm1632, 1, 0
    %v1761 = vsel %vm1633, 1, 0
    %v1762 = vsel %vm1634, 1, 0
    %v1763 = vsel %vm1635, 1, 0
    %v1764 = vsel %vm1636, 1, 0
    %v1765 = vsel %vm1637, 1, 0
    %v1766 = vsel %vm1638, 1, 0
    %v1767 = vsel %vm1639, 1, 0
    %v1768 = vsel %vm1640, 1, 0
    %v1769 = vsel %vm1641, 1, 0
    %v1770 = vsel %vm1642, 1, 0
    %v1771 = vsel %vm1643, 1, 0
    %v1772 = vsel %vm1644, 1, 0
    %v1773 = vsel %vm1645, 1, 0
    %v1774 = vsel %vm1646, 1, 0
    %v1775 = vsel %vm1647, 1, 0
    %v1776 = vsel %vm1648, 1, 0
    %v1777 = vsel %vm1649, 1, 0
    %v1778 = vsel %vm1650, 1, 0
    %v1779 = vsel %vm1651, 1, 0
    %v1780 = vsel %vm1652, 1, 0
    %v1781 = vsel %vm1653, 1, 0
    %v1782 = vsel %vm1654, 1, 0
    %v1783 = vsel %vm1655, 1, 0
    %v1784 = vsel %vm1656, 1, 0
    %v1785 = vsel %vm1657, 1, 0
    %v1786 = vsel %vm1658, 1, 0
    %v1787 = vsel %vm1659, 1, 0
    %v1788 = vsel %vm1660, 1, 0
    %v1789 = vsel %vm1661, 1, 0
    %v1790 = vsel %vm1662, 1, 0
    %v1791 = vsel %vm1663, 1, 0
    %v1792 = vsel %vm1664, 1, 0
    %v1793 = vsel %vm1665, 1, 0
    %v1794 = vsel %vm1666, 1, 0
    %v1795 = vsel %vm1667, 1, 0
    %v1796 = vsel %vm1668, 1, 0
    %v1797 = vsel %vm1669, 1, 0
    %v1798 = vsel %vm1670, 1, 0
    %v1799 = vsel %vm1671, 1, 0
    %v1800 = vsel %vm1672, 1, 0
    %v1801 = vsel %vm1673, 1, 0
    %v1802 = vsel %vm1674, 1, 0
    %v1803 = vsel %vm1675, 1, 0
    %v1804 = vsel %vm1676, 1, 0
    %v1805 = vsel %vm1677, 1, 0
    %v1806 = vsel %vm1678, 1, 0
    %v1807 = vsel %vm1679, 1, 0
    %v1808 = vsel %vm1680, 1, 0
    %v1809 = vsel %vm1681, 1, 0
    %v1810 = vsel %vm1682, 1, 0
    %v1811 = vsel %vm1683, 1, 0
    %v1812 = vsel %vm1684, 1, 0
    %v1813 = vsel %vm1685, 1, 0
    %v1814 = vsel %vm1686, 1, 0
    %v1815 = vsel %vm1687, 1, 0
    %v1816 = vsel %vm1688, 1, 0
    %v1817 = vsel %vm1689, 1, 0
    %v1818 = vsel %vm1690, 1, 0
    %v1819 = vsel %vm1691, 1, 0
    %v1820 = vsel %vm1692, 1, 0
    %v1821 = vsel %vm1693, 1, 0
    %v1822 = vsel %vm1694, 1, 0
    %v1823 = vsel %vm1695, 1, 0
    %v1824 = vsel %vm1696, 1, 0
    %v1825 = vsel %vm1697, 1, 0
    %v1826 = vsel %vm1698, 1, 0
    %v1827 = vsel %vm1699, 1, 0
    %v1828 = vsel %vm1700, 1, 0
    %v1829 = vsel %vm1701, 1, 0
    %v1830 = vsel %vm1702, 1, 0
    %v1831 = vsel %vm1703, 1, 0
    %v1832 = vsel %vm1704, 1, 0
    %v1833 = vsel %vm1705, 1, 0
    %v1834 = vsel %vm1706, 1, 0
    %v1835 = vsel %vm1707, 1, 0
    %v1836 = vsel %vm1708, 1, 0
    %v1837 = vsel %vm1709, 1, 0
    %v1838 = vsel %vm1710, 1, 0
    %v1839 = vsel %vm1711, 1, 0
    %v1840 = vsel %vm1712, 1, 0
    %v1841 = vsel %vm1713, 1, 0
    %v1842 = vsel %vm1714, 1, 0
    %v1843 = vcvt.s32.f32 %v1715
    %v1844 = vcvt.s32.f32 %v1716
    %v1845 = vcvt.s32.f32 %v1717
    %v1846 = vcvt.s32.f32 %v1718
    %v1847 = vcvt.s32.f32 %v1719
    %v1848 = vcvt.s32.f32 %v1720
    %v1849 = vcvt.s32.f32 %v1721
    %v1850 = vcvt.s32.f32 %v1722
    %v1851 = vcvt.s32.f32 %v1723
    %v1852 = vcvt.s32.f32 %v1724
    %v1853 = vcvt.s32.f32 %v1725
    %v1854 = vcvt.s32.f32 %v1726
    %v1855 = vcvt.s32.f32 %v1727
    %v1856 = vcvt.s32.f32 %v1728
    %v1857 = vcvt.s32.f32 %v1729
    %v1858 = vcvt.s32.f32 %v1730
    %v1859 = vcvt.s32.f32 %v1731
    %v1860 = vcvt.s32.f32 %v1732
    %v1861 = vcvt.s32.f32 %v1733
    %v1862 = vcvt.s32.f32 %v1734
    %v1863 = vcvt.s32.f32 %v1735
    %v1864 = vcvt.s32.f32 %v1736
    %v1865 = vcvt.s32.f32 %v1737
    %v1866 = vcvt.s32.f32 %v1738
    %v1867 = vcvt.s32.f32 %v1739
    %v1868 = vcvt.s32.f32 %v1740
    %v1869 = vcvt.s32.f32 %v1741
    %v1870 = vcvt.s32.f32 %v1742
    %v1871 = vcvt.s32.f32 %v1743
    %v1872 = vcvt.s32.f32 %v1744
    %v1873 = vcvt.s32.f32 %v1745
    %v1874 = vcvt.s32.f32 %v1746
    %v1875 = vcvt.s32.f32 %v1747
    %v1876 = vcvt.s32.f32 %v1748
    %v1877 = vcvt.s32.f32 %v1749
    %v1878 = vcvt.s32.f32 %v1750
    %v1879 = vcvt.s32.f32 %v1751
    %v1880 = vcvt.s32.f32 %v1752
    %v1881 = vcvt.s32.f32 %v1753
    %v1882 = vcvt.s32.f32 %v1754
    %v1883 = vcvt.s32.f32 %v1755
    %v1884 = vcvt.s32.f32 %v1756
    %v1885 = vcvt.s32.f32 %v1757
    %v1886 = vcvt.s32.f32 %v1758
    %v1887 = vcvt.s32.f32 %v1759
    %v1888 = vcvt.s32.f32 %v1760
    %v1889 = vcvt.s32.f32 %v1761
    %v1890 = vcvt.s32.f32 %v1762
    %v1891 = vcvt.s32.f32 %v1763
    %v1892 = vcvt.s32.f32 %v1764
    %v1893 = vcvt.s32.f32 %v1765
    %v1894 = vcvt.s32.f32 %v1766
    %v1895 = vcvt.s32.f32 %v1767
    %v1896 = vcvt.s32.f32 %v1768
    %v1897 = vcvt.s32.f32 %v1769
    %v1898 = vcvt.s32.f32 %v1770
    %v1899 = vcvt.s32.f32 %v1771
    %v1900 = vcvt.s32.f32 %v1772
    %v1901 = vcvt.s32.f32 %v1773
    %v1902 = vcvt.s32.f32 %v1774
    %v1903 = vcvt.s32.f32 %v1775
    %v1904 = vcvt.s32.f32 %v1776
    %v1905 = vcvt.s32.f32 %v1777
    %v1906 = vcvt.s32.f32 %v1778
    %v1907 = vcvt.s32.f32 %v1779
    %v1908 = vcvt.s32.f32 %v1780
    %v1909 = vcvt.s32.f32 %v1781
    %v1910 = vcvt.s32.f32 %v1782
    %v1911 = vcvt.s32.f32 %v1783
    %v1912 = vcvt.s32.f32 %v1784
    %v1913 = vcvt.s32.f32 %v1785
    %v1914 = vcvt.s32.f32 %v1786
    %v1915 = vcvt.s32.f32 %v1787
    %v1916 = vcvt.s32.f32 %v1788
    %v1917 = vcvt.s32.f32 %v1789
    %v1918 = vcvt.s32.f32 %v1790
    %v1919 = vcvt.s32.f32 %v1791
    %v1920 = vcvt.s32.f32 %v1792
    %v1921 = vcvt.s32.f32 %v1793
    %v1922 = vcvt.s32.f32 %v1794
    %v1923 = vcvt.s32.f32 %v1795
    %v1924 = vcvt.s32.f32 %v1796
    %v1925 = vcvt.s32.f32 %v1797
    %v1926 = vcvt.s32.f32 %v1798
    %v1927 = vcvt.s32.f32 %v1799
    %v1928 = vcvt.s32.f32 %v1800
    %v1929 = vcvt.s32.f32 %v1801
    %v1930 = vcvt.s32.f32 %v1802
    %v1931 = vcvt.s32.f32 %v1803
    %v1932 = vcvt.s32.f32 %v1804
    %v1933 = vcvt.s32.f32 %v1805
    %v1934 = vcvt.s32.f32 %v1806
    %v1935 = vcvt.s32.f32 %v1807
    %v1936 = vcvt.s32.f32 %v1808
    %v1937 = vcvt.s32.f32 %v1809
    %v1938 = vcvt.s32.f32 %v1810
    %v1939 = vcvt.s32.f32 %v1811
    %v1940 = vcvt.s32.f32 %v1812
    %v1941 = vcvt.s32.f32 %v1813
    %v1942 = vcvt.s32.f32 %v1814
    %v1943 = vcvt.s32.f32 %v1815
    %v1944 = vcvt.s32.f32 %v1816
    %v1945 = vcvt.s32.f32 %v1817
    %v1946 = vcvt.s32.f32 %v1818
    %v1947 = vcvt.s32.f32 %v1819
    %v1948 = vcvt.s32.f32 %v1820
    %v1949 = vcvt.s32.f32 %v1821
    %v1950 = vcvt.s32.f32 %v1822
    %v1951 = vcvt.s32.f32 %v1823
    %v1952 = vcvt.s32.f32 %v1824
    %v1953 = vcvt.s32.f32 %v1825
    %v1954 = vcvt.s32.f32 %v1826
    %v1955 = vcvt.s32.f32 %v1827
    %v1956 = vcvt.s32.f32 %v1828
    %v1957 = vcvt.s32.f32 %v1829
    %v1958 = vcvt.s32.f32 %v1830
    %v1959 = vcvt.s32.f32 %v1831
    %v1960 = vcvt.s32.f32 %v1832
    %v1961 = vcvt.s32.f32 %v1833
    %v1962 = vcvt.s32.f32 %v1834
    %v1963 = vcvt.s32.f32 %v1835
    %v1964 = vcvt.s32.f32 %v1836
    %v1965 = vcvt.s32.f32 %v1837
    %v1966 = vcvt.s32.f32 %v1838
    %v1967 = vcvt.s32.f32 %v1839
    %v1968 = vcvt.s32.f32 %v1840
    %v1969 = vcvt.s32.f32 %v1841
    %v1970 = vcvt.s32.f32 %v1842
    %v1971 = vadd.f32 %v1843, 0.0
    %v1972 = vadd.f32 %v1844, 0.0
    %v1973 = vadd.f32 %v1845, 0.0
    %v1974 = vadd.f32 %v1846, 0.0
    %v1975 = vadd.f32 %v1847, 0.0
    %v1976 = vadd.f32 %v1848, 0.0
    %v1977 = vadd.f32 %v1849, 0.0
    %v1978 = vadd.f32 %v1850, 0.0
    %v1979 = vadd.f32 %v1851, 0.0
    %v1980 = vadd.f32 %v1852, 0.0
    %v1981 = vadd.f32 %v1853, 0.0
    %v1982 = vadd.f32 %v1854, 0.0
    %v1983 = vadd.f32 %v1855, 0.0
    %v1984 = vadd.f32 %v1856, 0.0
    %v1985 = vadd.f32 %v1857, 0.0
    %v1986 = vadd.f32 %v1858, 0.0
    %v1987 = vadd.f32 %v1859, 0.0
    %v1988 = vadd.f32 %v1860, 0.0
    %v1989 = vadd.f32 %v1861, 0.0
    %v1990 = vadd.f32 %v1862, 0.0
    %v1991 = vadd.f32 %v1863, 0.0
    %v1992 = vadd.f32 %v1864, 0.0
    %v1993 = vadd.f32 %v1865, 0.0
    %v1994 = vadd.f32 %v1866, 0.0
    %v1995 = vadd.f32 %v1867, 0.0
    %v1996 = vadd.f32 %v1868, 0.0
    %v1997 = vadd.f32 %v1869, 0.0
    %v1998 = vadd.f32 %v1870, 0.0
    %v1999 = vadd.f32 %v1871, 0.0
    %v2000 = vadd.f32 %v1872, 0.0
    %v2001 = vadd.f32 %v1873, 0.0
    %v2002 = vadd.f32 %v1874, 0.0
    %v2003 = vadd.f32 %v1875, 0.0
    %v2004 = vadd.f32 %v1876, 0.0
    %v2005 = vadd.f32 %v1877, 0.0
    %v2006 = vadd.f32 %v1878, 0.0
    %v2007 = vadd.f32 %v1879, 0.0
    %v2008 = vadd.f32 %v1880, 0.0
    %v2009 = vadd.f32 %v1881, 0.0
    %v2010 = vadd.f32 %v1882, 0.0
    %v2011 = vadd.f32 %v1883, 0.0
    %v2012 = vadd.f32 %v1884, 0.0
    %v2013 = vadd.f32 %v1885, 0.0
    %v2014 = vadd.f32 %v1886, 0.0
    %v2015 = vadd.f32 %v1887, 0.0
    %v2016 = vadd.f32 %v1888, 0.0
    %v2017 = vadd.f32 %v1889, 0.0
    %v2018 = vadd.f32 %v1890, 0.0
    %v2019 = vadd.f32 %v1891, 0.0
    %v2020 = vadd.f32 %v1892, 0.0
    %v2021 = vadd.f32 %v1893, 0.0
    %v2022 = vadd.f32 %v1894, 0.0
    %v2023 = vadd.f32 %v1895, 0.0
    %v2024 = vadd.f32 %v1896, 0.0
    %v2025 = vadd.f32 %v1897, 0.0
    %v2026 = vadd.f32 %v1898, 0.0
    %v2027 = vadd.f32 %v1899, 0.0
    %v2028 = vadd.f32 %v1900, 0.0
    %v2029 = vadd.f32 %v1901, 0.0
    %v2030 = vadd.f32 %v1902, 0.0
    %v2031 = vadd.f32 %v1903, 0.0
    %v2032 = vadd.f32 %v1904, 0.0
    %v2033 = vadd.f32 %v1905, 0.0
    %v2034 = vadd.f32 %v1906, 0.0
    %v2035 = vadd.f32 %v1907, 0.0
    %v2036 = vadd.f32 %v1908, 0.0
    %v2037 = vadd.f32 %v1909, 0.0
    %v2038 = vadd.f32 %v1910, 0.0
    %v2039 = vadd.f32 %v1911, 0.0
    %v2040 = vadd.f32 %v1912, 0.0
    %v2041 = vadd.f32 %v1913, 0.0
    %v2042 = vadd.f32 %v1914, 0.0
    %v2043 = vadd.f32 %v1915, 0.0
    %v2044 = vadd.f32 %v1916, 0.0
    %v2045 = vadd.f32 %v1917, 0.0
    %v2046 = vadd.f32 %v1918, 0.0
    %v2047 = vadd.f32 %v1919, 0.0
    %v2048 = vadd.f32 %v1920, 0.0
    %v2049 = vadd.f32 %v1921, 0.0
    %v2050 = vadd.f32 %v1922, 0.0
    %v2051 = vadd.f32 %v1923, 0.0
    %v2052 = vadd.f32 %v1924, 0.0
    %v2053 = vadd.f32 %v1925, 0.0
    %v2054 = vadd.f32 %v1926, 0.0
    %v2055 = vadd.f32 %v1927, 0.0
    %v2056 = vadd.f32 %v1928, 0.0
    %v2057 = vadd.f32 %v1929, 0.0
    %v2058 = vadd.f32 %v1930, 0.0
    %v2059 = vadd.f32 %v1931, 0.0
    %v2060 = vadd.f32 %v1932, 0.0
    %v2061 = vadd.f32 %v1933, 0.0
    %v2062 = vadd.f32 %v1934, 0.0
    %v2063 = vadd.f32 %v1935, 0.0
    %v2064 = vadd.f32 %v1936, 0.0
    %v2065 = vadd.f32 %v1937, 0.0
    %v2066 = vadd.f32 %v1938, 0.0
    %v2067 = vadd.f32 %v1939, 0.0
    %v2068 = vadd.f32 %v1940, 0.0
    %v2069 = vadd.f32 %v1941, 0.0
    %v2070 = vadd.f32 %v1942, 0.0
    %v2071 = vadd.f32 %v1943, 0.0
    %v2072 = vadd.f32 %v1944, 0.0
    %v2073 = vadd.f32 %v1945, 0.0
    %v2074 = vadd.f32 %v1946, 0.0
    %v2075 = vadd.f32 %v1947, 0.0
    %v2076 = vadd.f32 %v1948, 0.0
    %v2077 = vadd.f32 %v1949, 0.0
    %v2078 = vadd.f32 %v1950, 0.0
    %v2079 = vadd.f32 %v1951, 0.0
    %v2080 = vadd.f32 %v1952, 0.0
    %v2081 = vadd.f32 %v1953, 0.0
    %v2082 = vadd.f32 %v1954, 0.0
    %v2083 = vadd.f32 %v1955, 0.0
    %v2084 = vadd.f32 %v1956, 0.0
    %v2085 = vadd.f32 %v1957, 0.0
    %v2086 = vadd.f32 %v1958, 0.0
    %v2087 = vadd.f32 %v1959, 0.0
    %v2088 = vadd.f32 %v1960, 0.0
    %v2089 = vadd.f32 %v1961, 0.0
    %v2090 = vadd.f32 %v1962, 0.0
    %v2091 = vadd.f32 %v1963, 0.0
    %v2092 = vadd.f32 %v1964, 0.0
    %v2093 = vadd.f32 %v1965, 0.0
    %v2094 = vadd.f32 %v1966, 0.0
    %v2095 = vadd.f32 %v1967, 0.0
    %v2096 = vadd.f32 %v1968, 0.0
    %v2097 = vadd.f32 %v1969, 0.0
    %v2098 = vadd.f32 %v1970, 0.0
    %vm2099 = vcmp.ge.s32.totalorder %v1203, 512
    %vm2100 = vcmp.ge.s32.totalorder %v1204, 512
    %vm2101 = vcmp.ge.s32.totalorder %v1205, 512
    %vm2102 = vcmp.ge.s32.totalorder %v1206, 512
    %vm2103 = vcmp.ge.s32.totalorder %v1207, 512
    %vm2104 = vcmp.ge.s32.totalorder %v1208, 512
    %vm2105 = vcmp.ge.s32.totalorder %v1209, 512
    %vm2106 = vcmp.ge.s32.totalorder %v1210, 512
    %vm2107 = vcmp.ge.s32.totalorder %v1211, 512
    %vm2108 = vcmp.ge.s32.totalorder %v1212, 512
    %vm2109 = vcmp.ge.s32.totalorder %v1213, 512
    %vm2110 = vcmp.ge.s32.totalorder %v1214, 512
    %vm2111 = vcmp.ge.s32.totalorder %v1215, 512
    %vm2112 = vcmp.ge.s32.totalorder %v1216, 512
    %vm2113 = vcmp.ge.s32.totalorder %v1217, 512
    %vm2114 = vcmp.ge.s32.totalorder %v1218, 512
    %vm2115 = vcmp.ge.s32.totalorder %v1219, 512
    %vm2116 = vcmp.ge.s32.totalorder %v1220, 512
    %vm2117 = vcmp.ge.s32.totalorder %v1221, 512
    %vm2118 = vcmp.ge.s32.totalorder %v1222, 512
    %vm2119 = vcmp.ge.s32.totalorder %v1223, 512
    %vm2120 = vcmp.ge.s32.totalorder %v1224, 512
    %vm2121 = vcmp.ge.s32.totalorder %v1225, 512
    %vm2122 = vcmp.ge.s32.totalorder %v1226, 512
    %vm2123 = vcmp.ge.s32.totalorder %v1227, 512
    %vm2124 = vcmp.ge.s32.totalorder %v1228, 512
    %vm2125 = vcmp.ge.s32.totalorder %v1229, 512
    %vm2126 = vcmp.ge.s32.totalorder %v1230, 512
    %vm2127 = vcmp.ge.s32.totalorder %v1231, 512
    %vm2128 = vcmp.ge.s32.totalorder %v1232, 512
    %vm2129 = vcmp.ge.s32.totalorder %v1233, 512
    %vm2130 = vcmp.ge.s32.totalorder %v1234, 512
    %vm2131 = vcmp.ge.s32.totalorder %v1235, 512
    %vm2132 = vcmp.ge.s32.totalorder %v1236, 512
    %vm2133 = vcmp.ge.s32.totalorder %v1237, 512
    %vm2134 = vcmp.ge.s32.totalorder %v1238, 512
    %vm2135 = vcmp.ge.s32.totalorder %v1239, 512
    %vm2136 = vcmp.ge.s32.totalorder %v1240, 512
    %vm2137 = vcmp.ge.s32.totalorder %v1241, 512
    %vm2138 = vcmp.ge.s32.totalorder %v1242, 512
    %vm2139 = vcmp.ge.s32.totalorder %v1243, 512
    %vm2140 = vcmp.ge.s32.totalorder %v1244, 512
    %vm2141 = vcmp.ge.s32.totalorder %v1245, 512
    %vm2142 = vcmp.ge.s32.totalorder %v1246, 512
    %vm2143 = vcmp.ge.s32.totalorder %v1247, 512
    %vm2144 = vcmp.ge.s32.totalorder %v1248, 512
    %vm2145 = vcmp.ge.s32.totalorder %v1249, 512
    %vm2146 = vcmp.ge.s32.totalorder %v1250, 512
    %vm2147 = vcmp.ge.s32.totalorder %v1251, 512
    %vm2148 = vcmp.ge.s32.totalorder %v1252, 512
    %vm2149 = vcmp.ge.s32.totalorder %v1253, 512
    %vm2150 = vcmp.ge.s32.totalorder %v1254, 512
    %vm2151 = vcmp.ge.s32.totalorder %v1255, 512
    %vm2152 = vcmp.ge.s32.totalorder %v1256, 512
    %vm2153 = vcmp.ge.s32.totalorder %v1257, 512
    %vm2154 = vcmp.ge.s32.totalorder %v1258, 512
    %vm2155 = vcmp.ge.s32.totalorder %v1259, 512
    %vm2156 = vcmp.ge.s32.totalorder %v1260, 512
    %vm2157 = vcmp.ge.s32.totalorder %v1261, 512
    %vm2158 = vcmp.ge.s32.totalorder %v1262, 512
    %vm2159 = vcmp.ge.s32.totalorder %v1263, 512
    %vm2160 = vcmp.ge.s32.totalorder %v1264, 512
    %vm2161 = vcmp.ge.s32.totalorder %v1265, 512
    %vm2162 = vcmp.ge.s32.totalorder %v1266, 512
    %vm2163 = vcmp.ge.s32.totalorder %v1267, 512
    %vm2164 = vcmp.ge.s32.totalorder %v1268, 512
    %vm2165 = vcmp.ge.s32.totalorder %v1269, 512
    %vm2166 = vcmp.ge.s32.totalorder %v1270, 512
    %vm2167 = vcmp.ge.s32.totalorder %v1271, 512
    %vm2168 = vcmp.ge.s32.totalorder %v1272, 512
    %vm2169 = vcmp.ge.s32.totalorder %v1273, 512
    %vm2170 = vcmp.ge.s32.totalorder %v1274, 512
    %vm2171 = vcmp.ge.s32.totalorder %v1275, 512
    %vm2172 = vcmp.ge.s32.totalorder %v1276, 512
    %vm2173 = vcmp.ge.s32.totalorder %v1277, 512
    %vm2174 = vcmp.ge.s32.totalorder %v1278, 512
    %vm2175 = vcmp.ge.s32.totalorder %v1279, 512
    %vm2176 = vcmp.ge.s32.totalorder %v1280, 512
    %vm2177 = vcmp.ge.s32.totalorder %v1281, 512
    %vm2178 = vcmp.ge.s32.totalorder %v1282, 512
    %vm2179 = vcmp.ge.s32.totalorder %v1283, 512
    %vm2180 = vcmp.ge.s32.totalorder %v1284, 512
    %vm2181 = vcmp.ge.s32.totalorder %v1285, 512
    %vm2182 = vcmp.ge.s32.totalorder %v1286, 512
    %vm2183 = vcmp.ge.s32.totalorder %v1287, 512
    %vm2184 = vcmp.ge.s32.totalorder %v1288, 512
    %vm2185 = vcmp.ge.s32.totalorder %v1289, 512
    %vm2186 = vcmp.ge.s32.totalorder %v1290, 512
    %vm2187 = vcmp.ge.s32.totalorder %v1291, 512
    %vm2188 = vcmp.ge.s32.totalorder %v1292, 512
    %vm2189 = vcmp.ge.s32.totalorder %v1293, 512
    %vm2190 = vcmp.ge.s32.totalorder %v1294, 512
    %vm2191 = vcmp.ge.s32.totalorder %v1295, 512
    %vm2192 = vcmp.ge.s32.totalorder %v1296, 512
    %vm2193 = vcmp.ge.s32.totalorder %v1297, 512
    %vm2194 = vcmp.ge.s32.totalorder %v1298, 512
    %vm2195 = vcmp.ge.s32.totalorder %v1299, 512
    %vm2196 = vcmp.ge.s32.totalorder %v1300, 512
    %vm2197 = vcmp.ge.s32.totalorder %v1301, 512
    %vm2198 = vcmp.ge.s32.totalorder %v1302, 512
    %vm2199 = vcmp.ge.s32.totalorder %v1303, 512
    %vm2200 = vcmp.ge.s32.totalorder %v1304, 512
    %vm2201 = vcmp.ge.s32.totalorder %v1305, 512
    %vm2202 = vcmp.ge.s32.totalorder %v1306, 512
    %vm2203 = vcmp.ge.s32.totalorder %v1307, 512
    %vm2204 = vcmp.ge.s32.totalorder %v1308, 512
    %vm2205 = vcmp.ge.s32.totalorder %v1309, 512
    %vm2206 = vcmp.ge.s32.totalorder %v1310, 512
    %vm2207 = vcmp.ge.s32.totalorder %v1311, 512
    %vm2208 = vcmp.ge.s32.totalorder %v1312, 512
    %vm2209 = vcmp.ge.s32.totalorder %v1313, 512
    %vm2210 = vcmp.ge.s32.totalorder %v1314, 512
    %vm2211 = vcmp.ge.s32.totalorder %v1315, 512
    %vm2212 = vcmp.ge.s32.totalorder %v1316, 512
    %vm2213 = vcmp.ge.s32.totalorder %v1317, 512
    %vm2214 = vcmp.ge.s32.totalorder %v1318, 512
    %vm2215 = vcmp.ge.s32.totalorder %v1319, 512
    %vm2216 = vcmp.ge.s32.totalorder %v1320, 512
    %vm2217 = vcmp.ge.s32.totalorder %v1321, 512
    %vm2218 = vcmp.ge.s32.totalorder %v1322, 512
    %vm2219 = vcmp.ge.s32.totalorder %v1323, 512
    %vm2220 = vcmp.ge.s32.totalorder %v1324, 512
    %vm2221 = vcmp.ge.s32.totalorder %v1325, 512
    %vm2222 = vcmp.ge.s32.totalorder %v1326, 512
    %vm2223 = vcmp.ge.s32.totalorder %v1327, 512
    %vm2224 = vcmp.ge.s32.totalorder %v1328, 512
    %vm2225 = vcmp.ge.s32.totalorder %v1329, 512
    %vm2226 = vcmp.ge.s32.totalorder %v1330, 512
    %vm2227 = vcmp.lt.s32.totalorder %v1203, 1008
    %vm2228 = vcmp.lt.s32.totalorder %v1204, 1008
    %vm2229 = vcmp.lt.s32.totalorder %v1205, 1008
    %vm2230 = vcmp.lt.s32.totalorder %v1206, 1008
    %vm2231 = vcmp.lt.s32.totalorder %v1207, 1008
    %vm2232 = vcmp.lt.s32.totalorder %v1208, 1008
    %vm2233 = vcmp.lt.s32.totalorder %v1209, 1008
    %vm2234 = vcmp.lt.s32.totalorder %v1210, 1008
    %vm2235 = vcmp.lt.s32.totalorder %v1211, 1008
    %vm2236 = vcmp.lt.s32.totalorder %v1212, 1008
    %vm2237 = vcmp.lt.s32.totalorder %v1213, 1008
    %vm2238 = vcmp.lt.s32.totalorder %v1214, 1008
    %vm2239 = vcmp.lt.s32.totalorder %v1215, 1008
    %vm2240 = vcmp.lt.s32.totalorder %v1216, 1008
    %vm2241 = vcmp.lt.s32.totalorder %v1217, 1008
    %vm2242 = vcmp.lt.s32.totalorder %v1218, 1008
    %vm2243 = vcmp.lt.s32.totalorder %v1219, 1008
    %vm2244 = vcmp.lt.s32.totalorder %v1220, 1008
    %vm2245 = vcmp.lt.s32.totalorder %v1221, 1008
    %vm2246 = vcmp.lt.s32.totalorder %v1222, 1008
    %vm2247 = vcmp.lt.s32.totalorder %v1223, 1008
    %vm2248 = vcmp.lt.s32.totalorder %v1224, 1008
    %vm2249 = vcmp.lt.s32.totalorder %v1225, 1008
    %vm2250 = vcmp.lt.s32.totalorder %v1226, 1008
    %vm2251 = vcmp.lt.s32.totalorder %v1227, 1008
    %vm2252 = vcmp.lt.s32.totalorder %v1228, 1008
    %vm2253 = vcmp.lt.s32.totalorder %v1229, 1008
    %vm2254 = vcmp.lt.s32.totalorder %v1230, 1008
    %vm2255 = vcmp.lt.s32.totalorder %v1231, 1008
    %vm2256 = vcmp.lt.s32.totalorder %v1232, 1008
    %vm2257 = vcmp.lt.s32.totalorder %v1233, 1008
    %vm2258 = vcmp.lt.s32.totalorder %v1234, 1008
    %vm2259 = vcmp.lt.s32.totalorder %v1235, 1008
    %vm2260 = vcmp.lt.s32.totalorder %v1236, 1008
    %vm2261 = vcmp.lt.s32.totalorder %v1237, 1008
    %vm2262 = vcmp.lt.s32.totalorder %v1238, 1008
    %vm2263 = vcmp.lt.s32.totalorder %v1239, 1008
    %vm2264 = vcmp.lt.s32.totalorder %v1240, 1008
    %vm2265 = vcmp.lt.s32.totalorder %v1241, 1008
    %vm2266 = vcmp.lt.s32.totalorder %v1242, 1008
    %vm2267 = vcmp.lt.s32.totalorder %v1243, 1008
    %vm2268 = vcmp.lt.s32.totalorder %v1244, 1008
    %vm2269 = vcmp.lt.s32.totalorder %v1245, 1008
    %vm2270 = vcmp.lt.s32.totalorder %v1246, 1008
    %vm2271 = vcmp.lt.s32.totalorder %v1247, 1008
    %vm2272 = vcmp.lt.s32.totalorder %v1248, 1008
    %vm2273 = vcmp.lt.s32.totalorder %v1249, 1008
    %vm2274 = vcmp.lt.s32.totalorder %v1250, 1008
    %vm2275 = vcmp.lt.s32.totalorder %v1251, 1008
    %vm2276 = vcmp.lt.s32.totalorder %v1252, 1008
    %vm2277 = vcmp.lt.s32.totalorder %v1253, 1008
    %vm2278 = vcmp.lt.s32.totalorder %v1254, 1008
    %vm2279 = vcmp.lt.s32.totalorder %v1255, 1008
    %vm2280 = vcmp.lt.s32.totalorder %v1256, 1008
    %vm2281 = vcmp.lt.s32.totalorder %v1257, 1008
    %vm2282 = vcmp.lt.s32.totalorder %v1258, 1008
    %vm2283 = vcmp.lt.s32.totalorder %v1259, 1008
    %vm2284 = vcmp.lt.s32.totalorder %v1260, 1008
    %vm2285 = vcmp.lt.s32.totalorder %v1261, 1008
    %vm2286 = vcmp.lt.s32.totalorder %v1262, 1008
    %vm2287 = vcmp.lt.s32.totalorder %v1263, 1008
    %vm2288 = vcmp.lt.s32.totalorder %v1264, 1008
    %vm2289 = vcmp.lt.s32.totalorder %v1265, 1008
    %vm2290 = vcmp.lt.s32.totalorder %v1266, 1008
    %vm2291 = vcmp.lt.s32.totalorder %v1267, 1008
    %vm2292 = vcmp.lt.s32.totalorder %v1268, 1008
    %vm2293 = vcmp.lt.s32.totalorder %v1269, 1008
    %vm2294 = vcmp.lt.s32.totalorder %v1270, 1008
    %vm2295 = vcmp.lt.s32.totalorder %v1271, 1008
    %vm2296 = vcmp.lt.s32.totalorder %v1272, 1008
    %vm2297 = vcmp.lt.s32.totalorder %v1273, 1008
    %vm2298 = vcmp.lt.s32.totalorder %v1274, 1008
    %vm2299 = vcmp.lt.s32.totalorder %v1275, 1008
    %vm2300 = vcmp.lt.s32.totalorder %v1276, 1008
    %vm2301 = vcmp.lt.s32.totalorder %v1277, 1008
    %vm2302 = vcmp.lt.s32.totalorder %v1278, 1008
    %vm2303 = vcmp.lt.s32.totalorder %v1279, 1008
    %vm2304 = vcmp.lt.s32.totalorder %v1280, 1008
    %vm2305 = vcmp.lt.s32.totalorder %v1281, 1008
    %vm2306 = vcmp.lt.s32.totalorder %v1282, 1008
    %vm2307 = vcmp.lt.s32.totalorder %v1283, 1008
    %vm2308 = vcmp.lt.s32.totalorder %v1284, 1008
    %vm2309 = vcmp.lt.s32.totalorder %v1285, 1008
    %vm2310 = vcmp.lt.s32.totalorder %v1286, 1008
    %vm2311 = vcmp.lt.s32.totalorder %v1287, 1008
    %vm2312 = vcmp.lt.s32.totalorder %v1288, 1008
    %vm2313 = vcmp.lt.s32.totalorder %v1289, 1008
    %vm2314 = vcmp.lt.s32.totalorder %v1290, 1008
    %vm2315 = vcmp.lt.s32.totalorder %v1291, 1008
    %vm2316 = vcmp.lt.s32.totalorder %v1292, 1008
    %vm2317 = vcmp.lt.s32.totalorder %v1293, 1008
    %vm2318 = vcmp.lt.s32.totalorder %v1294, 1008
    %vm2319 = vcmp.lt.s32.totalorder %v1295, 1008
    %vm2320 = vcmp.lt.s32.totalorder %v1296, 1008
    %vm2321 = vcmp.lt.s32.totalorder %v1297, 1008
    %vm2322 = vcmp.lt.s32.totalorder %v1298, 1008
    %vm2323 = vcmp.lt.s32.totalorder %v1299, 1008
    %vm2324 = vcmp.lt.s32.totalorder %v1300, 1008
    %vm2325 = vcmp.lt.s32.totalorder %v1301, 1008
    %vm2326 = vcmp.lt.s32.totalorder %v1302, 1008
    %vm2327 = vcmp.lt.s32.totalorder %v1303, 1008
    %vm2328 = vcmp.lt.s32.totalorder %v1304, 1008
    %vm2329 = vcmp.lt.s32.totalorder %v1305, 1008
    %vm2330 = vcmp.lt.s32.totalorder %v1306, 1008
    %vm2331 = vcmp.lt.s32.totalorder %v1307, 1008
    %vm2332 = vcmp.lt.s32.totalorder %v1308, 1008
    %vm2333 = vcmp.lt.s32.totalorder %v1309, 1008
    %vm2334 = vcmp.lt.s32.totalorder %v1310, 1008
    %vm2335 = vcmp.lt.s32.totalorder %v1311, 1008
    %vm2336 = vcmp.lt.s32.totalorder %v1312, 1008
    %vm2337 = vcmp.lt.s32.totalorder %v1313, 1008
    %vm2338 = vcmp.lt.s32.totalorder %v1314, 1008
    %vm2339 = vcmp.lt.s32.totalorder %v1315, 1008
    %vm2340 = vcmp.lt.s32.totalorder %v1316, 1008
    %vm2341 = vcmp.lt.s32.totalorder %v1317, 1008
    %vm2342 = vcmp.lt.s32.totalorder %v1318, 1008
    %vm2343 = vcmp.lt.s32.totalorder %v1319, 1008
    %vm2344 = vcmp.lt.s32.totalorder %v1320, 1008
    %vm2345 = vcmp.lt.s32.totalorder %v1321, 1008
    %vm2346 = vcmp.lt.s32.totalorder %v1322, 1008
    %vm2347 = vcmp.lt.s32.totalorder %v1323, 1008
    %vm2348 = vcmp.lt.s32.totalorder %v1324, 1008
    %vm2349 = vcmp.lt.s32.totalorder %v1325, 1008
    %vm2350 = vcmp.lt.s32.totalorder %v1326, 1008
    %vm2351 = vcmp.lt.s32.totalorder %v1327, 1008
    %vm2352 = vcmp.lt.s32.totalorder %v1328, 1008
    %vm2353 = vcmp.lt.s32.totalorder %v1329, 1008
    %vm2354 = vcmp.lt.s32.totalorder %v1330, 1008
    %vm2355 = vmand %vm2099, %vm2227
    %vm2356 = vmand %vm2100, %vm2228
    %vm2357 = vmand %vm2101, %vm2229
    %vm2358 = vmand %vm2102, %vm2230
    %vm2359 = vmand %vm2103, %vm2231
    %vm2360 = vmand %vm2104, %vm2232
    %vm2361 = vmand %vm2105, %vm2233
    %vm2362 = vmand %vm2106, %vm2234
    %vm2363 = vmand %vm2107, %vm2235
    %vm2364 = vmand %vm2108, %vm2236
    %vm2365 = vmand %vm2109, %vm2237
    %vm2366 = vmand %vm2110, %vm2238
    %vm2367 = vmand %vm2111, %vm2239
    %vm2368 = vmand %vm2112, %vm2240
    %vm2369 = vmand %vm2113, %vm2241
    %vm2370 = vmand %vm2114, %vm2242
    %vm2371 = vmand %vm2115, %vm2243
    %vm2372 = vmand %vm2116, %vm2244
    %vm2373 = vmand %vm2117, %vm2245
    %vm2374 = vmand %vm2118, %vm2246
    %vm2375 = vmand %vm2119, %vm2247
    %vm2376 = vmand %vm2120, %vm2248
    %vm2377 = vmand %vm2121, %vm2249
    %vm2378 = vmand %vm2122, %vm2250
    %vm2379 = vmand %vm2123, %vm2251
    %vm2380 = vmand %vm2124, %vm2252
    %vm2381 = vmand %vm2125, %vm2253
    %vm2382 = vmand %vm2126, %vm2254
    %vm2383 = vmand %vm2127, %vm2255
    %vm2384 = vmand %vm2128, %vm2256
    %vm2385 = vmand %vm2129, %vm2257
    %vm2386 = vmand %vm2130, %vm2258
    %vm2387 = vmand %vm2131, %vm2259
    %vm2388 = vmand %vm2132, %vm2260
    %vm2389 = vmand %vm2133, %vm2261
    %vm2390 = vmand %vm2134, %vm2262
    %vm2391 = vmand %vm2135, %vm2263
    %vm2392 = vmand %vm2136, %vm2264
    %vm2393 = vmand %vm2137, %vm2265
    %vm2394 = vmand %vm2138, %vm2266
    %vm2395 = vmand %vm2139, %vm2267
    %vm2396 = vmand %vm2140, %vm2268
    %vm2397 = vmand %vm2141, %vm2269
    %vm2398 = vmand %vm2142, %vm2270
    %vm2399 = vmand %vm2143, %vm2271
    %vm2400 = vmand %vm2144, %vm2272
    %vm2401 = vmand %vm2145, %vm2273
    %vm2402 = vmand %vm2146, %vm2274
    %vm2403 = vmand %vm2147, %vm2275
    %vm2404 = vmand %vm2148, %vm2276
    %vm2405 = vmand %vm2149, %vm2277
    %vm2406 = vmand %vm2150, %vm2278
    %vm2407 = vmand %vm2151, %vm2279
    %vm2408 = vmand %vm2152, %vm2280
    %vm2409 = vmand %vm2153, %vm2281
    %vm2410 = vmand %vm2154, %vm2282
    %vm2411 = vmand %vm2155, %vm2283
    %vm2412 = vmand %vm2156, %vm2284
    %vm2413 = vmand %vm2157, %vm2285
    %vm2414 = vmand %vm2158, %vm2286
    %vm2415 = vmand %vm2159, %vm2287
    %vm2416 = vmand %vm2160, %vm2288
    %vm2417 = vmand %vm2161, %vm2289
    %vm2418 = vmand %vm2162, %vm2290
    %vm2419 = vmand %vm2163, %vm2291
    %vm2420 = vmand %vm2164, %vm2292
    %vm2421 = vmand %vm2165, %vm2293
    %vm2422 = vmand %vm2166, %vm2294
    %vm2423 = vmand %vm2167, %vm2295
    %vm2424 = vmand %vm2168, %vm2296
    %vm2425 = vmand %vm2169, %vm2297
    %vm2426 = vmand %vm2170, %vm2298
    %vm2427 = vmand %vm2171, %vm2299
    %vm2428 = vmand %vm2172, %vm2300
    %vm2429 = vmand %vm2173, %vm2301
    %vm2430 = vmand %vm2174, %vm2302
    %vm2431 = vmand %vm2175, %vm2303
    %vm2432 = vmand %vm2176, %vm2304
    %vm2433 = vmand %vm2177, %vm2305
    %vm2434 = vmand %vm2178, %vm2306
    %vm2435 = vmand %vm2179, %vm2307
    %vm2436 = vmand %vm2180, %vm2308
    %vm2437 = vmand %vm2181, %vm2309
    %vm2438 = vmand %vm2182, %vm2310
    %vm2439 = vmand %vm2183, %vm2311
    %vm2440 = vmand %vm2184, %vm2312
    %vm2441 = vmand %vm2185, %vm2313
    %vm2442 = vmand %vm2186, %vm2314
    %vm2443 = vmand %vm2187, %vm2315
    %vm2444 = vmand %vm2188, %vm2316
    %vm2445 = vmand %vm2189, %vm2317
    %vm2446 = vmand %vm2190, %vm2318
    %vm2447 = vmand %vm2191, %vm2319
    %vm2448 = vmand %vm2192, %vm2320
    %vm2449 = vmand %vm2193, %vm2321
    %vm2450 = vmand %vm2194, %vm2322
    %vm2451 = vmand %vm2195, %vm2323
    %vm2452 = vmand %vm2196, %vm2324
    %vm2453 = vmand %vm2197, %vm2325
    %vm2454 = vmand %vm2198, %vm2326
    %vm2455 = vmand %vm2199, %vm2327
    %vm2456 = vmand %vm2200, %vm2328
    %vm2457 = vmand %vm2201, %vm2329
    %vm2458 = vmand %vm2202, %vm2330
    %vm2459 = vmand %vm2203, %vm2331
    %vm2460 = vmand %vm2204, %vm2332
    %vm2461 = vmand %vm2205, %vm2333
    %vm2462 = vmand %vm2206, %vm2334
    %vm2463 = vmand %vm2207, %vm2335
    %vm2464 = vmand %vm2208, %vm2336
    %vm2465 = vmand %vm2209, %vm2337
    %vm2466 = vmand %vm2210, %vm2338
    %vm2467 = vmand %vm2211, %vm2339
    %vm2468 = vmand %vm2212, %vm2340
    %vm2469 = vmand %vm2213, %vm2341
    %vm2470 = vmand %vm2214, %vm2342
    %vm2471 = vmand %vm2215, %vm2343
    %vm2472 = vmand %vm2216, %vm2344
    %vm2473 = vmand %vm2217, %vm2345
    %vm2474 = vmand %vm2218, %vm2346
    %vm2475 = vmand %vm2219, %vm2347
    %vm2476 = vmand %vm2220, %vm2348
    %vm2477 = vmand %vm2221, %vm2349
    %vm2478 = vmand %vm2222, %vm2350
    %vm2479 = vmand %vm2223, %vm2351
    %vm2480 = vmand %vm2224, %vm2352
    %vm2481 = vmand %vm2225, %vm2353
    %vm2482 = vmand %vm2226, %vm2354
    %v2483 = vsel %vm2355, 1, 0
    %v2484 = vsel %vm2356, 1, 0
    %v2485 = vsel %vm2357, 1, 0
    %v2486 = vsel %vm2358, 1, 0
    %v2487 = vsel %vm2359, 1, 0
    %v2488 = vsel %vm2360, 1, 0
    %v2489 = vsel %vm2361, 1, 0
    %v2490 = vsel %vm2362, 1, 0
    %v2491 = vsel %vm2363, 1, 0
    %v2492 = vsel %vm2364, 1, 0
    %v2493 = vsel %vm2365, 1, 0
    %v2494 = vsel %vm2366, 1, 0
    %v2495 = vsel %vm2367, 1, 0
    %v2496 = vsel %vm2368, 1, 0
    %v2497 = vsel %vm2369, 1, 0
    %v2498 = vsel %vm2370, 1, 0
    %v2499 = vsel %vm2371, 1, 0
    %v2500 = vsel %vm2372, 1, 0
    %v2501 = vsel %vm2373, 1, 0
    %v2502 = vsel %vm2374, 1, 0
    %v2503 = vsel %vm2375, 1, 0
    %v2504 = vsel %vm2376, 1, 0
    %v2505 = vsel %vm2377, 1, 0
    %v2506 = vsel %vm2378, 1, 0
    %v2507 = vsel %vm2379, 1, 0
    %v2508 = vsel %vm2380, 1, 0
    %v2509 = vsel %vm2381, 1, 0
    %v2510 = vsel %vm2382, 1, 0
    %v2511 = vsel %vm2383, 1, 0
    %v2512 = vsel %vm2384, 1, 0
    %v2513 = vsel %vm2385, 1, 0
    %v2514 = vsel %vm2386, 1, 0
    %v2515 = vsel %vm2387, 1, 0
    %v2516 = vsel %vm2388, 1, 0
    %v2517 = vsel %vm2389, 1, 0
    %v2518 = vsel %vm2390, 1, 0
    %v2519 = vsel %vm2391, 1, 0
    %v2520 = vsel %vm2392, 1, 0
    %v2521 = vsel %vm2393, 1, 0
    %v2522 = vsel %vm2394, 1, 0
    %v2523 = vsel %vm2395, 1, 0
    %v2524 = vsel %vm2396, 1, 0
    %v2525 = vsel %vm2397, 1, 0
    %v2526 = vsel %vm2398, 1, 0
    %v2527 = vsel %vm2399, 1, 0
    %v2528 = vsel %vm2400, 1, 0
    %v2529 = vsel %vm2401, 1, 0
    %v2530 = vsel %vm2402, 1, 0
    %v2531 = vsel %vm2403, 1, 0
    %v2532 = vsel %vm2404, 1, 0
    %v2533 = vsel %vm2405, 1, 0
    %v2534 = vsel %vm2406, 1, 0
    %v2535 = vsel %vm2407, 1, 0
    %v2536 = vsel %vm2408, 1, 0
    %v2537 = vsel %vm2409, 1, 0
    %v2538 = vsel %vm2410, 1, 0
    %v2539 = vsel %vm2411, 1, 0
    %v2540 = vsel %vm2412, 1, 0
    %v2541 = vsel %vm2413, 1, 0
    %v2542 = vsel %vm2414, 1, 0
    %v2543 = vsel %vm2415, 1, 0
    %v2544 = vsel %vm2416, 1, 0
    %v2545 = vsel %vm2417, 1, 0
    %v2546 = vsel %vm2418, 1, 0
    %v2547 = vsel %vm2419, 1, 0
    %v2548 = vsel %vm2420, 1, 0
    %v2549 = vsel %vm2421, 1, 0
    %v2550 = vsel %vm2422, 1, 0
    %v2551 = vsel %vm2423, 1, 0
    %v2552 = vsel %vm2424, 1, 0
    %v2553 = vsel %vm2425, 1, 0
    %v2554 = vsel %vm2426, 1, 0
    %v2555 = vsel %vm2427, 1, 0
    %v2556 = vsel %vm2428, 1, 0
    %v2557 = vsel %vm2429, 1, 0
    %v2558 = vsel %vm2430, 1, 0
    %v2559 = vsel %vm2431, 1, 0
    %v2560 = vsel %vm2432, 1, 0
    %v2561 = vsel %vm2433, 1, 0
    %v2562 = vsel %vm2434, 1, 0
    %v2563 = vsel %vm2435, 1, 0
    %v2564 = vsel %vm2436, 1, 0
    %v2565 = vsel %vm2437, 1, 0
    %v2566 = vsel %vm2438, 1, 0
    %v2567 = vsel %vm2439, 1, 0
    %v2568 = vsel %vm2440, 1, 0
    %v2569 = vsel %vm2441, 1, 0
    %v2570 = vsel %vm2442, 1, 0
    %v2571 = vsel %vm2443, 1, 0
    %v2572 = vsel %vm2444, 1, 0
    %v2573 = vsel %vm2445, 1, 0
    %v2574 = vsel %vm2446, 1, 0
    %v2575 = vsel %vm2447, 1, 0
    %v2576 = vsel %vm2448, 1, 0
    %v2577 = vsel %vm2449, 1, 0
    %v2578 = vsel %vm2450, 1, 0
    %v2579 = vsel %vm2451, 1, 0
    %v2580 = vsel %vm2452, 1, 0
    %v2581 = vsel %vm2453, 1, 0
    %v2582 = vsel %vm2454, 1, 0
    %v2583 = vsel %vm2455, 1, 0
    %v2584 = vsel %vm2456, 1, 0
    %v2585 = vsel %vm2457, 1, 0
    %v2586 = vsel %vm2458, 1, 0
    %v2587 = vsel %vm2459, 1, 0
    %v2588 = vsel %vm2460, 1, 0
    %v2589 = vsel %vm2461, 1, 0
    %v2590 = vsel %vm2462, 1, 0
    %v2591 = vsel %vm2463, 1, 0
    %v2592 = vsel %vm2464, 1, 0
    %v2593 = vsel %vm2465, 1, 0
    %v2594 = vsel %vm2466, 1, 0
    %v2595 = vsel %vm2467, 1, 0
    %v2596 = vsel %vm2468, 1, 0
    %v2597 = vsel %vm2469, 1, 0
    %v2598 = vsel %vm2470, 1, 0
    %v2599 = vsel %vm2471, 1, 0
    %v2600 = vsel %vm2472, 1, 0
    %v2601 = vsel %vm2473, 1, 0
    %v2602 = vsel %vm2474, 1, 0
    %v2603 = vsel %vm2475, 1, 0
    %v2604 = vsel %vm2476, 1, 0
    %v2605 = vsel %vm2477, 1, 0
    %v2606 = vsel %vm2478, 1, 0
    %v2607 = vsel %vm2479, 1, 0
    %v2608 = vsel %vm2480, 1, 0
    %v2609 = vsel %vm2481, 1, 0
    %v2610 = vsel %vm2482, 1, 0
    %v2611 = vcvt.s32.f32 %v2483
    %v2612 = vcvt.s32.f32 %v2484
    %v2613 = vcvt.s32.f32 %v2485
    %v2614 = vcvt.s32.f32 %v2486
    %v2615 = vcvt.s32.f32 %v2487
    %v2616 = vcvt.s32.f32 %v2488
    %v2617 = vcvt.s32.f32 %v2489
    %v2618 = vcvt.s32.f32 %v2490
    %v2619 = vcvt.s32.f32 %v2491
    %v2620 = vcvt.s32.f32 %v2492
    %v2621 = vcvt.s32.f32 %v2493
    %v2622 = vcvt.s32.f32 %v2494
    %v2623 = vcvt.s32.f32 %v2495
    %v2624 = vcvt.s32.f32 %v2496
    %v2625 = vcvt.s32.f32 %v2497
    %v2626 = vcvt.s32.f32 %v2498
    %v2627 = vcvt.s32.f32 %v2499
    %v2628 = vcvt.s32.f32 %v2500
    %v2629 = vcvt.s32.f32 %v2501
    %v2630 = vcvt.s32.f32 %v2502
    %v2631 = vcvt.s32.f32 %v2503
    %v2632 = vcvt.s32.f32 %v2504
    %v2633 = vcvt.s32.f32 %v2505
    %v2634 = vcvt.s32.f32 %v2506
    %v2635 = vcvt.s32.f32 %v2507
    %v2636 = vcvt.s32.f32 %v2508
    %v2637 = vcvt.s32.f32 %v2509
    %v2638 = vcvt.s32.f32 %v2510
    %v2639 = vcvt.s32.f32 %v2511
    %v2640 = vcvt.s32.f32 %v2512
    %v2641 = vcvt.s32.f32 %v2513
    %v2642 = vcvt.s32.f32 %v2514
    %v2643 = vcvt.s32.f32 %v2515
    %v2644 = vcvt.s32.f32 %v2516
    %v2645 = vcvt.s32.f32 %v2517
    %v2646 = vcvt.s32.f32 %v2518
    %v2647 = vcvt.s32.f32 %v2519
    %v2648 = vcvt.s32.f32 %v2520
    %v2649 = vcvt.s32.f32 %v2521
    %v2650 = vcvt.s32.f32 %v2522
    %v2651 = vcvt.s32.f32 %v2523
    %v2652 = vcvt.s32.f32 %v2524
    %v2653 = vcvt.s32.f32 %v2525
    %v2654 = vcvt.s32.f32 %v2526
    %v2655 = vcvt.s32.f32 %v2527
    %v2656 = vcvt.s32.f32 %v2528
    %v2657 = vcvt.s32.f32 %v2529
    %v2658 = vcvt.s32.f32 %v2530
    %v2659 = vcvt.s32.f32 %v2531
    %v2660 = vcvt.s32.f32 %v2532
    %v2661 = vcvt.s32.f32 %v2533
    %v2662 = vcvt.s32.f32 %v2534
    %v2663 = vcvt.s32.f32 %v2535
    %v2664 = vcvt.s32.f32 %v2536
    %v2665 = vcvt.s32.f32 %v2537
    %v2666 = vcvt.s32.f32 %v2538
    %v2667 = vcvt.s32.f32 %v2539
    %v2668 = vcvt.s32.f32 %v2540
    %v2669 = vcvt.s32.f32 %v2541
    %v2670 = vcvt.s32.f32 %v2542
    %v2671 = vcvt.s32.f32 %v2543
    %v2672 = vcvt.s32.f32 %v2544
    %v2673 = vcvt.s32.f32 %v2545
    %v2674 = vcvt.s32.f32 %v2546
    %v2675 = vcvt.s32.f32 %v2547
    %v2676 = vcvt.s32.f32 %v2548
    %v2677 = vcvt.s32.f32 %v2549
    %v2678 = vcvt.s32.f32 %v2550
    %v2679 = vcvt.s32.f32 %v2551
    %v2680 = vcvt.s32.f32 %v2552
    %v2681 = vcvt.s32.f32 %v2553
    %v2682 = vcvt.s32.f32 %v2554
    %v2683 = vcvt.s32.f32 %v2555
    %v2684 = vcvt.s32.f32 %v2556
    %v2685 = vcvt.s32.f32 %v2557
    %v2686 = vcvt.s32.f32 %v2558
    %v2687 = vcvt.s32.f32 %v2559
    %v2688 = vcvt.s32.f32 %v2560
    %v2689 = vcvt.s32.f32 %v2561
    %v2690 = vcvt.s32.f32 %v2562
    %v2691 = vcvt.s32.f32 %v2563
    %v2692 = vcvt.s32.f32 %v2564
    %v2693 = vcvt.s32.f32 %v2565
    %v2694 = vcvt.s32.f32 %v2566
    %v2695 = vcvt.s32.f32 %v2567
    %v2696 = vcvt.s32.f32 %v2568
    %v2697 = vcvt.s32.f32 %v2569
    %v2698 = vcvt.s32.f32 %v2570
    %v2699 = vcvt.s32.f32 %v2571
    %v2700 = vcvt.s32.f32 %v2572
    %v2701 = vcvt.s32.f32 %v2573
    %v2702 = vcvt.s32.f32 %v2574
    %v2703 = vcvt.s32.f32 %v2575
    %v2704 = vcvt.s32.f32 %v2576
    %v2705 = vcvt.s32.f32 %v2577
    %v2706 = vcvt.s32.f32 %v2578
    %v2707 = vcvt.s32.f32 %v2579
    %v2708 = vcvt.s32.f32 %v2580
    %v2709 = vcvt.s32.f32 %v2581
    %v2710 = vcvt.s32.f32 %v2582
    %v2711 = vcvt.s32.f32 %v2583
    %v2712 = vcvt.s32.f32 %v2584
    %v2713 = vcvt.s32.f32 %v2585
    %v2714 = vcvt.s32.f32 %v2586
    %v2715 = vcvt.s32.f32 %v2587
    %v2716 = vcvt.s32.f32 %v2588
    %v2717 = vcvt.s32.f32 %v2589
    %v2718 = vcvt.s32.f32 %v2590
    %v2719 = vcvt.s32.f32 %v2591
    %v2720 = vcvt.s32.f32 %v2592
    %v2721 = vcvt.s32.f32 %v2593
    %v2722 = vcvt.s32.f32 %v2594
    %v2723 = vcvt.s32.f32 %v2595
    %v2724 = vcvt.s32.f32 %v2596
    %v2725 = vcvt.s32.f32 %v2597
    %v2726 = vcvt.s32.f32 %v2598
    %v2727 = vcvt.s32.f32 %v2599
    %v2728 = vcvt.s32.f32 %v2600
    %v2729 = vcvt.s32.f32 %v2601
    %v2730 = vcvt.s32.f32 %v2602
    %v2731 = vcvt.s32.f32 %v2603
    %v2732 = vcvt.s32.f32 %v2604
    %v2733 = vcvt.s32.f32 %v2605
    %v2734 = vcvt.s32.f32 %v2606
    %v2735 = vcvt.s32.f32 %v2607
    %v2736 = vcvt.s32.f32 %v2608
    %v2737 = vcvt.s32.f32 %v2609
    %v2738 = vcvt.s32.f32 %v2610
    %v2739 = vadd.f32 %v1971, %v2611
    %v2740 = vadd.f32 %v1972, %v2612
    %v2741 = vadd.f32 %v1973, %v2613
    %v2742 = vadd.f32 %v1974, %v2614
    %v2743 = vadd.f32 %v1975, %v2615
    %v2744 = vadd.f32 %v1976, %v2616
    %v2745 = vadd.f32 %v1977, %v2617
    %v2746 = vadd.f32 %v1978, %v2618
    %v2747 = vadd.f32 %v1979, %v2619
    %v2748 = vadd.f32 %v1980, %v2620
    %v2749 = vadd.f32 %v1981, %v2621
    %v2750 = vadd.f32 %v1982, %v2622
    %v2751 = vadd.f32 %v1983, %v2623
    %v2752 = vadd.f32 %v1984, %v2624
    %v2753 = vadd.f32 %v1985, %v2625
    %v2754 = vadd.f32 %v1986, %v2626
    %v2755 = vadd.f32 %v1987, %v2627
    %v2756 = vadd.f32 %v1988, %v2628
    %v2757 = vadd.f32 %v1989, %v2629
    %v2758 = vadd.f32 %v1990, %v2630
    %v2759 = vadd.f32 %v1991, %v2631
    %v2760 = vadd.f32 %v1992, %v2632
    %v2761 = vadd.f32 %v1993, %v2633
    %v2762 = vadd.f32 %v1994, %v2634
    %v2763 = vadd.f32 %v1995, %v2635
    %v2764 = vadd.f32 %v1996, %v2636
    %v2765 = vadd.f32 %v1997, %v2637
    %v2766 = vadd.f32 %v1998, %v2638
    %v2767 = vadd.f32 %v1999, %v2639
    %v2768 = vadd.f32 %v2000, %v2640
    %v2769 = vadd.f32 %v2001, %v2641
    %v2770 = vadd.f32 %v2002, %v2642
    %v2771 = vadd.f32 %v2003, %v2643
    %v2772 = vadd.f32 %v2004, %v2644
    %v2773 = vadd.f32 %v2005, %v2645
    %v2774 = vadd.f32 %v2006, %v2646
    %v2775 = vadd.f32 %v2007, %v2647
    %v2776 = vadd.f32 %v2008, %v2648
    %v2777 = vadd.f32 %v2009, %v2649
    %v2778 = vadd.f32 %v2010, %v2650
    %v2779 = vadd.f32 %v2011, %v2651
    %v2780 = vadd.f32 %v2012, %v2652
    %v2781 = vadd.f32 %v2013, %v2653
    %v2782 = vadd.f32 %v2014, %v2654
    %v2783 = vadd.f32 %v2015, %v2655
    %v2784 = vadd.f32 %v2016, %v2656
    %v2785 = vadd.f32 %v2017, %v2657
    %v2786 = vadd.f32 %v2018, %v2658
    %v2787 = vadd.f32 %v2019, %v2659
    %v2788 = vadd.f32 %v2020, %v2660
    %v2789 = vadd.f32 %v2021, %v2661
    %v2790 = vadd.f32 %v2022, %v2662
    %v2791 = vadd.f32 %v2023, %v2663
    %v2792 = vadd.f32 %v2024, %v2664
    %v2793 = vadd.f32 %v2025, %v2665
    %v2794 = vadd.f32 %v2026, %v2666
    %v2795 = vadd.f32 %v2027, %v2667
    %v2796 = vadd.f32 %v2028, %v2668
    %v2797 = vadd.f32 %v2029, %v2669
    %v2798 = vadd.f32 %v2030, %v2670
    %v2799 = vadd.f32 %v2031, %v2671
    %v2800 = vadd.f32 %v2032, %v2672
    %v2801 = vadd.f32 %v2033, %v2673
    %v2802 = vadd.f32 %v2034, %v2674
    %v2803 = vadd.f32 %v2035, %v2675
    %v2804 = vadd.f32 %v2036, %v2676
    %v2805 = vadd.f32 %v2037, %v2677
    %v2806 = vadd.f32 %v2038, %v2678
    %v2807 = vadd.f32 %v2039, %v2679
    %v2808 = vadd.f32 %v2040, %v2680
    %v2809 = vadd.f32 %v2041, %v2681
    %v2810 = vadd.f32 %v2042, %v2682
    %v2811 = vadd.f32 %v2043, %v2683
    %v2812 = vadd.f32 %v2044, %v2684
    %v2813 = vadd.f32 %v2045, %v2685
    %v2814 = vadd.f32 %v2046, %v2686
    %v2815 = vadd.f32 %v2047, %v2687
    %v2816 = vadd.f32 %v2048, %v2688
    %v2817 = vadd.f32 %v2049, %v2689
    %v2818 = vadd.f32 %v2050, %v2690
    %v2819 = vadd.f32 %v2051, %v2691
    %v2820 = vadd.f32 %v2052, %v2692
    %v2821 = vadd.f32 %v2053, %v2693
    %v2822 = vadd.f32 %v2054, %v2694
    %v2823 = vadd.f32 %v2055, %v2695
    %v2824 = vadd.f32 %v2056, %v2696
    %v2825 = vadd.f32 %v2057, %v2697
    %v2826 = vadd.f32 %v2058, %v2698
    %v2827 = vadd.f32 %v2059, %v2699
    %v2828 = vadd.f32 %v2060, %v2700
    %v2829 = vadd.f32 %v2061, %v2701
    %v2830 = vadd.f32 %v2062, %v2702
    %v2831 = vadd.f32 %v2063, %v2703
    %v2832 = vadd.f32 %v2064, %v2704
    %v2833 = vadd.f32 %v2065, %v2705
    %v2834 = vadd.f32 %v2066, %v2706
    %v2835 = vadd.f32 %v2067, %v2707
    %v2836 = vadd.f32 %v2068, %v2708
    %v2837 = vadd.f32 %v2069, %v2709
    %v2838 = vadd.f32 %v2070, %v2710
    %v2839 = vadd.f32 %v2071, %v2711
    %v2840 = vadd.f32 %v2072, %v2712
    %v2841 = vadd.f32 %v2073, %v2713
    %v2842 = vadd.f32 %v2074, %v2714
    %v2843 = vadd.f32 %v2075, %v2715
    %v2844 = vadd.f32 %v2076, %v2716
    %v2845 = vadd.f32 %v2077, %v2717
    %v2846 = vadd.f32 %v2078, %v2718
    %v2847 = vadd.f32 %v2079, %v2719
    %v2848 = vadd.f32 %v2080, %v2720
    %v2849 = vadd.f32 %v2081, %v2721
    %v2850 = vadd.f32 %v2082, %v2722
    %v2851 = vadd.f32 %v2083, %v2723
    %v2852 = vadd.f32 %v2084, %v2724
    %v2853 = vadd.f32 %v2085, %v2725
    %v2854 = vadd.f32 %v2086, %v2726
    %v2855 = vadd.f32 %v2087, %v2727
    %v2856 = vadd.f32 %v2088, %v2728
    %v2857 = vadd.f32 %v2089, %v2729
    %v2858 = vadd.f32 %v2090, %v2730
    %v2859 = vadd.f32 %v2091, %v2731
    %v2860 = vadd.f32 %v2092, %v2732
    %v2861 = vadd.f32 %v2093, %v2733
    %v2862 = vadd.f32 %v2094, %v2734
    %v2863 = vadd.f32 %v2095, %v2735
    %v2864 = vadd.f32 %v2096, %v2736
    %v2865 = vadd.f32 %v2097, %v2737
    %v2866 = vadd.f32 %v2098, %v2738
    %v2867 = vmul.f32 %v692, %v2739
    %v2868 = vmul.f32 %v695, %v2740
    %v2869 = vmul.f32 %v700, %v2741
    %v2870 = vmul.f32 %v703, %v2742
    %v2871 = vmul.f32 %v708, %v2743
    %v2872 = vmul.f32 %v711, %v2744
    %v2873 = vmul.f32 %v716, %v2745
    %v2874 = vmul.f32 %v719, %v2746
    %v2875 = vmul.f32 %v724, %v2747
    %v2876 = vmul.f32 %v727, %v2748
    %v2877 = vmul.f32 %v732, %v2749
    %v2878 = vmul.f32 %v735, %v2750
    %v2879 = vmul.f32 %v740, %v2751
    %v2880 = vmul.f32 %v743, %v2752
    %v2881 = vmul.f32 %v748, %v2753
    %v2882 = vmul.f32 %v751, %v2754
    %v2883 = vmul.f32 %v756, %v2755
    %v2884 = vmul.f32 %v759, %v2756
    %v2885 = vmul.f32 %v764, %v2757
    %v2886 = vmul.f32 %v767, %v2758
    %v2887 = vmul.f32 %v772, %v2759
    %v2888 = vmul.f32 %v775, %v2760
    %v2889 = vmul.f32 %v780, %v2761
    %v2890 = vmul.f32 %v783, %v2762
    %v2891 = vmul.f32 %v788, %v2763
    %v2892 = vmul.f32 %v791, %v2764
    %v2893 = vmul.f32 %v796, %v2765
    %v2894 = vmul.f32 %v799, %v2766
    %v2895 = vmul.f32 %v804, %v2767
    %v2896 = vmul.f32 %v807, %v2768
    %v2897 = vmul.f32 %v812, %v2769
    %v2898 = vmul.f32 %v815, %v2770
    %v2899 = vmul.f32 %v820, %v2771
    %v2900 = vmul.f32 %v823, %v2772
    %v2901 = vmul.f32 %v828, %v2773
    %v2902 = vmul.f32 %v831, %v2774
    %v2903 = vmul.f32 %v836, %v2775
    %v2904 = vmul.f32 %v839, %v2776
    %v2905 = vmul.f32 %v844, %v2777
    %v2906 = vmul.f32 %v847, %v2778
    %v2907 = vmul.f32 %v852, %v2779
    %v2908 = vmul.f32 %v855, %v2780
    %v2909 = vmul.f32 %v860, %v2781
    %v2910 = vmul.f32 %v863, %v2782
    %v2911 = vmul.f32 %v868, %v2783
    %v2912 = vmul.f32 %v871, %v2784
    %v2913 = vmul.f32 %v876, %v2785
    %v2914 = vmul.f32 %v879, %v2786
    %v2915 = vmul.f32 %v884, %v2787
    %v2916 = vmul.f32 %v887, %v2788
    %v2917 = vmul.f32 %v892, %v2789
    %v2918 = vmul.f32 %v895, %v2790
    %v2919 = vmul.f32 %v900, %v2791
    %v2920 = vmul.f32 %v903, %v2792
    %v2921 = vmul.f32 %v908, %v2793
    %v2922 = vmul.f32 %v911, %v2794
    %v2923 = vmul.f32 %v916, %v2795
    %v2924 = vmul.f32 %v919, %v2796
    %v2925 = vmul.f32 %v924, %v2797
    %v2926 = vmul.f32 %v927, %v2798
    %v2927 = vmul.f32 %v932, %v2799
    %v2928 = vmul.f32 %v935, %v2800
    %v2929 = vmul.f32 %v940, %v2801
    %v2930 = vmul.f32 %v943, %v2802
    %v2931 = vmul.f32 %v948, %v2803
    %v2932 = vmul.f32 %v951, %v2804
    %v2933 = vmul.f32 %v956, %v2805
    %v2934 = vmul.f32 %v959, %v2806
    %v2935 = vmul.f32 %v964, %v2807
    %v2936 = vmul.f32 %v967, %v2808
    %v2937 = vmul.f32 %v972, %v2809
    %v2938 = vmul.f32 %v975, %v2810
    %v2939 = vmul.f32 %v980, %v2811
    %v2940 = vmul.f32 %v983, %v2812
    %v2941 = vmul.f32 %v988, %v2813
    %v2942 = vmul.f32 %v991, %v2814
    %v2943 = vmul.f32 %v996, %v2815
    %v2944 = vmul.f32 %v999, %v2816
    %v2945 = vmul.f32 %v1004, %v2817
    %v2946 = vmul.f32 %v1007, %v2818
    %v2947 = vmul.f32 %v1012, %v2819
    %v2948 = vmul.f32 %v1015, %v2820
    %v2949 = vmul.f32 %v1020, %v2821
    %v2950 = vmul.f32 %v1023, %v2822
    %v2951 = vmul.f32 %v1028, %v2823
    %v2952 = vmul.f32 %v1031, %v2824
    %v2953 = vmul.f32 %v1036, %v2825
    %v2954 = vmul.f32 %v1039, %v2826
    %v2955 = vmul.f32 %v1044, %v2827
    %v2956 = vmul.f32 %v1047, %v2828
    %v2957 = vmul.f32 %v1052, %v2829
    %v2958 = vmul.f32 %v1055, %v2830
    %v2959 = vmul.f32 %v1060, %v2831
    %v2960 = vmul.f32 %v1063, %v2832
    %v2961 = vmul.f32 %v1068, %v2833
    %v2962 = vmul.f32 %v1071, %v2834
    %v2963 = vmul.f32 %v1076, %v2835
    %v2964 = vmul.f32 %v1079, %v2836
    %v2965 = vmul.f32 %v1084, %v2837
    %v2966 = vmul.f32 %v1087, %v2838
    %v2967 = vmul.f32 %v1092, %v2839
    %v2968 = vmul.f32 %v1095, %v2840
    %v2969 = vmul.f32 %v1100, %v2841
    %v2970 = vmul.f32 %v1103, %v2842
    %v2971 = vmul.f32 %v1108, %v2843
    %v2972 = vmul.f32 %v1111, %v2844
    %v2973 = vmul.f32 %v1116, %v2845
    %v2974 = vmul.f32 %v1119, %v2846
    %v2975 = vmul.f32 %v1124, %v2847
    %v2976 = vmul.f32 %v1127, %v2848
    %v2977 = vmul.f32 %v1132, %v2849
    %v2978 = vmul.f32 %v1135, %v2850
    %v2979 = vmul.f32 %v1140, %v2851
    %v2980 = vmul.f32 %v1143, %v2852
    %v2981 = vmul.f32 %v1148, %v2853
    %v2982 = vmul.f32 %v1151, %v2854
    %v2983 = vmul.f32 %v1156, %v2855
    %v2984 = vmul.f32 %v1159, %v2856
    %v2985 = vmul.f32 %v1164, %v2857
    %v2986 = vmul.f32 %v1167, %v2858
    %v2987 = vmul.f32 %v1172, %v2859
    %v2988 = vmul.f32 %v1175, %v2860
    %v2989 = vmul.f32 %v1180, %v2861
    %v2990 = vmul.f32 %v1183, %v2862
    %v2991 = vmul.f32 %v1188, %v2863
    %v2992 = vmul.f32 %v1191, %v2864
    %v2993 = vmul.f32 %v1196, %v2865
    %v2994 = vmul.f32 %v1199, %v2866
    %v2995 = vadd.f32 %v2867, %v2868
    %v2996 = vadd.f32 %v2995, %v2869
    %v2997 = vadd.f32 %v2996, %v2870
    %v2998 = vadd.f32 %v2997, %v2871
    %v2999 = vadd.f32 %v2998, %v2872
    %v3000 = vadd.f32 %v2999, %v2873
    %v3001 = vadd.f32 %v3000, %v2874
    %v3002 = vadd.f32 %v3001, %v2875
    %v3003 = vadd.f32 %v3002, %v2876
    %v3004 = vadd.f32 %v3003, %v2877
    %v3005 = vadd.f32 %v3004, %v2878
    %v3006 = vadd.f32 %v3005, %v2879
    %v3007 = vadd.f32 %v3006, %v2880
    %v3008 = vadd.f32 %v3007, %v2881
    %v3009 = vadd.f32 %v3008, %v2882
    %v3010 = vadd.f32 %v3009, %v2883
    %v3011 = vadd.f32 %v3010, %v2884
    %v3012 = vadd.f32 %v3011, %v2885
    %v3013 = vadd.f32 %v3012, %v2886
    %v3014 = vadd.f32 %v3013, %v2887
    %v3015 = vadd.f32 %v3014, %v2888
    %v3016 = vadd.f32 %v3015, %v2889
    %v3017 = vadd.f32 %v3016, %v2890
    %v3018 = vadd.f32 %v3017, %v2891
    %v3019 = vadd.f32 %v3018, %v2892
    %v3020 = vadd.f32 %v3019, %v2893
    %v3021 = vadd.f32 %v3020, %v2894
    %v3022 = vadd.f32 %v3021, %v2895
    %v3023 = vadd.f32 %v3022, %v2896
    %v3024 = vadd.f32 %v3023, %v2897
    %v3025 = vadd.f32 %v3024, %v2898
    %v3026 = vadd.f32 %v3025, %v2899
    %v3027 = vadd.f32 %v3026, %v2900
    %v3028 = vadd.f32 %v3027, %v2901
    %v3029 = vadd.f32 %v3028, %v2902
    %v3030 = vadd.f32 %v3029, %v2903
    %v3031 = vadd.f32 %v3030, %v2904
    %v3032 = vadd.f32 %v3031, %v2905
    %v3033 = vadd.f32 %v3032, %v2906
    %v3034 = vadd.f32 %v3033, %v2907
    %v3035 = vadd.f32 %v3034, %v2908
    %v3036 = vadd.f32 %v3035, %v2909
    %v3037 = vadd.f32 %v3036, %v2910
    %v3038 = vadd.f32 %v3037, %v2911
    %v3039 = vadd.f32 %v3038, %v2912
    %v3040 = vadd.f32 %v3039, %v2913
    %v3041 = vadd.f32 %v3040, %v2914
    %v3042 = vadd.f32 %v3041, %v2915
    %v3043 = vadd.f32 %v3042, %v2916
    %v3044 = vadd.f32 %v3043, %v2917
    %v3045 = vadd.f32 %v3044, %v2918
    %v3046 = vadd.f32 %v3045, %v2919
    %v3047 = vadd.f32 %v3046, %v2920
    %v3048 = vadd.f32 %v3047, %v2921
    %v3049 = vadd.f32 %v3048, %v2922
    %v3050 = vadd.f32 %v3049, %v2923
    %v3051 = vadd.f32 %v3050, %v2924
    %v3052 = vadd.f32 %v3051, %v2925
    %v3053 = vadd.f32 %v3052, %v2926
    %v3054 = vadd.f32 %v3053, %v2927
    %v3055 = vadd.f32 %v3054, %v2928
    %v3056 = vadd.f32 %v3055, %v2929
    %v3057 = vadd.f32 %v3056, %v2930
    %v3058 = vadd.f32 %v3057, %v2931
    %v3059 = vadd.f32 %v3058, %v2932
    %v3060 = vadd.f32 %v3059, %v2933
    %v3061 = vadd.f32 %v3060, %v2934
    %v3062 = vadd.f32 %v3061, %v2935
    %v3063 = vadd.f32 %v3062, %v2936
    %v3064 = vadd.f32 %v3063, %v2937
    %v3065 = vadd.f32 %v3064, %v2938
    %v3066 = vadd.f32 %v3065, %v2939
    %v3067 = vadd.f32 %v3066, %v2940
    %v3068 = vadd.f32 %v3067, %v2941
    %v3069 = vadd.f32 %v3068, %v2942
    %v3070 = vadd.f32 %v3069, %v2943
    %v3071 = vadd.f32 %v3070, %v2944
    %v3072 = vadd.f32 %v3071, %v2945
    %v3073 = vadd.f32 %v3072, %v2946
    %v3074 = vadd.f32 %v3073, %v2947
    %v3075 = vadd.f32 %v3074, %v2948
    %v3076 = vadd.f32 %v3075, %v2949
    %v3077 = vadd.f32 %v3076, %v2950
    %v3078 = vadd.f32 %v3077, %v2951
    %v3079 = vadd.f32 %v3078, %v2952
    %v3080 = vadd.f32 %v3079, %v2953
    %v3081 = vadd.f32 %v3080, %v2954
    %v3082 = vadd.f32 %v3081, %v2955
    %v3083 = vadd.f32 %v3082, %v2956
    %v3084 = vadd.f32 %v3083, %v2957
    %v3085 = vadd.f32 %v3084, %v2958
    %v3086 = vadd.f32 %v3085, %v2959
    %v3087 = vadd.f32 %v3086, %v2960
    %v3088 = vadd.f32 %v3087, %v2961
    %v3089 = vadd.f32 %v3088, %v2962
    %v3090 = vadd.f32 %v3089, %v2963
    %v3091 = vadd.f32 %v3090, %v2964
    %v3092 = vadd.f32 %v3091, %v2965
    %v3093 = vadd.f32 %v3092, %v2966
    %v3094 = vadd.f32 %v3093, %v2967
    %v3095 = vadd.f32 %v3094, %v2968
    %v3096 = vadd.f32 %v3095, %v2969
    %v3097 = vadd.f32 %v3096, %v2970
    %v3098 = vadd.f32 %v3097, %v2971
    %v3099 = vadd.f32 %v3098, %v2972
    %v3100 = vadd.f32 %v3099, %v2973
    %v3101 = vadd.f32 %v3100, %v2974
    %v3102 = vadd.f32 %v3101, %v2975
    %v3103 = vadd.f32 %v3102, %v2976
    %v3104 = vadd.f32 %v3103, %v2977
    %v3105 = vadd.f32 %v3104, %v2978
    %v3106 = vadd.f32 %v3105, %v2979
    %v3107 = vadd.f32 %v3106, %v2980
    %v3108 = vadd.f32 %v3107, %v2981
    %v3109 = vadd.f32 %v3108, %v2982
    %v3110 = vadd.f32 %v3109, %v2983
    %v3111 = vadd.f32 %v3110, %v2984
    %v3112 = vadd.f32 %v3111, %v2985
    %v3113 = vadd.f32 %v3112, %v2986
    %v3114 = vadd.f32 %v3113, %v2987
    %v3115 = vadd.f32 %v3114, %v2988
    %v3116 = vadd.f32 %v3115, %v2989
    %v3117 = vadd.f32 %v3116, %v2990
    %v3118 = vadd.f32 %v3117, %v2991
    %v3119 = vadd.f32 %v3118, %v2992
    %v3120 = vadd.f32 %v3119, %v2993
    %v3121 = vadd.f32 %v3120, %v2994
    %v3122 = vrot.slane %v3121, 4
    %v3123 = vadd.f32 %v3121, %v3122
    %v3124 = vrot.slane %v3123, 2
    %v3125 = vadd.f32 %v3123, %v3124
    %v3126 = vrot.slane %v3125, 1
    %v3127 = vadd.f32 %v3125, %v3126
    %v3128 = vmul.f32 %v692, %v692
    %v3129 = vmul.f32 %v695, %v695
    %v3130 = vmul.f32 %v700, %v700
    %v3131 = vmul.f32 %v703, %v703
    %v3132 = vmul.f32 %v708, %v708
    %v3133 = vmul.f32 %v711, %v711
    %v3134 = vmul.f32 %v716, %v716
    %v3135 = vmul.f32 %v719, %v719
    %v3136 = vmul.f32 %v724, %v724
    %v3137 = vmul.f32 %v727, %v727
    %v3138 = vmul.f32 %v732, %v732
    %v3139 = vmul.f32 %v735, %v735
    %v3140 = vmul.f32 %v740, %v740
    %v3141 = vmul.f32 %v743, %v743
    %v3142 = vmul.f32 %v748, %v748
    %v3143 = vmul.f32 %v751, %v751
    %v3144 = vmul.f32 %v756, %v756
    %v3145 = vmul.f32 %v759, %v759
    %v3146 = vmul.f32 %v764, %v764
    %v3147 = vmul.f32 %v767, %v767
    %v3148 = vmul.f32 %v772, %v772
    %v3149 = vmul.f32 %v775, %v775
    %v3150 = vmul.f32 %v780, %v780
    %v3151 = vmul.f32 %v783, %v783
    %v3152 = vmul.f32 %v788, %v788
    %v3153 = vmul.f32 %v791, %v791
    %v3154 = vmul.f32 %v796, %v796
    %v3155 = vmul.f32 %v799, %v799
    %v3156 = vmul.f32 %v804, %v804
    %v3157 = vmul.f32 %v807, %v807
    %v3158 = vmul.f32 %v812, %v812
    %v3159 = vmul.f32 %v815, %v815
    %v3160 = vmul.f32 %v820, %v820
    %v3161 = vmul.f32 %v823, %v823
    %v3162 = vmul.f32 %v828, %v828
    %v3163 = vmul.f32 %v831, %v831
    %v3164 = vmul.f32 %v836, %v836
    %v3165 = vmul.f32 %v839, %v839
    %v3166 = vmul.f32 %v844, %v844
    %v3167 = vmul.f32 %v847, %v847
    %v3168 = vmul.f32 %v852, %v852
    %v3169 = vmul.f32 %v855, %v855
    %v3170 = vmul.f32 %v860, %v860
    %v3171 = vmul.f32 %v863, %v863
    %v3172 = vmul.f32 %v868, %v868
    %v3173 = vmul.f32 %v871, %v871
    %v3174 = vmul.f32 %v876, %v876
    %v3175 = vmul.f32 %v879, %v879
    %v3176 = vmul.f32 %v884, %v884
    %v3177 = vmul.f32 %v887, %v887
    %v3178 = vmul.f32 %v892, %v892
    %v3179 = vmul.f32 %v895, %v895
    %v3180 = vmul.f32 %v900, %v900
    %v3181 = vmul.f32 %v903, %v903
    %v3182 = vmul.f32 %v908, %v908
    %v3183 = vmul.f32 %v911, %v911
    %v3184 = vmul.f32 %v916, %v916
    %v3185 = vmul.f32 %v919, %v919
    %v3186 = vmul.f32 %v924, %v924
    %v3187 = vmul.f32 %v927, %v927
    %v3188 = vmul.f32 %v932, %v932
    %v3189 = vmul.f32 %v935, %v935
    %v3190 = vmul.f32 %v940, %v940
    %v3191 = vmul.f32 %v943, %v943
    %v3192 = vmul.f32 %v948, %v948
    %v3193 = vmul.f32 %v951, %v951
    %v3194 = vmul.f32 %v956, %v956
    %v3195 = vmul.f32 %v959, %v959
    %v3196 = vmul.f32 %v964, %v964
    %v3197 = vmul.f32 %v967, %v967
    %v3198 = vmul.f32 %v972, %v972
    %v3199 = vmul.f32 %v975, %v975
    %v3200 = vmul.f32 %v980, %v980
    %v3201 = vmul.f32 %v983, %v983
    %v3202 = vmul.f32 %v988, %v988
    %v3203 = vmul.f32 %v991, %v991
    %v3204 = vmul.f32 %v996, %v996
    %v3205 = vmul.f32 %v999, %v999
    %v3206 = vmul.f32 %v1004, %v1004
    %v3207 = vmul.f32 %v1007, %v1007
    %v3208 = vmul.f32 %v1012, %v1012
    %v3209 = vmul.f32 %v1015, %v1015
    %v3210 = vmul.f32 %v1020, %v1020
    %v3211 = vmul.f32 %v1023, %v1023
    %v3212 = vmul.f32 %v1028, %v1028
    %v3213 = vmul.f32 %v1031, %v1031
    %v3214 = vmul.f32 %v1036, %v1036
    %v3215 = vmul.f32 %v1039, %v1039
    %v3216 = vmul.f32 %v1044, %v1044
    %v3217 = vmul.f32 %v1047, %v1047
    %v3218 = vmul.f32 %v1052, %v1052
    %v3219 = vmul.f32 %v1055, %v1055
    %v3220 = vmul.f32 %v1060, %v1060
    %v3221 = vmul.f32 %v1063, %v1063
    %v3222 = vmul.f32 %v1068, %v1068
    %v3223 = vmul.f32 %v1071, %v1071
    %v3224 = vmul.f32 %v1076, %v1076
    %v3225 = vmul.f32 %v1079, %v1079
    %v3226 = vmul.f32 %v1084, %v1084
    %v3227 = vmul.f32 %v1087, %v1087
    %v3228 = vmul.f32 %v1092, %v1092
    %v3229 = vmul.f32 %v1095, %v1095
    %v3230 = vmul.f32 %v1100, %v1100
    %v3231 = vmul.f32 %v1103, %v1103
    %v3232 = vmul.f32 %v1108, %v1108
    %v3233 = vmul.f32 %v1111, %v1111
    %v3234 = vmul.f32 %v1116, %v1116
    %v3235 = vmul.f32 %v1119, %v1119
    %v3236 = vmul.f32 %v1124, %v1124
    %v3237 = vmul.f32 %v1127, %v1127
    %v3238 = vmul.f32 %v1132, %v1132
    %v3239 = vmul.f32 %v1135, %v1135
    %v3240 = vmul.f32 %v1140, %v1140
    %v3241 = vmul.f32 %v1143, %v1143
    %v3242 = vmul.f32 %v1148, %v1148
    %v3243 = vmul.f32 %v1151, %v1151
    %v3244 = vmul.f32 %v1156, %v1156
    %v3245 = vmul.f32 %v1159, %v1159
    %v3246 = vmul.f32 %v1164, %v1164
    %v3247 = vmul.f32 %v1167, %v1167
    %v3248 = vmul.f32 %v1172, %v1172
    %v3249 = vmul.f32 %v1175, %v1175
    %v3250 = vmul.f32 %v1180, %v1180
    %v3251 = vmul.f32 %v1183, %v1183
    %v3252 = vmul.f32 %v1188, %v1188
    %v3253 = vmul.f32 %v1191, %v1191
    %v3254 = vmul.f32 %v1196, %v1196
    %v3255 = vmul.f32 %v1199, %v1199
    %v3256 = vmul.f32 %v3128, %v2739
    %v3257 = vmul.f32 %v3129, %v2740
    %v3258 = vmul.f32 %v3130, %v2741
    %v3259 = vmul.f32 %v3131, %v2742
    %v3260 = vmul.f32 %v3132, %v2743
    %v3261 = vmul.f32 %v3133, %v2744
    %v3262 = vmul.f32 %v3134, %v2745
    %v3263 = vmul.f32 %v3135, %v2746
    %v3264 = vmul.f32 %v3136, %v2747
    %v3265 = vmul.f32 %v3137, %v2748
    %v3266 = vmul.f32 %v3138, %v2749
    %v3267 = vmul.f32 %v3139, %v2750
    %v3268 = vmul.f32 %v3140, %v2751
    %v3269 = vmul.f32 %v3141, %v2752
    %v3270 = vmul.f32 %v3142, %v2753
    %v3271 = vmul.f32 %v3143, %v2754
    %v3272 = vmul.f32 %v3144, %v2755
    %v3273 = vmul.f32 %v3145, %v2756
    %v3274 = vmul.f32 %v3146, %v2757
    %v3275 = vmul.f32 %v3147, %v2758
    %v3276 = vmul.f32 %v3148, %v2759
    %v3277 = vmul.f32 %v3149, %v2760
    %v3278 = vmul.f32 %v3150, %v2761
    %v3279 = vmul.f32 %v3151, %v2762
    %v3280 = vmul.f32 %v3152, %v2763
    %v3281 = vmul.f32 %v3153, %v2764
    %v3282 = vmul.f32 %v3154, %v2765
    %v3283 = vmul.f32 %v3155, %v2766
    %v3284 = vmul.f32 %v3156, %v2767
    %v3285 = vmul.f32 %v3157, %v2768
    %v3286 = vmul.f32 %v3158, %v2769
    %v3287 = vmul.f32 %v3159, %v2770
    %v3288 = vmul.f32 %v3160, %v2771
    %v3289 = vmul.f32 %v3161, %v2772
    %v3290 = vmul.f32 %v3162, %v2773
    %v3291 = vmul.f32 %v3163, %v2774
    %v3292 = vmul.f32 %v3164, %v2775
    %v3293 = vmul.f32 %v3165, %v2776
    %v3294 = vmul.f32 %v3166, %v2777
    %v3295 = vmul.f32 %v3167, %v2778
    %v3296 = vmul.f32 %v3168, %v2779
    %v3297 = vmul.f32 %v3169, %v2780
    %v3298 = vmul.f32 %v3170, %v2781
    %v3299 = vmul.f32 %v3171, %v2782
    %v3300 = vmul.f32 %v3172, %v2783
    %v3301 = vmul.f32 %v3173, %v2784
    %v3302 = vmul.f32 %v3174, %v2785
    %v3303 = vmul.f32 %v3175, %v2786
    %v3304 = vmul.f32 %v3176, %v2787
    %v3305 = vmul.f32 %v3177, %v2788
    %v3306 = vmul.f32 %v3178, %v2789
    %v3307 = vmul.f32 %v3179, %v2790
    %v3308 = vmul.f32 %v3180, %v2791
    %v3309 = vmul.f32 %v3181, %v2792
    %v3310 = vmul.f32 %v3182, %v2793
    %v3311 = vmul.f32 %v3183, %v2794
    %v3312 = vmul.f32 %v3184, %v2795
    %v3313 = vmul.f32 %v3185, %v2796
    %v3314 = vmul.f32 %v3186, %v2797
    %v3315 = vmul.f32 %v3187, %v2798
    %v3316 = vmul.f32 %v3188, %v2799
    %v3317 = vmul.f32 %v3189, %v2800
    %v3318 = vmul.f32 %v3190, %v2801
    %v3319 = vmul.f32 %v3191, %v2802
    %v3320 = vmul.f32 %v3192, %v2803
    %v3321 = vmul.f32 %v3193, %v2804
    %v3322 = vmul.f32 %v3194, %v2805
    %v3323 = vmul.f32 %v3195, %v2806
    %v3324 = vmul.f32 %v3196, %v2807
    %v3325 = vmul.f32 %v3197, %v2808
    %v3326 = vmul.f32 %v3198, %v2809
    %v3327 = vmul.f32 %v3199, %v2810
    %v3328 = vmul.f32 %v3200, %v2811
    %v3329 = vmul.f32 %v3201, %v2812
    %v3330 = vmul.f32 %v3202, %v2813
    %v3331 = vmul.f32 %v3203, %v2814
    %v3332 = vmul.f32 %v3204, %v2815
    %v3333 = vmul.f32 %v3205, %v2816
    %v3334 = vmul.f32 %v3206, %v2817
    %v3335 = vmul.f32 %v3207, %v2818
    %v3336 = vmul.f32 %v3208, %v2819
    %v3337 = vmul.f32 %v3209, %v2820
    %v3338 = vmul.f32 %v3210, %v2821
    %v3339 = vmul.f32 %v3211, %v2822
    %v3340 = vmul.f32 %v3212, %v2823
    %v3341 = vmul.f32 %v3213, %v2824
    %v3342 = vmul.f32 %v3214, %v2825
    %v3343 = vmul.f32 %v3215, %v2826
    %v3344 = vmul.f32 %v3216, %v2827
    %v3345 = vmul.f32 %v3217, %v2828
    %v3346 = vmul.f32 %v3218, %v2829
    %v3347 = vmul.f32 %v3219, %v2830
    %v3348 = vmul.f32 %v3220, %v2831
    %v3349 = vmul.f32 %v3221, %v2832
    %v3350 = vmul.f32 %v3222, %v2833
    %v3351 = vmul.f32 %v3223, %v2834
    %v3352 = vmul.f32 %v3224, %v2835
    %v3353 = vmul.f32 %v3225, %v2836
    %v3354 = vmul.f32 %v3226, %v2837
    %v3355 = vmul.f32 %v3227, %v2838
    %v3356 = vmul.f32 %v3228, %v2839
    %v3357 = vmul.f32 %v3229, %v2840
    %v3358 = vmul.f32 %v3230, %v2841
    %v3359 = vmul.f32 %v3231, %v2842
    %v3360 = vmul.f32 %v3232, %v2843
    %v3361 = vmul.f32 %v3233, %v2844
    %v3362 = vmul.f32 %v3234, %v2845
    %v3363 = vmul.f32 %v3235, %v2846
    %v3364 = vmul.f32 %v3236, %v2847
    %v3365 = vmul.f32 %v3237, %v2848
    %v3366 = vmul.f32 %v3238, %v2849
    %v3367 = vmul.f32 %v3239, %v2850
    %v3368 = vmul.f32 %v3240, %v2851
    %v3369 = vmul.f32 %v3241, %v2852
    %v3370 = vmul.f32 %v3242, %v2853
    %v3371 = vmul.f32 %v3243, %v2854
    %v3372 = vmul.f32 %v3244, %v2855
    %v3373 = vmul.f32 %v3245, %v2856
    %v3374 = vmul.f32 %v3246, %v2857
    %v3375 = vmul.f32 %v3247, %v2858
    %v3376 = vmul.f32 %v3248, %v2859
    %v3377 = vmul.f32 %v3249, %v2860
    %v3378 = vmul.f32 %v3250, %v2861
    %v3379 = vmul.f32 %v3251, %v2862
    %v3380 = vmul.f32 %v3252, %v2863
    %v3381 = vmul.f32 %v3253, %v2864
    %v3382 = vmul.f32 %v3254, %v2865
    %v3383 = vmul.f32 %v3255, %v2866
    %v3384 = vadd.f32 %v3256, %v3257
    %v3385 = vadd.f32 %v3384, %v3258
    %v3386 = vadd.f32 %v3385, %v3259
    %v3387 = vadd.f32 %v3386, %v3260
    %v3388 = vadd.f32 %v3387, %v3261
    %v3389 = vadd.f32 %v3388, %v3262
    %v3390 = vadd.f32 %v3389, %v3263
    %v3391 = vadd.f32 %v3390, %v3264
    %v3392 = vadd.f32 %v3391, %v3265
    %v3393 = vadd.f32 %v3392, %v3266
    %v3394 = vadd.f32 %v3393, %v3267
    %v3395 = vadd.f32 %v3394, %v3268
    %v3396 = vadd.f32 %v3395, %v3269
    %v3397 = vadd.f32 %v3396, %v3270
    %v3398 = vadd.f32 %v3397, %v3271
    %v3399 = vadd.f32 %v3398, %v3272
    %v3400 = vadd.f32 %v3399, %v3273
    %v3401 = vadd.f32 %v3400, %v3274
    %v3402 = vadd.f32 %v3401, %v3275
    %v3403 = vadd.f32 %v3402, %v3276
    %v3404 = vadd.f32 %v3403, %v3277
    %v3405 = vadd.f32 %v3404, %v3278
    %v3406 = vadd.f32 %v3405, %v3279
    %v3407 = vadd.f32 %v3406, %v3280
    %v3408 = vadd.f32 %v3407, %v3281
    %v3409 = vadd.f32 %v3408, %v3282
    %v3410 = vadd.f32 %v3409, %v3283
    %v3411 = vadd.f32 %v3410, %v3284
    %v3412 = vadd.f32 %v3411, %v3285
    %v3413 = vadd.f32 %v3412, %v3286
    %v3414 = vadd.f32 %v3413, %v3287
    %v3415 = vadd.f32 %v3414, %v3288
    %v3416 = vadd.f32 %v3415, %v3289
    %v3417 = vadd.f32 %v3416, %v3290
    %v3418 = vadd.f32 %v3417, %v3291
    %v3419 = vadd.f32 %v3418, %v3292
    %v3420 = vadd.f32 %v3419, %v3293
    %v3421 = vadd.f32 %v3420, %v3294
    %v3422 = vadd.f32 %v3421, %v3295
    %v3423 = vadd.f32 %v3422, %v3296
    %v3424 = vadd.f32 %v3423, %v3297
    %v3425 = vadd.f32 %v3424, %v3298
    %v3426 = vadd.f32 %v3425, %v3299
    %v3427 = vadd.f32 %v3426, %v3300
    %v3428 = vadd.f32 %v3427, %v3301
    %v3429 = vadd.f32 %v3428, %v3302
    %v3430 = vadd.f32 %v3429, %v3303
    %v3431 = vadd.f32 %v3430, %v3304
    %v3432 = vadd.f32 %v3431, %v3305
    %v3433 = vadd.f32 %v3432, %v3306
    %v3434 = vadd.f32 %v3433, %v3307
    %v3435 = vadd.f32 %v3434, %v3308
    %v3436 = vadd.f32 %v3435, %v3309
    %v3437 = vadd.f32 %v3436, %v3310
    %v3438 = vadd.f32 %v3437, %v3311
    %v3439 = vadd.f32 %v3438, %v3312
    %v3440 = vadd.f32 %v3439, %v3313
    %v3441 = vadd.f32 %v3440, %v3314
    %v3442 = vadd.f32 %v3441, %v3315
    %v3443 = vadd.f32 %v3442, %v3316
    %v3444 = vadd.f32 %v3443, %v3317
    %v3445 = vadd.f32 %v3444, %v3318
    %v3446 = vadd.f32 %v3445, %v3319
    %v3447 = vadd.f32 %v3446, %v3320
    %v3448 = vadd.f32 %v3447, %v3321
    %v3449 = vadd.f32 %v3448, %v3322
    %v3450 = vadd.f32 %v3449, %v3323
    %v3451 = vadd.f32 %v3450, %v3324
    %v3452 = vadd.f32 %v3451, %v3325
    %v3453 = vadd.f32 %v3452, %v3326
    %v3454 = vadd.f32 %v3453, %v3327
    %v3455 = vadd.f32 %v3454, %v3328
    %v3456 = vadd.f32 %v3455, %v3329
    %v3457 = vadd.f32 %v3456, %v3330
    %v3458 = vadd.f32 %v3457, %v3331
    %v3459 = vadd.f32 %v3458, %v3332
    %v3460 = vadd.f32 %v3459, %v3333
    %v3461 = vadd.f32 %v3460, %v3334
    %v3462 = vadd.f32 %v3461, %v3335
    %v3463 = vadd.f32 %v3462, %v3336
    %v3464 = vadd.f32 %v3463, %v3337
    %v3465 = vadd.f32 %v3464, %v3338
    %v3466 = vadd.f32 %v3465, %v3339
    %v3467 = vadd.f32 %v3466, %v3340
    %v3468 = vadd.f32 %v3467, %v3341
    %v3469 = vadd.f32 %v3468, %v3342
    %v3470 = vadd.f32 %v3469, %v3343
    %v3471 = vadd.f32 %v3470, %v3344
    %v3472 = vadd.f32 %v3471, %v3345
    %v3473 = vadd.f32 %v3472, %v3346
    %v3474 = vadd.f32 %v3473, %v3347
    %v3475 = vadd.f32 %v3474, %v3348
    %v3476 = vadd.f32 %v3475, %v3349
    %v3477 = vadd.f32 %v3476, %v3350
    %v3478 = vadd.f32 %v3477, %v3351
    %v3479 = vadd.f32 %v3478, %v3352
    %v3480 = vadd.f32 %v3479, %v3353
    %v3481 = vadd.f32 %v3480, %v3354
    %v3482 = vadd.f32 %v3481, %v3355
    %v3483 = vadd.f32 %v3482, %v3356
    %v3484 = vadd.f32 %v3483, %v3357
    %v3485 = vadd.f32 %v3484, %v3358
    %v3486 = vadd.f32 %v3485, %v3359
    %v3487 = vadd.f32 %v3486, %v3360
    %v3488 = vadd.f32 %v3487, %v3361
    %v3489 = vadd.f32 %v3488, %v3362
    %v3490 = vadd.f32 %v3489, %v3363
    %v3491 = vadd.f32 %v3490, %v3364
    %v3492 = vadd.f32 %v3491, %v3365
    %v3493 = vadd.f32 %v3492, %v3366
    %v3494 = vadd.f32 %v3493, %v3367
    %v3495 = vadd.f32 %v3494, %v3368
    %v3496 = vadd.f32 %v3495, %v3369
    %v3497 = vadd.f32 %v3496, %v3370
    %v3498 = vadd.f32 %v3497, %v3371
    %v3499 = vadd.f32 %v3498, %v3372
    %v3500 = vadd.f32 %v3499, %v3373
    %v3501 = vadd.f32 %v3500, %v3374
    %v3502 = vadd.f32 %v3501, %v3375
    %v3503 = vadd.f32 %v3502, %v3376
    %v3504 = vadd.f32 %v3503, %v3377
    %v3505 = vadd.f32 %v3504, %v3378
    %v3506 = vadd.f32 %v3505, %v3379
    %v3507 = vadd.f32 %v3506, %v3380
    %v3508 = vadd.f32 %v3507, %v3381
    %v3509 = vadd.f32 %v3508, %v3382
    %v3510 = vadd.f32 %v3509, %v3383
    %v3511 = vrot.slane %v3510, 4
    %v3512 = vadd.f32 %v3510, %v3511
    %v3513 = vrot.slane %v3512, 2
    %v3514 = vadd.f32 %v3512, %v3513
    %v3515 = vrot.slane %v3514, 1
    %v3516 = vadd.f32 %v3514, %v3515
    %v3517 = vmul.f32 %v3127, 0.0010080645
    %v3518 = vmul.f32 %v3516, 0.0010080645
    %v3519 = vmul.f32 %v3517, %v3517
    %v3520 = vsub.f32 %v3518, %v3519
    %v3521 = vmax.f32 %v3520, 0.0
    %v3522 = vld [vmem:[%s5] sm:$0x1]
    %v3523 = vld [vmem:[%s6] sm:$0x1]
    %v3524 = vadd.f32 %v3521, 1e-05
    %v3525 = vrsqrt.pop %v3524
    %v3526 = vmul.f32 %v3522, %v3525
    %v3527 = vmul.f32 %v3517, %v3526
    %v3528 = vsub.f32 %v3523, %v3527
    %3529 = vst [vmem:[#allocation2] sm:$0xff] %v692
    %3530 = vst [vmem:[#allocation2 + $0x8] sm:$0xff] %v695
    %3531 = vst [vmem:[#allocation2 + $0x10] sm:$0xff] %v700
    %3532 = vst [vmem:[#allocation2 + $0x18] sm:$0xff] %v703
    %3533 = vst [vmem:[#allocation2 + $0x20] sm:$0xff] %v708
    %3534 = vst [vmem:[#allocation2 + $0x28] sm:$0xff] %v711
    %3535 = vst [vmem:[#allocation2 + $0x30] sm:$0xff] %v716
    %3536 = vst [vmem:[#allocation2 + $0x38] sm:$0xff] %v719
    %3537 = vst [vmem:[#allocation2 + $0x40] sm:$0xff] %v724
    %3538 = vst [vmem:[#allocation2 + $0x48] sm:$0xff] %v727
    %3539 = vst [vmem:[#allocation2 + $0x50] sm:$0xff] %v732
    %3540 = vst [vmem:[#allocation2 + $0x58] sm:$0xff] %v735
    %3541 = vst [vmem:[#allocation2 + $0x60] sm:$0xff] %v740
    %3542 = vst [vmem:[#allocation2 + $0x68] sm:$0xff] %v743
    %3543 = vst [vmem:[#allocation2 + $0x70] sm:$0xff] %v748
    %3544 = vst [vmem:[#allocation2 + $0x78] sm:$0xff] %v751
    %3545 = vst [vmem:[#allocation2 + $0x80] sm:$0xff] %v756
    %3546 = vst [vmem:[#allocation2 + $0x88] sm:$0xff] %v759
    %3547 = vst [vmem:[#allocation2 + $0x90] sm:$0xff] %v764
    %3548 = vst [vmem:[#allocation2 + $0x98] sm:$0xff] %v767
    %3549 = vst [vmem:[#allocation2 + $0xa0] sm:$0xff] %v772
    %3550 = vst [vmem:[#allocation2 + $0xa8] sm:$0xff] %v775
    %3551 = vst [vmem:[#allocation2 + $0xb0] sm:$0xff] %v780
    %3552 = vst [vmem:[#allocation2 + $0xb8] sm:$0xff] %v783
    %3553 = vst [vmem:[#allocation2 + $0xc0] sm:$0xff] %v788
    %3554 = vst [vmem:[#allocation2 + $0xc8] sm:$0xff] %v791
    %3555 = vst [vmem:[#allocation2 + $0xd0] sm:$0xff] %v796
    %3556 = vst [vmem:[#allocation2 + $0xd8] sm:$0xff] %v799
    %3557 = vst [vmem:[#allocation2 + $0xe0] sm:$0xff] %v804
    %3558 = vst [vmem:[#allocation2 + $0xe8] sm:$0xff] %v807
    %3559 = vst [vmem:[#allocation2 + $0xf0] sm:$0xff] %v812
    %3560 = vst [vmem:[#allocation2 + $0xf8] sm:$0xff] %v815
    %3561 = vst [vmem:[#allocation2 + $0x100] sm:$0xff] %v820
    %3562 = vst [vmem:[#allocation2 + $0x108] sm:$0xff] %v823
    %3563 = vst [vmem:[#allocation2 + $0x110] sm:$0xff] %v828
    %3564 = vst [vmem:[#allocation2 + $0x118] sm:$0xff] %v831
    %3565 = vst [vmem:[#allocation2 + $0x120] sm:$0xff] %v836
    %3566 = vst [vmem:[#allocation2 + $0x128] sm:$0xff] %v839
    %3567 = vst [vmem:[#allocation2 + $0x130] sm:$0xff] %v844
    %3568 = vst [vmem:[#allocation2 + $0x138] sm:$0xff] %v847
    %3569 = vst [vmem:[#allocation2 + $0x140] sm:$0xff] %v852
    %3570 = vst [vmem:[#allocation2 + $0x148] sm:$0xff] %v855
    %3571 = vst [vmem:[#allocation2 + $0x150] sm:$0xff] %v860
    %3572 = vst [vmem:[#allocation2 + $0x158] sm:$0xff] %v863
    %3573 = vst [vmem:[#allocation2 + $0x160] sm:$0xff] %v868
    %3574 = vst [vmem:[#allocation2 + $0x168] sm:$0xff] %v871
    %3575 = vst [vmem:[#allocation2 + $0x170] sm:$0xff] %v876
    %3576 = vst [vmem:[#allocation2 + $0x178] sm:$0xff] %v879
    %3577 = vst [vmem:[#allocation2 + $0x180] sm:$0xff] %v884
    %3578 = vst [vmem:[#allocation2 + $0x188] sm:$0xff] %v887
    %3579 = vst [vmem:[#allocation2 + $0x190] sm:$0xff] %v892
    %3580 = vst [vmem:[#allocation2 + $0x198] sm:$0xff] %v895
    %3581 = vst [vmem:[#allocation2 + $0x1a0] sm:$0xff] %v900
    %3582 = vst [vmem:[#allocation2 + $0x1a8] sm:$0xff] %v903
    %3583 = vst [vmem:[#allocation2 + $0x1b0] sm:$0xff] %v908
    %3584 = vst [vmem:[#allocation2 + $0x1b8] sm:$0xff] %v911
    %3585 = vst [vmem:[#allocation2 + $0x1c0] sm:$0xff] %v916
    %3586 = vst [vmem:[#allocation2 + $0x1c8] sm:$0xff] %v919
    %3587 = vst [vmem:[#allocation2 + $0x1d0] sm:$0xff] %v924
    %3588 = vst [vmem:[#allocation2 + $0x1d8] sm:$0xff] %v927
    %3589 = vst [vmem:[#allocation2 + $0x1e0] sm:$0xff] %v932
    %3590 = vst [vmem:[#allocation2 + $0x1e8] sm:$0xff] %v935
    %3591 = vst [vmem:[#allocation2 + $0x1f0] sm:$0xff] %v940
    %3592 = vst [vmem:[#allocation2 + $0x1f8] sm:$0xff] %v943
    %3593 = vst [vmem:[#allocation2 + $0x200] sm:$0xff] %v948
    %3594 = vst [vmem:[#allocation2 + $0x208] sm:$0xff] %v951
    %3595 = vst [vmem:[#allocation2 + $0x210] sm:$0xff] %v956
    %3596 = vst [vmem:[#allocation2 + $0x218] sm:$0xff] %v959
    %3597 = vst [vmem:[#allocation2 + $0x220] sm:$0xff] %v964
    %3598 = vst [vmem:[#allocation2 + $0x228] sm:$0xff] %v967
    %3599 = vst [vmem:[#allocation2 + $0x230] sm:$0xff] %v972
    %3600 = vst [vmem:[#allocation2 + $0x238] sm:$0xff] %v975
    %3601 = vst [vmem:[#allocation2 + $0x240] sm:$0xff] %v980
    %3602 = vst [vmem:[#allocation2 + $0x248] sm:$0xff] %v983
    %3603 = vst [vmem:[#allocation2 + $0x250] sm:$0xff] %v988
    %3604 = vst [vmem:[#allocation2 + $0x258] sm:$0xff] %v991
    %3605 = vst [vmem:[#allocation2 + $0x260] sm:$0xff] %v996
    %3606 = vst [vmem:[#allocation2 + $0x268] sm:$0xff] %v999
    %3607 = vst [vmem:[#allocation2 + $0x270] sm:$0xff] %v1004
    %3608 = vst [vmem:[#allocation2 + $0x278] sm:$0xff] %v1007
    %3609 = vst [vmem:[#allocation2 + $0x280] sm:$0xff] %v1012
    %3610 = vst [vmem:[#allocation2 + $0x288] sm:$0xff] %v1015
    %3611 = vst [vmem:[#allocation2 + $0x290] sm:$0xff] %v1020
    %3612 = vst [vmem:[#allocation2 + $0x298] sm:$0xff] %v1023
    %3613 = vst [vmem:[#allocation2 + $0x2a0] sm:$0xff] %v1028
    %3614 = vst [vmem:[#allocation2 + $0x2a8] sm:$0xff] %v1031
    %3615 = vst [vmem:[#allocation2 + $0x2b0] sm:$0xff] %v1036
    %3616 = vst [vmem:[#allocation2 + $0x2b8] sm:$0xff] %v1039
    %3617 = vst [vmem:[#allocation2 + $0x2c0] sm:$0xff] %v1044
    %3618 = vst [vmem:[#allocation2 + $0x2c8] sm:$0xff] %v1047
    %3619 = vst [vmem:[#allocation2 + $0x2d0] sm:$0xff] %v1052
    %3620 = vst [vmem:[#allocation2 + $0x2d8] sm:$0xff] %v1055
    %3621 = vst [vmem:[#allocation2 + $0x2e0] sm:$0xff] %v1060
    %3622 = vst [vmem:[#allocation2 + $0x2e8] sm:$0xff] %v1063
    %3623 = vst [vmem:[#allocation2 + $0x2f0] sm:$0xff] %v1068
    %3624 = vst [vmem:[#allocation2 + $0x2f8] sm:$0xff] %v1071
    %3625 = vst [vmem:[#allocation2 + $0x300] sm:$0xff] %v1076
    %3626 = vst [vmem:[#allocation2 + $0x308] sm:$0xff] %v1079
    %3627 = vst [vmem:[#allocation2 + $0x310] sm:$0xff] %v1084
    %3628 = vst [vmem:[#allocation2 + $0x318] sm:$0xff] %v1087
    %3629 = vst [vmem:[#allocation2 + $0x320] sm:$0xff] %v1092
    %3630 = vst [vmem:[#allocation2 + $0x328] sm:$0xff] %v1095
    %3631 = vst [vmem:[#allocation2 + $0x330] sm:$0xff] %v1100
    %3632 = vst [vmem:[#allocation2 + $0x338] sm:$0xff] %v1103
    %3633 = vst [vmem:[#allocation2 + $0x340] sm:$0xff] %v1108
    %3634 = vst [vmem:[#allocation2 + $0x348] sm:$0xff] %v1111
    %3635 = vst [vmem:[#allocation2 + $0x350] sm:$0xff] %v1116
    %3636 = vst [vmem:[#allocation2 + $0x358] sm:$0xff] %v1119
    %3637 = vst [vmem:[#allocation2 + $0x360] sm:$0xff] %v1124
    %3638 = vst [vmem:[#allocation2 + $0x368] sm:$0xff] %v1127
    %3639 = vst [vmem:[#allocation2 + $0x370] sm:$0xff] %v1132
    %3640 = vst [vmem:[#allocation2 + $0x378] sm:$0xff] %v1135
    %3641 = vst [vmem:[#allocation2 + $0x380] sm:$0xff] %v1140
    %3642 = vst [vmem:[#allocation2 + $0x388] sm:$0xff] %v1143
    %3643 = vst [vmem:[#allocation2 + $0x390] sm:$0xff] %v1148
    %3644 = vst [vmem:[#allocation2 + $0x398] sm:$0xff] %v1151
    %3645 = vst [vmem:[#allocation2 + $0x3a0] sm:$0xff] %v1156
    %3646 = vst [vmem:[#allocation2 + $0x3a8] sm:$0xff] %v1159
    %3647 = vst [vmem:[#allocation2 + $0x3b0] sm:$0xff] %v1164
    %3648 = vst [vmem:[#allocation2 + $0x3b8] sm:$0xff] %v1167
    %3649 = vst [vmem:[#allocation2 + $0x3c0] sm:$0xff] %v1172
    %3650 = vst [vmem:[#allocation2 + $0x3c8] sm:$0xff] %v1175
    %3651 = vst [vmem:[#allocation2 + $0x3d0] sm:$0xff] %v1180
    %3652 = vst [vmem:[#allocation2 + $0x3d8] sm:$0xff] %v1183
    %3653 = vst [vmem:[#allocation2 + $0x3e0] sm:$0xff] %v1188
    %3654 = vst [vmem:[#allocation2 + $0x3e8] sm:$0xff] %v1191
    %3655 = vst [vmem:[#allocation2 + $0x3f0] sm:$0xff] %v1196
    %3656 = vst [vmem:[#allocation2 + $0x3f8] sm:$0xff] %v1199
    %v3657 = vld [vmem:[#allocation2] ss:$4 sm:$0xff]
    %s3658 = scalar_lea.vmem [#allocation2], 32
    %v3659 = vld [vmem:[%s3658] ss:$4 sm:$0xff]
    %s3660 = scalar_lea.vmem [#allocation2], 64
    %v3661 = vld [vmem:[%s3660] ss:$4 sm:$0xff]
    %s3662 = scalar_lea.vmem [#allocation2], 96
    %v3663 = vld [vmem:[%s3662] ss:$4 sm:$0xff]
    %s3664 = scalar_lea.vmem [#allocation2], 128
    %v3665 = vld [vmem:[%s3664] ss:$4 sm:$0xff]
    %s3666 = scalar_lea.vmem [#allocation2], 160
    %v3667 = vld [vmem:[%s3666] ss:$4 sm:$0xff]
    %s3668 = scalar_lea.vmem [#allocation2], 192
    %v3669 = vld [vmem:[%s3668] ss:$4 sm:$0xff]
    %s3670 = scalar_lea.vmem [#allocation2], 224
    %v3671 = vld [vmem:[%s3670] ss:$4 sm:$0xff]
    %s3672 = scalar_lea.vmem [#allocation2], 256
    %v3673 = vld [vmem:[%s3672] ss:$4 sm:$0xff]
    %s3674 = scalar_lea.vmem [#allocation2], 288
    %v3675 = vld [vmem:[%s3674] ss:$4 sm:$0xff]
    %s3676 = scalar_lea.vmem [#allocation2], 320
    %v3677 = vld [vmem:[%s3676] ss:$4 sm:$0xff]
    %s3678 = scalar_lea.vmem [#allocation2], 352
    %v3679 = vld [vmem:[%s3678] ss:$4 sm:$0xff]
    %s3680 = scalar_lea.vmem [#allocation2], 384
    %v3681 = vld [vmem:[%s3680] ss:$4 sm:$0xff]
    %s3682 = scalar_lea.vmem [#allocation2], 416
    %v3683 = vld [vmem:[%s3682] ss:$4 sm:$0xff]
    %s3684 = scalar_lea.vmem [#allocation2], 448
    %v3685 = vld [vmem:[%s3684] ss:$4 sm:$0xff]
    %s3686 = scalar_lea.vmem [#allocation2], 480
    %v3687 = vld [vmem:[%s3686] ss:$4 sm:$0xff]
    %s3688 = scalar_lea.vmem [#allocation2], 512
    %v3689 = vld [vmem:[%s3688] ss:$4 sm:$0xff]
    %s3690 = scalar_lea.vmem [#allocation2], 544
    %v3691 = vld [vmem:[%s3690] ss:$4 sm:$0xff]
    %s3692 = scalar_lea.vmem [#allocation2], 576
    %v3693 = vld [vmem:[%s3692] ss:$4 sm:$0xff]
    %s3694 = scalar_lea.vmem [#allocation2], 608
    %v3695 = vld [vmem:[%s3694] ss:$4 sm:$0xff]
    %s3696 = scalar_lea.vmem [#allocation2], 640
    %v3697 = vld [vmem:[%s3696] ss:$4 sm:$0xff]
    %s3698 = scalar_lea.vmem [#allocation2], 672
    %v3699 = vld [vmem:[%s3698] ss:$4 sm:$0xff]
    %s3700 = scalar_lea.vmem [#allocation2], 704
    %v3701 = vld [vmem:[%s3700] ss:$4 sm:$0xff]
    %s3702 = scalar_lea.vmem [#allocation2], 736
    %v3703 = vld [vmem:[%s3702] ss:$4 sm:$0xff]
    %s3704 = scalar_lea.vmem [#allocation2], 768
    %v3705 = vld [vmem:[%s3704] ss:$4 sm:$0xff]
    %s3706 = scalar_lea.vmem [#allocation2], 800
    %v3707 = vld [vmem:[%s3706] ss:$4 sm:$0xff]
    %s3708 = scalar_lea.vmem [#allocation2], 832
    %v3709 = vld [vmem:[%s3708] ss:$4 sm:$0xff]
    %s3710 = scalar_lea.vmem [#allocation2], 864
    %v3711 = vld [vmem:[%s3710] ss:$4 sm:$0xff]
    %s3712 = scalar_lea.vmem [#allocation2], 896
    %v3713 = vld [vmem:[%s3712] ss:$4 sm:$0xff]
    %s3714 = scalar_lea.vmem [#allocation2], 928
    %v3715 = vld [vmem:[%s3714] ss:$4 sm:$0xff]
    %s3716 = scalar_lea.vmem [#allocation2], 960
    %v3717 = vld [vmem:[%s3716] ss:$4 sm:$0xff]
    %s3718 = scalar_lea.vmem [#allocation2], 992
    %v3719 = vld [vmem:[%s3718] ss:$4 sm:$0xff]
    %s3720 = scalar_lea.vmem [#allocation2], 1
    %v3721 = vld [vmem:[%s3720] ss:$4 sm:$0xff]
    %s3722 = scalar_lea.vmem [#allocation2], 33
    %v3723 = vld [vmem:[%s3722] ss:$4 sm:$0xff]
    %s3724 = scalar_lea.vmem [#allocation2], 65
    %v3725 = vld [vmem:[%s3724] ss:$4 sm:$0xff]
    %s3726 = scalar_lea.vmem [#allocation2], 97
    %v3727 = vld [vmem:[%s3726] ss:$4 sm:$0xff]
    %s3728 = scalar_lea.vmem [#allocation2], 129
    %v3729 = vld [vmem:[%s3728] ss:$4 sm:$0xff]
    %s3730 = scalar_lea.vmem [#allocation2], 161
    %v3731 = vld [vmem:[%s3730] ss:$4 sm:$0xff]
    %s3732 = scalar_lea.vmem [#allocation2], 193
    %v3733 = vld [vmem:[%s3732] ss:$4 sm:$0xff]
    %s3734 = scalar_lea.vmem [#allocation2], 225
    %v3735 = vld [vmem:[%s3734] ss:$4 sm:$0xff]
    %s3736 = scalar_lea.vmem [#allocation2], 257
    %v3737 = vld [vmem:[%s3736] ss:$4 sm:$0xff]
    %s3738 = scalar_lea.vmem [#allocation2], 289
    %v3739 = vld [vmem:[%s3738] ss:$4 sm:$0xff]
    %s3740 = scalar_lea.vmem [#allocation2], 321
    %v3741 = vld [vmem:[%s3740] ss:$4 sm:$0xff]
    %s3742 = scalar_lea.vmem [#allocation2], 353
    %v3743 = vld [vmem:[%s3742] ss:$4 sm:$0xff]
    %s3744 = scalar_lea.vmem [#allocation2], 385
    %v3745 = vld [vmem:[%s3744] ss:$4 sm:$0xff]
    %s3746 = scalar_lea.vmem [#allocation2], 417
    %v3747 = vld [vmem:[%s3746] ss:$4 sm:$0xff]
    %s3748 = scalar_lea.vmem [#allocation2], 449
    %v3749 = vld [vmem:[%s3748] ss:$4 sm:$0xff]
    %s3750 = scalar_lea.vmem [#allocation2], 481
    %v3751 = vld [vmem:[%s3750] ss:$4 sm:$0xff]
    %s3752 = scalar_lea.vmem [#allocation2], 513
    %v3753 = vld [vmem:[%s3752] ss:$4 sm:$0xff]
    %s3754 = scalar_lea.vmem [#allocation2], 545
    %v3755 = vld [vmem:[%s3754] ss:$4 sm:$0xff]
    %s3756 = scalar_lea.vmem [#allocation2], 577
    %v3757 = vld [vmem:[%s3756] ss:$4 sm:$0xff]
    %s3758 = scalar_lea.vmem [#allocation2], 609
    %v3759 = vld [vmem:[%s3758] ss:$4 sm:$0xff]
    %s3760 = scalar_lea.vmem [#allocation2], 641
    %v3761 = vld [vmem:[%s3760] ss:$4 sm:$0xff]
    %s3762 = scalar_lea.vmem [#allocation2], 673
    %v3763 = vld [vmem:[%s3762] ss:$4 sm:$0xff]
    %s3764 = scalar_lea.vmem [#allocation2], 705
    %v3765 = vld [vmem:[%s3764] ss:$4 sm:$0xff]
    %s3766 = scalar_lea.vmem [#allocation2], 737
    %v3767 = vld [vmem:[%s3766] ss:$4 sm:$0xff]
    %s3768 = scalar_lea.vmem [#allocation2], 769
    %v3769 = vld [vmem:[%s3768] ss:$4 sm:$0xff]
    %s3770 = scalar_lea.vmem [#allocation2], 801
    %v3771 = vld [vmem:[%s3770] ss:$4 sm:$0xff]
    %s3772 = scalar_lea.vmem [#allocation2], 833
    %v3773 = vld [vmem:[%s3772] ss:$4 sm:$0xff]
    %s3774 = scalar_lea.vmem [#allocation2], 865
    %v3775 = vld [vmem:[%s3774] ss:$4 sm:$0xff]
    %s3776 = scalar_lea.vmem [#allocation2], 897
    %v3777 = vld [vmem:[%s3776] ss:$4 sm:$0xff]
    %s3778 = scalar_lea.vmem [#allocation2], 929
    %v3779 = vld [vmem:[%s3778] ss:$4 sm:$0xff]
    %s3780 = scalar_lea.vmem [#allocation2], 961
    %v3781 = vld [vmem:[%s3780] ss:$4 sm:$0xff]
    %s3782 = scalar_lea.vmem [#allocation2], 993
    %v3783 = vld [vmem:[%s3782] ss:$4 sm:$0xff]
    %v3784 = vmax.f32 %v3657, %v3721
    %v3785 = vmax.f32 %v3659, %v3723
    %v3786 = vmax.f32 %v3661, %v3725
    %v3787 = vmax.f32 %v3663, %v3727
    %v3788 = vmax.f32 %v3665, %v3729
    %v3789 = vmax.f32 %v3667, %v3731
    %v3790 = vmax.f32 %v3669, %v3733
    %v3791 = vmax.f32 %v3671, %v3735
    %v3792 = vmax.f32 %v3673, %v3737
    %v3793 = vmax.f32 %v3675, %v3739
    %v3794 = vmax.f32 %v3677, %v3741
    %v3795 = vmax.f32 %v3679, %v3743
    %v3796 = vmax.f32 %v3681, %v3745
    %v3797 = vmax.f32 %v3683, %v3747
    %v3798 = vmax.f32 %v3685, %v3749
    %v3799 = vmax.f32 %v3687, %v3751
    %v3800 = vmax.f32 %v3689, %v3753
    %v3801 = vmax.f32 %v3691, %v3755
    %v3802 = vmax.f32 %v3693, %v3757
    %v3803 = vmax.f32 %v3695, %v3759
    %v3804 = vmax.f32 %v3697, %v3761
    %v3805 = vmax.f32 %v3699, %v3763
    %v3806 = vmax.f32 %v3701, %v3765
    %v3807 = vmax.f32 %v3703, %v3767
    %v3808 = vmax.f32 %v3705, %v3769
    %v3809 = vmax.f32 %v3707, %v3771
    %v3810 = vmax.f32 %v3709, %v3773
    %v3811 = vmax.f32 %v3711, %v3775
    %v3812 = vmax.f32 %v3713, %v3777
    %v3813 = vmax.f32 %v3715, %v3779
    %v3814 = vmax.f32 %v3717, %v3781
    %v3815 = vmax.f32 %v3719, %v3783
    %v3816 = vmin.f32 %v3657, %v3721
    %v3817 = vmin.f32 %v3659, %v3723
    %v3818 = vmin.f32 %v3661, %v3725
    %v3819 = vmin.f32 %v3663, %v3727
    %v3820 = vmin.f32 %v3665, %v3729
    %v3821 = vmin.f32 %v3667, %v3731
    %v3822 = vmin.f32 %v3669, %v3733
    %v3823 = vmin.f32 %v3671, %v3735
    %v3824 = vmin.f32 %v3673, %v3737
    %v3825 = vmin.f32 %v3675, %v3739
    %v3826 = vmin.f32 %v3677, %v3741
    %v3827 = vmin.f32 %v3679, %v3743
    %v3828 = vmin.f32 %v3681, %v3745
    %v3829 = vmin.f32 %v3683, %v3747
    %v3830 = vmin.f32 %v3685, %v3749
    %v3831 = vmin.f32 %v3687, %v3751
    %v3832 = vmin.f32 %v3689, %v3753
    %v3833 = vmin.f32 %v3691, %v3755
    %v3834 = vmin.f32 %v3693, %v3757
    %v3835 = vmin.f32 %v3695, %v3759
    %v3836 = vmin.f32 %v3697, %v3761
    %v3837 = vmin.f32 %v3699, %v3763
    %v3838 = vmin.f32 %v3701, %v3765
    %v3839 = vmin.f32 %v3703, %v3767
    %v3840 = vmin.f32 %v3705, %v3769
    %v3841 = vmin.f32 %v3707, %v3771
    %v3842 = vmin.f32 %v3709, %v3773
    %v3843 = vmin.f32 %v3711, %v3775
    %v3844 = vmin.f32 %v3713, %v3777
    %v3845 = vmin.f32 %v3715, %v3779
    %v3846 = vmin.f32 %v3717, %v3781
    %v3847 = vmin.f32 %v3719, %v3783
    %s3848 = scalar_lea.vmem [#allocation2], 2
    %v3849 = vld [vmem:[%s3848] ss:$4 sm:$0xff]
    %s3850 = scalar_lea.vmem [#allocation2], 34
    %v3851 = vld [vmem:[%s3850] ss:$4 sm:$0xff]
    %s3852 = scalar_lea.vmem [#allocation2], 66
    %v3853 = vld [vmem:[%s3852] ss:$4 sm:$0xff]
    %s3854 = scalar_lea.vmem [#allocation2], 98
    %v3855 = vld [vmem:[%s3854] ss:$4 sm:$0xff]
    %s3856 = scalar_lea.vmem [#allocation2], 130
    %v3857 = vld [vmem:[%s3856] ss:$4 sm:$0xff]
    %s3858 = scalar_lea.vmem [#allocation2], 162
    %v3859 = vld [vmem:[%s3858] ss:$4 sm:$0xff]
    %s3860 = scalar_lea.vmem [#allocation2], 194
    %v3861 = vld [vmem:[%s3860] ss:$4 sm:$0xff]
    %s3862 = scalar_lea.vmem [#allocation2], 226
    %v3863 = vld [vmem:[%s3862] ss:$4 sm:$0xff]
    %s3864 = scalar_lea.vmem [#allocation2], 258
    %v3865 = vld [vmem:[%s3864] ss:$4 sm:$0xff]
    %s3866 = scalar_lea.vmem [#allocation2], 290
    %v3867 = vld [vmem:[%s3866] ss:$4 sm:$0xff]
    %s3868 = scalar_lea.vmem [#allocation2], 322
    %v3869 = vld [vmem:[%s3868] ss:$4 sm:$0xff]
    %s3870 = scalar_lea.vmem [#allocation2], 354
    %v3871 = vld [vmem:[%s3870] ss:$4 sm:$0xff]
    %s3872 = scalar_lea.vmem [#allocation2], 386
    %v3873 = vld [vmem:[%s3872] ss:$4 sm:$0xff]
    %s3874 = scalar_lea.vmem [#allocation2], 418
    %v3875 = vld [vmem:[%s3874] ss:$4 sm:$0xff]
    %s3876 = scalar_lea.vmem [#allocation2], 450
    %v3877 = vld [vmem:[%s3876] ss:$4 sm:$0xff]
    %s3878 = scalar_lea.vmem [#allocation2], 482
    %v3879 = vld [vmem:[%s3878] ss:$4 sm:$0xff]
    %s3880 = scalar_lea.vmem [#allocation2], 514
    %v3881 = vld [vmem:[%s3880] ss:$4 sm:$0xff]
    %s3882 = scalar_lea.vmem [#allocation2], 546
    %v3883 = vld [vmem:[%s3882] ss:$4 sm:$0xff]
    %s3884 = scalar_lea.vmem [#allocation2], 578
    %v3885 = vld [vmem:[%s3884] ss:$4 sm:$0xff]
    %s3886 = scalar_lea.vmem [#allocation2], 610
    %v3887 = vld [vmem:[%s3886] ss:$4 sm:$0xff]
    %s3888 = scalar_lea.vmem [#allocation2], 642
    %v3889 = vld [vmem:[%s3888] ss:$4 sm:$0xff]
    %s3890 = scalar_lea.vmem [#allocation2], 674
    %v3891 = vld [vmem:[%s3890] ss:$4 sm:$0xff]
    %s3892 = scalar_lea.vmem [#allocation2], 706
    %v3893 = vld [vmem:[%s3892] ss:$4 sm:$0xff]
    %s3894 = scalar_lea.vmem [#allocation2], 738
    %v3895 = vld [vmem:[%s3894] ss:$4 sm:$0xff]
    %s3896 = scalar_lea.vmem [#allocation2], 770
    %v3897 = vld [vmem:[%s3896] ss:$4 sm:$0xff]
    %s3898 = scalar_lea.vmem [#allocation2], 802
    %v3899 = vld [vmem:[%s3898] ss:$4 sm:$0xff]
    %s3900 = scalar_lea.vmem [#allocation2], 834
    %v3901 = vld [vmem:[%s3900] ss:$4 sm:$0xff]
    %s3902 = scalar_lea.vmem [#allocation2], 866
    %v3903 = vld [vmem:[%s3902] ss:$4 sm:$0xff]
    %s3904 = scalar_lea.vmem [#allocation2], 898
    %v3905 = vld [vmem:[%s3904] ss:$4 sm:$0xff]
    %s3906 = scalar_lea.vmem [#allocation2], 930
    %v3907 = vld [vmem:[%s3906] ss:$4 sm:$0xff]
    %s3908 = scalar_lea.vmem [#allocation2], 962
    %v3909 = vld [vmem:[%s3908] ss:$4 sm:$0xff]
    %s3910 = scalar_lea.vmem [#allocation2], 994
    %v3911 = vld [vmem:[%s3910] ss:$4 sm:$0xff]
    %v3912 = vmax.f32 %v3784, %v3849
    %v3913 = vmax.f32 %v3785, %v3851
    %v3914 = vmax.f32 %v3786, %v3853
    %v3915 = vmax.f32 %v3787, %v3855
    %v3916 = vmax.f32 %v3788, %v3857
    %v3917 = vmax.f32 %v3789, %v3859
    %v3918 = vmax.f32 %v3790, %v3861
    %v3919 = vmax.f32 %v3791, %v3863
    %v3920 = vmax.f32 %v3792, %v3865
    %v3921 = vmax.f32 %v3793, %v3867
    %v3922 = vmax.f32 %v3794, %v3869
    %v3923 = vmax.f32 %v3795, %v3871
    %v3924 = vmax.f32 %v3796, %v3873
    %v3925 = vmax.f32 %v3797, %v3875
    %v3926 = vmax.f32 %v3798, %v3877
    %v3927 = vmax.f32 %v3799, %v3879
    %v3928 = vmax.f32 %v3800, %v3881
    %v3929 = vmax.f32 %v3801, %v3883
    %v3930 = vmax.f32 %v3802, %v3885
    %v3931 = vmax.f32 %v3803, %v3887
    %v3932 = vmax.f32 %v3804, %v3889
    %v3933 = vmax.f32 %v3805, %v3891
    %v3934 = vmax.f32 %v3806, %v3893
    %v3935 = vmax.f32 %v3807, %v3895
    %v3936 = vmax.f32 %v3808, %v3897
    %v3937 = vmax.f32 %v3809, %v3899
    %v3938 = vmax.f32 %v3810, %v3901
    %v3939 = vmax.f32 %v3811, %v3903
    %v3940 = vmax.f32 %v3812, %v3905
    %v3941 = vmax.f32 %v3813, %v3907
    %v3942 = vmax.f32 %v3814, %v3909
    %v3943 = vmax.f32 %v3815, %v3911
    %v3944 = vmin.f32 %v3816, %v3849
    %v3945 = vmin.f32 %v3817, %v3851
    %v3946 = vmin.f32 %v3818, %v3853
    %v3947 = vmin.f32 %v3819, %v3855
    %v3948 = vmin.f32 %v3820, %v3857
    %v3949 = vmin.f32 %v3821, %v3859
    %v3950 = vmin.f32 %v3822, %v3861
    %v3951 = vmin.f32 %v3823, %v3863
    %v3952 = vmin.f32 %v3824, %v3865
    %v3953 = vmin.f32 %v3825, %v3867
    %v3954 = vmin.f32 %v3826, %v3869
    %v3955 = vmin.f32 %v3827, %v3871
    %v3956 = vmin.f32 %v3828, %v3873
    %v3957 = vmin.f32 %v3829, %v3875
    %v3958 = vmin.f32 %v3830, %v3877
    %v3959 = vmin.f32 %v3831, %v3879
    %v3960 = vmin.f32 %v3832, %v3881
    %v3961 = vmin.f32 %v3833, %v3883
    %v3962 = vmin.f32 %v3834, %v3885
    %v3963 = vmin.f32 %v3835, %v3887
    %v3964 = vmin.f32 %v3836, %v3889
    %v3965 = vmin.f32 %v3837, %v3891
    %v3966 = vmin.f32 %v3838, %v3893
    %v3967 = vmin.f32 %v3839, %v3895
    %v3968 = vmin.f32 %v3840, %v3897
    %v3969 = vmin.f32 %v3841, %v3899
    %v3970 = vmin.f32 %v3842, %v3901
    %v3971 = vmin.f32 %v3843, %v3903
    %v3972 = vmin.f32 %v3844, %v3905
    %v3973 = vmin.f32 %v3845, %v3907
    %v3974 = vmin.f32 %v3846, %v3909
    %v3975 = vmin.f32 %v3847, %v3911
    %s3976 = scalar_lea.vmem [#allocation2], 3
    %v3977 = vld [vmem:[%s3976] ss:$4 sm:$0xff]
    %s3978 = scalar_lea.vmem [#allocation2], 35
    %v3979 = vld [vmem:[%s3978] ss:$4 sm:$0xff]
    %s3980 = scalar_lea.vmem [#allocation2], 67
    %v3981 = vld [vmem:[%s3980] ss:$4 sm:$0xff]
    %s3982 = scalar_lea.vmem [#allocation2], 99
    %v3983 = vld [vmem:[%s3982] ss:$4 sm:$0xff]
    %s3984 = scalar_lea.vmem [#allocation2], 131
    %v3985 = vld [vmem:[%s3984] ss:$4 sm:$0xff]
    %s3986 = scalar_lea.vmem [#allocation2], 163
    %v3987 = vld [vmem:[%s3986] ss:$4 sm:$0xff]
    %s3988 = scalar_lea.vmem [#allocation2], 195
    %v3989 = vld [vmem:[%s3988] ss:$4 sm:$0xff]
    %s3990 = scalar_lea.vmem [#allocation2], 227
    %v3991 = vld [vmem:[%s3990] ss:$4 sm:$0xff]
    %s3992 = scalar_lea.vmem [#allocation2], 259
    %v3993 = vld [vmem:[%s3992] ss:$4 sm:$0xff]
    %s3994 = scalar_lea.vmem [#allocation2], 291
    %v3995 = vld [vmem:[%s3994] ss:$4 sm:$0xff]
    %s3996 = scalar_lea.vmem [#allocation2], 323
    %v3997 = vld [vmem:[%s3996] ss:$4 sm:$0xff]
    %s3998 = scalar_lea.vmem [#allocation2], 355
    %v3999 = vld [vmem:[%s3998] ss:$4 sm:$0xff]
    %s4000 = scalar_lea.vmem [#allocation2], 387
    %v4001 = vld [vmem:[%s4000] ss:$4 sm:$0xff]
    %s4002 = scalar_lea.vmem [#allocation2], 419
    %v4003 = vld [vmem:[%s4002] ss:$4 sm:$0xff]
    %s4004 = scalar_lea.vmem [#allocation2], 451
    %v4005 = vld [vmem:[%s4004] ss:$4 sm:$0xff]
    %s4006 = scalar_lea.vmem [#allocation2], 483
    %v4007 = vld [vmem:[%s4006] ss:$4 sm:$0xff]
    %s4008 = scalar_lea.vmem [#allocation2], 515
    %v4009 = vld [vmem:[%s4008] ss:$4 sm:$0xff]
    %s4010 = scalar_lea.vmem [#allocation2], 547
    %v4011 = vld [vmem:[%s4010] ss:$4 sm:$0xff]
    %s4012 = scalar_lea.vmem [#allocation2], 579
    %v4013 = vld [vmem:[%s4012] ss:$4 sm:$0xff]
    %s4014 = scalar_lea.vmem [#allocation2], 611
    %v4015 = vld [vmem:[%s4014] ss:$4 sm:$0xff]
    %s4016 = scalar_lea.vmem [#allocation2], 643
    %v4017 = vld [vmem:[%s4016] ss:$4 sm:$0xff]
    %s4018 = scalar_lea.vmem [#allocation2], 675
    %v4019 = vld [vmem:[%s4018] ss:$4 sm:$0xff]
    %s4020 = scalar_lea.vmem [#allocation2], 707
    %v4021 = vld [vmem:[%s4020] ss:$4 sm:$0xff]
    %s4022 = scalar_lea.vmem [#allocation2], 739
    %v4023 = vld [vmem:[%s4022] ss:$4 sm:$0xff]
    %s4024 = scalar_lea.vmem [#allocation2], 771
    %v4025 = vld [vmem:[%s4024] ss:$4 sm:$0xff]
    %s4026 = scalar_lea.vmem [#allocation2], 803
    %v4027 = vld [vmem:[%s4026] ss:$4 sm:$0xff]
    %s4028 = scalar_lea.vmem [#allocation2], 835
    %v4029 = vld [vmem:[%s4028] ss:$4 sm:$0xff]
    %s4030 = scalar_lea.vmem [#allocation2], 867
    %v4031 = vld [vmem:[%s4030] ss:$4 sm:$0xff]
    %s4032 = scalar_lea.vmem [#allocation2], 899
    %v4033 = vld [vmem:[%s4032] ss:$4 sm:$0xff]
    %s4034 = scalar_lea.vmem [#allocation2], 931
    %v4035 = vld [vmem:[%s4034] ss:$4 sm:$0xff]
    %s4036 = scalar_lea.vmem [#allocation2], 963
    %v4037 = vld [vmem:[%s4036] ss:$4 sm:$0xff]
    %s4038 = scalar_lea.vmem [#allocation2], 995
    %v4039 = vld [vmem:[%s4038] ss:$4 sm:$0xff]
    %v4040 = vmax.f32 %v3912, %v3977
    %v4041 = vmax.f32 %v3913, %v3979
    %v4042 = vmax.f32 %v3914, %v3981
    %v4043 = vmax.f32 %v3915, %v3983
    %v4044 = vmax.f32 %v3916, %v3985
    %v4045 = vmax.f32 %v3917, %v3987
    %v4046 = vmax.f32 %v3918, %v3989
    %v4047 = vmax.f32 %v3919, %v3991
    %v4048 = vmax.f32 %v3920, %v3993
    %v4049 = vmax.f32 %v3921, %v3995
    %v4050 = vmax.f32 %v3922, %v3997
    %v4051 = vmax.f32 %v3923, %v3999
    %v4052 = vmax.f32 %v3924, %v4001
    %v4053 = vmax.f32 %v3925, %v4003
    %v4054 = vmax.f32 %v3926, %v4005
    %v4055 = vmax.f32 %v3927, %v4007
    %v4056 = vmax.f32 %v3928, %v4009
    %v4057 = vmax.f32 %v3929, %v4011
    %v4058 = vmax.f32 %v3930, %v4013
    %v4059 = vmax.f32 %v3931, %v4015
    %v4060 = vmax.f32 %v3932, %v4017
    %v4061 = vmax.f32 %v3933, %v4019
    %v4062 = vmax.f32 %v3934, %v4021
    %v4063 = vmax.f32 %v3935, %v4023
    %v4064 = vmax.f32 %v3936, %v4025
    %v4065 = vmax.f32 %v3937, %v4027
    %v4066 = vmax.f32 %v3938, %v4029
    %v4067 = vmax.f32 %v3939, %v4031
    %v4068 = vmax.f32 %v3940, %v4033
    %v4069 = vmax.f32 %v3941, %v4035
    %v4070 = vmax.f32 %v3942, %v4037
    %v4071 = vmax.f32 %v3943, %v4039
    %v4072 = vmin.f32 %v3944, %v3977
    %v4073 = vmin.f32 %v3945, %v3979
    %v4074 = vmin.f32 %v3946, %v3981
    %v4075 = vmin.f32 %v3947, %v3983
    %v4076 = vmin.f32 %v3948, %v3985
    %v4077 = vmin.f32 %v3949, %v3987
    %v4078 = vmin.f32 %v3950, %v3989
    %v4079 = vmin.f32 %v3951, %v3991
    %v4080 = vmin.f32 %v3952, %v3993
    %v4081 = vmin.f32 %v3953, %v3995
    %v4082 = vmin.f32 %v3954, %v3997
    %v4083 = vmin.f32 %v3955, %v3999
    %v4084 = vmin.f32 %v3956, %v4001
    %v4085 = vmin.f32 %v3957, %v4003
    %v4086 = vmin.f32 %v3958, %v4005
    %v4087 = vmin.f32 %v3959, %v4007
    %v4088 = vmin.f32 %v3960, %v4009
    %v4089 = vmin.f32 %v3961, %v4011
    %v4090 = vmin.f32 %v3962, %v4013
    %v4091 = vmin.f32 %v3963, %v4015
    %v4092 = vmin.f32 %v3964, %v4017
    %v4093 = vmin.f32 %v3965, %v4019
    %v4094 = vmin.f32 %v3966, %v4021
    %v4095 = vmin.f32 %v3967, %v4023
    %v4096 = vmin.f32 %v3968, %v4025
    %v4097 = vmin.f32 %v3969, %v4027
    %v4098 = vmin.f32 %v3970, %v4029
    %v4099 = vmin.f32 %v3971, %v4031
    %v4100 = vmin.f32 %v3972, %v4033
    %v4101 = vmin.f32 %v3973, %v4035
    %v4102 = vmin.f32 %v3974, %v4037
    %v4103 = vmin.f32 %v3975, %v4039
    %vm4104 = vcmp.ge.f32.partialorder %v3526, 0.0
    %v4105 = vsel %vm4104, 1, 0
    %v4106 = vcvt.s32.f32 %v4105
    %v4107 = vlaneseq
    %v4108 = vshrl.u32 %v4107, 7
    %v4109 = vsub.s32 0, %v4108
    %v4110 = vrot.slane %v4106, %v4109
    %v4111 = vmul.f32 %v4040, %v4110
    %v4112 = vmul.f32 %v4041, %v4110
    %v4113 = vmul.f32 %v4042, %v4110
    %v4114 = vmul.f32 %v4043, %v4110
    %v4115 = vmul.f32 %v4044, %v4110
    %v4116 = vmul.f32 %v4045, %v4110
    %v4117 = vmul.f32 %v4046, %v4110
    %v4118 = vmul.f32 %v4047, %v4110
    %v4119 = vmul.f32 %v4048, %v4110
    %v4120 = vmul.f32 %v4049, %v4110
    %v4121 = vmul.f32 %v4050, %v4110
    %v4122 = vmul.f32 %v4051, %v4110
    %v4123 = vmul.f32 %v4052, %v4110
    %v4124 = vmul.f32 %v4053, %v4110
    %v4125 = vmul.f32 %v4054, %v4110
    %v4126 = vmul.f32 %v4055, %v4110
    %v4127 = vmul.f32 %v4056, %v4110
    %v4128 = vmul.f32 %v4057, %v4110
    %v4129 = vmul.f32 %v4058, %v4110
    %v4130 = vmul.f32 %v4059, %v4110
    %v4131 = vmul.f32 %v4060, %v4110
    %v4132 = vmul.f32 %v4061, %v4110
    %v4133 = vmul.f32 %v4062, %v4110
    %v4134 = vmul.f32 %v4063, %v4110
    %v4135 = vmul.f32 %v4064, %v4110
    %v4136 = vmul.f32 %v4065, %v4110
    %v4137 = vmul.f32 %v4066, %v4110
    %v4138 = vmul.f32 %v4067, %v4110
    %v4139 = vmul.f32 %v4068, %v4110
    %v4140 = vmul.f32 %v4069, %v4110
    %v4141 = vmul.f32 %v4070, %v4110
    %v4142 = vmul.f32 %v4071, %v4110
    %v4143 = vsub.f32 1.0, %v4106
    %v4144 = vlaneseq
    %v4145 = vshrl.u32 %v4144, 7
    %v4146 = vsub.s32 0, %v4145
    %v4147 = vrot.slane %v4143, %v4146
    %v4148 = vmul.f32 %v4072, %v4147
    %v4149 = vmul.f32 %v4073, %v4147
    %v4150 = vmul.f32 %v4074, %v4147
    %v4151 = vmul.f32 %v4075, %v4147
    %v4152 = vmul.f32 %v4076, %v4147
    %v4153 = vmul.f32 %v4077, %v4147
    %v4154 = vmul.f32 %v4078, %v4147
    %v4155 = vmul.f32 %v4079, %v4147
    %v4156 = vmul.f32 %v4080, %v4147
    %v4157 = vmul.f32 %v4081, %v4147
    %v4158 = vmul.f32 %v4082, %v4147
    %v4159 = vmul.f32 %v4083, %v4147
    %v4160 = vmul.f32 %v4084, %v4147
    %v4161 = vmul.f32 %v4085, %v4147
    %v4162 = vmul.f32 %v4086, %v4147
    %v4163 = vmul.f32 %v4087, %v4147
    %v4164 = vmul.f32 %v4088, %v4147
    %v4165 = vmul.f32 %v4089, %v4147
    %v4166 = vmul.f32 %v4090, %v4147
    %v4167 = vmul.f32 %v4091, %v4147
    %v4168 = vmul.f32 %v4092, %v4147
    %v4169 = vmul.f32 %v4093, %v4147
    %v4170 = vmul.f32 %v4094, %v4147
    %v4171 = vmul.f32 %v4095, %v4147
    %v4172 = vmul.f32 %v4096, %v4147
    %v4173 = vmul.f32 %v4097, %v4147
    %v4174 = vmul.f32 %v4098, %v4147
    %v4175 = vmul.f32 %v4099, %v4147
    %v4176 = vmul.f32 %v4100, %v4147
    %v4177 = vmul.f32 %v4101, %v4147
    %v4178 = vmul.f32 %v4102, %v4147
    %v4179 = vmul.f32 %v4103, %v4147
    %v4180 = vadd.f32 %v4111, %v4148
    %v4181 = vadd.f32 %v4112, %v4149
    %v4182 = vadd.f32 %v4113, %v4150
    %v4183 = vadd.f32 %v4114, %v4151
    %v4184 = vadd.f32 %v4115, %v4152
    %v4185 = vadd.f32 %v4116, %v4153
    %v4186 = vadd.f32 %v4117, %v4154
    %v4187 = vadd.f32 %v4118, %v4155
    %v4188 = vadd.f32 %v4119, %v4156
    %v4189 = vadd.f32 %v4120, %v4157
    %v4190 = vadd.f32 %v4121, %v4158
    %v4191 = vadd.f32 %v4122, %v4159
    %v4192 = vadd.f32 %v4123, %v4160
    %v4193 = vadd.f32 %v4124, %v4161
    %v4194 = vadd.f32 %v4125, %v4162
    %v4195 = vadd.f32 %v4126, %v4163
    %v4196 = vadd.f32 %v4127, %v4164
    %v4197 = vadd.f32 %v4128, %v4165
    %v4198 = vadd.f32 %v4129, %v4166
    %v4199 = vadd.f32 %v4130, %v4167
    %v4200 = vadd.f32 %v4131, %v4168
    %v4201 = vadd.f32 %v4132, %v4169
    %v4202 = vadd.f32 %v4133, %v4170
    %v4203 = vadd.f32 %v4134, %v4171
    %v4204 = vadd.f32 %v4135, %v4172
    %v4205 = vadd.f32 %v4136, %v4173
    %v4206 = vadd.f32 %v4137, %v4174
    %v4207 = vadd.f32 %v4138, %v4175
    %v4208 = vadd.f32 %v4139, %v4176
    %v4209 = vadd.f32 %v4140, %v4177
    %v4210 = vadd.f32 %v4141, %v4178
    %v4211 = vadd.f32 %v4142, %v4179
    %v4212 = vlaneseq
    %v4213 = vshrl.u32 %v4212, 7
    %v4214 = vsub.s32 0, %v4213
    %v4215 = vrot.slane %v3526, %v4214
    %v4216 = vmul.f32 %v4180, %v4215
    %v4217 = vmul.f32 %v4181, %v4215
    %v4218 = vmul.f32 %v4182, %v4215
    %v4219 = vmul.f32 %v4183, %v4215
    %v4220 = vmul.f32 %v4184, %v4215
    %v4221 = vmul.f32 %v4185, %v4215
    %v4222 = vmul.f32 %v4186, %v4215
    %v4223 = vmul.f32 %v4187, %v4215
    %v4224 = vmul.f32 %v4188, %v4215
    %v4225 = vmul.f32 %v4189, %v4215
    %v4226 = vmul.f32 %v4190, %v4215
    %v4227 = vmul.f32 %v4191, %v4215
    %v4228 = vmul.f32 %v4192, %v4215
    %v4229 = vmul.f32 %v4193, %v4215
    %v4230 = vmul.f32 %v4194, %v4215
    %v4231 = vmul.f32 %v4195, %v4215
    %v4232 = vmul.f32 %v4196, %v4215
    %v4233 = vmul.f32 %v4197, %v4215
    %v4234 = vmul.f32 %v4198, %v4215
    %v4235 = vmul.f32 %v4199, %v4215
    %v4236 = vmul.f32 %v4200, %v4215
    %v4237 = vmul.f32 %v4201, %v4215
    %v4238 = vmul.f32 %v4202, %v4215
    %v4239 = vmul.f32 %v4203, %v4215
    %v4240 = vmul.f32 %v4204, %v4215
    %v4241 = vmul.f32 %v4205, %v4215
    %v4242 = vmul.f32 %v4206, %v4215
    %v4243 = vmul.f32 %v4207, %v4215
    %v4244 = vmul.f32 %v4208, %v4215
    %v4245 = vmul.f32 %v4209, %v4215
    %v4246 = vmul.f32 %v4210, %v4215
    %v4247 = vmul.f32 %v4211, %v4215
    %v4248 = vlaneseq
    %v4249 = vshrl.u32 %v4248, 7
    %v4250 = vsub.s32 0, %v4249
    %v4251 = vrot.slane %v3528, %v4250
    %v4252 = vadd.f32 %v4216, %v4251
    %v4253 = vadd.f32 %v4217, %v4251
    %v4254 = vadd.f32 %v4218, %v4251
    %v4255 = vadd.f32 %v4219, %v4251
    %v4256 = vadd.f32 %v4220, %v4251
    %v4257 = vadd.f32 %v4221, %v4251
    %v4258 = vadd.f32 %v4222, %v4251
    %v4259 = vadd.f32 %v4223, %v4251
    %v4260 = vadd.f32 %v4224, %v4251
    %v4261 = vadd.f32 %v4225, %v4251
    %v4262 = vadd.f32 %v4226, %v4251
    %v4263 = vadd.f32 %v4227, %v4251
    %v4264 = vadd.f32 %v4228, %v4251
    %v4265 = vadd.f32 %v4229, %v4251
    %v4266 = vadd.f32 %v4230, %v4251
    %v4267 = vadd.f32 %v4231, %v4251
    %v4268 = vadd.f32 %v4232, %v4251
    %v4269 = vadd.f32 %v4233, %v4251
    %v4270 = vadd.f32 %v4234, %v4251
    %v4271 = vadd.f32 %v4235, %v4251
    %v4272 = vadd.f32 %v4236, %v4251
    %v4273 = vadd.f32 %v4237, %v4251
    %v4274 = vadd.f32 %v4238, %v4251
    %v4275 = vadd.f32 %v4239, %v4251
    %v4276 = vadd.f32 %v4240, %v4251
    %v4277 = vadd.f32 %v4241, %v4251
    %v4278 = vadd.f32 %v4242, %v4251
    %v4279 = vadd.f32 %v4243, %v4251
    %v4280 = vadd.f32 %v4244, %v4251
    %v4281 = vadd.f32 %v4245, %v4251
    %v4282 = vadd.f32 %v4246, %v4251
    %v4283 = vadd.f32 %v4247, %v4251
    %v4284 = vmax.f32 %v4252, 0.0
    %v4285 = vmax.f32 %v4253, 0.0
    %v4286 = vmax.f32 %v4254, 0.0
    %v4287 = vmax.f32 %v4255, 0.0
    %v4288 = vmax.f32 %v4256, 0.0
    %v4289 = vmax.f32 %v4257, 0.0
    %v4290 = vmax.f32 %v4258, 0.0
    %v4291 = vmax.f32 %v4259, 0.0
    %v4292 = vmax.f32 %v4260, 0.0
    %v4293 = vmax.f32 %v4261, 0.0
    %v4294 = vmax.f32 %v4262, 0.0
    %v4295 = vmax.f32 %v4263, 0.0
    %v4296 = vmax.f32 %v4264, 0.0
    %v4297 = vmax.f32 %v4265, 0.0
    %v4298 = vmax.f32 %v4266, 0.0
    %v4299 = vmax.f32 %v4267, 0.0
    %v4300 = vmax.f32 %v4268, 0.0
    %v4301 = vmax.f32 %v4269, 0.0
    %v4302 = vmax.f32 %v4270, 0.0
    %v4303 = vmax.f32 %v4271, 0.0
    %v4304 = vmax.f32 %v4272, 0.0
    %v4305 = vmax.f32 %v4273, 0.0
    %v4306 = vmax.f32 %v4274, 0.0
    %v4307 = vmax.f32 %v4275, 0.0
    %v4308 = vmax.f32 %v4276, 0.0
    %v4309 = vmax.f32 %v4277, 0.0
    %v4310 = vmax.f32 %v4278, 0.0
    %v4311 = vmax.f32 %v4279, 0.0
    %v4312 = vmax.f32 %v4280, 0.0
    %v4313 = vmax.f32 %v4281, 0.0
    %v4314 = vmax.f32 %v4282, 0.0
    %v4315 = vmax.f32 %v4283, 0.0
    %4316 = vst [vmem:[#allocation3] sm:$0xff] %v4284
    %4317 = vst [vmem:[#allocation3 + $0x8] sm:$0xff] %v4285
    %4318 = vst [vmem:[#allocation3 + $0x10] sm:$0xff] %v4286
    %4319 = vst [vmem:[#allocation3 + $0x18] sm:$0xff] %v4287
    %4320 = vst [vmem:[#allocation3 + $0x20] sm:$0xff] %v4288
    %4321 = vst [vmem:[#allocation3 + $0x28] sm:$0xff] %v4289
    %4322 = vst [vmem:[#allocation3 + $0x30] sm:$0xff] %v4290
    %4323 = vst [vmem:[#allocation3 + $0x38] sm:$0xff] %v4291
    %4324 = vst [vmem:[#allocation3 + $0x40] sm:$0xff] %v4292
    %4325 = vst [vmem:[#allocation3 + $0x48] sm:$0xff] %v4293
    %4326 = vst [vmem:[#allocation3 + $0x50] sm:$0xff] %v4294
    %4327 = vst [vmem:[#allocation3 + $0x58] sm:$0xff] %v4295
    %4328 = vst [vmem:[#allocation3 + $0x60] sm:$0xff] %v4296
    %4329 = vst [vmem:[#allocation3 + $0x68] sm:$0xff] %v4297
    %4330 = vst [vmem:[#allocation3 + $0x70] sm:$0xff] %v4298
    %4331 = vst [vmem:[#allocation3 + $0x78] sm:$0xff] %v4299
    %4332 = vst [vmem:[#allocation3 + $0x80] sm:$0xff] %v4300
    %4333 = vst [vmem:[#allocation3 + $0x88] sm:$0xff] %v4301
    %4334 = vst [vmem:[#allocation3 + $0x90] sm:$0xff] %v4302
    %4335 = vst [vmem:[#allocation3 + $0x98] sm:$0xff] %v4303
    %4336 = vst [vmem:[#allocation3 + $0xa0] sm:$0xff] %v4304
    %4337 = vst [vmem:[#allocation3 + $0xa8] sm:$0xff] %v4305
    %4338 = vst [vmem:[#allocation3 + $0xb0] sm:$0xff] %v4306
    %4339 = vst [vmem:[#allocation3 + $0xb8] sm:$0xff] %v4307
    %4340 = vst [vmem:[#allocation3 + $0xc0] sm:$0xff] %v4308
    %4341 = vst [vmem:[#allocation3 + $0xc8] sm:$0xff] %v4309
    %4342 = vst [vmem:[#allocation3 + $0xd0] sm:$0xff] %v4310
    %4343 = vst [vmem:[#allocation3 + $0xd8] sm:$0xff] %v4311
    %4344 = vst [vmem:[#allocation3 + $0xe0] sm:$0xff] %v4312
    %4345 = vst [vmem:[#allocation3 + $0xe8] sm:$0xff] %v4313
    %4346 = vst [vmem:[#allocation3 + $0xf0] sm:$0xff] %v4314
    %4347 = vst [vmem:[#allocation3 + $0xf8] sm:$0xff] %v4315
    %v4348 = vld [vmem:[#allocation3] sm:$0xff]
    %v4349 = vld [vmem:[#allocation3 + $0x8] sm:$0xff]
    %v4350 = vld [vmem:[#allocation3 + $0x10] sm:$0xff]
    %v4351 = vld [vmem:[#allocation3 + $0x18] sm:$0xff]
    %v4352 = vld [vmem:[#allocation3 + $0x20] sm:$0xff]
    %v4353 = vld [vmem:[#allocation3 + $0x28] sm:$0xff]
    %v4354 = vld [vmem:[#allocation3 + $0x30] sm:$0xff]
    %v4355 = vld [vmem:[#allocation3 + $0x38] sm:$0xff]
    %v4356 = vld [vmem:[#allocation3 + $0x40] sm:$0xff]
    %v4357 = vld [vmem:[#allocation3 + $0x48] sm:$0xff]
    %v4358 = vld [vmem:[#allocation3 + $0x50] sm:$0xff]
    %v4359 = vld [vmem:[#allocation3 + $0x58] sm:$0xff]
    %v4360 = vld [vmem:[#allocation3 + $0x60] sm:$0xff]
    %v4361 = vld [vmem:[#allocation3 + $0x68] sm:$0xff]
    %v4362 = vld [vmem:[#allocation3 + $0x70] sm:$0xff]
    %v4363 = vld [vmem:[#allocation3 + $0x78] sm:$0xff]
    %v4364 = vld [vmem:[#allocation3 + $0x80] sm:$0xff]
    %v4365 = vld [vmem:[#allocation3 + $0x88] sm:$0xff]
    %v4366 = vld [vmem:[#allocation3 + $0x90] sm:$0xff]
    %v4367 = vld [vmem:[#allocation3 + $0x98] sm:$0xff]
    %v4368 = vld [vmem:[#allocation3 + $0xa0] sm:$0xff]
    %v4369 = vld [vmem:[#allocation3 + $0xa8] sm:$0xff]
    %v4370 = vld [vmem:[#allocation3 + $0xb0] sm:$0xff]
    %v4371 = vld [vmem:[#allocation3 + $0xb8] sm:$0xff]
    %v4372 = vld [vmem:[#allocation3 + $0xc0] sm:$0xff]
    %v4373 = vld [vmem:[#allocation3 + $0xc8] sm:$0xff]
    %v4374 = vld [vmem:[#allocation3 + $0xd0] sm:$0xff]
    %v4375 = vld [vmem:[#allocation3 + $0xd8] sm:$0xff]
    %v4376 = vld [vmem:[#allocation3 + $0xe0] sm:$0xff]
    %v4377 = vld [vmem:[#allocation3 + $0xe8] sm:$0xff]
    %v4378 = vld [vmem:[#allocation3 + $0xf0] sm:$0xff]
    %v4379 = vld [vmem:[#allocation3 + $0xf8] sm:$0xff]
    %v4380 = vld [vmem:[#allocation3 + $0x1] sm:$0xff]
    %v4381 = vld [vmem:[#allocation3 + $0x9] sm:$0xff]
    %v4382 = vld [vmem:[#allocation3 + $0x11] sm:$0xff]
    %v4383 = vld [vmem:[#allocation3 + $0x19] sm:$0xff]
    %v4384 = vld [vmem:[#allocation3 + $0x21] sm:$0xff]
    %v4385 = vld [vmem:[#allocation3 + $0x29] sm:$0xff]
    %v4386 = vld [vmem:[#allocation3 + $0x31] sm:$0xff]
    %v4387 = vld [vmem:[#allocation3 + $0x39] sm:$0xff]
    %v4388 = vld [vmem:[#allocation3 + $0x41] sm:$0xff]
    %v4389 = vld [vmem:[#allocation3 + $0x49] sm:$0xff]
    %v4390 = vld [vmem:[#allocation3 + $0x51] sm:$0xff]
    %v4391 = vld [vmem:[#allocation3 + $0x59] sm:$0xff]
    %v4392 = vld [vmem:[#allocation3 + $0x61] sm:$0xff]
    %v4393 = vld [vmem:[#allocation3 + $0x69] sm:$0xff]
    %v4394 = vld [vmem:[#allocation3 + $0x71] sm:$0xff]
    %v4395 = vld [vmem:[#allocation3 + $0x79] sm:$0xff]
    %v4396 = vld [vmem:[#allocation3 + $0x81] sm:$0xff]
    %v4397 = vld [vmem:[#allocation3 + $0x89] sm:$0xff]
    %v4398 = vld [vmem:[#allocation3 + $0x91] sm:$0xff]
    %v4399 = vld [vmem:[#allocation3 + $0x99] sm:$0xff]
    %v4400 = vld [vmem:[#allocation3 + $0xa1] sm:$0xff]
    %v4401 = vld [vmem:[#allocation3 + $0xa9] sm:$0xff]
    %v4402 = vld [vmem:[#allocation3 + $0xb1] sm:$0xff]
    %v4403 = vld [vmem:[#allocation3 + $0xb9] sm:$0xff]
    %v4404 = vld [vmem:[#allocation3 + $0xc1] sm:$0xff]
    %v4405 = vld [vmem:[#allocation3 + $0xc9] sm:$0xff]
    %v4406 = vld [vmem:[#allocation3 + $0xd1] sm:$0xff]
    %v4407 = vld [vmem:[#allocation3 + $0xd9] sm:$0xff]
    %v4408 = vld [vmem:[#allocation3 + $0xe1] sm:$0xff]
    %v4409 = vld [vmem:[#allocation3 + $0xe9] sm:$0xff]
    %v4410 = vld [vmem:[#allocation3 + $0xf1] sm:$0xff]
    %v4411 = vld [vmem:[#allocation3 + $0xf9] sm:$0xff]
    %v4412 = vld [vmem:[#allocation3 + $0x2] sm:$0xff]
    %v4413 = vld [vmem:[#allocation3 + $0xa] sm:$0xff]
    %v4414 = vld [vmem:[#allocation3 + $0x12] sm:$0xff]
    %v4415 = vld [vmem:[#allocation3 + $0x1a] sm:$0xff]
    %v4416 = vld [vmem:[#allocation3 + $0x22] sm:$0xff]
    %v4417 = vld [vmem:[#allocation3 + $0x2a] sm:$0xff]
    %v4418 = vld [vmem:[#allocation3 + $0x32] sm:$0xff]
    %v4419 = vld [vmem:[#allocation3 + $0x3a] sm:$0xff]
    %v4420 = vld [vmem:[#allocation3 + $0x42] sm:$0xff]
    %v4421 = vld [vmem:[#allocation3 + $0x4a] sm:$0xff]
    %v4422 = vld [vmem:[#allocation3 + $0x52] sm:$0xff]
    %v4423 = vld [vmem:[#allocation3 + $0x5a] sm:$0xff]
    %v4424 = vld [vmem:[#allocation3 + $0x62] sm:$0xff]
    %v4425 = vld [vmem:[#allocation3 + $0x6a] sm:$0xff]
    %v4426 = vld [vmem:[#allocation3 + $0x72] sm:$0xff]
    %v4427 = vld [vmem:[#allocation3 + $0x7a] sm:$0xff]
    %v4428 = vld [vmem:[#allocation3 + $0x82] sm:$0xff]
    %v4429 = vld [vmem:[#allocation3 + $0x8a] sm:$0xff]
    %v4430 = vld [vmem:[#allocation3 + $0x92] sm:$0xff]
    %v4431 = vld [vmem:[#allocation3 + $0x9a] sm:$0xff]
    %v4432 = vld [vmem:[#allocation3 + $0xa2] sm:$0xff]
    %v4433 = vld [vmem:[#allocation3 + $0xaa] sm:$0xff]
    %v4434 = vld [vmem:[#allocation3 + $0xb2] sm:$0xff]
    %v4435 = vld [vmem:[#allocation3 + $0xba] sm:$0xff]
    %v4436 = vld [vmem:[#allocation3 + $0xc2] sm:$0xff]
    %v4437 = vld [vmem:[#allocation3 + $0xca] sm:$0xff]
    %v4438 = vld [vmem:[#allocation3 + $0xd2] sm:$0xff]
    %v4439 = vld [vmem:[#allocation3 + $0xda] sm:$0xff]
    %v4440 = vld [vmem:[#allocation3 + $0xe2] sm:$0xff]
    %v4441 = vld [vmem:[#allocation3 + $0xea] sm:$0xff]
    %v4442 = vld [vmem:[#allocation3 + $0xf2] sm:$0xff]
    %v4443 = vld [vmem:[#allocation3 + $0xfa] sm:$0xff]
    %v4444 = vpack.c.bf16 %v4349, %v4348
    %v4445 = vpack.c.bf16 %v4381, %v4380
    %v4446 = vpack.c.bf16 %v4413, %v4412
    %v4447 = vpack.c.bf16 %v4351, %v4350
    %v4448 = vpack.c.bf16 %v4383, %v4382
    %v4449 = vpack.c.bf16 %v4415, %v4414
    %v4450 = vpack.c.bf16 %v4353, %v4352
    %v4451 = vpack.c.bf16 %v4385, %v4384
    %v4452 = vpack.c.bf16 %v4417, %v4416
    %v4453 = vpack.c.bf16 %v4355, %v4354
    %v4454 = vpack.c.bf16 %v4387, %v4386
    %v4455 = vpack.c.bf16 %v4419, %v4418
    %v4456 = vpack.c.bf16 %v4357, %v4356
    %v4457 = vpack.c.bf16 %v4389, %v4388
    %v4458 = vpack.c.bf16 %v4421, %v4420
    %v4459 = vpack.c.bf16 %v4359, %v4358
    %v4460 = vpack.c.bf16 %v4391, %v4390
    %v4461 = vpack.c.bf16 %v4423, %v4422
    %v4462 = vpack.c.bf16 %v4361, %v4360
    %v4463 = vpack.c.bf16 %v4393, %v4392
    %v4464 = vpack.c.bf16 %v4425, %v4424
    %v4465 = vpack.c.bf16 %v4363, %v4362
    %v4466 = vpack.c.bf16 %v4395, %v4394
    %v4467 = vpack.c.bf16 %v4427, %v4426
    %v4468 = vpack.c.bf16 %v4365, %v4364
    %v4469 = vpack.c.bf16 %v4397, %v4396
    %v4470 = vpack.c.bf16 %v4429, %v4428
    %v4471 = vpack.c.bf16 %v4367, %v4366
    %v4472 = vpack.c.bf16 %v4399, %v4398
    %v4473 = vpack.c.bf16 %v4431, %v4430
    %v4474 = vpack.c.bf16 %v4369, %v4368
    %v4475 = vpack.c.bf16 %v4401, %v4400
    %v4476 = vpack.c.bf16 %v4433, %v4432
    %v4477 = vpack.c.bf16 %v4371, %v4370
    %v4478 = vpack.c.bf16 %v4403, %v4402
    %v4479 = vpack.c.bf16 %v4435, %v4434
    %v4480 = vpack.c.bf16 %v4373, %v4372
    %v4481 = vpack.c.bf16 %v4405, %v4404
    %v4482 = vpack.c.bf16 %v4437, %v4436
    %v4483 = vpack.c.bf16 %v4375, %v4374
    %v4484 = vpack.c.bf16 %v4407, %v4406
    %v4485 = vpack.c.bf16 %v4439, %v4438
    %v4486 = vpack.c.bf16 %v4377, %v4376
    %v4487 = vpack.c.bf16 %v4409, %v4408
    %v4488 = vpack.c.bf16 %v4441, %v4440
    %v4489 = vpack.c.bf16 %v4379, %v4378
    %v4490 = vpack.c.bf16 %v4411, %v4410
    %v4491 = vpack.c.bf16 %v4443, %v4442
    %v4492 = vld [vmem:[%s2] sm:$0xf]
    %v4493 = vld [vmem:[%s2 + $0x4] sm:$0xf]
    %v4494 = vld [vmem:[%s2 + $0x8] sm:$0xf]
    %v4495 = vld [vmem:[%s2 + $0xc] sm:$0xf]
    %v4496 = vld [vmem:[%s2 + $0x10] sm:$0xf]
    %v4497 = vld [vmem:[%s2 + $0x14] sm:$0xf]
    %v4498 = vld [vmem:[%s2 + $0x18] sm:$0xf]
    %v4499 = vld [vmem:[%s2 + $0x1c] sm:$0xf]
    %v4500 = vld [vmem:[%s2 + $0x20] sm:$0xf]
    %v4501 = vld [vmem:[%s2 + $0x24] sm:$0xf]
    %v4502 = vld [vmem:[%s2 + $0x28] sm:$0xf]
    %v4503 = vld [vmem:[%s2 + $0x2c] sm:$0xf]
    %v4504 = vld [vmem:[%s2 + $0x30] sm:$0xf]
    %v4505 = vld [vmem:[%s2 + $0x34] sm:$0xf]
    %v4506 = vld [vmem:[%s2 + $0x38] sm:$0xf]
    %v4507 = vld [vmem:[%s2 + $0x3c] sm:$0xf]
    %v4508 = vld [vmem:[%s2 + $0x40] sm:$0xf]
    %v4509 = vld [vmem:[%s2 + $0x44] sm:$0xf]
    %v4510 = vld [vmem:[%s2 + $0x48] sm:$0xf]
    %v4511 = vld [vmem:[%s2 + $0x4c] sm:$0xf]
    %v4512 = vld [vmem:[%s2 + $0x50] sm:$0xf]
    %v4513 = vld [vmem:[%s2 + $0x54] sm:$0xf]
    %v4514 = vld [vmem:[%s2 + $0x58] sm:$0xf]
    %v4515 = vld [vmem:[%s2 + $0x5c] sm:$0xf]
    %v4516 = vld [vmem:[%s2 + $0x60] sm:$0xf]
    %v4517 = vld [vmem:[%s2 + $0x64] sm:$0xf]
    %v4518 = vld [vmem:[%s2 + $0x68] sm:$0xf]
    %v4519 = vld [vmem:[%s2 + $0x6c] sm:$0xf]
    %v4520 = vld [vmem:[%s2 + $0x70] sm:$0xf]
    %v4521 = vld [vmem:[%s2 + $0x74] sm:$0xf]
    %v4522 = vld [vmem:[%s2 + $0x78] sm:$0xf]
    %v4523 = vld [vmem:[%s2 + $0x7c] sm:$0xf]
    %v4524 = vld [vmem:[%s2 + $0x80] sm:$0xf]
    %v4525 = vld [vmem:[%s2 + $0x84] sm:$0xf]
    %v4526 = vld [vmem:[%s2 + $0x88] sm:$0xf]
    %v4527 = vld [vmem:[%s2 + $0x8c] sm:$0xf]
    %v4528 = vld [vmem:[%s2 + $0x90] sm:$0xf]
    %v4529 = vld [vmem:[%s2 + $0x94] sm:$0xf]
    %v4530 = vld [vmem:[%s2 + $0x98] sm:$0xf]
    %v4531 = vld [vmem:[%s2 + $0x9c] sm:$0xf]
    %v4532 = vld [vmem:[%s2 + $0xa0] sm:$0xf]
    %v4533 = vld [vmem:[%s2 + $0xa4] sm:$0xf]
    %v4534 = vld [vmem:[%s2 + $0xa8] sm:$0xf]
    %v4535 = vld [vmem:[%s2 + $0xac] sm:$0xf]
    %v4536 = vld [vmem:[%s2 + $0xb0] sm:$0xf]
    %v4537 = vld [vmem:[%s2 + $0xb4] sm:$0xf]
    %v4538 = vld [vmem:[%s2 + $0xb8] sm:$0xf]
    %v4539 = vld [vmem:[%s2 + $0xbc] sm:$0xf]
    %v4588 = vunpack.c.l.b16 %v4492
    %v4589 = vunpack.c.l.b16 %v4493
    %v4590 = vunpack.c.l.b16 %v4494
    %v4591 = vunpack.c.l.b16 %v4495
    %v4592 = vunpack.c.l.b16 %v4496
    %v4593 = vunpack.c.l.b16 %v4497
    %v4594 = vunpack.c.l.b16 %v4498
    %v4595 = vunpack.c.l.b16 %v4499
    %v4596 = vunpack.c.l.b16 %v4500
    %v4597 = vunpack.c.l.b16 %v4501
    %v4598 = vunpack.c.l.b16 %v4502
    %v4599 = vunpack.c.l.b16 %v4503
    %v4600 = vunpack.c.l.b16 %v4504
    %v4601 = vunpack.c.l.b16 %v4505
    %v4602 = vunpack.c.l.b16 %v4506
    %v4603 = vunpack.c.l.b16 %v4507
    %v4604 = vunpack.c.l.b16 %v4508
    %v4605 = vunpack.c.l.b16 %v4509
    %v4606 = vunpack.c.l.b16 %v4510
    %v4607 = vunpack.c.l.b16 %v4511
    %v4608 = vunpack.c.l.b16 %v4512
    %v4609 = vunpack.c.l.b16 %v4513
    %v4610 = vunpack.c.l.b16 %v4514
    %v4611 = vunpack.c.l.b16 %v4515
    %v4612 = vunpack.c.l.b16 %v4516
    %v4613 = vunpack.c.l.b16 %v4517
    %v4614 = vunpack.c.l.b16 %v4518
    %v4615 = vunpack.c.l.b16 %v4519
    %v4616 = vunpack.c.l.b16 %v4520
    %v4617 = vunpack.c.l.b16 %v4521
    %v4618 = vunpack.c.l.b16 %v4522
    %v4619 = vunpack.c.l.b16 %v4523
    %v4620 = vunpack.c.l.b16 %v4524
    %v4621 = vunpack.c.l.b16 %v4525
    %v4622 = vunpack.c.l.b16 %v4526
    %v4623 = vunpack.c.l.b16 %v4527
    %v4624 = vunpack.c.l.b16 %v4528
    %v4625 = vunpack.c.l.b16 %v4529
    %v4626 = vunpack.c.l.b16 %v4530
    %v4627 = vunpack.c.l.b16 %v4531
    %v4628 = vunpack.c.l.b16 %v4532
    %v4629 = vunpack.c.l.b16 %v4533
    %v4630 = vunpack.c.l.b16 %v4534
    %v4631 = vunpack.c.l.b16 %v4535
    %v4632 = vunpack.c.l.b16 %v4536
    %v4633 = vunpack.c.l.b16 %v4537
    %v4634 = vunpack.c.l.b16 %v4538
    %v4635 = vunpack.c.l.b16 %v4539
    %v4636 = vpack.c.b16 %v4589, %v4588
    %v4637 = vpack.c.b16 %v4591, %v4590
    %v4638 = vpack.c.b16 %v4593, %v4592
    %v4639 = vpack.c.b16 %v4595, %v4594
    %v4640 = vpack.c.b16 %v4597, %v4596
    %v4641 = vpack.c.b16 %v4599, %v4598
    %v4642 = vpack.c.b16 %v4601, %v4600
    %v4643 = vpack.c.b16 %v4603, %v4602
    %v4644 = vpack.c.b16 %v4605, %v4604
    %v4645 = vpack.c.b16 %v4607, %v4606
    %v4646 = vpack.c.b16 %v4609, %v4608
    %v4647 = vpack.c.b16 %v4611, %v4610
    %v4648 = vpack.c.b16 %v4613, %v4612
    %v4649 = vpack.c.b16 %v4615, %v4614
    %v4650 = vpack.c.b16 %v4617, %v4616
    %v4651 = vpack.c.b16 %v4619, %v4618
    %v4652 = vpack.c.b16 %v4621, %v4620
    %v4653 = vpack.c.b16 %v4623, %v4622
    %v4654 = vpack.c.b16 %v4625, %v4624
    %v4655 = vpack.c.b16 %v4627, %v4626
    %v4656 = vpack.c.b16 %v4629, %v4628
    %v4657 = vpack.c.b16 %v4631, %v4630
    %v4658 = vpack.c.b16 %v4633, %v4632
    %v4659 = vpack.c.b16 %v4635, %v4634
    %4684 = vmatprep.subr.bf16.mxu0 0
    %4685 = vmatpush1.bf16.msra.mxu0 %v4636
    %4686 = vmatprep.subr.bf16.mxu0 0
    %4687 = vmatpush1.bf16.msra.mxu0 %v4637
    %4688 = vmatprep.subr.bf16.mxu0 0
    %4689 = vmatpush1.bf16.msra.mxu0 %v4638
    %4690 = vmatprep.subr.bf16.mxu0 0
    %4691 = vmatpush1.bf16.msra.mxu0 %v4639
    %4692 = vmatprep.subr.bf16.mxu0 0
    %4693 = vmatpush1.bf16.msra.mxu0 %v4640
    %4694 = vmatprep.subr.bf16.mxu0 0
    %4695 = vmatpush1.bf16.msra.mxu0 %v4641
    %4696 = vmatprep.subr.bf16.mxu0 0
    %4697 = vmatpush1.bf16.msra.mxu0 %v4642
    %4698 = vmatprep.subr.bf16.mxu0 0
    %4699 = vmatpush1.bf16.msra.mxu0 %v4643
    %4700 = vmatprep.subr.bf16.mxu0 0
    %4701 = vmatpush1.bf16.msra.mxu0 %v4644
    %4702 = vmatprep.subr.bf16.mxu0 0
    %4703 = vmatpush1.bf16.msra.mxu0 %v4645
    %4704 = vmatprep.subr.bf16.mxu0 0
    %4705 = vmatpush1.bf16.msra.mxu0 %v4646
    %4706 = vmatprep.subr.bf16.mxu0 0
    %4707 = vmatpush1.bf16.msra.mxu0 %v4647
    %4708 = vmatprep.subr.bf16.mxu0 0
    %4709 = vmatpush1.bf16.msra.mxu0 %v4648
    %4710 = vmatprep.subr.bf16.mxu0 0
    %4711 = vmatpush1.bf16.msra.mxu0 %v4649
    %4712 = vmatprep.subr.bf16.mxu0 0
    %4713 = vmatpush1.bf16.msra.mxu0 %v4650
    %4714 = vmatprep.subr.bf16.mxu0 0
    %4715 = vmatpush1.bf16.msra.mxu0 %v4651
    %4716 = vmatprep.mubr.bf16.mxu0 %v4445
    %4717 = vmatmul.mubr.bf16.gmra.mrb[0].mxu0 %v4444
    %v4718 = vpop.f32.mrb[0].mxu0
    %v4719 = vadd.f32 0.0, %v4718
    %v4720 = vpop.f32.mrb[0].mxu0
    %v4721 = vpop.f32.mrb[0].mxu0
    %v4722 = vadd.f32 0.0, %v4721
    %v4723 = vpop.f32.mrb[0].mxu0
    %4724 = vmatprep.mubr.bf16.mxu0 %v4448
    %4725 = vmatmul.mubr.bf16.gmra.mrb[0].mxu0 %v4447
    %v4726 = vpop.f32.mrb[0].mxu0
    %v4727 = vadd.f32 0.0, %v4726
    %v4728 = vpop.f32.mrb[0].mxu0
    %v4729 = vpop.f32.mrb[0].mxu0
    %v4730 = vadd.f32 0.0, %v4729
    %v4731 = vpop.f32.mrb[0].mxu0
    %4732 = vmatprep.mubr.bf16.mxu0 %v4451
    %4733 = vmatmul.mubr.bf16.gmra.mrb[0].mxu0 %v4450
    %v4734 = vpop.f32.mrb[0].mxu0
    %v4735 = vadd.f32 0.0, %v4734
    %v4736 = vpop.f32.mrb[0].mxu0
    %v4737 = vpop.f32.mrb[0].mxu0
    %v4738 = vadd.f32 0.0, %v4737
    %v4739 = vpop.f32.mrb[0].mxu0
    %4740 = vmatprep.mubr.bf16.mxu0 %v4454
    %4741 = vmatmul.mubr.bf16.gmra.mrb[0].mxu0 %v4453
    %v4742 = vpop.f32.mrb[0].mxu0
    %v4743 = vadd.f32 0.0, %v4742
    %v4744 = vpop.f32.mrb[0].mxu0
    %v4745 = vpop.f32.mrb[0].mxu0
    %v4746 = vadd.f32 0.0, %v4745
    %v4747 = vpop.f32.mrb[0].mxu0
    %4748 = vmatprep.mubr.bf16.mxu0 %v4457
    %4749 = vmatmul.mubr.bf16.gmra.mrb[0].mxu0 %v4456
    %v4750 = vpop.f32.mrb[0].mxu0
    %v4751 = vadd.f32 0.0, %v4750
    %v4752 = vpop.f32.mrb[0].mxu0
    %v4753 = vpop.f32.mrb[0].mxu0
    %v4754 = vadd.f32 0.0, %v4753
    %v4755 = vpop.f32.mrb[0].mxu0
    %4756 = vmatprep.mubr.bf16.mxu0 %v4460
    %4757 = vmatmul.mubr.bf16.gmra.mrb[0].mxu0 %v4459
    %v4758 = vpop.f32.mrb[0].mxu0
    %v4759 = vadd.f32 0.0, %v4758
    %v4760 = vpop.f32.mrb[0].mxu0
    %v4761 = vpop.f32.mrb[0].mxu0
    %v4762 = vadd.f32 0.0, %v4761
    %v4763 = vpop.f32.mrb[0].mxu0
    %4764 = vmatprep.mubr.bf16.mxu0 %v4463
    %4765 = vmatmul.mubr.bf16.gmra.mrb[0].mxu0 %v4462
    %v4766 = vpop.f32.mrb[0].mxu0
    %v4767 = vadd.f32 0.0, %v4766
    %v4768 = vpop.f32.mrb[0].mxu0
    %v4769 = vpop.f32.mrb[0].mxu0
    %v4770 = vadd.f32 0.0, %v4769
    %v4771 = vpop.f32.mrb[0].mxu0
    %4772 = vmatprep.mubr.bf16.mxu0 %v4466
    %4773 = vmatmul.mubr.bf16.gmra.mrb[0].mxu0 %v4465
    %v4774 = vpop.f32.mrb[0].mxu0
    %v4775 = vadd.f32 0.0, %v4774
    %v4776 = vpop.f32.mrb[0].mxu0
    %v4777 = vpop.f32.mrb[0].mxu0
    %v4778 = vadd.f32 0.0, %v4777
    %v4779 = vpop.f32.mrb[0].mxu0
    %4780 = vmatprep.mubr.bf16.mxu0 %v4469
    %4781 = vmatmul.mubr.bf16.gmra.mrb[0].mxu0 %v4468
    %v4782 = vpop.f32.mrb[0].mxu0
    %v4783 = vadd.f32 0.0, %v4782
    %v4784 = vpop.f32.mrb[0].mxu0
    %v4785 = vpop.f32.mrb[0].mxu0
    %v4786 = vadd.f32 0.0, %v4785
    %v4787 = vpop.f32.mrb[0].mxu0
    %4788 = vmatprep.mubr.bf16.mxu0 %v4472
    %4789 = vmatmul.mubr.bf16.gmra.mrb[0].mxu0 %v4471
    %v4790 = vpop.f32.mrb[0].mxu0
    %v4791 = vadd.f32 0.0, %v4790
    %v4792 = vpop.f32.mrb[0].mxu0
    %v4793 = vpop.f32.mrb[0].mxu0
    %v4794 = vadd.f32 0.0, %v4793
    %v4795 = vpop.f32.mrb[0].mxu0
    %4796 = vmatprep.mubr.bf16.mxu0 %v4475
    %4797 = vmatmul.mubr.bf16.gmra.mrb[0].mxu0 %v4474
    %v4798 = vpop.f32.mrb[0].mxu0
    %v4799 = vadd.f32 0.0, %v4798
    %v4800 = vpop.f32.mrb[0].mxu0
    %v4801 = vpop.f32.mrb[0].mxu0
    %v4802 = vadd.f32 0.0, %v4801
    %v4803 = vpop.f32.mrb[0].mxu0
    %4804 = vmatprep.mubr.bf16.mxu0 %v4478
    %4805 = vmatmul.mubr.bf16.gmra.mrb[0].mxu0 %v4477
    %v4806 = vpop.f32.mrb[0].mxu0
    %v4807 = vadd.f32 0.0, %v4806
    %v4808 = vpop.f32.mrb[0].mxu0
    %v4809 = vpop.f32.mrb[0].mxu0
    %v4810 = vadd.f32 0.0, %v4809
    %v4811 = vpop.f32.mrb[0].mxu0
    %4812 = vmatprep.mubr.bf16.mxu0 %v4481
    %4813 = vmatmul.mubr.bf16.gmra.mrb[0].mxu0 %v4480
    %v4814 = vpop.f32.mrb[0].mxu0
    %v4815 = vadd.f32 0.0, %v4814
    %v4816 = vpop.f32.mrb[0].mxu0
    %v4817 = vpop.f32.mrb[0].mxu0
    %v4818 = vadd.f32 0.0, %v4817
    %v4819 = vpop.f32.mrb[0].mxu0
    %4820 = vmatprep.mubr.bf16.mxu0 %v4484
    %4821 = vmatmul.mubr.bf16.gmra.mrb[0].mxu0 %v4483
    %v4822 = vpop.f32.mrb[0].mxu0
    %v4823 = vadd.f32 0.0, %v4822
    %v4824 = vpop.f32.mrb[0].mxu0
    %v4825 = vpop.f32.mrb[0].mxu0
    %v4826 = vadd.f32 0.0, %v4825
    %v4827 = vpop.f32.mrb[0].mxu0
    %4828 = vmatprep.mubr.bf16.mxu0 %v4487
    %4829 = vmatmul.mubr.bf16.gmra.mrb[0].mxu0 %v4486
    %v4830 = vpop.f32.mrb[0].mxu0
    %v4831 = vadd.f32 0.0, %v4830
    %v4832 = vpop.f32.mrb[0].mxu0
    %v4833 = vpop.f32.mrb[0].mxu0
    %v4834 = vadd.f32 0.0, %v4833
    %v4835 = vpop.f32.mrb[0].mxu0
    %4836 = vmatprep.mubr.bf16.mxu0 %v4490
    %4837 = vmatmul.mubr.bf16.gmra.mrb[0].mxu0 %v4489
    %v4838 = vpop.f32.mrb[0].mxu0
    %v4839 = vadd.f32 0.0, %v4838
    %v4840 = vpop.f32.mrb[0].mxu0
    %v4841 = vpop.f32.mrb[0].mxu0
    %v4842 = vadd.f32 0.0, %v4841
    %v4843 = vpop.f32.mrb[0].mxu0
    %4844 = vdwg.mxu0
    %4845 = vmatprep.subr.bf16.mxu0 0
    %4846 = vmatpush1.bf16.msra.mxu0 %v4652
    %4847 = vmatprep.subr.bf16.mxu0 0
    %4848 = vmatpush1.bf16.msra.mxu0 %v4653
    %4849 = vmatprep.subr.bf16.mxu0 0
    %4850 = vmatpush1.bf16.msra.mxu0 %v4654
    %4851 = vmatprep.subr.bf16.mxu0 0
    %4852 = vmatpush1.bf16.msra.mxu0 %v4655
    %4853 = vmatprep.subr.bf16.mxu0 0
    %4854 = vmatpush1.bf16.msra.mxu0 %v4656
    %4855 = vmatprep.subr.bf16.mxu0 0
    %4856 = vmatpush1.bf16.msra.mxu0 %v4657
    %4857 = vmatprep.subr.bf16.mxu0 0
    %4858 = vmatpush1.bf16.msra.mxu0 %v4658
    %4859 = vmatprep.subr.bf16.mxu0 0
    %4860 = vmatpush1.bf16.msra.mxu0 %v4659
    %4861 = vmatprep.subr.bf16.mxu0 0
    %4862 = vmatpush1.bf16.msra.mxu0 0
    %4863 = vmatprep.subr.bf16.mxu0 0
    %4864 = vmatpush1.bf16.msra.mxu0 0
    %4865 = vmatprep.subr.bf16.mxu0 0
    %4866 = vmatpush1.bf16.msra.mxu0 0
    %4867 = vmatprep.subr.bf16.mxu0 0
    %4868 = vmatpush1.bf16.msra.mxu0 0
    %4869 = vmatprep.subr.bf16.mxu0 0
    %4870 = vmatpush1.bf16.msra.mxu0 0
    %4871 = vmatprep.subr.bf16.mxu0 0
    %4872 = vmatpush1.bf16.msra.mxu0 0
    %4873 = vmatprep.subr.bf16.mxu0 0
    %4874 = vmatpush1.bf16.msra.mxu0 0
    %4875 = vmatprep.subr.bf16.mxu0 0
    %4876 = vmatpush1.bf16.msra.mxu0 0
    %4877 = vmatprep.mubr.bf16.mxu0 0
    %4878 = vmatmul.mubr.bf16.gmra.mrb[0].mxu0 %v4446
    %v4879 = vpop.f32.mrb[0].mxu0
    %v4880 = vadd.f32 %v4719, %v4879
    %v4881 = vpop.f32.mrb[0].mxu0
    %v4882 = vpop.f32.mrb[0].mxu0
    %v4883 = vadd.f32 %v4722, %v4882
    %v4884 = vpop.f32.mrb[0].mxu0
    %4885 = vmatprep.mubr.bf16.mxu0 0
    %4886 = vmatmul.mubr.bf16.gmra.mrb[0].mxu0 %v4449
    %v4887 = vpop.f32.mrb[0].mxu0
    %v4888 = vadd.f32 %v4727, %v4887
    %v4889 = vpop.f32.mrb[0].mxu0
    %v4890 = vpop.f32.mrb[0].mxu0
    %v4891 = vadd.f32 %v4730, %v4890
    %v4892 = vpop.f32.mrb[0].mxu0
    %4893 = vmatprep.mubr.bf16.mxu0 0
    %4894 = vmatmul.mubr.bf16.gmra.mrb[0].mxu0 %v4452
    %v4895 = vpop.f32.mrb[0].mxu0
    %v4896 = vadd.f32 %v4735, %v4895
    %v4897 = vpop.f32.mrb[0].mxu0
    %v4898 = vpop.f32.mrb[0].mxu0
    %v4899 = vadd.f32 %v4738, %v4898
    %v4900 = vpop.f32.mrb[0].mxu0
    %4901 = vmatprep.mubr.bf16.mxu0 0
    %4902 = vmatmul.mubr.bf16.gmra.mrb[0].mxu0 %v4455
    %v4903 = vpop.f32.mrb[0].mxu0
    %v4904 = vadd.f32 %v4743, %v4903
    %v4905 = vpop.f32.mrb[0].mxu0
    %v4906 = vpop.f32.mrb[0].mxu0
    %v4907 = vadd.f32 %v4746, %v4906
    %v4908 = vpop.f32.mrb[0].mxu0
    %4909 = vmatprep.mubr.bf16.mxu0 0
    %4910 = vmatmul.mubr.bf16.gmra.mrb[0].mxu0 %v4458
    %v4911 = vpop.f32.mrb[0].mxu0
    %v4912 = vadd.f32 %v4751, %v4911
    %v4913 = vpop.f32.mrb[0].mxu0
    %v4914 = vpop.f32.mrb[0].mxu0
    %v4915 = vadd.f32 %v4754, %v4914
    %v4916 = vpop.f32.mrb[0].mxu0
    %4917 = vmatprep.mubr.bf16.mxu0 0
    %4918 = vmatmul.mubr.bf16.gmra.mrb[0].mxu0 %v4461
    %v4919 = vpop.f32.mrb[0].mxu0
    %v4920 = vadd.f32 %v4759, %v4919
    %v4921 = vpop.f32.mrb[0].mxu0
    %v4922 = vpop.f32.mrb[0].mxu0
    %v4923 = vadd.f32 %v4762, %v4922
    %v4924 = vpop.f32.mrb[0].mxu0
    %4925 = vmatprep.mubr.bf16.mxu0 0
    %4926 = vmatmul.mubr.bf16.gmra.mrb[0].mxu0 %v4464
    %v4927 = vpop.f32.mrb[0].mxu0
    %v4928 = vadd.f32 %v4767, %v4927
    %v4929 = vpop.f32.mrb[0].mxu0
    %v4930 = vpop.f32.mrb[0].mxu0
    %v4931 = vadd.f32 %v4770, %v4930
    %v4932 = vpop.f32.mrb[0].mxu0
    %4933 = vmatprep.mubr.bf16.mxu0 0
    %4934 = vmatmul.mubr.bf16.gmra.mrb[0].mxu0 %v4467
    %v4935 = vpop.f32.mrb[0].mxu0
    %v4936 = vadd.f32 %v4775, %v4935
    %v4937 = vpop.f32.mrb[0].mxu0
    %v4938 = vpop.f32.mrb[0].mxu0
    %v4939 = vadd.f32 %v4778, %v4938
    %v4940 = vpop.f32.mrb[0].mxu0
    %4941 = vmatprep.mubr.bf16.mxu0 0
    %4942 = vmatmul.mubr.bf16.gmra.mrb[0].mxu0 %v4470
    %v4943 = vpop.f32.mrb[0].mxu0
    %v4944 = vadd.f32 %v4783, %v4943
    %v4945 = vpop.f32.mrb[0].mxu0
    %v4946 = vpop.f32.mrb[0].mxu0
    %v4947 = vadd.f32 %v4786, %v4946
    %v4948 = vpop.f32.mrb[0].mxu0
    %4949 = vmatprep.mubr.bf16.mxu0 0
    %4950 = vmatmul.mubr.bf16.gmra.mrb[0].mxu0 %v4473
    %v4951 = vpop.f32.mrb[0].mxu0
    %v4952 = vadd.f32 %v4791, %v4951
    %v4953 = vpop.f32.mrb[0].mxu0
    %v4954 = vpop.f32.mrb[0].mxu0
    %v4955 = vadd.f32 %v4794, %v4954
    %v4956 = vpop.f32.mrb[0].mxu0
    %4957 = vmatprep.mubr.bf16.mxu0 0
    %4958 = vmatmul.mubr.bf16.gmra.mrb[0].mxu0 %v4476
    %v4959 = vpop.f32.mrb[0].mxu0
    %v4960 = vadd.f32 %v4799, %v4959
    %v4961 = vpop.f32.mrb[0].mxu0
    %v4962 = vpop.f32.mrb[0].mxu0
    %v4963 = vadd.f32 %v4802, %v4962
    %v4964 = vpop.f32.mrb[0].mxu0
    %4965 = vmatprep.mubr.bf16.mxu0 0
    %4966 = vmatmul.mubr.bf16.gmra.mrb[0].mxu0 %v4479
    %v4967 = vpop.f32.mrb[0].mxu0
    %v4968 = vadd.f32 %v4807, %v4967
    %v4969 = vpop.f32.mrb[0].mxu0
    %v4970 = vpop.f32.mrb[0].mxu0
    %v4971 = vadd.f32 %v4810, %v4970
    %v4972 = vpop.f32.mrb[0].mxu0
    %4973 = vmatprep.mubr.bf16.mxu0 0
    %4974 = vmatmul.mubr.bf16.gmra.mrb[0].mxu0 %v4482
    %v4975 = vpop.f32.mrb[0].mxu0
    %v4976 = vadd.f32 %v4815, %v4975
    %v4977 = vpop.f32.mrb[0].mxu0
    %v4978 = vpop.f32.mrb[0].mxu0
    %v4979 = vadd.f32 %v4818, %v4978
    %v4980 = vpop.f32.mrb[0].mxu0
    %4981 = vmatprep.mubr.bf16.mxu0 0
    %4982 = vmatmul.mubr.bf16.gmra.mrb[0].mxu0 %v4485
    %v4983 = vpop.f32.mrb[0].mxu0
    %v4984 = vadd.f32 %v4823, %v4983
    %v4985 = vpop.f32.mrb[0].mxu0
    %v4986 = vpop.f32.mrb[0].mxu0
    %v4987 = vadd.f32 %v4826, %v4986
    %v4988 = vpop.f32.mrb[0].mxu0
    %4989 = vmatprep.mubr.bf16.mxu0 0
    %4990 = vmatmul.mubr.bf16.gmra.mrb[0].mxu0 %v4488
    %v4991 = vpop.f32.mrb[0].mxu0
    %v4992 = vadd.f32 %v4831, %v4991
    %v4993 = vpop.f32.mrb[0].mxu0
    %v4994 = vpop.f32.mrb[0].mxu0
    %v4995 = vadd.f32 %v4834, %v4994
    %v4996 = vpop.f32.mrb[0].mxu0
    %4997 = vmatprep.mubr.bf16.mxu0 0
    %4998 = vmatmul.mubr.bf16.gmra.mrb[0].mxu0 %v4491
    %v4999 = vpop.f32.mrb[0].mxu0
    %v5000 = vadd.f32 %v4839, %v4999
    %v5001 = vpop.f32.mrb[0].mxu0
    %v5002 = vpop.f32.mrb[0].mxu0
    %v5003 = vadd.f32 %v4842, %v5002
    %v5004 = vpop.f32.mrb[0].mxu0
    %5005 = vdwg.mxu0
    %vm5006 = vcmp.lt.s32.totalorder %v1203, 122
    %vm5007 = vcmp.lt.s32.totalorder %v1204, 122
    %vm5008 = vcmp.lt.s32.totalorder %v1205, 122
    %vm5009 = vcmp.lt.s32.totalorder %v1206, 122
    %vm5010 = vcmp.lt.s32.totalorder %v1207, 122
    %vm5011 = vcmp.lt.s32.totalorder %v1208, 122
    %vm5012 = vcmp.lt.s32.totalorder %v1209, 122
    %vm5013 = vcmp.lt.s32.totalorder %v1210, 122
    %vm5014 = vcmp.lt.s32.totalorder %v1211, 122
    %vm5015 = vcmp.lt.s32.totalorder %v1212, 122
    %vm5016 = vcmp.lt.s32.totalorder %v1213, 122
    %vm5017 = vcmp.lt.s32.totalorder %v1214, 122
    %vm5018 = vcmp.lt.s32.totalorder %v1215, 122
    %vm5019 = vcmp.lt.s32.totalorder %v1216, 122
    %vm5020 = vcmp.lt.s32.totalorder %v1217, 122
    %vm5021 = vcmp.lt.s32.totalorder %v1218, 122
    %vm5022 = vcmp.lt.s32.totalorder %v1219, 122
    %vm5023 = vcmp.lt.s32.totalorder %v1220, 122
    %vm5024 = vcmp.lt.s32.totalorder %v1221, 122
    %vm5025 = vcmp.lt.s32.totalorder %v1222, 122
    %vm5026 = vcmp.lt.s32.totalorder %v1223, 122
    %vm5027 = vcmp.lt.s32.totalorder %v1224, 122
    %vm5028 = vcmp.lt.s32.totalorder %v1225, 122
    %vm5029 = vcmp.lt.s32.totalorder %v1226, 122
    %vm5030 = vcmp.lt.s32.totalorder %v1227, 122
    %vm5031 = vcmp.lt.s32.totalorder %v1228, 122
    %vm5032 = vcmp.lt.s32.totalorder %v1229, 122
    %vm5033 = vcmp.lt.s32.totalorder %v1230, 122
    %vm5034 = vcmp.lt.s32.totalorder %v1231, 122
    %vm5035 = vcmp.lt.s32.totalorder %v1232, 122
    %vm5036 = vcmp.lt.s32.totalorder %v1233, 122
    %vm5037 = vcmp.lt.s32.totalorder %v1234, 122
    %vm5038 = vmand %vm1331, %vm5006
    %vm5039 = vmand %vm1332, %vm5007
    %vm5040 = vmand %vm1333, %vm5008
    %vm5041 = vmand %vm1334, %vm5009
    %vm5042 = vmand %vm1335, %vm5010
    %vm5043 = vmand %vm1336, %vm5011
    %vm5044 = vmand %vm1337, %vm5012
    %vm5045 = vmand %vm1338, %vm5013
    %vm5046 = vmand %vm1339, %vm5014
    %vm5047 = vmand %vm1340, %vm5015
    %vm5048 = vmand %vm1341, %vm5016
    %vm5049 = vmand %vm1342, %vm5017
    %vm5050 = vmand %vm1343, %vm5018
    %vm5051 = vmand %vm1344, %vm5019
    %vm5052 = vmand %vm1345, %vm5020
    %vm5053 = vmand %vm1346, %vm5021
    %vm5054 = vmand %vm1347, %vm5022
    %vm5055 = vmand %vm1348, %vm5023
    %vm5056 = vmand %vm1349, %vm5024
    %vm5057 = vmand %vm1350, %vm5025
    %vm5058 = vmand %vm1351, %vm5026
    %vm5059 = vmand %vm1352, %vm5027
    %vm5060 = vmand %vm1353, %vm5028
    %vm5061 = vmand %vm1354, %vm5029
    %vm5062 = vmand %vm1355, %vm5030
    %vm5063 = vmand %vm1356, %vm5031
    %vm5064 = vmand %vm1357, %vm5032
    %vm5065 = vmand %vm1358, %vm5033
    %vm5066 = vmand %vm1359, %vm5034
    %vm5067 = vmand %vm1360, %vm5035
    %vm5068 = vmand %vm1361, %vm5036
    %vm5069 = vmand %vm1362, %vm5037
    %v5070 = vsel %vm5038, 1, 0
    %v5071 = vsel %vm5039, 1, 0
    %v5072 = vsel %vm5040, 1, 0
    %v5073 = vsel %vm5041, 1, 0
    %v5074 = vsel %vm5042, 1, 0
    %v5075 = vsel %vm5043, 1, 0
    %v5076 = vsel %vm5044, 1, 0
    %v5077 = vsel %vm5045, 1, 0
    %v5078 = vsel %vm5046, 1, 0
    %v5079 = vsel %vm5047, 1, 0
    %v5080 = vsel %vm5048, 1, 0
    %v5081 = vsel %vm5049, 1, 0
    %v5082 = vsel %vm5050, 1, 0
    %v5083 = vsel %vm5051, 1, 0
    %v5084 = vsel %vm5052, 1, 0
    %v5085 = vsel %vm5053, 1, 0
    %v5086 = vsel %vm5054, 1, 0
    %v5087 = vsel %vm5055, 1, 0
    %v5088 = vsel %vm5056, 1, 0
    %v5089 = vsel %vm5057, 1, 0
    %v5090 = vsel %vm5058, 1, 0
    %v5091 = vsel %vm5059, 1, 0
    %v5092 = vsel %vm5060, 1, 0
    %v5093 = vsel %vm5061, 1, 0
    %v5094 = vsel %vm5062, 1, 0
    %v5095 = vsel %vm5063, 1, 0
    %v5096 = vsel %vm5064, 1, 0
    %v5097 = vsel %vm5065, 1, 0
    %v5098 = vsel %vm5066, 1, 0
    %v5099 = vsel %vm5067, 1, 0
    %v5100 = vsel %vm5068, 1, 0
    %v5101 = vsel %vm5069, 1, 0
    %v5102 = vcvt.s32.f32 %v5070
    %v5103 = vcvt.s32.f32 %v5071
    %v5104 = vcvt.s32.f32 %v5072
    %v5105 = vcvt.s32.f32 %v5073
    %v5106 = vcvt.s32.f32 %v5074
    %v5107 = vcvt.s32.f32 %v5075
    %v5108 = vcvt.s32.f32 %v5076
    %v5109 = vcvt.s32.f32 %v5077
    %v5110 = vcvt.s32.f32 %v5078
    %v5111 = vcvt.s32.f32 %v5079
    %v5112 = vcvt.s32.f32 %v5080
    %v5113 = vcvt.s32.f32 %v5081
    %v5114 = vcvt.s32.f32 %v5082
    %v5115 = vcvt.s32.f32 %v5083
    %v5116 = vcvt.s32.f32 %v5084
    %v5117 = vcvt.s32.f32 %v5085
    %v5118 = vcvt.s32.f32 %v5086
    %v5119 = vcvt.s32.f32 %v5087
    %v5120 = vcvt.s32.f32 %v5088
    %v5121 = vcvt.s32.f32 %v5089
    %v5122 = vcvt.s32.f32 %v5090
    %v5123 = vcvt.s32.f32 %v5091
    %v5124 = vcvt.s32.f32 %v5092
    %v5125 = vcvt.s32.f32 %v5093
    %v5126 = vcvt.s32.f32 %v5094
    %v5127 = vcvt.s32.f32 %v5095
    %v5128 = vcvt.s32.f32 %v5096
    %v5129 = vcvt.s32.f32 %v5097
    %v5130 = vcvt.s32.f32 %v5098
    %v5131 = vcvt.s32.f32 %v5099
    %v5132 = vcvt.s32.f32 %v5100
    %v5133 = vcvt.s32.f32 %v5101
    %v5134 = vadd.f32 %v5102, 0.0
    %v5135 = vadd.f32 %v5103, 0.0
    %v5136 = vadd.f32 %v5104, 0.0
    %v5137 = vadd.f32 %v5105, 0.0
    %v5138 = vadd.f32 %v5106, 0.0
    %v5139 = vadd.f32 %v5107, 0.0
    %v5140 = vadd.f32 %v5108, 0.0
    %v5141 = vadd.f32 %v5109, 0.0
    %v5142 = vadd.f32 %v5110, 0.0
    %v5143 = vadd.f32 %v5111, 0.0
    %v5144 = vadd.f32 %v5112, 0.0
    %v5145 = vadd.f32 %v5113, 0.0
    %v5146 = vadd.f32 %v5114, 0.0
    %v5147 = vadd.f32 %v5115, 0.0
    %v5148 = vadd.f32 %v5116, 0.0
    %v5149 = vadd.f32 %v5117, 0.0
    %v5150 = vadd.f32 %v5118, 0.0
    %v5151 = vadd.f32 %v5119, 0.0
    %v5152 = vadd.f32 %v5120, 0.0
    %v5153 = vadd.f32 %v5121, 0.0
    %v5154 = vadd.f32 %v5122, 0.0
    %v5155 = vadd.f32 %v5123, 0.0
    %v5156 = vadd.f32 %v5124, 0.0
    %v5157 = vadd.f32 %v5125, 0.0
    %v5158 = vadd.f32 %v5126, 0.0
    %v5159 = vadd.f32 %v5127, 0.0
    %v5160 = vadd.f32 %v5128, 0.0
    %v5161 = vadd.f32 %v5129, 0.0
    %v5162 = vadd.f32 %v5130, 0.0
    %v5163 = vadd.f32 %v5131, 0.0
    %v5164 = vadd.f32 %v5132, 0.0
    %v5165 = vadd.f32 %v5133, 0.0
    %vm5166 = vcmp.ge.s32.totalorder %v1203, 128
    %vm5167 = vcmp.ge.s32.totalorder %v1204, 128
    %vm5168 = vcmp.ge.s32.totalorder %v1205, 128
    %vm5169 = vcmp.ge.s32.totalorder %v1206, 128
    %vm5170 = vcmp.ge.s32.totalorder %v1207, 128
    %vm5171 = vcmp.ge.s32.totalorder %v1208, 128
    %vm5172 = vcmp.ge.s32.totalorder %v1209, 128
    %vm5173 = vcmp.ge.s32.totalorder %v1210, 128
    %vm5174 = vcmp.ge.s32.totalorder %v1211, 128
    %vm5175 = vcmp.ge.s32.totalorder %v1212, 128
    %vm5176 = vcmp.ge.s32.totalorder %v1213, 128
    %vm5177 = vcmp.ge.s32.totalorder %v1214, 128
    %vm5178 = vcmp.ge.s32.totalorder %v1215, 128
    %vm5179 = vcmp.ge.s32.totalorder %v1216, 128
    %vm5180 = vcmp.ge.s32.totalorder %v1217, 128
    %vm5181 = vcmp.ge.s32.totalorder %v1218, 128
    %vm5182 = vcmp.ge.s32.totalorder %v1219, 128
    %vm5183 = vcmp.ge.s32.totalorder %v1220, 128
    %vm5184 = vcmp.ge.s32.totalorder %v1221, 128
    %vm5185 = vcmp.ge.s32.totalorder %v1222, 128
    %vm5186 = vcmp.ge.s32.totalorder %v1223, 128
    %vm5187 = vcmp.ge.s32.totalorder %v1224, 128
    %vm5188 = vcmp.ge.s32.totalorder %v1225, 128
    %vm5189 = vcmp.ge.s32.totalorder %v1226, 128
    %vm5190 = vcmp.ge.s32.totalorder %v1227, 128
    %vm5191 = vcmp.ge.s32.totalorder %v1228, 128
    %vm5192 = vcmp.ge.s32.totalorder %v1229, 128
    %vm5193 = vcmp.ge.s32.totalorder %v1230, 128
    %vm5194 = vcmp.ge.s32.totalorder %v1231, 128
    %vm5195 = vcmp.ge.s32.totalorder %v1232, 128
    %vm5196 = vcmp.ge.s32.totalorder %v1233, 128
    %vm5197 = vcmp.ge.s32.totalorder %v1234, 128
    %vm5198 = vcmp.lt.s32.totalorder %v1203, 250
    %vm5199 = vcmp.lt.s32.totalorder %v1204, 250
    %vm5200 = vcmp.lt.s32.totalorder %v1205, 250
    %vm5201 = vcmp.lt.s32.totalorder %v1206, 250
    %vm5202 = vcmp.lt.s32.totalorder %v1207, 250
    %vm5203 = vcmp.lt.s32.totalorder %v1208, 250
    %vm5204 = vcmp.lt.s32.totalorder %v1209, 250
    %vm5205 = vcmp.lt.s32.totalorder %v1210, 250
    %vm5206 = vcmp.lt.s32.totalorder %v1211, 250
    %vm5207 = vcmp.lt.s32.totalorder %v1212, 250
    %vm5208 = vcmp.lt.s32.totalorder %v1213, 250
    %vm5209 = vcmp.lt.s32.totalorder %v1214, 250
    %vm5210 = vcmp.lt.s32.totalorder %v1215, 250
    %vm5211 = vcmp.lt.s32.totalorder %v1216, 250
    %vm5212 = vcmp.lt.s32.totalorder %v1217, 250
    %vm5213 = vcmp.lt.s32.totalorder %v1218, 250
    %vm5214 = vcmp.lt.s32.totalorder %v1219, 250
    %vm5215 = vcmp.lt.s32.totalorder %v1220, 250
    %vm5216 = vcmp.lt.s32.totalorder %v1221, 250
    %vm5217 = vcmp.lt.s32.totalorder %v1222, 250
    %vm5218 = vcmp.lt.s32.totalorder %v1223, 250
    %vm5219 = vcmp.lt.s32.totalorder %v1224, 250
    %vm5220 = vcmp.lt.s32.totalorder %v1225, 250
    %vm5221 = vcmp.lt.s32.totalorder %v1226, 250
    %vm5222 = vcmp.lt.s32.totalorder %v1227, 250
    %vm5223 = vcmp.lt.s32.totalorder %v1228, 250
    %vm5224 = vcmp.lt.s32.totalorder %v1229, 250
    %vm5225 = vcmp.lt.s32.totalorder %v1230, 250
    %vm5226 = vcmp.lt.s32.totalorder %v1231, 250
    %vm5227 = vcmp.lt.s32.totalorder %v1232, 250
    %vm5228 = vcmp.lt.s32.totalorder %v1233, 250
    %vm5229 = vcmp.lt.s32.totalorder %v1234, 250
    %vm5230 = vmand %vm5166, %vm5198
    %vm5231 = vmand %vm5167, %vm5199
    %vm5232 = vmand %vm5168, %vm5200
    %vm5233 = vmand %vm5169, %vm5201
    %vm5234 = vmand %vm5170, %vm5202
    %vm5235 = vmand %vm5171, %vm5203
    %vm5236 = vmand %vm5172, %vm5204
    %vm5237 = vmand %vm5173, %vm5205
    %vm5238 = vmand %vm5174, %vm5206
    %vm5239 = vmand %vm5175, %vm5207
    %vm5240 = vmand %vm5176, %vm5208
    %vm5241 = vmand %vm5177, %vm5209
    %vm5242 = vmand %vm5178, %vm5210
    %vm5243 = vmand %vm5179, %vm5211
    %vm5244 = vmand %vm5180, %vm5212
    %vm5245 = vmand %vm5181, %vm5213
    %vm5246 = vmand %vm5182, %vm5214
    %vm5247 = vmand %vm5183, %vm5215
    %vm5248 = vmand %vm5184, %vm5216
    %vm5249 = vmand %vm5185, %vm5217
    %vm5250 = vmand %vm5186, %vm5218
    %vm5251 = vmand %vm5187, %vm5219
    %vm5252 = vmand %vm5188, %vm5220
    %vm5253 = vmand %vm5189, %vm5221
    %vm5254 = vmand %vm5190, %vm5222
    %vm5255 = vmand %vm5191, %vm5223
    %vm5256 = vmand %vm5192, %vm5224
    %vm5257 = vmand %vm5193, %vm5225
    %vm5258 = vmand %vm5194, %vm5226
    %vm5259 = vmand %vm5195, %vm5227
    %vm5260 = vmand %vm5196, %vm5228
    %vm5261 = vmand %vm5197, %vm5229
    %v5262 = vsel %vm5230, 1, 0
    %v5263 = vsel %vm5231, 1, 0
    %v5264 = vsel %vm5232, 1, 0
    %v5265 = vsel %vm5233, 1, 0
    %v5266 = vsel %vm5234, 1, 0
    %v5267 = vsel %vm5235, 1, 0
    %v5268 = vsel %vm5236, 1, 0
    %v5269 = vsel %vm5237, 1, 0
    %v5270 = vsel %vm5238, 1, 0
    %v5271 = vsel %vm5239, 1, 0
    %v5272 = vsel %vm5240, 1, 0
    %v5273 = vsel %vm5241, 1, 0
    %v5274 = vsel %vm5242, 1, 0
    %v5275 = vsel %vm5243, 1, 0
    %v5276 = vsel %vm5244, 1, 0
    %v5277 = vsel %vm5245, 1, 0
    %v5278 = vsel %vm5246, 1, 0
    %v5279 = vsel %vm5247, 1, 0
    %v5280 = vsel %vm5248, 1, 0
    %v5281 = vsel %vm5249, 1, 0
    %v5282 = vsel %vm5250, 1, 0
    %v5283 = vsel %vm5251, 1, 0
    %v5284 = vsel %vm5252, 1, 0
    %v5285 = vsel %vm5253, 1, 0
    %v5286 = vsel %vm5254, 1, 0
    %v5287 = vsel %vm5255, 1, 0
    %v5288 = vsel %vm5256, 1, 0
    %v5289 = vsel %vm5257, 1, 0
    %v5290 = vsel %vm5258, 1, 0
    %v5291 = vsel %vm5259, 1, 0
    %v5292 = vsel %vm5260, 1, 0
    %v5293 = vsel %vm5261, 1, 0
    %v5294 = vcvt.s32.f32 %v5262
    %v5295 = vcvt.s32.f32 %v5263
    %v5296 = vcvt.s32.f32 %v5264
    %v5297 = vcvt.s32.f32 %v5265
    %v5298 = vcvt.s32.f32 %v5266
    %v5299 = vcvt.s32.f32 %v5267
    %v5300 = vcvt.s32.f32 %v5268
    %v5301 = vcvt.s32.f32 %v5269
    %v5302 = vcvt.s32.f32 %v5270
    %v5303 = vcvt.s32.f32 %v5271
    %v5304 = vcvt.s32.f32 %v5272
    %v5305 = vcvt.s32.f32 %v5273
    %v5306 = vcvt.s32.f32 %v5274
    %v5307 = vcvt.s32.f32 %v5275
    %v5308 = vcvt.s32.f32 %v5276
    %v5309 = vcvt.s32.f32 %v5277
    %v5310 = vcvt.s32.f32 %v5278
    %v5311 = vcvt.s32.f32 %v5279
    %v5312 = vcvt.s32.f32 %v5280
    %v5313 = vcvt.s32.f32 %v5281
    %v5314 = vcvt.s32.f32 %v5282
    %v5315 = vcvt.s32.f32 %v5283
    %v5316 = vcvt.s32.f32 %v5284
    %v5317 = vcvt.s32.f32 %v5285
    %v5318 = vcvt.s32.f32 %v5286
    %v5319 = vcvt.s32.f32 %v5287
    %v5320 = vcvt.s32.f32 %v5288
    %v5321 = vcvt.s32.f32 %v5289
    %v5322 = vcvt.s32.f32 %v5290
    %v5323 = vcvt.s32.f32 %v5291
    %v5324 = vcvt.s32.f32 %v5292
    %v5325 = vcvt.s32.f32 %v5293
    %v5326 = vadd.f32 %v5134, %v5294
    %v5327 = vadd.f32 %v5135, %v5295
    %v5328 = vadd.f32 %v5136, %v5296
    %v5329 = vadd.f32 %v5137, %v5297
    %v5330 = vadd.f32 %v5138, %v5298
    %v5331 = vadd.f32 %v5139, %v5299
    %v5332 = vadd.f32 %v5140, %v5300
    %v5333 = vadd.f32 %v5141, %v5301
    %v5334 = vadd.f32 %v5142, %v5302
    %v5335 = vadd.f32 %v5143, %v5303
    %v5336 = vadd.f32 %v5144, %v5304
    %v5337 = vadd.f32 %v5145, %v5305
    %v5338 = vadd.f32 %v5146, %v5306
    %v5339 = vadd.f32 %v5147, %v5307
    %v5340 = vadd.f32 %v5148, %v5308
    %v5341 = vadd.f32 %v5149, %v5309
    %v5342 = vadd.f32 %v5150, %v5310
    %v5343 = vadd.f32 %v5151, %v5311
    %v5344 = vadd.f32 %v5152, %v5312
    %v5345 = vadd.f32 %v5153, %v5313
    %v5346 = vadd.f32 %v5154, %v5314
    %v5347 = vadd.f32 %v5155, %v5315
    %v5348 = vadd.f32 %v5156, %v5316
    %v5349 = vadd.f32 %v5157, %v5317
    %v5350 = vadd.f32 %v5158, %v5318
    %v5351 = vadd.f32 %v5159, %v5319
    %v5352 = vadd.f32 %v5160, %v5320
    %v5353 = vadd.f32 %v5161, %v5321
    %v5354 = vadd.f32 %v5162, %v5322
    %v5355 = vadd.f32 %v5163, %v5323
    %v5356 = vadd.f32 %v5164, %v5324
    %v5357 = vadd.f32 %v5165, %v5325
    %v5358 = vmul.f32 %v4880, %v5326
    %v5359 = vmul.f32 %v4883, %v5327
    %v5360 = vmul.f32 %v4888, %v5328
    %v5361 = vmul.f32 %v4891, %v5329
    %v5362 = vmul.f32 %v4896, %v5330
    %v5363 = vmul.f32 %v4899, %v5331
    %v5364 = vmul.f32 %v4904, %v5332
    %v5365 = vmul.f32 %v4907, %v5333
    %v5366 = vmul.f32 %v4912, %v5334
    %v5367 = vmul.f32 %v4915, %v5335
    %v5368 = vmul.f32 %v4920, %v5336
    %v5369 = vmul.f32 %v4923, %v5337
    %v5370 = vmul.f32 %v4928, %v5338
    %v5371 = vmul.f32 %v4931, %v5339
    %v5372 = vmul.f32 %v4936, %v5340
    %v5373 = vmul.f32 %v4939, %v5341
    %v5374 = vmul.f32 %v4944, %v5342
    %v5375 = vmul.f32 %v4947, %v5343
    %v5376 = vmul.f32 %v4952, %v5344
    %v5377 = vmul.f32 %v4955, %v5345
    %v5378 = vmul.f32 %v4960, %v5346
    %v5379 = vmul.f32 %v4963, %v5347
    %v5380 = vmul.f32 %v4968, %v5348
    %v5381 = vmul.f32 %v4971, %v5349
    %v5382 = vmul.f32 %v4976, %v5350
    %v5383 = vmul.f32 %v4979, %v5351
    %v5384 = vmul.f32 %v4984, %v5352
    %v5385 = vmul.f32 %v4987, %v5353
    %v5386 = vmul.f32 %v4992, %v5354
    %v5387 = vmul.f32 %v4995, %v5355
    %v5388 = vmul.f32 %v5000, %v5356
    %v5389 = vmul.f32 %v5003, %v5357
    %v5390 = vadd.f32 %v5358, %v5359
    %v5391 = vadd.f32 %v5390, %v5360
    %v5392 = vadd.f32 %v5391, %v5361
    %v5393 = vadd.f32 %v5392, %v5362
    %v5394 = vadd.f32 %v5393, %v5363
    %v5395 = vadd.f32 %v5394, %v5364
    %v5396 = vadd.f32 %v5395, %v5365
    %v5397 = vadd.f32 %v5396, %v5366
    %v5398 = vadd.f32 %v5397, %v5367
    %v5399 = vadd.f32 %v5398, %v5368
    %v5400 = vadd.f32 %v5399, %v5369
    %v5401 = vadd.f32 %v5400, %v5370
    %v5402 = vadd.f32 %v5401, %v5371
    %v5403 = vadd.f32 %v5402, %v5372
    %v5404 = vadd.f32 %v5403, %v5373
    %v5405 = vadd.f32 %v5404, %v5374
    %v5406 = vadd.f32 %v5405, %v5375
    %v5407 = vadd.f32 %v5406, %v5376
    %v5408 = vadd.f32 %v5407, %v5377
    %v5409 = vadd.f32 %v5408, %v5378
    %v5410 = vadd.f32 %v5409, %v5379
    %v5411 = vadd.f32 %v5410, %v5380
    %v5412 = vadd.f32 %v5411, %v5381
    %v5413 = vadd.f32 %v5412, %v5382
    %v5414 = vadd.f32 %v5413, %v5383
    %v5415 = vadd.f32 %v5414, %v5384
    %v5416 = vadd.f32 %v5415, %v5385
    %v5417 = vadd.f32 %v5416, %v5386
    %v5418 = vadd.f32 %v5417, %v5387
    %v5419 = vadd.f32 %v5418, %v5388
    %v5420 = vadd.f32 %v5419, %v5389
    %v5421 = vrot.slane %v5420, 4
    %v5422 = vadd.f32 %v5420, %v5421
    %v5423 = vrot.slane %v5422, 2
    %v5424 = vadd.f32 %v5422, %v5423
    %v5425 = vrot.slane %v5424, 1
    %v5426 = vadd.f32 %v5424, %v5425
    %v5427 = vmul.f32 %v4880, %v4880
    %v5428 = vmul.f32 %v4883, %v4883
    %v5429 = vmul.f32 %v4888, %v4888
    %v5430 = vmul.f32 %v4891, %v4891
    %v5431 = vmul.f32 %v4896, %v4896
    %v5432 = vmul.f32 %v4899, %v4899
    %v5433 = vmul.f32 %v4904, %v4904
    %v5434 = vmul.f32 %v4907, %v4907
    %v5435 = vmul.f32 %v4912, %v4912
    %v5436 = vmul.f32 %v4915, %v4915
    %v5437 = vmul.f32 %v4920, %v4920
    %v5438 = vmul.f32 %v4923, %v4923
    %v5439 = vmul.f32 %v4928, %v4928
    %v5440 = vmul.f32 %v4931, %v4931
    %v5441 = vmul.f32 %v4936, %v4936
    %v5442 = vmul.f32 %v4939, %v4939
    %v5443 = vmul.f32 %v4944, %v4944
    %v5444 = vmul.f32 %v4947, %v4947
    %v5445 = vmul.f32 %v4952, %v4952
    %v5446 = vmul.f32 %v4955, %v4955
    %v5447 = vmul.f32 %v4960, %v4960
    %v5448 = vmul.f32 %v4963, %v4963
    %v5449 = vmul.f32 %v4968, %v4968
    %v5450 = vmul.f32 %v4971, %v4971
    %v5451 = vmul.f32 %v4976, %v4976
    %v5452 = vmul.f32 %v4979, %v4979
    %v5453 = vmul.f32 %v4984, %v4984
    %v5454 = vmul.f32 %v4987, %v4987
    %v5455 = vmul.f32 %v4992, %v4992
    %v5456 = vmul.f32 %v4995, %v4995
    %v5457 = vmul.f32 %v5000, %v5000
    %v5458 = vmul.f32 %v5003, %v5003
    %v5459 = vmul.f32 %v5427, %v5326
    %v5460 = vmul.f32 %v5428, %v5327
    %v5461 = vmul.f32 %v5429, %v5328
    %v5462 = vmul.f32 %v5430, %v5329
    %v5463 = vmul.f32 %v5431, %v5330
    %v5464 = vmul.f32 %v5432, %v5331
    %v5465 = vmul.f32 %v5433, %v5332
    %v5466 = vmul.f32 %v5434, %v5333
    %v5467 = vmul.f32 %v5435, %v5334
    %v5468 = vmul.f32 %v5436, %v5335
    %v5469 = vmul.f32 %v5437, %v5336
    %v5470 = vmul.f32 %v5438, %v5337
    %v5471 = vmul.f32 %v5439, %v5338
    %v5472 = vmul.f32 %v5440, %v5339
    %v5473 = vmul.f32 %v5441, %v5340
    %v5474 = vmul.f32 %v5442, %v5341
    %v5475 = vmul.f32 %v5443, %v5342
    %v5476 = vmul.f32 %v5444, %v5343
    %v5477 = vmul.f32 %v5445, %v5344
    %v5478 = vmul.f32 %v5446, %v5345
    %v5479 = vmul.f32 %v5447, %v5346
    %v5480 = vmul.f32 %v5448, %v5347
    %v5481 = vmul.f32 %v5449, %v5348
    %v5482 = vmul.f32 %v5450, %v5349
    %v5483 = vmul.f32 %v5451, %v5350
    %v5484 = vmul.f32 %v5452, %v5351
    %v5485 = vmul.f32 %v5453, %v5352
    %v5486 = vmul.f32 %v5454, %v5353
    %v5487 = vmul.f32 %v5455, %v5354
    %v5488 = vmul.f32 %v5456, %v5355
    %v5489 = vmul.f32 %v5457, %v5356
    %v5490 = vmul.f32 %v5458, %v5357
    %v5491 = vadd.f32 %v5459, %v5460
    %v5492 = vadd.f32 %v5491, %v5461
    %v5493 = vadd.f32 %v5492, %v5462
    %v5494 = vadd.f32 %v5493, %v5463
    %v5495 = vadd.f32 %v5494, %v5464
    %v5496 = vadd.f32 %v5495, %v5465
    %v5497 = vadd.f32 %v5496, %v5466
    %v5498 = vadd.f32 %v5497, %v5467
    %v5499 = vadd.f32 %v5498, %v5468
    %v5500 = vadd.f32 %v5499, %v5469
    %v5501 = vadd.f32 %v5500, %v5470
    %v5502 = vadd.f32 %v5501, %v5471
    %v5503 = vadd.f32 %v5502, %v5472
    %v5504 = vadd.f32 %v5503, %v5473
    %v5505 = vadd.f32 %v5504, %v5474
    %v5506 = vadd.f32 %v5505, %v5475
    %v5507 = vadd.f32 %v5506, %v5476
    %v5508 = vadd.f32 %v5507, %v5477
    %v5509 = vadd.f32 %v5508, %v5478
    %v5510 = vadd.f32 %v5509, %v5479
    %v5511 = vadd.f32 %v5510, %v5480
    %v5512 = vadd.f32 %v5511, %v5481
    %v5513 = vadd.f32 %v5512, %v5482
    %v5514 = vadd.f32 %v5513, %v5483
    %v5515 = vadd.f32 %v5514, %v5484
    %v5516 = vadd.f32 %v5515, %v5485
    %v5517 = vadd.f32 %v5516, %v5486
    %v5518 = vadd.f32 %v5517, %v5487
    %v5519 = vadd.f32 %v5518, %v5488
    %v5520 = vadd.f32 %v5519, %v5489
    %v5521 = vadd.f32 %v5520, %v5490
    %v5522 = vrot.slane %v5521, 4
    %v5523 = vadd.f32 %v5521, %v5522
    %v5524 = vrot.slane %v5523, 2
    %v5525 = vadd.f32 %v5523, %v5524
    %v5526 = vrot.slane %v5525, 1
    %v5527 = vadd.f32 %v5525, %v5526
    %v5528 = vmul.f32 %v5426, 0.0040983604
    %v5529 = vmul.f32 %v5527, 0.0040983604
    %v5530 = vmul.f32 %v5528, %v5528
    %v5531 = vsub.f32 %v5529, %v5530
    %v5532 = vmax.f32 %v5531, 0.0
    %v5533 = vld [vmem:[%s5 + $0x1] sm:$0x1]
    %v5534 = vld [vmem:[%s6 + $0x1] sm:$0x1]
    %v5535 = vadd.f32 %v5532, 1e-05
    %v5536 = vrsqrt.pop %v5535
    %v5537 = vmul.f32 %v5533, %v5536
    %v5538 = vmul.f32 %v5528, %v5537
    %v5539 = vsub.f32 %v5534, %v5538
    %5540 = vst [vmem:[#allocation2] sm:$0xff] %v4880
    %5541 = vst [vmem:[#allocation2 + $0x8] sm:$0xff] %v4883
    %5542 = vst [vmem:[#allocation2 + $0x10] sm:$0xff] %v4888
    %5543 = vst [vmem:[#allocation2 + $0x18] sm:$0xff] %v4891
    %5544 = vst [vmem:[#allocation2 + $0x20] sm:$0xff] %v4896
    %5545 = vst [vmem:[#allocation2 + $0x28] sm:$0xff] %v4899
    %5546 = vst [vmem:[#allocation2 + $0x30] sm:$0xff] %v4904
    %5547 = vst [vmem:[#allocation2 + $0x38] sm:$0xff] %v4907
    %5548 = vst [vmem:[#allocation2 + $0x40] sm:$0xff] %v4912
    %5549 = vst [vmem:[#allocation2 + $0x48] sm:$0xff] %v4915
    %5550 = vst [vmem:[#allocation2 + $0x50] sm:$0xff] %v4920
    %5551 = vst [vmem:[#allocation2 + $0x58] sm:$0xff] %v4923
    %5552 = vst [vmem:[#allocation2 + $0x60] sm:$0xff] %v4928
    %5553 = vst [vmem:[#allocation2 + $0x68] sm:$0xff] %v4931
    %5554 = vst [vmem:[#allocation2 + $0x70] sm:$0xff] %v4936
    %5555 = vst [vmem:[#allocation2 + $0x78] sm:$0xff] %v4939
    %5556 = vst [vmem:[#allocation2 + $0x80] sm:$0xff] %v4944
    %5557 = vst [vmem:[#allocation2 + $0x88] sm:$0xff] %v4947
    %5558 = vst [vmem:[#allocation2 + $0x90] sm:$0xff] %v4952
    %5559 = vst [vmem:[#allocation2 + $0x98] sm:$0xff] %v4955
    %5560 = vst [vmem:[#allocation2 + $0xa0] sm:$0xff] %v4960
    %5561 = vst [vmem:[#allocation2 + $0xa8] sm:$0xff] %v4963
    %5562 = vst [vmem:[#allocation2 + $0xb0] sm:$0xff] %v4968
    %5563 = vst [vmem:[#allocation2 + $0xb8] sm:$0xff] %v4971
    %5564 = vst [vmem:[#allocation2 + $0xc0] sm:$0xff] %v4976
    %5565 = vst [vmem:[#allocation2 + $0xc8] sm:$0xff] %v4979
    %5566 = vst [vmem:[#allocation2 + $0xd0] sm:$0xff] %v4984
    %5567 = vst [vmem:[#allocation2 + $0xd8] sm:$0xff] %v4987
    %5568 = vst [vmem:[#allocation2 + $0xe0] sm:$0xff] %v4992
    %5569 = vst [vmem:[#allocation2 + $0xe8] sm:$0xff] %v4995
    %5570 = vst [vmem:[#allocation2 + $0xf0] sm:$0xff] %v5000
    %5571 = vst [vmem:[#allocation2 + $0xf8] sm:$0xff] %v5003
    %v5572 = vld [vmem:[#allocation2] ss:$4 sm:$0xff]
    %s5573 = scalar_lea.vmem [#allocation2], 32
    %v5574 = vld [vmem:[%s5573] ss:$4 sm:$0xff]
    %s5575 = scalar_lea.vmem [#allocation2], 64
    %v5576 = vld [vmem:[%s5575] ss:$4 sm:$0xff]
    %s5577 = scalar_lea.vmem [#allocation2], 96
    %v5578 = vld [vmem:[%s5577] ss:$4 sm:$0xff]
    %s5579 = scalar_lea.vmem [#allocation2], 128
    %v5580 = vld [vmem:[%s5579] ss:$4 sm:$0xff]
    %s5581 = scalar_lea.vmem [#allocation2], 160
    %v5582 = vld [vmem:[%s5581] ss:$4 sm:$0xff]
    %s5583 = scalar_lea.vmem [#allocation2], 192
    %v5584 = vld [vmem:[%s5583] ss:$4 sm:$0xff]
    %s5585 = scalar_lea.vmem [#allocation2], 224
    %v5586 = vld [vmem:[%s5585] ss:$4 sm:$0xff]
    %v5587 = vld [vmem:[%s3720] ss:$4 sm:$0xff]
    %v5588 = vld [vmem:[%s3722] ss:$4 sm:$0xff]
    %v5589 = vld [vmem:[%s3724] ss:$4 sm:$0xff]
    %v5590 = vld [vmem:[%s3726] ss:$4 sm:$0xff]
    %v5591 = vld [vmem:[%s3728] ss:$4 sm:$0xff]
    %v5592 = vld [vmem:[%s3730] ss:$4 sm:$0xff]
    %v5593 = vld [vmem:[%s3732] ss:$4 sm:$0xff]
    %v5594 = vld [vmem:[%s3734] ss:$4 sm:$0xff]
    %v5595 = vmax.f32 %v5572, %v5587
    %v5596 = vmax.f32 %v5574, %v5588
    %v5597 = vmax.f32 %v5576, %v5589
    %v5598 = vmax.f32 %v5578, %v5590
    %v5599 = vmax.f32 %v5580, %v5591
    %v5600 = vmax.f32 %v5582, %v5592
    %v5601 = vmax.f32 %v5584, %v5593
    %v5602 = vmax.f32 %v5586, %v5594
    %v5603 = vmin.f32 %v5572, %v5587
    %v5604 = vmin.f32 %v5574, %v5588
    %v5605 = vmin.f32 %v5576, %v5589
    %v5606 = vmin.f32 %v5578, %v5590
    %v5607 = vmin.f32 %v5580, %v5591
    %v5608 = vmin.f32 %v5582, %v5592
    %v5609 = vmin.f32 %v5584, %v5593
    %v5610 = vmin.f32 %v5586, %v5594
    %v5611 = vld [vmem:[%s3848] ss:$4 sm:$0xff]
    %v5612 = vld [vmem:[%s3850] ss:$4 sm:$0xff]
    %v5613 = vld [vmem:[%s3852] ss:$4 sm:$0xff]
    %v5614 = vld [vmem:[%s3854] ss:$4 sm:$0xff]
    %v5615 = vld [vmem:[%s3856] ss:$4 sm:$0xff]
    %v5616 = vld [vmem:[%s3858] ss:$4 sm:$0xff]
    %v5617 = vld [vmem:[%s3860] ss:$4 sm:$0xff]
    %v5618 = vld [vmem:[%s3862] ss:$4 sm:$0xff]
    %v5619 = vmax.f32 %v5595, %v5611
    %v5620 = vmax.f32 %v5596, %v5612
    %v5621 = vmax.f32 %v5597, %v5613
    %v5622 = vmax.f32 %v5598, %v5614
    %v5623 = vmax.f32 %v5599, %v5615
    %v5624 = vmax.f32 %v5600, %v5616
    %v5625 = vmax.f32 %v5601, %v5617
    %v5626 = vmax.f32 %v5602, %v5618
    %v5627 = vmin.f32 %v5603, %v5611
    %v5628 = vmin.f32 %v5604, %v5612
    %v5629 = vmin.f32 %v5605, %v5613
    %v5630 = vmin.f32 %v5606, %v5614
    %v5631 = vmin.f32 %v5607, %v5615
    %v5632 = vmin.f32 %v5608, %v5616
    %v5633 = vmin.f32 %v5609, %v5617
    %v5634 = vmin.f32 %v5610, %v5618
    %v5635 = vld [vmem:[%s3976] ss:$4 sm:$0xff]
    %v5636 = vld [vmem:[%s3978] ss:$4 sm:$0xff]
    %v5637 = vld [vmem:[%s3980] ss:$4 sm:$0xff]
    %v5638 = vld [vmem:[%s3982] ss:$4 sm:$0xff]
    %v5639 = vld [vmem:[%s3984] ss:$4 sm:$0xff]
    %v5640 = vld [vmem:[%s3986] ss:$4 sm:$0xff]
    %v5641 = vld [vmem:[%s3988] ss:$4 sm:$0xff]
    %v5642 = vld [vmem:[%s3990] ss:$4 sm:$0xff]
    %v5643 = vmax.f32 %v5619, %v5635
    %v5644 = vmax.f32 %v5620, %v5636
    %v5645 = vmax.f32 %v5621, %v5637
    %v5646 = vmax.f32 %v5622, %v5638
    %v5647 = vmax.f32 %v5623, %v5639
    %v5648 = vmax.f32 %v5624, %v5640
    %v5649 = vmax.f32 %v5625, %v5641
    %v5650 = vmax.f32 %v5626, %v5642
    %v5651 = vmin.f32 %v5627, %v5635
    %v5652 = vmin.f32 %v5628, %v5636
    %v5653 = vmin.f32 %v5629, %v5637
    %v5654 = vmin.f32 %v5630, %v5638
    %v5655 = vmin.f32 %v5631, %v5639
    %v5656 = vmin.f32 %v5632, %v5640
    %v5657 = vmin.f32 %v5633, %v5641
    %v5658 = vmin.f32 %v5634, %v5642
    %vm5659 = vcmp.ge.f32.partialorder %v5537, 0.0
    %v5660 = vsel %vm5659, 1, 0
    %v5661 = vcvt.s32.f32 %v5660
    %v5662 = vlaneseq
    %v5663 = vshrl.u32 %v5662, 7
    %v5664 = vsub.s32 0, %v5663
    %v5665 = vrot.slane %v5661, %v5664
    %v5666 = vmul.f32 %v5643, %v5665
    %v5667 = vmul.f32 %v5644, %v5665
    %v5668 = vmul.f32 %v5645, %v5665
    %v5669 = vmul.f32 %v5646, %v5665
    %v5670 = vmul.f32 %v5647, %v5665
    %v5671 = vmul.f32 %v5648, %v5665
    %v5672 = vmul.f32 %v5649, %v5665
    %v5673 = vmul.f32 %v5650, %v5665
    %v5674 = vsub.f32 1.0, %v5661
    %v5675 = vlaneseq
    %v5676 = vshrl.u32 %v5675, 7
    %v5677 = vsub.s32 0, %v5676
    %v5678 = vrot.slane %v5674, %v5677
    %v5679 = vmul.f32 %v5651, %v5678
    %v5680 = vmul.f32 %v5652, %v5678
    %v5681 = vmul.f32 %v5653, %v5678
    %v5682 = vmul.f32 %v5654, %v5678
    %v5683 = vmul.f32 %v5655, %v5678
    %v5684 = vmul.f32 %v5656, %v5678
    %v5685 = vmul.f32 %v5657, %v5678
    %v5686 = vmul.f32 %v5658, %v5678
    %v5687 = vadd.f32 %v5666, %v5679
    %v5688 = vadd.f32 %v5667, %v5680
    %v5689 = vadd.f32 %v5668, %v5681
    %v5690 = vadd.f32 %v5669, %v5682
    %v5691 = vadd.f32 %v5670, %v5683
    %v5692 = vadd.f32 %v5671, %v5684
    %v5693 = vadd.f32 %v5672, %v5685
    %v5694 = vadd.f32 %v5673, %v5686
    %v5695 = vlaneseq
    %v5696 = vshrl.u32 %v5695, 7
    %v5697 = vsub.s32 0, %v5696
    %v5698 = vrot.slane %v5537, %v5697
    %v5699 = vmul.f32 %v5687, %v5698
    %v5700 = vmul.f32 %v5688, %v5698
    %v5701 = vmul.f32 %v5689, %v5698
    %v5702 = vmul.f32 %v5690, %v5698
    %v5703 = vmul.f32 %v5691, %v5698
    %v5704 = vmul.f32 %v5692, %v5698
    %v5705 = vmul.f32 %v5693, %v5698
    %v5706 = vmul.f32 %v5694, %v5698
    %v5707 = vlaneseq
    %v5708 = vshrl.u32 %v5707, 7
    %v5709 = vsub.s32 0, %v5708
    %v5710 = vrot.slane %v5539, %v5709
    %v5711 = vadd.f32 %v5699, %v5710
    %v5712 = vadd.f32 %v5700, %v5710
    %v5713 = vadd.f32 %v5701, %v5710
    %v5714 = vadd.f32 %v5702, %v5710
    %v5715 = vadd.f32 %v5703, %v5710
    %v5716 = vadd.f32 %v5704, %v5710
    %v5717 = vadd.f32 %v5705, %v5710
    %v5718 = vadd.f32 %v5706, %v5710
    %v5719 = vmax.f32 %v5711, 0.0
    %v5720 = vmax.f32 %v5712, 0.0
    %v5721 = vmax.f32 %v5713, 0.0
    %v5722 = vmax.f32 %v5714, 0.0
    %v5723 = vmax.f32 %v5715, 0.0
    %v5724 = vmax.f32 %v5716, 0.0
    %v5725 = vmax.f32 %v5717, 0.0
    %v5726 = vmax.f32 %v5718, 0.0
    %5727 = vst [vmem:[#allocation3 + $0x108] sm:$0xff] %v5719
    %5728 = vst [vmem:[#allocation3 + $0x110] sm:$0xff] %v5720
    %5729 = vst [vmem:[#allocation3 + $0x118] sm:$0xff] %v5721
    %5730 = vst [vmem:[#allocation3 + $0x120] sm:$0xff] %v5722
    %5731 = vst [vmem:[#allocation3 + $0x128] sm:$0xff] %v5723
    %5732 = vst [vmem:[#allocation3 + $0x130] sm:$0xff] %v5724
    %5733 = vst [vmem:[#allocation3 + $0x138] sm:$0xff] %v5725
    %5734 = vst [vmem:[#allocation3 + $0x140] sm:$0xff] %v5726
    %v5735 = vld [vmem:[#allocation3 + $0x108] sm:$0xff]
    %v5736 = vld [vmem:[#allocation3 + $0x110] sm:$0xff]
    %v5737 = vld [vmem:[#allocation3 + $0x118] sm:$0xff]
    %v5738 = vld [vmem:[#allocation3 + $0x120] sm:$0xff]
    %v5739 = vld [vmem:[#allocation3 + $0x128] sm:$0xff]
    %v5740 = vld [vmem:[#allocation3 + $0x130] sm:$0xff]
    %v5741 = vld [vmem:[#allocation3 + $0x138] sm:$0xff]
    %v5742 = vld [vmem:[#allocation3 + $0x140] sm:$0xff]
    %v5743 = vld [vmem:[#allocation3 + $0x109] sm:$0xff]
    %v5744 = vld [vmem:[#allocation3 + $0x111] sm:$0xff]
    %v5745 = vld [vmem:[#allocation3 + $0x119] sm:$0xff]
    %v5746 = vld [vmem:[#allocation3 + $0x121] sm:$0xff]
    %v5747 = vld [vmem:[#allocation3 + $0x129] sm:$0xff]
    %v5748 = vld [vmem:[#allocation3 + $0x131] sm:$0xff]
    %v5749 = vld [vmem:[#allocation3 + $0x139] sm:$0xff]
    %v5750 = vld [vmem:[#allocation3 + $0x141] sm:$0xff]
    %v5751 = vld [vmem:[#allocation3 + $0x10a] sm:$0xff]
    %v5752 = vld [vmem:[#allocation3 + $0x112] sm:$0xff]
    %v5753 = vld [vmem:[#allocation3 + $0x11a] sm:$0xff]
    %v5754 = vld [vmem:[#allocation3 + $0x122] sm:$0xff]
    %v5755 = vld [vmem:[#allocation3 + $0x12a] sm:$0xff]
    %v5756 = vld [vmem:[#allocation3 + $0x132] sm:$0xff]
    %v5757 = vld [vmem:[#allocation3 + $0x13a] sm:$0xff]
    %v5758 = vld [vmem:[#allocation3 + $0x142] sm:$0xff]
    %v5759 = vpack.c.bf16 %v5736, %v5735
    %v5760 = vpack.c.bf16 %v5744, %v5743
    %v5761 = vpack.c.bf16 %v5752, %v5751
    %v5762 = vpack.c.bf16 %v5738, %v5737
    %v5763 = vpack.c.bf16 %v5746, %v5745
    %v5764 = vpack.c.bf16 %v5754, %v5753
    %v5765 = vpack.c.bf16 %v5740, %v5739
    %v5766 = vpack.c.bf16 %v5748, %v5747
    %v5767 = vpack.c.bf16 %v5756, %v5755
    %v5768 = vpack.c.bf16 %v5742, %v5741
    %v5769 = vpack.c.bf16 %v5750, %v5749
    %v5770 = vpack.c.bf16 %v5758, %v5757
    %v5771 = vld [vmem:[%s3] sm:$0xf]
    %v5772 = vld [vmem:[%s3 + $0x4] sm:$0xf]
    %v5773 = vld [vmem:[%s3 + $0x8] sm:$0xf]
    %v5774 = vld [vmem:[%s3 + $0xc] sm:$0xf]
    %v5775 = vld [vmem:[%s3 + $0x10] sm:$0xf]
    %v5776 = vld [vmem:[%s3 + $0x14] sm:$0xf]
    %v5777 = vld [vmem:[%s3 + $0x18] sm:$0xf]
    %v5778 = vld [vmem:[%s3 + $0x1c] sm:$0xf]
    %v5779 = vld [vmem:[%s3 + $0x20] sm:$0xf]
    %v5780 = vld [vmem:[%s3 + $0x24] sm:$0xf]
    %v5781 = vld [vmem:[%s3 + $0x28] sm:$0xf]
    %v5782 = vld [vmem:[%s3 + $0x2c] sm:$0xf]
    %v5783 = vld [vmem:[%s3 + $0x30] sm:$0xf]
    %v5784 = vld [vmem:[%s3 + $0x34] sm:$0xf]
    %v5785 = vld [vmem:[%s3 + $0x38] sm:$0xf]
    %v5786 = vld [vmem:[%s3 + $0x3c] sm:$0xf]
    %v5787 = vld [vmem:[%s3 + $0x40] sm:$0xf]
    %v5788 = vld [vmem:[%s3 + $0x44] sm:$0xf]
    %v5789 = vld [vmem:[%s3 + $0x48] sm:$0xf]
    %v5790 = vld [vmem:[%s3 + $0x4c] sm:$0xf]
    %v5791 = vld [vmem:[%s3 + $0x50] sm:$0xf]
    %v5792 = vld [vmem:[%s3 + $0x54] sm:$0xf]
    %v5793 = vld [vmem:[%s3 + $0x58] sm:$0xf]
    %v5794 = vld [vmem:[%s3 + $0x5c] sm:$0xf]
    %v5795 = vld [vmem:[%s3 + $0x60] sm:$0xf]
    %v5796 = vld [vmem:[%s3 + $0x64] sm:$0xf]
    %v5797 = vld [vmem:[%s3 + $0x68] sm:$0xf]
    %v5798 = vld [vmem:[%s3 + $0x6c] sm:$0xf]
    %v5799 = vld [vmem:[%s3 + $0x70] sm:$0xf]
    %v5800 = vld [vmem:[%s3 + $0x74] sm:$0xf]
    %v5801 = vld [vmem:[%s3 + $0x78] sm:$0xf]
    %v5802 = vld [vmem:[%s3 + $0x7c] sm:$0xf]
    %v5803 = vld [vmem:[%s3 + $0x80] sm:$0xf]
    %v5804 = vld [vmem:[%s3 + $0x84] sm:$0xf]
    %v5805 = vld [vmem:[%s3 + $0x88] sm:$0xf]
    %v5806 = vld [vmem:[%s3 + $0x8c] sm:$0xf]
    %v5807 = vld [vmem:[%s3 + $0x90] sm:$0xf]
    %v5808 = vld [vmem:[%s3 + $0x94] sm:$0xf]
    %v5809 = vld [vmem:[%s3 + $0x98] sm:$0xf]
    %v5810 = vld [vmem:[%s3 + $0x9c] sm:$0xf]
    %v5811 = vld [vmem:[%s3 + $0xa0] sm:$0xf]
    %v5812 = vld [vmem:[%s3 + $0xa4] sm:$0xf]
    %v5813 = vld [vmem:[%s3 + $0xa8] sm:$0xf]
    %v5814 = vld [vmem:[%s3 + $0xac] sm:$0xf]
    %v5815 = vld [vmem:[%s3 + $0xb0] sm:$0xf]
    %v5816 = vld [vmem:[%s3 + $0xb4] sm:$0xf]
    %v5817 = vld [vmem:[%s3 + $0xb8] sm:$0xf]
    %v5818 = vld [vmem:[%s3 + $0xbc] sm:$0xf]
    %v5867 = vunpack.c.l.b16 %v5771
    %v5868 = vunpack.c.l.b16 %v5772
    %v5869 = vunpack.c.l.b16 %v5773
    %v5870 = vunpack.c.l.b16 %v5774
    %v5871 = vunpack.c.l.b16 %v5775
    %v5872 = vunpack.c.l.b16 %v5776
    %v5873 = vunpack.c.l.b16 %v5777
    %v5874 = vunpack.c.l.b16 %v5778
    %v5875 = vunpack.c.l.b16 %v5779
    %v5876 = vunpack.c.l.b16 %v5780
    %v5877 = vunpack.c.l.b16 %v5781
    %v5878 = vunpack.c.l.b16 %v5782
    %v5879 = vunpack.c.l.b16 %v5783
    %v5880 = vunpack.c.l.b16 %v5784
    %v5881 = vunpack.c.l.b16 %v5785
    %v5882 = vunpack.c.l.b16 %v5786
    %v5883 = vunpack.c.l.b16 %v5787
    %v5884 = vunpack.c.l.b16 %v5788
    %v5885 = vunpack.c.l.b16 %v5789
    %v5886 = vunpack.c.l.b16 %v5790
    %v5887 = vunpack.c.l.b16 %v5791
    %v5888 = vunpack.c.l.b16 %v5792
    %v5889 = vunpack.c.l.b16 %v5793
    %v5890 = vunpack.c.l.b16 %v5794
    %v5891 = vunpack.c.l.b16 %v5795
    %v5892 = vunpack.c.l.b16 %v5796
    %v5893 = vunpack.c.l.b16 %v5797
    %v5894 = vunpack.c.l.b16 %v5798
    %v5895 = vunpack.c.l.b16 %v5799
    %v5896 = vunpack.c.l.b16 %v5800
    %v5897 = vunpack.c.l.b16 %v5801
    %v5898 = vunpack.c.l.b16 %v5802
    %v5899 = vunpack.c.l.b16 %v5803
    %v5900 = vunpack.c.l.b16 %v5804
    %v5901 = vunpack.c.l.b16 %v5805
    %v5902 = vunpack.c.l.b16 %v5806
    %v5903 = vunpack.c.l.b16 %v5807
    %v5904 = vunpack.c.l.b16 %v5808
    %v5905 = vunpack.c.l.b16 %v5809
    %v5906 = vunpack.c.l.b16 %v5810
    %v5907 = vunpack.c.l.b16 %v5811
    %v5908 = vunpack.c.l.b16 %v5812
    %v5909 = vunpack.c.l.b16 %v5813
    %v5910 = vunpack.c.l.b16 %v5814
    %v5911 = vunpack.c.l.b16 %v5815
    %v5912 = vunpack.c.l.b16 %v5816
    %v5913 = vunpack.c.l.b16 %v5817
    %v5914 = vunpack.c.l.b16 %v5818
    %v5915 = vpack.c.b16 %v5868, %v5867
    %v5916 = vpack.c.b16 %v5870, %v5869
    %v5917 = vpack.c.b16 %v5872, %v5871
    %v5918 = vpack.c.b16 %v5874, %v5873
    %v5919 = vpack.c.b16 %v5876, %v5875
    %v5920 = vpack.c.b16 %v5878, %v5877
    %v5921 = vpack.c.b16 %v5880, %v5879
    %v5922 = vpack.c.b16 %v5882, %v5881
    %v5923 = vpack.c.b16 %v5884, %v5883
    %v5924 = vpack.c.b16 %v5886, %v5885
    %v5925 = vpack.c.b16 %v5888, %v5887
    %v5926 = vpack.c.b16 %v5890, %v5889
    %v5927 = vpack.c.b16 %v5892, %v5891
    %v5928 = vpack.c.b16 %v5894, %v5893
    %v5929 = vpack.c.b16 %v5896, %v5895
    %v5930 = vpack.c.b16 %v5898, %v5897
    %v5931 = vpack.c.b16 %v5900, %v5899
    %v5932 = vpack.c.b16 %v5902, %v5901
    %v5933 = vpack.c.b16 %v5904, %v5903
    %v5934 = vpack.c.b16 %v5906, %v5905
    %v5935 = vpack.c.b16 %v5908, %v5907
    %v5936 = vpack.c.b16 %v5910, %v5909
    %v5937 = vpack.c.b16 %v5912, %v5911
    %v5938 = vpack.c.b16 %v5914, %v5913
    %5963 = vmatprep.subr.bf16.mxu0 0
    %5964 = vmatpush1.bf16.msra.mxu0 %v5915
    %5965 = vmatprep.subr.bf16.mxu0 0
    %5966 = vmatpush1.bf16.msra.mxu0 %v5916
    %5967 = vmatprep.subr.bf16.mxu0 0
    %5968 = vmatpush1.bf16.msra.mxu0 %v5917
    %5969 = vmatprep.subr.bf16.mxu0 0
    %5970 = vmatpush1.bf16.msra.mxu0 %v5918
    %5971 = vmatprep.subr.bf16.mxu0 0
    %5972 = vmatpush1.bf16.msra.mxu0 %v5919
    %5973 = vmatprep.subr.bf16.mxu0 0
    %5974 = vmatpush1.bf16.msra.mxu0 %v5920
    %5975 = vmatprep.subr.bf16.mxu0 0
    %5976 = vmatpush1.bf16.msra.mxu0 %v5921
    %5977 = vmatprep.subr.bf16.mxu0 0
    %5978 = vmatpush1.bf16.msra.mxu0 %v5922
    %5979 = vmatprep.subr.bf16.mxu0 0
    %5980 = vmatpush1.bf16.msra.mxu0 %v5923
    %5981 = vmatprep.subr.bf16.mxu0 0
    %5982 = vmatpush1.bf16.msra.mxu0 %v5924
    %5983 = vmatprep.subr.bf16.mxu0 0
    %5984 = vmatpush1.bf16.msra.mxu0 %v5925
    %5985 = vmatprep.subr.bf16.mxu0 0
    %5986 = vmatpush1.bf16.msra.mxu0 %v5926
    %5987 = vmatprep.subr.bf16.mxu0 0
    %5988 = vmatpush1.bf16.msra.mxu0 %v5927
    %5989 = vmatprep.subr.bf16.mxu0 0
    %5990 = vmatpush1.bf16.msra.mxu0 %v5928
    %5991 = vmatprep.subr.bf16.mxu0 0
    %5992 = vmatpush1.bf16.msra.mxu0 %v5929
    %5993 = vmatprep.subr.bf16.mxu0 0
    %5994 = vmatpush1.bf16.msra.mxu0 %v5930
    %5995 = vmatprep.mubr.bf16.mxu0 %v5760
    %5996 = vmatmul.mubr.bf16.gmra.mrb[0].mxu0 %v5759
    %v5997 = vpop.f32.mrb[0].mxu0
    %v5998 = vadd.f32 0.0, %v5997
    %v5999 = vpop.f32.mrb[0].mxu0
    %v6000 = vpop.f32.mrb[0].mxu0
    %v6001 = vadd.f32 0.0, %v6000
    %v6002 = vpop.f32.mrb[0].mxu0
    %6003 = vmatprep.mubr.bf16.mxu0 %v5763
    %6004 = vmatmul.mubr.bf16.gmra.mrb[0].mxu0 %v5762
    %v6005 = vpop.f32.mrb[0].mxu0
    %v6006 = vadd.f32 0.0, %v6005
    %v6007 = vpop.f32.mrb[0].mxu0
    %v6008 = vpop.f32.mrb[0].mxu0
    %v6009 = vadd.f32 0.0, %v6008
    %v6010 = vpop.f32.mrb[0].mxu0
    %6011 = vmatprep.mubr.bf16.mxu0 %v5766
    %6012 = vmatmul.mubr.bf16.gmra.mrb[0].mxu0 %v5765
    %v6013 = vpop.f32.mrb[0].mxu0
    %v6014 = vadd.f32 0.0, %v6013
    %v6015 = vpop.f32.mrb[0].mxu0
    %v6016 = vpop.f32.mrb[0].mxu0
    %v6017 = vadd.f32 0.0, %v6016
    %v6018 = vpop.f32.mrb[0].mxu0
    %6019 = vmatprep.mubr.bf16.mxu0 %v5769
    %6020 = vmatmul.mubr.bf16.gmra.mrb[0].mxu0 %v5768
    %v6021 = vpop.f32.mrb[0].mxu0
    %v6022 = vadd.f32 0.0, %v6021
    %v6023 = vpop.f32.mrb[0].mxu0
    %v6024 = vpop.f32.mrb[0].mxu0
    %v6025 = vadd.f32 0.0, %v6024
    %v6026 = vpop.f32.mrb[0].mxu0
    %6027 = vdwg.mxu0
    %6028 = vmatprep.subr.bf16.mxu0 0
    %6029 = vmatpush1.bf16.msra.mxu0 %v5931
    %6030 = vmatprep.subr.bf16.mxu0 0
    %6031 = vmatpush1.bf16.msra.mxu0 %v5932
    %6032 = vmatprep.subr.bf16.mxu0 0
    %6033 = vmatpush1.bf16.msra.mxu0 %v5933
    %6034 = vmatprep.subr.bf16.mxu0 0
    %6035 = vmatpush1.bf16.msra.mxu0 %v5934
    %6036 = vmatprep.subr.bf16.mxu0 0
    %6037 = vmatpush1.bf16.msra.mxu0 %v5935
    %6038 = vmatprep.subr.bf16.mxu0 0
    %6039 = vmatpush1.bf16.msra.mxu0 %v5936
    %6040 = vmatprep.subr.bf16.mxu0 0
    %6041 = vmatpush1.bf16.msra.mxu0 %v5937
    %6042 = vmatprep.subr.bf16.mxu0 0
    %6043 = vmatpush1.bf16.msra.mxu0 %v5938
    %6044 = vmatprep.subr.bf16.mxu0 0
    %6045 = vmatpush1.bf16.msra.mxu0 0
    %6046 = vmatprep.subr.bf16.mxu0 0
    %6047 = vmatpush1.bf16.msra.mxu0 0
    %6048 = vmatprep.subr.bf16.mxu0 0
    %6049 = vmatpush1.bf16.msra.mxu0 0
    %6050 = vmatprep.subr.bf16.mxu0 0
    %6051 = vmatpush1.bf16.msra.mxu0 0
    %6052 = vmatprep.subr.bf16.mxu0 0
    %6053 = vmatpush1.bf16.msra.mxu0 0
    %6054 = vmatprep.subr.bf16.mxu0 0
    %6055 = vmatpush1.bf16.msra.mxu0 0
    %6056 = vmatprep.subr.bf16.mxu0 0
    %6057 = vmatpush1.bf16.msra.mxu0 0
    %6058 = vmatprep.subr.bf16.mxu0 0
    %6059 = vmatpush1.bf16.msra.mxu0 0
    %6060 = vmatprep.mubr.bf16.mxu0 0
    %6061 = vmatmul.mubr.bf16.gmra.mrb[0].mxu0 %v5761
    %v6062 = vpop.f32.mrb[0].mxu0
    %v6063 = vadd.f32 %v5998, %v6062
    %v6064 = vpop.f32.mrb[0].mxu0
    %v6065 = vpop.f32.mrb[0].mxu0
    %v6066 = vadd.f32 %v6001, %v6065
    %v6067 = vpop.f32.mrb[0].mxu0
    %6068 = vmatprep.mubr.bf16.mxu0 0
    %6069 = vmatmul.mubr.bf16.gmra.mrb[0].mxu0 %v5764
    %v6070 = vpop.f32.mrb[0].mxu0
    %v6071 = vadd.f32 %v6006, %v6070
    %v6072 = vpop.f32.mrb[0].mxu0
    %v6073 = vpop.f32.mrb[0].mxu0
    %v6074 = vadd.f32 %v6009, %v6073
    %v6075 = vpop.f32.mrb[0].mxu0
    %6076 = vmatprep.mubr.bf16.mxu0 0
    %6077 = vmatmul.mubr.bf16.gmra.mrb[0].mxu0 %v5767
    %v6078 = vpop.f32.mrb[0].mxu0
    %v6079 = vadd.f32 %v6014, %v6078
    %v6080 = vpop.f32.mrb[0].mxu0
    %v6081 = vpop.f32.mrb[0].mxu0
    %v6082 = vadd.f32 %v6017, %v6081
    %v6083 = vpop.f32.mrb[0].mxu0
    %6084 = vmatprep.mubr.bf16.mxu0 0
    %6085 = vmatmul.mubr.bf16.gmra.mrb[0].mxu0 %v5770
    %v6086 = vpop.f32.mrb[0].mxu0
    %v6087 = vadd.f32 %v6022, %v6086
    %v6088 = vpop.f32.mrb[0].mxu0
    %v6089 = vpop.f32.mrb[0].mxu0
    %v6090 = vadd.f32 %v6025, %v6089
    %v6091 = vpop.f32.mrb[0].mxu0
    %6092 = vdwg.mxu0
    %vm6093 = vcmp.lt.s32.totalorder %v1203, 28
    %vm6094 = vcmp.lt.s32.totalorder %v1204, 28
    %vm6095 = vcmp.lt.s32.totalorder %v1205, 28
    %vm6096 = vcmp.lt.s32.totalorder %v1206, 28
    %vm6097 = vcmp.lt.s32.totalorder %v1207, 28
    %vm6098 = vcmp.lt.s32.totalorder %v1208, 28
    %vm6099 = vcmp.lt.s32.totalorder %v1209, 28
    %vm6100 = vcmp.lt.s32.totalorder %v1210, 28
    %vm6101 = vmand %vm1331, %vm6093
    %vm6102 = vmand %vm1332, %vm6094
    %vm6103 = vmand %vm1333, %vm6095
    %vm6104 = vmand %vm1334, %vm6096
    %vm6105 = vmand %vm1335, %vm6097
    %vm6106 = vmand %vm1336, %vm6098
    %vm6107 = vmand %vm1337, %vm6099
    %vm6108 = vmand %vm1338, %vm6100
    %v6109 = vsel %vm6101, 1, 0
    %v6110 = vsel %vm6102, 1, 0
    %v6111 = vsel %vm6103, 1, 0
    %v6112 = vsel %vm6104, 1, 0
    %v6113 = vsel %vm6105, 1, 0
    %v6114 = vsel %vm6106, 1, 0
    %v6115 = vsel %vm6107, 1, 0
    %v6116 = vsel %vm6108, 1, 0
    %v6117 = vcvt.s32.f32 %v6109
    %v6118 = vcvt.s32.f32 %v6110
    %v6119 = vcvt.s32.f32 %v6111
    %v6120 = vcvt.s32.f32 %v6112
    %v6121 = vcvt.s32.f32 %v6113
    %v6122 = vcvt.s32.f32 %v6114
    %v6123 = vcvt.s32.f32 %v6115
    %v6124 = vcvt.s32.f32 %v6116
    %v6125 = vadd.f32 %v6117, 0.0
    %v6126 = vadd.f32 %v6118, 0.0
    %v6127 = vadd.f32 %v6119, 0.0
    %v6128 = vadd.f32 %v6120, 0.0
    %v6129 = vadd.f32 %v6121, 0.0
    %v6130 = vadd.f32 %v6122, 0.0
    %v6131 = vadd.f32 %v6123, 0.0
    %v6132 = vadd.f32 %v6124, 0.0
    %vm6133 = vcmp.ge.s32.totalorder %v1203, 32
    %vm6134 = vcmp.ge.s32.totalorder %v1204, 32
    %vm6135 = vcmp.ge.s32.totalorder %v1205, 32
    %vm6136 = vcmp.ge.s32.totalorder %v1206, 32
    %vm6137 = vcmp.ge.s32.totalorder %v1207, 32
    %vm6138 = vcmp.ge.s32.totalorder %v1208, 32
    %vm6139 = vcmp.ge.s32.totalorder %v1209, 32
    %vm6140 = vcmp.ge.s32.totalorder %v1210, 32
    %vm6141 = vcmp.lt.s32.totalorder %v1203, 60
    %vm6142 = vcmp.lt.s32.totalorder %v1204, 60
    %vm6143 = vcmp.lt.s32.totalorder %v1205, 60
    %vm6144 = vcmp.lt.s32.totalorder %v1206, 60
    %vm6145 = vcmp.lt.s32.totalorder %v1207, 60
    %vm6146 = vcmp.lt.s32.totalorder %v1208, 60
    %vm6147 = vcmp.lt.s32.totalorder %v1209, 60
    %vm6148 = vcmp.lt.s32.totalorder %v1210, 60
    %vm6149 = vmand %vm6133, %vm6141
    %vm6150 = vmand %vm6134, %vm6142
    %vm6151 = vmand %vm6135, %vm6143
    %vm6152 = vmand %vm6136, %vm6144
    %vm6153 = vmand %vm6137, %vm6145
    %vm6154 = vmand %vm6138, %vm6146
    %vm6155 = vmand %vm6139, %vm6147
    %vm6156 = vmand %vm6140, %vm6148
    %v6157 = vsel %vm6149, 1, 0
    %v6158 = vsel %vm6150, 1, 0
    %v6159 = vsel %vm6151, 1, 0
    %v6160 = vsel %vm6152, 1, 0
    %v6161 = vsel %vm6153, 1, 0
    %v6162 = vsel %vm6154, 1, 0
    %v6163 = vsel %vm6155, 1, 0
    %v6164 = vsel %vm6156, 1, 0
    %v6165 = vcvt.s32.f32 %v6157
    %v6166 = vcvt.s32.f32 %v6158
    %v6167 = vcvt.s32.f32 %v6159
    %v6168 = vcvt.s32.f32 %v6160
    %v6169 = vcvt.s32.f32 %v6161
    %v6170 = vcvt.s32.f32 %v6162
    %v6171 = vcvt.s32.f32 %v6163
    %v6172 = vcvt.s32.f32 %v6164
    %v6173 = vadd.f32 %v6125, %v6165
    %v6174 = vadd.f32 %v6126, %v6166
    %v6175 = vadd.f32 %v6127, %v6167
    %v6176 = vadd.f32 %v6128, %v6168
    %v6177 = vadd.f32 %v6129, %v6169
    %v6178 = vadd.f32 %v6130, %v6170
    %v6179 = vadd.f32 %v6131, %v6171
    %v6180 = vadd.f32 %v6132, %v6172
    %v6181 = vmul.f32 %v6063, %v6173
    %v6182 = vmul.f32 %v6066, %v6174
    %v6183 = vmul.f32 %v6071, %v6175
    %v6184 = vmul.f32 %v6074, %v6176
    %v6185 = vmul.f32 %v6079, %v6177
    %v6186 = vmul.f32 %v6082, %v6178
    %v6187 = vmul.f32 %v6087, %v6179
    %v6188 = vmul.f32 %v6090, %v6180
    %v6189 = vadd.f32 %v6181, %v6182
    %v6190 = vadd.f32 %v6189, %v6183
    %v6191 = vadd.f32 %v6190, %v6184
    %v6192 = vadd.f32 %v6191, %v6185
    %v6193 = vadd.f32 %v6192, %v6186
    %v6194 = vadd.f32 %v6193, %v6187
    %v6195 = vadd.f32 %v6194, %v6188
    %v6196 = vrot.slane %v6195, 4
    %v6197 = vadd.f32 %v6195, %v6196
    %v6198 = vrot.slane %v6197, 2
    %v6199 = vadd.f32 %v6197, %v6198
    %v6200 = vrot.slane %v6199, 1
    %v6201 = vadd.f32 %v6199, %v6200
    %v6202 = vmul.f32 %v6063, %v6063
    %v6203 = vmul.f32 %v6066, %v6066
    %v6204 = vmul.f32 %v6071, %v6071
    %v6205 = vmul.f32 %v6074, %v6074
    %v6206 = vmul.f32 %v6079, %v6079
    %v6207 = vmul.f32 %v6082, %v6082
    %v6208 = vmul.f32 %v6087, %v6087
    %v6209 = vmul.f32 %v6090, %v6090
    %v6210 = vmul.f32 %v6202, %v6173
    %v6211 = vmul.f32 %v6203, %v6174
    %v6212 = vmul.f32 %v6204, %v6175
    %v6213 = vmul.f32 %v6205, %v6176
    %v6214 = vmul.f32 %v6206, %v6177
    %v6215 = vmul.f32 %v6207, %v6178
    %v6216 = vmul.f32 %v6208, %v6179
    %v6217 = vmul.f32 %v6209, %v6180
    %v6218 = vadd.f32 %v6210, %v6211
    %v6219 = vadd.f32 %v6218, %v6212
    %v6220 = vadd.f32 %v6219, %v6213
    %v6221 = vadd.f32 %v6220, %v6214
    %v6222 = vadd.f32 %v6221, %v6215
    %v6223 = vadd.f32 %v6222, %v6216
    %v6224 = vadd.f32 %v6223, %v6217
    %v6225 = vrot.slane %v6224, 4
    %v6226 = vadd.f32 %v6224, %v6225
    %v6227 = vrot.slane %v6226, 2
    %v6228 = vadd.f32 %v6226, %v6227
    %v6229 = vrot.slane %v6228, 1
    %v6230 = vadd.f32 %v6228, %v6229
    %v6231 = vmul.f32 %v6201, 0.017857144
    %v6232 = vmul.f32 %v6230, 0.017857144
    %v6233 = vmul.f32 %v6231, %v6231
    %v6234 = vsub.f32 %v6232, %v6233
    %v6235 = vmax.f32 %v6234, 0.0
    %v6236 = vld [vmem:[%s5 + $0x2] sm:$0x1]
    %v6237 = vld [vmem:[%s6 + $0x2] sm:$0x1]
    %v6238 = vadd.f32 %v6235, 1e-05
    %v6239 = vrsqrt.pop %v6238
    %v6240 = vmul.f32 %v6236, %v6239
    %v6241 = vmul.f32 %v6231, %v6240
    %v6242 = vsub.f32 %v6237, %v6241
    %6243 = vst [vmem:[#allocation2] sm:$0xff] %v6063
    %6244 = vst [vmem:[#allocation2 + $0x8] sm:$0xff] %v6066
    %6245 = vst [vmem:[#allocation2 + $0x10] sm:$0xff] %v6071
    %6246 = vst [vmem:[#allocation2 + $0x18] sm:$0xff] %v6074
    %6247 = vst [vmem:[#allocation2 + $0x20] sm:$0xff] %v6079
    %6248 = vst [vmem:[#allocation2 + $0x28] sm:$0xff] %v6082
    %6249 = vst [vmem:[#allocation2 + $0x30] sm:$0xff] %v6087
    %6250 = vst [vmem:[#allocation2 + $0x38] sm:$0xff] %v6090
    %v6251 = vld [vmem:[#allocation2] ss:$4 sm:$0xff]
    %v6252 = vld [vmem:[%s5573] ss:$4 sm:$0xff]
    %v6253 = vld [vmem:[%s3720] ss:$4 sm:$0xff]
    %v6254 = vld [vmem:[%s3722] ss:$4 sm:$0xff]
    %v6255 = vmax.f32 %v6251, %v6253
    %v6256 = vmax.f32 %v6252, %v6254
    %v6257 = vmin.f32 %v6251, %v6253
    %v6258 = vmin.f32 %v6252, %v6254
    %v6259 = vld [vmem:[%s3848] ss:$4 sm:$0xff]
    %v6260 = vld [vmem:[%s3850] ss:$4 sm:$0xff]
    %v6261 = vmax.f32 %v6255, %v6259
    %v6262 = vmax.f32 %v6256, %v6260
    %v6263 = vmin.f32 %v6257, %v6259
    %v6264 = vmin.f32 %v6258, %v6260
    %v6265 = vld [vmem:[%s3976] ss:$4 sm:$0xff]
    %v6266 = vld [vmem:[%s3978] ss:$4 sm:$0xff]
    %v6267 = vmax.f32 %v6261, %v6265
    %v6268 = vmax.f32 %v6262, %v6266
    %v6269 = vmin.f32 %v6263, %v6265
    %v6270 = vmin.f32 %v6264, %v6266
    %vm6271 = vcmp.ge.f32.partialorder %v6240, 0.0
    %v6272 = vsel %vm6271, 1, 0
    %v6273 = vcvt.s32.f32 %v6272
    %v6274 = vlaneseq
    %v6275 = vshrl.u32 %v6274, 7
    %v6276 = vsub.s32 0, %v6275
    %v6277 = vrot.slane %v6273, %v6276
    %v6278 = vmul.f32 %v6267, %v6277
    %v6279 = vmul.f32 %v6268, %v6277
    %v6280 = vsub.f32 1.0, %v6273
    %v6281 = vlaneseq
    %v6282 = vshrl.u32 %v6281, 7
    %v6283 = vsub.s32 0, %v6282
    %v6284 = vrot.slane %v6280, %v6283
    %v6285 = vmul.f32 %v6269, %v6284
    %v6286 = vmul.f32 %v6270, %v6284
    %v6287 = vadd.f32 %v6278, %v6285
    %v6288 = vadd.f32 %v6279, %v6286
    %v6289 = vlaneseq
    %v6290 = vshrl.u32 %v6289, 7
    %v6291 = vsub.s32 0, %v6290
    %v6292 = vrot.slane %v6240, %v6291
    %v6293 = vmul.f32 %v6287, %v6292
    %v6294 = vmul.f32 %v6288, %v6292
    %v6295 = vlaneseq
    %v6296 = vshrl.u32 %v6295, 7
    %v6297 = vsub.s32 0, %v6296
    %v6298 = vrot.slane %v6242, %v6297
    %v6299 = vadd.f32 %v6293, %v6298
    %v6300 = vadd.f32 %v6294, %v6298
    %v6301 = vmax.f32 %v6299, 0.0
    %v6302 = vmax.f32 %v6300, 0.0
    %6303 = vst [vmem:[#allocation3 + $0x150] sm:$0xff] %v6301
    %6304 = vst [vmem:[#allocation3 + $0x158] sm:$0xff] %v6302
    %v6305 = vld [vmem:[#allocation3 + $0x150] sm:$0xff]
    %v6306 = vld [vmem:[#allocation3 + $0x158] sm:$0xff]
    %v6307 = vld [vmem:[#allocation3 + $0x151] sm:$0xff]
    %v6308 = vld [vmem:[#allocation3 + $0x159] sm:$0xff]
    %v6309 = vld [vmem:[#allocation3 + $0x152] sm:$0xff]
    %v6310 = vld [vmem:[#allocation3 + $0x15a] sm:$0xff]
    %v6311 = vpack.c.bf16 %v6306, %v6305
    %v6312 = vpack.c.bf16 %v6308, %v6307
    %v6313 = vpack.c.bf16 %v6310, %v6309
    %v6314 = vld [vmem:[%s4] sm:$0xf]
    %v6315 = vld [vmem:[%s4 + $0x4] sm:$0xf]
    %v6316 = vld [vmem:[%s4 + $0x8] sm:$0xf]
    %v6317 = vld [vmem:[%s4 + $0xc] sm:$0xf]
    %v6318 = vld [vmem:[%s4 + $0x10] sm:$0xf]
    %v6319 = vld [vmem:[%s4 + $0x14] sm:$0xf]
    %v6320 = vld [vmem:[%s4 + $0x18] sm:$0xf]
    %v6321 = vld [vmem:[%s4 + $0x1c] sm:$0xf]
    %v6322 = vld [vmem:[%s4 + $0x20] sm:$0xf]
    %v6323 = vld [vmem:[%s4 + $0x24] sm:$0xf]
    %v6324 = vld [vmem:[%s4 + $0x28] sm:$0xf]
    %v6325 = vld [vmem:[%s4 + $0x2c] sm:$0xf]
    %v6326 = vld [vmem:[%s4 + $0x30] sm:$0xf]
    %v6327 = vld [vmem:[%s4 + $0x34] sm:$0xf]
    %v6328 = vld [vmem:[%s4 + $0x38] sm:$0xf]
    %v6329 = vld [vmem:[%s4 + $0x3c] sm:$0xf]
    %v6330 = vld [vmem:[%s4 + $0x40] sm:$0xf]
    %v6331 = vld [vmem:[%s4 + $0x44] sm:$0xf]
    %v6332 = vld [vmem:[%s4 + $0x48] sm:$0xf]
    %v6333 = vld [vmem:[%s4 + $0x4c] sm:$0xf]
    %v6334 = vld [vmem:[%s4 + $0x50] sm:$0xf]
    %v6335 = vld [vmem:[%s4 + $0x54] sm:$0xf]
    %v6336 = vld [vmem:[%s4 + $0x58] sm:$0xf]
    %v6337 = vld [vmem:[%s4 + $0x5c] sm:$0xf]
    %v6338 = vld [vmem:[%s4 + $0x60] sm:$0xf]
    %v6339 = vld [vmem:[%s4 + $0x64] sm:$0xf]
    %v6340 = vld [vmem:[%s4 + $0x68] sm:$0xf]
    %v6341 = vld [vmem:[%s4 + $0x6c] sm:$0xf]
    %v6342 = vld [vmem:[%s4 + $0x70] sm:$0xf]
    %v6343 = vld [vmem:[%s4 + $0x74] sm:$0xf]
    %v6344 = vld [vmem:[%s4 + $0x78] sm:$0xf]
    %v6345 = vld [vmem:[%s4 + $0x7c] sm:$0xf]
    %v6346 = vld [vmem:[%s4 + $0x80] sm:$0xf]
    %v6347 = vld [vmem:[%s4 + $0x84] sm:$0xf]
    %v6348 = vld [vmem:[%s4 + $0x88] sm:$0xf]
    %v6349 = vld [vmem:[%s4 + $0x8c] sm:$0xf]
    %v6350 = vld [vmem:[%s4 + $0x90] sm:$0xf]
    %v6351 = vld [vmem:[%s4 + $0x94] sm:$0xf]
    %v6352 = vld [vmem:[%s4 + $0x98] sm:$0xf]
    %v6353 = vld [vmem:[%s4 + $0x9c] sm:$0xf]
    %v6354 = vld [vmem:[%s4 + $0xa0] sm:$0xf]
    %v6355 = vld [vmem:[%s4 + $0xa4] sm:$0xf]
    %v6356 = vld [vmem:[%s4 + $0xa8] sm:$0xf]
    %v6357 = vld [vmem:[%s4 + $0xac] sm:$0xf]
    %v6358 = vld [vmem:[%s4 + $0xb0] sm:$0xf]
    %v6359 = vld [vmem:[%s4 + $0xb4] sm:$0xf]
    %v6360 = vld [vmem:[%s4 + $0xb8] sm:$0xf]
    %v6361 = vld [vmem:[%s4 + $0xbc] sm:$0xf]
    %v6410 = vunpack.c.l.b16 %v6314
    %v6411 = vunpack.c.l.b16 %v6315
    %v6412 = vunpack.c.l.b16 %v6316
    %v6413 = vunpack.c.l.b16 %v6317
    %v6414 = vunpack.c.l.b16 %v6318
    %v6415 = vunpack.c.l.b16 %v6319
    %v6416 = vunpack.c.l.b16 %v6320
    %v6417 = vunpack.c.l.b16 %v6321
    %v6418 = vunpack.c.l.b16 %v6322
    %v6419 = vunpack.c.l.b16 %v6323
    %v6420 = vunpack.c.l.b16 %v6324
    %v6421 = vunpack.c.l.b16 %v6325
    %v6422 = vunpack.c.l.b16 %v6326
    %v6423 = vunpack.c.l.b16 %v6327
    %v6424 = vunpack.c.l.b16 %v6328
    %v6425 = vunpack.c.l.b16 %v6329
    %v6426 = vunpack.c.l.b16 %v6330
    %v6427 = vunpack.c.l.b16 %v6331
    %v6428 = vunpack.c.l.b16 %v6332
    %v6429 = vunpack.c.l.b16 %v6333
    %v6430 = vunpack.c.l.b16 %v6334
    %v6431 = vunpack.c.l.b16 %v6335
    %v6432 = vunpack.c.l.b16 %v6336
    %v6433 = vunpack.c.l.b16 %v6337
    %v6434 = vunpack.c.l.b16 %v6338
    %v6435 = vunpack.c.l.b16 %v6339
    %v6436 = vunpack.c.l.b16 %v6340
    %v6437 = vunpack.c.l.b16 %v6341
    %v6438 = vunpack.c.l.b16 %v6342
    %v6439 = vunpack.c.l.b16 %v6343
    %v6440 = vunpack.c.l.b16 %v6344
    %v6441 = vunpack.c.l.b16 %v6345
    %v6442 = vunpack.c.l.b16 %v6346
    %v6443 = vunpack.c.l.b16 %v6347
    %v6444 = vunpack.c.l.b16 %v6348
    %v6445 = vunpack.c.l.b16 %v6349
    %v6446 = vunpack.c.l.b16 %v6350
    %v6447 = vunpack.c.l.b16 %v6351
    %v6448 = vunpack.c.l.b16 %v6352
    %v6449 = vunpack.c.l.b16 %v6353
    %v6450 = vunpack.c.l.b16 %v6354
    %v6451 = vunpack.c.l.b16 %v6355
    %v6452 = vunpack.c.l.b16 %v6356
    %v6453 = vunpack.c.l.b16 %v6357
    %v6454 = vunpack.c.l.b16 %v6358
    %v6455 = vunpack.c.l.b16 %v6359
    %v6456 = vunpack.c.l.b16 %v6360
    %v6457 = vunpack.c.l.b16 %v6361
    %v6458 = vpack.c.b16 %v6411, %v6410
    %v6459 = vpack.c.b16 %v6413, %v6412
    %v6460 = vpack.c.b16 %v6415, %v6414
    %v6461 = vpack.c.b16 %v6417, %v6416
    %v6462 = vpack.c.b16 %v6419, %v6418
    %v6463 = vpack.c.b16 %v6421, %v6420
    %v6464 = vpack.c.b16 %v6423, %v6422
    %v6465 = vpack.c.b16 %v6425, %v6424
    %v6466 = vpack.c.b16 %v6427, %v6426
    %v6467 = vpack.c.b16 %v6429, %v6428
    %v6468 = vpack.c.b16 %v6431, %v6430
    %v6469 = vpack.c.b16 %v6433, %v6432
    %v6470 = vpack.c.b16 %v6435, %v6434
    %v6471 = vpack.c.b16 %v6437, %v6436
    %v6472 = vpack.c.b16 %v6439, %v6438
    %v6473 = vpack.c.b16 %v6441, %v6440
    %v6474 = vpack.c.b16 %v6443, %v6442
    %v6475 = vpack.c.b16 %v6445, %v6444
    %v6476 = vpack.c.b16 %v6447, %v6446
    %v6477 = vpack.c.b16 %v6449, %v6448
    %v6478 = vpack.c.b16 %v6451, %v6450
    %v6479 = vpack.c.b16 %v6453, %v6452
    %v6480 = vpack.c.b16 %v6455, %v6454
    %v6481 = vpack.c.b16 %v6457, %v6456
    %6506 = vmatprep.subr.bf16.mxu0 0
    %6507 = vmatpush1.bf16.msra.mxu0 %v6458
    %6508 = vmatprep.subr.bf16.mxu0 0
    %6509 = vmatpush1.bf16.msra.mxu0 %v6459
    %6510 = vmatprep.subr.bf16.mxu0 0
    %6511 = vmatpush1.bf16.msra.mxu0 %v6460
    %6512 = vmatprep.subr.bf16.mxu0 0
    %6513 = vmatpush1.bf16.msra.mxu0 %v6461
    %6514 = vmatprep.subr.bf16.mxu0 0
    %6515 = vmatpush1.bf16.msra.mxu0 %v6462
    %6516 = vmatprep.subr.bf16.mxu0 0
    %6517 = vmatpush1.bf16.msra.mxu0 %v6463
    %6518 = vmatprep.subr.bf16.mxu0 0
    %6519 = vmatpush1.bf16.msra.mxu0 %v6464
    %6520 = vmatprep.subr.bf16.mxu0 0
    %6521 = vmatpush1.bf16.msra.mxu0 %v6465
    %6522 = vmatprep.subr.bf16.mxu0 0
    %6523 = vmatpush1.bf16.msra.mxu0 %v6466
    %6524 = vmatprep.subr.bf16.mxu0 0
    %6525 = vmatpush1.bf16.msra.mxu0 %v6467
    %6526 = vmatprep.subr.bf16.mxu0 0
    %6527 = vmatpush1.bf16.msra.mxu0 %v6468
    %6528 = vmatprep.subr.bf16.mxu0 0
    %6529 = vmatpush1.bf16.msra.mxu0 %v6469
    %6530 = vmatprep.subr.bf16.mxu0 0
    %6531 = vmatpush1.bf16.msra.mxu0 %v6470
    %6532 = vmatprep.subr.bf16.mxu0 0
    %6533 = vmatpush1.bf16.msra.mxu0 %v6471
    %6534 = vmatprep.subr.bf16.mxu0 0
    %6535 = vmatpush1.bf16.msra.mxu0 %v6472
    %6536 = vmatprep.subr.bf16.mxu0 0
    %6537 = vmatpush1.bf16.msra.mxu0 %v6473
    %6538 = vmatprep.mubr.bf16.mxu0 %v6312
    %6539 = vmatmul.mubr.bf16.gmra.mrb[0].mxu0 %v6311
    %v6540 = vpop.f32.mrb[0].mxu0
    %v6541 = vadd.f32 0.0, %v6540
    %v6542 = vpop.f32.mrb[0].mxu0
    %v6543 = vpop.f32.mrb[0].mxu0
    %v6544 = vadd.f32 0.0, %v6543
    %v6545 = vpop.f32.mrb[0].mxu0
    %6546 = vdwg.mxu0
    %6547 = vmatprep.subr.bf16.mxu0 0
    %6548 = vmatpush1.bf16.msra.mxu0 %v6474
    %6549 = vmatprep.subr.bf16.mxu0 0
    %6550 = vmatpush1.bf16.msra.mxu0 %v6475
    %6551 = vmatprep.subr.bf16.mxu0 0
    %6552 = vmatpush1.bf16.msra.mxu0 %v6476
    %6553 = vmatprep.subr.bf16.mxu0 0
    %6554 = vmatpush1.bf16.msra.mxu0 %v6477
    %6555 = vmatprep.subr.bf16.mxu0 0
    %6556 = vmatpush1.bf16.msra.mxu0 %v6478
    %6557 = vmatprep.subr.bf16.mxu0 0
    %6558 = vmatpush1.bf16.msra.mxu0 %v6479
    %6559 = vmatprep.subr.bf16.mxu0 0
    %6560 = vmatpush1.bf16.msra.mxu0 %v6480
    %6561 = vmatprep.subr.bf16.mxu0 0
    %6562 = vmatpush1.bf16.msra.mxu0 %v6481
    %6563 = vmatprep.subr.bf16.mxu0 0
    %6564 = vmatpush1.bf16.msra.mxu0 0
    %6565 = vmatprep.subr.bf16.mxu0 0
    %6566 = vmatpush1.bf16.msra.mxu0 0
    %6567 = vmatprep.subr.bf16.mxu0 0
    %6568 = vmatpush1.bf16.msra.mxu0 0
    %6569 = vmatprep.subr.bf16.mxu0 0
    %6570 = vmatpush1.bf16.msra.mxu0 0
    %6571 = vmatprep.subr.bf16.mxu0 0
    %6572 = vmatpush1.bf16.msra.mxu0 0
    %6573 = vmatprep.subr.bf16.mxu0 0
    %6574 = vmatpush1.bf16.msra.mxu0 0
    %6575 = vmatprep.subr.bf16.mxu0 0
    %6576 = vmatpush1.bf16.msra.mxu0 0
    %6577 = vmatprep.subr.bf16.mxu0 0
    %6578 = vmatpush1.bf16.msra.mxu0 0
    %6579 = vmatprep.mubr.bf16.mxu0 0
    %6580 = vmatmul.mubr.bf16.gmra.mrb[0].mxu0 %v6313
    %v6581 = vpop.f32.mrb[0].mxu0
    %v6582 = vadd.f32 %v6541, %v6581
    %v6583 = vpop.f32.mrb[0].mxu0
    %v6584 = vpop.f32.mrb[0].mxu0
    %v6585 = vadd.f32 %v6544, %v6584
    %v6586 = vpop.f32.mrb[0].mxu0
    %6587 = vdwg.mxu0
    %vm6588 = vcmp.lt.s32.totalorder %v1203, 5
    %vm6589 = vcmp.lt.s32.totalorder %v1204, 5
    %vm6590 = vmand %vm1331, %vm6588
    %vm6591 = vmand %vm1332, %vm6589
    %v6592 = vsel %vm6590, 1, 0
    %v6593 = vsel %vm6591, 1, 0
    %v6594 = vcvt.s32.f32 %v6592
    %v6595 = vcvt.s32.f32 %v6593
    %v6596 = vadd.f32 %v6594, 0.0
    %v6597 = vadd.f32 %v6595, 0.0
    %vm6598 = vcmp.ge.s32.totalorder %v1203, 8
    %vm6599 = vcmp.ge.s32.totalorder %v1204, 8
    %vm6600 = vcmp.lt.s32.totalorder %v1203, 13
    %vm6601 = vcmp.lt.s32.totalorder %v1204, 13
    %vm6602 = vmand %vm6598, %vm6600
    %vm6603 = vmand %vm6599, %vm6601
    %v6604 = vsel %vm6602, 1, 0
    %v6605 = vsel %vm6603, 1, 0
    %v6606 = vcvt.s32.f32 %v6604
    %v6607 = vcvt.s32.f32 %v6605
    %v6608 = vadd.f32 %v6596, %v6606
    %v6609 = vadd.f32 %v6597, %v6607
    %v6610 = vmul.f32 %v6582, %v6608
    %v6611 = vmul.f32 %v6585, %v6609
    %v6612 = vadd.f32 %v6610, %v6611
    %v6613 = vrot.slane %v6612, 4
    %v6614 = vadd.f32 %v6612, %v6613
    %v6615 = vrot.slane %v6614, 2
    %v6616 = vadd.f32 %v6614, %v6615
    %v6617 = vrot.slane %v6616, 1
    %v6618 = vadd.f32 %v6616, %v6617
    %v6619 = vmul.f32 %v6582, %v6582
    %v6620 = vmul.f32 %v6585, %v6585
    %v6621 = vmul.f32 %v6619, %v6608
    %v6622 = vmul.f32 %v6620, %v6609
    %v6623 = vadd.f32 %v6621, %v6622
    %v6624 = vrot.slane %v6623, 4
    %v6625 = vadd.f32 %v6623, %v6624
    %v6626 = vrot.slane %v6625, 2
    %v6627 = vadd.f32 %v6625, %v6626
    %v6628 = vrot.slane %v6627, 1
    %v6629 = vadd.f32 %v6627, %v6628
    %v6630 = vmul.f32 %v6618, 0.1
    %v6631 = vmul.f32 %v6629, 0.1
    %v6632 = vmul.f32 %v6630, %v6630
    %v6633 = vsub.f32 %v6631, %v6632
    %v6634 = vmax.f32 %v6633, 0.0
    %v6635 = vld [vmem:[%s5 + $0x3] sm:$0x1]
    %v6636 = vld [vmem:[%s6 + $0x3] sm:$0x1]
    %v6637 = vadd.f32 %v6634, 1e-05
    %v6638 = vrsqrt.pop %v6637
    %v6639 = vmul.f32 %v6635, %v6638
    %v6640 = vmul.f32 %v6630, %v6639
    %v6641 = vsub.f32 %v6636, %v6640
    %6642 = vst [vmem:[#allocation2] sm:$0xff] %v6582
    %6643 = vst [vmem:[#allocation2 + $0x8] sm:$0xff] %v6585
    %v6644 = vld [vmem:[#allocation2] ss:$4 sm:$0xf]
    %v6645 = vld [vmem:[%s3720] ss:$4 sm:$0xf]
    %v6646 = vmax.f32 %v6644, %v6645
    %v6647 = vmin.f32 %v6644, %v6645
    %v6648 = vld [vmem:[%s3848] ss:$4 sm:$0xf]
    %v6649 = vmax.f32 %v6646, %v6648
    %v6650 = vmin.f32 %v6647, %v6648
    %v6651 = vld [vmem:[%s3976] ss:$4 sm:$0xf]
    %v6652 = vmax.f32 %v6649, %v6651
    %v6653 = vmin.f32 %v6650, %v6651
    %vm6654 = vcmp.ge.f32.partialorder %v6639, 0.0
    %v6655 = vsel %vm6654, 1, 0
    %v6656 = vcvt.s32.f32 %v6655
    %v6657 = vlaneseq
    %v6658 = vshrl.u32 %v6657, 7
    %v6659 = vsub.s32 0, %v6658
    %v6660 = vrot.slane %v6656, %v6659
    %v6661 = vmul.f32 %v6652, %v6660
    %v6662 = vsub.f32 1.0, %v6656
    %v6663 = vlaneseq
    %v6664 = vshrl.u32 %v6663, 7
    %v6665 = vsub.s32 0, %v6664
    %v6666 = vrot.slane %v6662, %v6665
    %v6667 = vmul.f32 %v6653, %v6666
    %v6668 = vadd.f32 %v6661, %v6667
    %v6669 = vlaneseq
    %v6670 = vshrl.u32 %v6669, 7
    %v6671 = vsub.s32 0, %v6670
    %v6672 = vrot.slane %v6639, %v6671
    %v6673 = vmul.f32 %v6668, %v6672
    %v6674 = vlaneseq
    %v6675 = vshrl.u32 %v6674, 7
    %v6676 = vsub.s32 0, %v6675
    %v6677 = vrot.slane %v6641, %v6676
    %v6678 = vadd.f32 %v6673, %v6677
    %v6679 = vmax.f32 %v6678, 0.0
    %6680 = vst [vmem:[#allocation3 + $0x168] sm:$0xf] %v6679
    %v6681 = vld [vmem:[#allocation3 + $0x168] sm:$0x1]
    %v6682 = vadd.f32 %v6681, 0.0
    %v6683 = vld [vmem:[#allocation3 + $0x16a] sm:$0x1]
    %v6684 = vadd.f32 %v6683, 0.0
    %v6686 = vrot.slane %v6684, 7
    %vm6688 = vcmask 1040384
    %v6689 = vsel %vm6688, %v6682, %v6686
    %v6690 = vld [vmem:[%s7] sm:$0xff]
    %v6691 = vld [vmem:[%s7 + $0x8] sm:$0xff]
    %v6692 = vld [vmem:[%s7 + $0x10] sm:$0xff]
    %v6693 = vld [vmem:[%s7 + $0x18] sm:$0xff]
    %v6694 = vld [vmem:[%s7 + $0x20] sm:$0xff]
    %v6695 = vld [vmem:[%s7 + $0x28] sm:$0xff]
    %v6696 = vld [vmem:[%s7 + $0x30] sm:$0xff]
    %v6697 = vld [vmem:[%s7 + $0x38] sm:$0xff]
    %v6698 = vld [vmem:[%s7 + $0x40] sm:$0xff]
    %v6699 = vld [vmem:[%s7 + $0x48] sm:$0xff]
    %v6700 = vld [vmem:[%s7 + $0x50] sm:$0xff]
    %v6701 = vld [vmem:[%s7 + $0x58] sm:$0xff]
    %v6702 = vld [vmem:[%s7 + $0x60] sm:$0xff]
    %v6703 = vld [vmem:[%s7 + $0x68] sm:$0xff]
    %v6704 = vld [vmem:[%s7 + $0x70] sm:$0xff]
    %v6705 = vld [vmem:[%s7 + $0x78] sm:$0xff]
    %v6706 = vld [vmem:[%s8] sm:$0x1]
    %v6708 = vlaneseq
    %v6709 = vshrl.u32 %v6708, 7
    %v6710 = vsub.s32 0, %v6709
    %v6711 = vrot.slane %v6706, %v6710
    %6713 = vmatprep.subr.mxu0 0.0
    %6714 = vmatpush1.msra.mxu0 %v6690
    %6715 = vmatprep.subr.mxu0 0.0
    %6716 = vmatpush1.msra.mxu0 %v6691
    %6717 = vmatprep.subr.mxu0 0.0
    %6718 = vmatpush1.msra.mxu0 %v6692
    %6719 = vmatprep.subr.mxu0 0.0
    %6720 = vmatpush1.msra.mxu0 %v6693
    %6721 = vmatprep.subr.mxu0 0.0
    %6722 = vmatpush1.msra.mxu0 %v6694
    %6723 = vmatprep.subr.mxu0 0.0
    %6724 = vmatpush1.msra.mxu0 %v6695
    %6725 = vmatprep.subr.mxu0 0.0
    %6726 = vmatpush1.msra.mxu0 %v6696
    %6727 = vmatprep.subr.mxu0 0.0
    %6728 = vmatpush1.msra.mxu0 %v6697
    %6729 = vmatprep.subr.mxu0 0.0
    %6730 = vmatpush1.msra.mxu0 %v6698
    %6731 = vmatprep.subr.mxu0 0.0
    %6732 = vmatpush1.msra.mxu0 %v6699
    %6733 = vmatprep.subr.mxu0 0.0
    %6734 = vmatpush1.msra.mxu0 %v6700
    %6735 = vmatprep.subr.mxu0 0.0
    %6736 = vmatpush1.msra.mxu0 %v6701
    %6737 = vmatprep.subr.mxu0 0.0
    %6738 = vmatpush1.msra.mxu0 %v6702
    %6739 = vmatprep.subr.mxu0 0.0
    %6740 = vmatpush1.msra.mxu0 %v6703
    %6741 = vmatprep.subr.mxu0 0.0
    %6742 = vmatpush1.msra.mxu0 %v6704
    %6743 = vmatprep.subr.mxu0 0.0
    %6744 = vmatpush1.msra.mxu0 %v6705
    %6745 = vmatprep.subr.mxu0 0.0
    %6746 = vmatpush1.msra.mxu0 0.0
    %6747 = vmatprep.subr.mxu0 0.0
    %6748 = vmatpush1.msra.mxu0 0.0
    %6749 = vmatprep.subr.mxu0 0.0
    %6750 = vmatpush1.msra.mxu0 0.0
    %6751 = vmatprep.subr.mxu0 0.0
    %6752 = vmatpush1.msra.mxu0 0.0
    %6753 = vmatprep.subr.mxu0 0.0
    %6754 = vmatpush1.msra.mxu0 0.0
    %6755 = vmatprep.subr.mxu0 0.0
    %6756 = vmatpush1.msra.mxu0 0.0
    %6757 = vmatprep.subr.mxu0 0.0
    %6758 = vmatpush1.msra.mxu0 0.0
    %6759 = vmatprep.subr.mxu0 0.0
    %6760 = vmatpush1.msra.mxu0 0.0
    %6761 = vmatprep.subr.mxu0 0.0
    %6762 = vmatpush1.msra.mxu0 0.0
    %6763 = vmatprep.subr.mxu0 0.0
    %6764 = vmatpush1.msra.mxu0 0.0
    %6765 = vmatprep.subr.mxu0 0.0
    %6766 = vmatpush1.msra.mxu0 0.0
    %6767 = vmatprep.subr.mxu0 0.0
    %6768 = vmatpush1.msra.mxu0 0.0
    %6769 = vmatprep.subr.mxu0 0.0
    %6770 = vmatpush1.msra.mxu0 0.0
    %6771 = vmatprep.subr.mxu0 0.0
    %6772 = vmatpush1.msra.mxu0 0.0
    %6773 = vmatprep.subr.mxu0 0.0
    %6774 = vmatpush1.msra.mxu0 0.0
    %6775 = vmatprep.subr.mxu0 0.0
    %6776 = vmatpush1.msra.mxu0 0.0
    %6777 = vmatprep.mubr.f32.mxu0 0.0
    %6778 = vmatmul.mubr.f32.gmra.mrb[0].mxu0 %v6689
    %v6779 = vpop.f32.mrb[0].mxu0
    %v6780 = vadd.f32 %v6711, %v6779
    %v6781 = vpop.f32.mrb[0].mxu0
    %6782 = vdwg.mxu0
    %vm6783 = vcmask 1041408
    %v6784 = vsel %vm6783, %v6780, -inf
    %6785 = vmax.xlane.f32.xlu0 %v6784
    %v6786 = vpop.xlane.xlu0 %6785
    %v6787 = vsub.f32 %v6780, %v6786
    %v6788 = vmul.f32 %v6787, 1.442695
    %v6789 = vpow.pop %v6788
    %v6790 = vsel %vm6783, %v6789, 0.0
    %6791 = vadd.xlane.f32.xlu0 %v6790
    %v6792 = vpop.xlane.xlu0 %6791
    %v6793 = vlog2.pop %v6792
    %v6794 = vmul.f32 %v6793, 0.6931472
    %v6795 = vsub.f32 %v6787, %v6794
    %6796 = vst [vmem:[#allocation4] sm:$0x3] %v6795
    // Predicated region
    $region38: #{m5_forward.1} parent=1 // pred_check
      _
    $region39: #{m5_forward.1} parent=1 // pred_check_branch
      %6798 = sbr.rel (0) target = $region41
    $region40: #{m5_forward.1} parent=1 // pred_region
      %s6800 = ssub.s32 32, 32
      %6801 = vsyncadd [#allocation5], %s6800
      %s6803 = sshll.u32 [#allocation4], 4
      %s6804 = int_to_ptr.vmem [resolvable:$true] %s6803
      %6806 = dma.vmem_to_hbm [thread:$0]  %s6804, 32, %s9, [#allocation5]
    $region41: #{m5_forward.1} parent=1 // pred_fallthru
      _
    // Predicated region
    $region42: #{m5_forward.1} parent=1 // pred_check
      _
    $region43: #{m5_forward.1} parent=1 // pred_check_branch
      %6808 = sbr.rel (0) target = $region45
    $region44: #{m5_forward.1} parent=1 // pred_region
      %6809 = dma.done [#allocation5], 32
    $region45: #{m5_forward.1} parent=1 // pred_fallthru
      _
    %6810 = vsyncpa [#allocation5], 1

</llo_original>
